<compile_context>
chip_gen: v5e
topology: v5e:2x2
jax: 0.10.0
libtpu: 0.0.40
codegen_flags: <defaults>
</compile_context>

<pallas_src>
import jax
import jax.numpy as jnp
from jax.experimental import pallas as pl
from jax.experimental.pallas import tpu as pltpu

EPS = 1e-5
_VMEM = pl.BlockSpec(memory_space=pltpu.MemorySpace.VMEM)


# --------------------------- shared epilogue ---------------------------------
def _bn_relu_epilogue(y, g, b):
    """Training-mode BatchNorm (biased variance) over all rows per channel + ReLU.

    y: (P, N, CO) f32 covering every output pixel exactly once.
    g, b: (1, CO) f32.
    """
    m = jnp.mean(jnp.mean(y, axis=0), axis=0, keepdims=True)                # (1, CO)
    v = jnp.mean(jnp.mean((y - m) ** 2, axis=0), axis=0, keepdims=True)     # (1, CO)
    return jnp.maximum((y - m) * jax.lax.rsqrt(v + EPS) * g + b, 0.0)


# ----------------------- kernel 1: fc1 + transConv1 --------------------------
def _fc_conv1_kernel(x_ref, wfc_ref, bfc_ref, w1_ref, g_ref, b_ref, o_ref):
    P, _, _ = w1_ref.shape                       # P = 16 spatial positions
    B = x_ref.shape[0]
    h = jnp.dot(x_ref[...], wfc_ref[...],
                preferred_element_type=jnp.float32) + bfc_ref[...]          # (B, 384) f32
    hb = jnp.broadcast_to(h.astype(jnp.bfloat16)[None], (P, B, h.shape[1]))
    # (16, B, 384) @ (16, 384, 192) -> (16, B, 192); p = oh*4 + ow
    y = jnp.einsum("pbc,pcd->pbd", hb, w1_ref[...],
                   preferred_element_type=jnp.float32)
    o_ref[...] = _bn_relu_epilogue(y, g_ref[...], b_ref[...]).astype(o_ref.dtype)


# ------------------ kernel 2: phase deconv + BN + ReLU ------------------------
def _phase_bn_relu_kernel(p_ref, w_ref, g_ref, b_ref, o_ref):
    # (4, N, 4*CI) @ (4, 4*CI, CO) -> (4, N, CO), f32 accumulate on the MXU.
    y = jnp.einsum("pnc,pcd->pnd", p_ref[...], w_ref[...],
                   preferred_element_type=jnp.float32)
    o_ref[...] = _bn_relu_epilogue(y, g_ref[...], b_ref[...]).astype(o_ref.dtype)


# ------------------ kernel 3: phase deconv + tanh (lane-dense) ----------------
def _phase_tanh_kernel(w_ref, p_ref, o_ref):
    # (4, CO, 4*CI) @ (4, 4*CI, N) -> (4, CO, N): output lane dim = N (dense).
    y = jnp.einsum("pdc,pcn->pdn", w_ref[...], p_ref[...],
                   preferred_element_type=jnp.float32)
    o_ref[...] = jnp.tanh(y)


# --------------------------- layer wrappers -----------------------------------
def _phase_deconv_bn_relu(a, W, gamma, beta):
    """ConvTranspose2d(k=4, s=2, p=1, bias=False) + BN + ReLU, NHWC in/out."""
    B, H, Wd, CI = a.shape
    CO = W.shape[1]
    N = B * H * Wd
    ap = jnp.pad(a, ((0, 0), (1, 1), (1, 1), (0, 0)))
    patches, wtaps = [], []
    for ph in (0, 1):
        for pw in (0, 1):
            pt = [ap[:, ph + dh:ph + dh + H, pw + dw:pw + dw + Wd, :]
                  for dh in (0, 1) for dw in (0, 1)]
            patches.append(jnp.concatenate(pt, axis=-1).reshape(N, 4 * CI))
            wt = [W[:, :, 3 - ph - 2 * dh, 3 - pw - 2 * dw]
                  for dh in (0, 1) for dw in (0, 1)]
            wtaps.append(jnp.concatenate(wt, axis=0))
    patches = jnp.stack(patches).astype(jnp.bfloat16)       # (4, N, 4*CI)
    wtaps = jnp.stack(wtaps).astype(jnp.bfloat16)           # (4, 4*CI, CO)

    y = pl.pallas_call(
        _phase_bn_relu_kernel,
        out_shape=jax.ShapeDtypeStruct((4, N, CO), jnp.bfloat16),
        in_specs=[_VMEM] * 4,
        out_specs=_VMEM,
    )(patches, wtaps, gamma.reshape(1, CO), beta.reshape(1, CO))

    # interleave phases: (ph, pw, b, i, j, co) -> (b, 2i+ph, 2j+pw, co)
    y = y.reshape(2, 2, B, H, Wd, CO)
    return jnp.transpose(y, (2, 3, 0, 4, 1, 5)).reshape(B, 2 * H, 2 * Wd, CO)


def _phase_deconv_tanh_nchw(a, W):
    """Final ConvTranspose2d(k=4, s=2, p=1) + Tanh; lane-dense, returns NCHW f32."""
    B, H, Wd, CI = a.shape
    CO = W.shape[1]
    N = B * H * Wd
    ap = jnp.pad(a, ((0, 0), (1, 1), (1, 1), (0, 0)))
    apT = jnp.transpose(ap, (3, 0, 1, 2))                    # (CI, B, H+2, W+2)
    patches, wtaps = [], []
    for ph in (0, 1):
        for pw in (0, 1):
            pt = [apT[:, :, ph + dh:ph + dh + H, pw + dw:pw + dw + Wd].reshape(CI, N)
                  for dh in (0, 1) for dw in (0, 1)]
            patches.append(jnp.concatenate(pt, axis=0))       # (4*CI, N)
            wt = [W[:, :, 3 - ph - 2 * dh, 3 - pw - 2 * dw].T
                  for dh in (0, 1) for dw in (0, 1)]
            wtaps.append(jnp.concatenate(wt, axis=1))         # (CO, 4*CI)
    patches = jnp.stack(patches).astype(jnp.bfloat16)         # (4, 4*CI, N)
    wtaps = jnp.stack(wtaps).astype(jnp.bfloat16)             # (4, CO, 4*CI)

    y = pl.pallas_call(
        _phase_tanh_kernel,
        out_shape=jax.ShapeDtypeStruct((4, CO, N), jnp.float32),
        in_specs=[_VMEM] * 2,
        out_specs=_VMEM,
    )(wtaps, patches)

    # (ph, pw, co, b, i, j) -> (b, co, 2i+ph, 2j+pw)  == NCHW directly.
    y = y.reshape(2, 2, CO, B, H, Wd)
    return jnp.transpose(y, (3, 2, 4, 0, 5, 1)).reshape(B, CO, 2 * H, 2 * Wd)


# ------------------------------ parameters ------------------------------------
def init_params(key):
    ks = jax.random.split(key, 6)
    p = {}
    p["fc_w"] = 0.05 * jax.random.normal(ks[0], (110, 384), jnp.float32)
    p["fc_b"] = 0.05 * jax.random.normal(ks[1], (384,), jnp.float32)
    convs = [(384, 192), (192, 96), (96, 48), (48, 3)]
    for i, (ci, co) in enumerate(convs):
        p[f"w{i + 1}"] = 0.02 * jax.random.normal(ks[2 + i], (ci, co, 4, 4),
                                                  jnp.float32)
        if i < 3:   # BN only on the first three blocks
            p[f"g{i + 1}"] = jnp.ones((co,), jnp.float32)
            p[f"b{i + 1}"] = jnp.zeros((co,), jnp.float32)
    return p


# ------------------------------ forward pass -----------------------------------
def generator_32_forward(x, params):
    x2 = x.reshape(-1, 110)
    B = x2.shape[0]

    # fused fc1 + transConv1 (1x1 spatial input => pure matmul) + BN + ReLU
    w1t = jnp.transpose(params["w1"], (2, 3, 0, 1)).reshape(16, 384, 192)
    y1 = pl.pallas_call(
        _fc_conv1_kernel,
        out_shape=jax.ShapeDtypeStruct((16, B, 192), jnp.bfloat16),
        in_specs=[_VMEM] * 6,
        out_specs=_VMEM,
    )(
        x2.astype(jnp.bfloat16),
        params["fc_w"].astype(jnp.bfloat16),
        params["fc_b"].reshape(1, 384),
        w1t.astype(jnp.bfloat16),
        params["g1"].reshape(1, 192),
        params["b1"].reshape(1, 192),
    )
    a = jnp.transpose(y1, (1, 0, 2)).reshape(B, 4, 4, 192)                  # NHWC
    a = _phase_deconv_bn_relu(a, params["w2"], params["g2"], params["b2"])  # (B,8,8,96)
    a = _phase_deconv_bn_relu(a, params["w3"], params["g3"], params["b3"])  # (B,16,16,48)
    return _phase_deconv_tanh_nchw(a, params["w4"])                         # (B,3,32,32)


# ---------------------- pure-JAX reference (self-check) ------------------------
def _ref_forward(x, p):
    x2 = x.reshape(-1, 110)
    B = x2.shape[0]
    h = jnp.dot(x2.astype(jnp.bfloat16), p["fc_w"].astype(jnp.bfloat16),
                preferred_element_type=jnp.float32) + p["fc_b"]
    a = h.reshape(B, 1, 1, 384)

    def convt(a, W, stride, pad):
        K = W.shape[2]
        wt = jnp.transpose(jnp.flip(W, (2, 3)), (2, 3, 0, 1)).astype(jnp.bfloat16)
        return jax.lax.conv_general_dilated(
            a.astype(jnp.bfloat16), wt, window_strides=(1, 1),
            padding=[(K - 1 - pad, K - 1 - pad)] * 2,
            lhs_dilation=(stride, stride),
            dimension_numbers=("NHWC", "HWIO", "NHWC"),
            preferred_element_type=jnp.float32)

    def bn_relu(y, g, b):
        m = jnp.mean(y, axis=(0, 1, 2), keepdims=True)
        v = jnp.mean((y - m) ** 2, axis=(0, 1, 2), keepdims=True)
        return jnp.maximum((y - m) * jax.lax.rsqrt(v + EPS) * g + b, 0.0)

    a = bn_relu(convt(a, p["w1"], 1, 0), p["g1"], p["b1"])
    a = bn_relu(convt(a, p["w2"], 2, 1), p["g2"], p["b2"])
    a = bn_relu(convt(a, p["w3"], 2, 1), p["g3"], p["b3"])
    a = jnp.tanh(convt(a, p["w4"], 2, 1))
    return jnp.transpose(a, (0, 3, 1, 2))


if __name__ == "__main__":
    x = jax.random.normal(jax.random.PRNGKey(0), (2, 110), jnp.float32)  # latent+label
    params = init_params(jax.random.PRNGKey(1234))

    out = jax.block_until_ready(jax.jit(generator_32_forward)(x, params))
    assert out.shape == (2, 3, 32, 32), out.shape
    assert bool(jnp.all(jnp.isfinite(out)))

    ref = jax.block_until_ready(jax.jit(_ref_forward)(x, params))
    err = float(jnp.max(jnp.abs(out - ref)))
    assert err < 2e-2, f"max abs err vs reference: {err}"

    print("KERNEL_OK")
</pallas_src>

<mosaic_0001>
module attributes {stable_mosaic.version = 11 : i64} {
  func.func @_fc_conv1_kernel(%arg0: memref<2x110xbf16, #tpu.memory_space<vmem>>, %arg1: memref<110x384xbf16, #tpu.memory_space<vmem>>, %arg2: memref<1x384xf32, #tpu.memory_space<vmem>>, %arg3: memref<16x384x192xbf16, #tpu.memory_space<vmem>>, %arg4: memref<1x192xf32, #tpu.memory_space<vmem>>, %arg5: memref<1x192xf32, #tpu.memory_space<vmem>>, %arg6: memref<16x2x192xbf16, #tpu.memory_space<vmem>>) attributes {dimension_semantics = [], scalar_prefetch = 0 : i64, scratch_operands = 0 : i64, tpu.core_type = #tpu.core_type<tc>} {
    %c0 = arith.constant 0 : index
    %c0_0 = arith.constant 0 : index
    %0 = vector.load %arg0[%c0, %c0_0] : memref<2x110xbf16, #tpu.memory_space<vmem>>, vector<2x110xbf16>
    %c0_1 = arith.constant 0 : index
    %c0_2 = arith.constant 0 : index
    %1 = vector.load %arg1[%c0_1, %c0_2] : memref<110x384xbf16, #tpu.memory_space<vmem>>, vector<110x384xbf16>
    %cst = arith.constant dense<0.000000e+00> : vector<2x384xf32>
    %2 = tpu.matmul %0, %1, %cst {dimension_numbers = #tpu.dot_dimension_numbers<[1], [0], [0], [1], [0, 0, 1, 1], [], []>} : vector<2x110xbf16>, vector<110x384xbf16>, vector<2x384xf32> -> vector<2x384xf32>
    %c0_3 = arith.constant 0 : index
    %c0_4 = arith.constant 0 : index
    %3 = vector.load %arg2[%c0_3, %c0_4] : memref<1x384xf32, #tpu.memory_space<vmem>>, vector<1x384xf32>
    %4 = vector.broadcast %3 : vector<1x384xf32> to vector<2x384xf32>
    %5 = arith.addf %2, %4 : vector<2x384xf32>
    %6 = arith.truncf %5 : vector<2x384xf32> to vector<2x384xbf16>
    %7 = vector.shape_cast %6 : vector<2x384xbf16> to vector<1x2x384xbf16>
    %8 = vector.shape_cast %7 : vector<1x2x384xbf16> to vector<1x2x384xbf16>
    %9 = vector.broadcast %8 : vector<1x2x384xbf16> to vector<16x2x384xbf16>
    %c0_5 = arith.constant 0 : index
    %c0_6 = arith.constant 0 : index
    %c0_7 = arith.constant 0 : index
    %10 = vector.load %arg3[%c0_5, %c0_6, %c0_7] : memref<16x384x192xbf16, #tpu.memory_space<vmem>>, vector<16x384x192xbf16>
    "tpu.trace_start"() <{level = 10 : i32, message = "pbc,pcd->pbd"}> : () -> ()
    %cst_8 = arith.constant dense<0.000000e+00> : vector<16x2x192xf32>
    %11 = tpu.matmul %9, %10, %cst_8 {dimension_numbers = #tpu.dot_dimension_numbers<[2], [1], [1], [2], [0, 0, 0, 1, 1, 2], [0], [0]>} : vector<16x2x384xbf16>, vector<16x384x192xbf16>, vector<16x2x192xf32> -> vector<16x2x192xf32>
    "tpu.trace_stop"() : () -> ()
    %c0_9 = arith.constant 0 : index
    %c0_10 = arith.constant 0 : index
    %12 = vector.load %arg4[%c0_9, %c0_10] : memref<1x192xf32, #tpu.memory_space<vmem>>, vector<1x192xf32>
    %c0_11 = arith.constant 0 : index
    %c0_12 = arith.constant 0 : index
    %13 = vector.load %arg5[%c0_11, %c0_12] : memref<1x192xf32, #tpu.memory_space<vmem>>, vector<1x192xf32>
    %cst_13 = arith.constant dense<0.000000e+00> : vector<2x192xf32>
    %14 = vector.multi_reduction <add>, %11, %cst_13 [0] : vector<16x2x192xf32> to vector<2x192xf32>
    %cst_14 = arith.constant 1.600000e+01 : f32
    %15 = vector.broadcast %cst_14 : f32 to vector<2x192xf32>
    %16 = arith.divf %14, %15 : vector<2x192xf32>
    %cst_15 = arith.constant dense<0.000000e+00> : vector<192xf32>
    %17 = vector.multi_reduction <add>, %16, %cst_15 [0] : vector<2x192xf32> to vector<192xf32>
    %18 = vector.shape_cast %17 : vector<192xf32> to vector<1x192xf32>
    %cst_16 = arith.constant 2.000000e+00 : f32
    %19 = vector.broadcast %cst_16 : f32 to vector<1x192xf32>
    %20 = arith.divf %18, %19 : vector<1x192xf32>
    %21 = vector.shape_cast %20 : vector<1x192xf32> to vector<1x1x192xf32>
    %22 = vector.broadcast %21 : vector<1x1x192xf32> to vector<16x2x192xf32>
    %23 = arith.subf %11, %22 : vector<16x2x192xf32>
    %24 = arith.mulf %23, %23 : vector<16x2x192xf32>
    %cst_17 = arith.constant dense<0.000000e+00> : vector<2x192xf32>
    %25 = vector.multi_reduction <add>, %24, %cst_17 [0] : vector<16x2x192xf32> to vector<2x192xf32>
    %cst_18 = arith.constant 1.600000e+01 : f32
    %26 = vector.broadcast %cst_18 : f32 to vector<2x192xf32>
    %27 = arith.divf %25, %26 : vector<2x192xf32>
    %cst_19 = arith.constant dense<0.000000e+00> : vector<192xf32>
    %28 = vector.multi_reduction <add>, %27, %cst_19 [0] : vector<2x192xf32> to vector<192xf32>
    %29 = vector.shape_cast %28 : vector<192xf32> to vector<1x192xf32>
    %cst_20 = arith.constant 2.000000e+00 : f32
    %30 = vector.broadcast %cst_20 : f32 to vector<1x192xf32>
    %31 = arith.divf %29, %30 : vector<1x192xf32>
    %32 = vector.shape_cast %20 : vector<1x192xf32> to vector<1x1x192xf32>
    %33 = vector.broadcast %32 : vector<1x1x192xf32> to vector<16x2x192xf32>
    %34 = arith.subf %11, %33 : vector<16x2x192xf32>
    %cst_21 = arith.constant 9.99999974E-6 : f32
    %35 = vector.broadcast %cst_21 : f32 to vector<1x192xf32>
    %36 = arith.addf %31, %35 : vector<1x192xf32>
    %37 = math.rsqrt %36 : vector<1x192xf32>
    %38 = vector.shape_cast %37 : vector<1x192xf32> to vector<1x1x192xf32>
    %39 = vector.broadcast %38 : vector<1x1x192xf32> to vector<16x2x192xf32>
    %40 = arith.mulf %34, %39 : vector<16x2x192xf32>
    %41 = vector.shape_cast %12 : vector<1x192xf32> to vector<1x1x192xf32>
    %42 = vector.broadcast %41 : vector<1x1x192xf32> to vector<16x2x192xf32>
    %43 = arith.mulf %40, %42 : vector<16x2x192xf32>
    %44 = vector.shape_cast %13 : vector<1x192xf32> to vector<1x1x192xf32>
    %45 = vector.broadcast %44 : vector<1x1x192xf32> to vector<16x2x192xf32>
    %46 = arith.addf %43, %45 : vector<16x2x192xf32>
    %cst_22 = arith.constant 0.000000e+00 : f32
    %47 = vector.broadcast %cst_22 : f32 to vector<16x2x192xf32>
    %48 = arith.maximumf %46, %47 : vector<16x2x192xf32>
    %49 = arith.truncf %48 : vector<16x2x192xf32> to vector<16x2x192xbf16>
    %c0_23 = arith.constant 0 : index
    %c0_24 = arith.constant 0 : index
    %c0_25 = arith.constant 0 : index
    %50 = vector.load %arg6[%c0_23, %c0_24, %c0_25] : memref<16x2x192xbf16, #tpu.memory_space<vmem>>, vector<16x2x192xbf16>
    tpu.vector_store %arg6[%c0_23, %c0_24, %c0_25], %49 {strides = array<i32>} : memref<16x2x192xbf16, #tpu.memory_space<vmem>>, vector<16x2x192xbf16>,
    return
  }
}

module attributes {stable_mosaic.version = 11 : i64} {
  func.func @_phase_bn_relu_kernel(%arg0: memref<4x32x768xbf16, #tpu.memory_space<vmem>>, %arg1: memref<4x768x96xbf16, #tpu.memory_space<vmem>>, %arg2: memref<1x96xf32, #tpu.memory_space<vmem>>, %arg3: memref<1x96xf32, #tpu.memory_space<vmem>>, %arg4: memref<4x32x96xbf16, #tpu.memory_space<vmem>>) attributes {dimension_semantics = [], scalar_prefetch = 0 : i64, scratch_operands = 0 : i64, tpu.core_type = #tpu.core_type<tc>} {
    %c0 = arith.constant 0 : index
    %c0_0 = arith.constant 0 : index
    %c0_1 = arith.constant 0 : index
    %0 = vector.load %arg0[%c0, %c0_0, %c0_1] : memref<4x32x768xbf16, #tpu.memory_space<vmem>>, vector<4x32x768xbf16>
    %c0_2 = arith.constant 0 : index
    %c0_3 = arith.constant 0 : index
    %c0_4 = arith.constant 0 : index
    %1 = vector.load %arg1[%c0_2, %c0_3, %c0_4] : memref<4x768x96xbf16, #tpu.memory_space<vmem>>, vector<4x768x96xbf16>
    "tpu.trace_start"() <{level = 10 : i32, message = "pnc,pcd->pnd"}> : () -> ()
    %cst = arith.constant dense<0.000000e+00> : vector<4x32x96xf32>
    %2 = tpu.matmul %0, %1, %cst {dimension_numbers = #tpu.dot_dimension_numbers<[2], [1], [1], [2], [0, 0, 0, 1, 1, 2], [0], [0]>} : vector<4x32x768xbf16>, vector<4x768x96xbf16>, vector<4x32x96xf32> -> vector<4x32x96xf32>
    "tpu.trace_stop"() : () -> ()
    %c0_5 = arith.constant 0 : index
    %c0_6 = arith.constant 0 : index
    %3 = vector.load %arg2[%c0_5, %c0_6] : memref<1x96xf32, #tpu.memory_space<vmem>>, vector<1x96xf32>
    %c0_7 = arith.constant 0 : index
    %c0_8 = arith.constant 0 : index
    %4 = vector.load %arg3[%c0_7, %c0_8] : memref<1x96xf32, #tpu.memory_space<vmem>>, vector<1x96xf32>
    %cst_9 = arith.constant dense<0.000000e+00> : vector<32x96xf32>
    %5 = vector.multi_reduction <add>, %2, %cst_9 [0] : vector<4x32x96xf32> to vector<32x96xf32>
    %cst_10 = arith.constant 4.000000e+00 : f32
    %6 = vector.broadcast %cst_10 : f32 to vector<32x96xf32>
    %7 = arith.divf %5, %6 : vector<32x96xf32>
    %cst_11 = arith.constant dense<0.000000e+00> : vector<96xf32>
    %8 = vector.multi_reduction <add>, %7, %cst_11 [0] : vector<32x96xf32> to vector<96xf32>
    %9 = vector.shape_cast %8 : vector<96xf32> to vector<1x96xf32>
    %cst_12 = arith.constant 3.200000e+01 : f32
    %10 = vector.broadcast %cst_12 : f32 to vector<1x96xf32>
    %11 = arith.divf %9, %10 : vector<1x96xf32>
    %12 = vector.shape_cast %11 : vector<1x96xf32> to vector<1x1x96xf32>
    %13 = vector.broadcast %12 : vector<1x1x96xf32> to vector<4x32x96xf32>
    %14 = arith.subf %2, %13 : vector<4x32x96xf32>
    %15 = arith.mulf %14, %14 : vector<4x32x96xf32>
    %cst_13 = arith.constant dense<0.000000e+00> : vector<32x96xf32>
    %16 = vector.multi_reduction <add>, %15, %cst_13 [0] : vector<4x32x96xf32> to vector<32x96xf32>
    %cst_14 = arith.constant 4.000000e+00 : f32
    %17 = vector.broadcast %cst_14 : f32 to vector<32x96xf32>
    %18 = arith.divf %16, %17 : vector<32x96xf32>
    %cst_15 = arith.constant dense<0.000000e+00> : vector<96xf32>
    %19 = vector.multi_reduction <add>, %18, %cst_15 [0] : vector<32x96xf32> to vector<96xf32>
    %20 = vector.shape_cast %19 : vector<96xf32> to vector<1x96xf32>
    %cst_16 = arith.constant 3.200000e+01 : f32
    %21 = vector.broadcast %cst_16 : f32 to vector<1x96xf32>
    %22 = arith.divf %20, %21 : vector<1x96xf32>
    %23 = vector.shape_cast %11 : vector<1x96xf32> to vector<1x1x96xf32>
    %24 = vector.broadcast %23 : vector<1x1x96xf32> to vector<4x32x96xf32>
    %25 = arith.subf %2, %24 : vector<4x32x96xf32>
    %cst_17 = arith.constant 9.99999974E-6 : f32
    %26 = vector.broadcast %cst_17 : f32 to vector<1x96xf32>
    %27 = arith.addf %22, %26 : vector<1x96xf32>
    %28 = math.rsqrt %27 : vector<1x96xf32>
    %29 = vector.shape_cast %28 : vector<1x96xf32> to vector<1x1x96xf32>
    %30 = vector.broadcast %29 : vector<1x1x96xf32> to vector<4x32x96xf32>
    %31 = arith.mulf %25, %30 : vector<4x32x96xf32>
    %32 = vector.shape_cast %3 : vector<1x96xf32> to vector<1x1x96xf32>
    %33 = vector.broadcast %32 : vector<1x1x96xf32> to vector<4x32x96xf32>
    %34 = arith.mulf %31, %33 : vector<4x32x96xf32>
    %35 = vector.shape_cast %4 : vector<1x96xf32> to vector<1x1x96xf32>
    %36 = vector.broadcast %35 : vector<1x1x96xf32> to vector<4x32x96xf32>
    %37 = arith.addf %34, %36 : vector<4x32x96xf32>
    %cst_18 = arith.constant 0.000000e+00 : f32
    %38 = vector.broadcast %cst_18 : f32 to vector<4x32x96xf32>
    %39 = arith.maximumf %37, %38 : vector<4x32x96xf32>
    %40 = arith.truncf %39 : vector<4x32x96xf32> to vector<4x32x96xbf16>
    %c0_19 = arith.constant 0 : index
    %c0_20 = arith.constant 0 : index
    %c0_21 = arith.constant 0 : index
    %41 = vector.load %arg4[%c0_19, %c0_20, %c0_21] : memref<4x32x96xbf16, #tpu.memory_space<vmem>>, vector<4x32x96xbf16>
    tpu.vector_store %arg4[%c0_19, %c0_20, %c0_21], %40 {strides = array<i32>} : memref<4x32x96xbf16, #tpu.memory_space<vmem>>, vector<4x32x96xbf16>,
    return
  }
}

module attributes {stable_mosaic.version = 11 : i64} {
  func.func @_phase_bn_relu_kernel(%arg0: memref<4x128x384xbf16, #tpu.memory_space<vmem>>, %arg1: memref<4x384x48xbf16, #tpu.memory_space<vmem>>, %arg2: memref<1x48xf32, #tpu.memory_space<vmem>>, %arg3: memref<1x48xf32, #tpu.memory_space<vmem>>, %arg4: memref<4x128x48xbf16, #tpu.memory_space<vmem>>) attributes {dimension_semantics = [], scalar_prefetch = 0 : i64, scratch_operands = 0 : i64, tpu.core_type = #tpu.core_type<tc>} {
    %c0 = arith.constant 0 : index
    %c0_0 = arith.constant 0 : index
    %c0_1 = arith.constant 0 : index
    %0 = vector.load %arg0[%c0, %c0_0, %c0_1] : memref<4x128x384xbf16, #tpu.memory_space<vmem>>, vector<4x128x384xbf16>
    %c0_2 = arith.constant 0 : index
    %c0_3 = arith.constant 0 : index
    %c0_4 = arith.constant 0 : index
    %1 = vector.load %arg1[%c0_2, %c0_3, %c0_4] : memref<4x384x48xbf16, #tpu.memory_space<vmem>>, vector<4x384x48xbf16>
    "tpu.trace_start"() <{level = 10 : i32, message = "pnc,pcd->pnd"}> : () -> ()
    %cst = arith.constant dense<0.000000e+00> : vector<4x128x48xf32>
    %2 = tpu.matmul %0, %1, %cst {dimension_numbers = #tpu.dot_dimension_numbers<[2], [1], [1], [2], [0, 0, 0, 1, 1, 2], [0], [0]>} : vector<4x128x384xbf16>, vector<4x384x48xbf16>, vector<4x128x48xf32> -> vector<4x128x48xf32>
    "tpu.trace_stop"() : () -> ()
    %c0_5 = arith.constant 0 : index
    %c0_6 = arith.constant 0 : index
    %3 = vector.load %arg2[%c0_5, %c0_6] : memref<1x48xf32, #tpu.memory_space<vmem>>, vector<1x48xf32>
    %c0_7 = arith.constant 0 : index
    %c0_8 = arith.constant 0 : index
    %4 = vector.load %arg3[%c0_7, %c0_8] : memref<1x48xf32, #tpu.memory_space<vmem>>, vector<1x48xf32>
    %cst_9 = arith.constant dense<0.000000e+00> : vector<128x48xf32>
    %5 = vector.multi_reduction <add>, %2, %cst_9 [0] : vector<4x128x48xf32> to vector<128x48xf32>
    %cst_10 = arith.constant 4.000000e+00 : f32
    %6 = vector.broadcast %cst_10 : f32 to vector<128x48xf32>
    %7 = arith.divf %5, %6 : vector<128x48xf32>
    %cst_11 = arith.constant dense<0.000000e+00> : vector<48xf32>
    %8 = vector.multi_reduction <add>, %7, %cst_11 [0] : vector<128x48xf32> to vector<48xf32>
    %9 = vector.shape_cast %8 : vector<48xf32> to vector<1x48xf32>
    %cst_12 = arith.constant 1.280000e+02 : f32
    %10 = vector.broadcast %cst_12 : f32 to vector<1x48xf32>
    %11 = arith.divf %9, %10 : vector<1x48xf32>
    %12 = vector.shape_cast %11 : vector<1x48xf32> to vector<1x1x48xf32>
    %13 = vector.broadcast %12 : vector<1x1x48xf32> to vector<4x128x48xf32>
    %14 = arith.subf %2, %13 : vector<4x128x48xf32>
    %15 = arith.mulf %14, %14 : vector<4x128x48xf32>
    %cst_13 = arith.constant dense<0.000000e+00> : vector<128x48xf32>
    %16 = vector.multi_reduction <add>, %15, %cst_13 [0] : vector<4x128x48xf32> to vector<128x48xf32>
    %cst_14 = arith.constant 4.000000e+00 : f32
    %17 = vector.broadcast %cst_14 : f32 to vector<128x48xf32>
    %18 = arith.divf %16, %17 : vector<128x48xf32>
    %cst_15 = arith.constant dense<0.000000e+00> : vector<48xf32>
    %19 = vector.multi_reduction <add>, %18, %cst_15 [0] : vector<128x48xf32> to vector<48xf32>
    %20 = vector.shape_cast %19 : vector<48xf32> to vector<1x48xf32>
    %cst_16 = arith.constant 1.280000e+02 : f32
    %21 = vector.broadcast %cst_16 : f32 to vector<1x48xf32>
    %22 = arith.divf %20, %21 : vector<1x48xf32>
    %23 = vector.shape_cast %11 : vector<1x48xf32> to vector<1x1x48xf32>
    %24 = vector.broadcast %23 : vector<1x1x48xf32> to vector<4x128x48xf32>
    %25 = arith.subf %2, %24 : vector<4x128x48xf32>
    %cst_17 = arith.constant 9.99999974E-6 : f32
    %26 = vector.broadcast %cst_17 : f32 to vector<1x48xf32>
    %27 = arith.addf %22, %26 : vector<1x48xf32>
    %28 = math.rsqrt %27 : vector<1x48xf32>
    %29 = vector.shape_cast %28 : vector<1x48xf32> to vector<1x1x48xf32>
    %30 = vector.broadcast %29 : vector<1x1x48xf32> to vector<4x128x48xf32>
    %31 = arith.mulf %25, %30 : vector<4x128x48xf32>
    %32 = vector.shape_cast %3 : vector<1x48xf32> to vector<1x1x48xf32>
    %33 = vector.broadcast %32 : vector<1x1x48xf32> to vector<4x128x48xf32>
    %34 = arith.mulf %31, %33 : vector<4x128x48xf32>
    %35 = vector.shape_cast %4 : vector<1x48xf32> to vector<1x1x48xf32>
    %36 = vector.broadcast %35 : vector<1x1x48xf32> to vector<4x128x48xf32>
    %37 = arith.addf %34, %36 : vector<4x128x48xf32>
    %cst_18 = arith.constant 0.000000e+00 : f32
    %38 = vector.broadcast %cst_18 : f32 to vector<4x128x48xf32>
    %39 = arith.maximumf %37, %38 : vector<4x128x48xf32>
    %40 = arith.truncf %39 : vector<4x128x48xf32> to vector<4x128x48xbf16>
    %c0_19 = arith.constant 0 : index
    %c0_20 = arith.constant 0 : index
    %c0_21 = arith.constant 0 : index
    %41 = vector.load %arg4[%c0_19, %c0_20, %c0_21] : memref<4x128x48xbf16, #tpu.memory_space<vmem>>, vector<4x128x48xbf16>
    tpu.vector_store %arg4[%c0_19, %c0_20, %c0_21], %40 {strides = array<i32>} : memref<4x128x48xbf16, #tpu.memory_space<vmem>>, vector<4x128x48xbf16>,
    return
  }
}

module attributes {stable_mosaic.version = 11 : i64} {
  func.func @_phase_tanh_kernel(%arg0: memref<4x3x192xbf16, #tpu.memory_space<vmem>>, %arg1: memref<4x192x512xbf16, #tpu.memory_space<vmem>>, %arg2: memref<4x3x512xf32, #tpu.memory_space<vmem>>) attributes {dimension_semantics = [], scalar_prefetch = 0 : i64, scratch_operands = 0 : i64, tpu.core_type = #tpu.core_type<tc>} {
    %c0 = arith.constant 0 : index
    %c0_0 = arith.constant 0 : index
    %c0_1 = arith.constant 0 : index
    %0 = vector.load %arg0[%c0, %c0_0, %c0_1] : memref<4x3x192xbf16, #tpu.memory_space<vmem>>, vector<4x3x192xbf16>
    %c0_2 = arith.constant 0 : index
    %c0_3 = arith.constant 0 : index
    %c0_4 = arith.constant 0 : index
    %1 = vector.load %arg1[%c0_2, %c0_3, %c0_4] : memref<4x192x512xbf16, #tpu.memory_space<vmem>>, vector<4x192x512xbf16>
    "tpu.trace_start"() <{level = 10 : i32, message = "pdc,pcn->pdn"}> : () -> ()
    %cst = arith.constant dense<0.000000e+00> : vector<4x3x512xf32>
    %2 = tpu.matmul %0, %1, %cst {dimension_numbers = #tpu.dot_dimension_numbers<[2], [1], [1], [2], [0, 0, 0, 1, 1, 2], [0], [0]>} : vector<4x3x192xbf16>, vector<4x192x512xbf16>, vector<4x3x512xf32> -> vector<4x3x512xf32>
    "tpu.trace_stop"() : () -> ()
    %3 = math.tanh %2 : vector<4x3x512xf32>
    %c0_5 = arith.constant 0 : index
    %c0_6 = arith.constant 0 : index
    %c0_7 = arith.constant 0 : index
    %4 = vector.load %arg2[%c0_5, %c0_6, %c0_7] : memref<4x3x512xf32, #tpu.memory_space<vmem>>, vector<4x3x512xf32>
    tpu.vector_store %arg2[%c0_5, %c0_6, %c0_7], %3 {strides = array<i32>} : memref<4x3x512xf32, #tpu.memory_space<vmem>>, vector<4x3x512xf32>,
    return
  }
}

</mosaic_0001>

<llo_original>
// kernel: generator_32_forward.5
$region0: #{generator_32_forward.5}
  #allocation0 [shape = 'u32[]', space=smem, size = 0x4, offset = 0x4, fixed_abs, tag = 'smem constant byte address 0x4 - core index']
  #allocation1 [shape = 'u32[72,128]{1,0:T(1,128)}', space=vmem, size = 0x9000, scoped, tag = 'internal scratch']
  %s0 = inlined_call_operand.vmem [shape: bf16[4,32,768], index: 0, kind: input, shape index: {}]
  %s1 = inlined_call_operand.vmem [shape: bf16[4,768,96], index: 1, kind: input, shape index: {}]
  %s2 = inlined_call_operand.vmem [shape: f32[1,96], index: 2, kind: input, shape index: {}]
  %s3 = inlined_call_operand.vmem [shape: f32[1,96], index: 3, kind: input, shape index: {}]
  %s4 = inlined_call_operand.vmem [shape: bf16[4,32,96], index: 4, kind: output, shape index: {}]
  %s5 = sld [smem:[#allocation0]]
  $region26: #{generator_32_forward.5} parent=0
    _
  %s7 = ssub.s32 1, %s5
  %s8 = scalar_select 0, %s7, %s5
  // Predicated region
  $region2: #{generator_32_forward.5} parent=0 // pred_check
    _
  $region3: #{generator_32_forward.5} parent=0 // pred_check_branch
    %10 = sbr.rel (0) target = $region5
  $region4: #{generator_32_forward.5} parent=0 // pred_region
    _
  $region5: #{generator_32_forward.5} parent=0 // pred_fallthru
    _
  // Predicated region
  $region6: #{generator_32_forward.5} parent=0 // pred_check
    _
  $region7: #{generator_32_forward.5} parent=0 // pred_check_branch
    %12 = sbr.rel (0) target = $region9
  $region8: #{generator_32_forward.5} parent=0 // pred_region
    _
  $region9: #{generator_32_forward.5} parent=0 // pred_fallthru
    _
  // Predicated region
  $region10: #{generator_32_forward.5} parent=0 // pred_check
    _
  $region11: #{generator_32_forward.5} parent=0 // pred_check_branch
    %14 = sbr.rel (0) target = $region13
  $region12: #{generator_32_forward.5} parent=0 // pred_region
    _
  $region13: #{generator_32_forward.5} parent=0 // pred_fallthru
    _
  // Predicated region
  $region14: #{generator_32_forward.5} parent=0 // pred_check
    _
  $region15: #{generator_32_forward.5} parent=0 // pred_check_branch
    %16 = sbr.rel (0) target = $region17
  $region16: #{generator_32_forward.5} parent=0 // pred_region
    _
  $region17: #{generator_32_forward.5} parent=0 // pred_fallthru
    _
  %v17 = vld [vmem:[%s0] sm:$0xff]
  %v18 = vld [vmem:[%s0 + $0x8] sm:$0xff]
  %v19 = vld [vmem:[%s0 + $0x10] sm:$0xff]
  %v20 = vld [vmem:[%s0 + $0x18] sm:$0xff]
  %v21 = vld [vmem:[%s0 + $0x20] sm:$0xff]
  %v22 = vld [vmem:[%s0 + $0x28] sm:$0xff]
  %v23 = vld [vmem:[%s0 + $0x30] sm:$0xff]
  %v24 = vld [vmem:[%s0 + $0x38] sm:$0xff]
  %v25 = vld [vmem:[%s0 + $0x40] sm:$0xff]
  %v26 = vld [vmem:[%s0 + $0x48] sm:$0xff]
  %v27 = vld [vmem:[%s0 + $0x50] sm:$0xff]
  %v28 = vld [vmem:[%s0 + $0x58] sm:$0xff]
  %v29 = vld [vmem:[%s0 + $0x60] sm:$0xff]
  %v30 = vld [vmem:[%s0 + $0x68] sm:$0xff]
  %v31 = vld [vmem:[%s0 + $0x70] sm:$0xff]
  %v32 = vld [vmem:[%s0 + $0x78] sm:$0xff]
  %v33 = vld [vmem:[%s0 + $0x80] sm:$0xff]
  %v34 = vld [vmem:[%s0 + $0x88] sm:$0xff]
  %v35 = vld [vmem:[%s0 + $0x90] sm:$0xff]
  %v36 = vld [vmem:[%s0 + $0x98] sm:$0xff]
  %v37 = vld [vmem:[%s0 + $0xa0] sm:$0xff]
  %v38 = vld [vmem:[%s0 + $0xa8] sm:$0xff]
  %v39 = vld [vmem:[%s0 + $0xb0] sm:$0xff]
  %v40 = vld [vmem:[%s0 + $0xb8] sm:$0xff]
  %v41 = vld [vmem:[%s0 + $0xc0] sm:$0xff]
  %v42 = vld [vmem:[%s0 + $0xc8] sm:$0xff]
  %v43 = vld [vmem:[%s0 + $0xd0] sm:$0xff]
  %v44 = vld [vmem:[%s0 + $0xd8] sm:$0xff]
  %v45 = vld [vmem:[%s0 + $0xe0] sm:$0xff]
  %v46 = vld [vmem:[%s0 + $0xe8] sm:$0xff]
  %v47 = vld [vmem:[%s0 + $0xf0] sm:$0xff]
  %v48 = vld [vmem:[%s0 + $0xf8] sm:$0xff]
  %v49 = vld [vmem:[%s0 + $0x100] sm:$0xff]
  %v50 = vld [vmem:[%s0 + $0x108] sm:$0xff]
  %v51 = vld [vmem:[%s0 + $0x110] sm:$0xff]
  %v52 = vld [vmem:[%s0 + $0x118] sm:$0xff]
  %v53 = vld [vmem:[%s0 + $0x120] sm:$0xff]
  %v54 = vld [vmem:[%s0 + $0x128] sm:$0xff]
  %v55 = vld [vmem:[%s0 + $0x130] sm:$0xff]
  %v56 = vld [vmem:[%s0 + $0x138] sm:$0xff]
  %v57 = vld [vmem:[%s0 + $0x140] sm:$0xff]
  %v58 = vld [vmem:[%s0 + $0x148] sm:$0xff]
  %v59 = vld [vmem:[%s0 + $0x150] sm:$0xff]
  %v60 = vld [vmem:[%s0 + $0x158] sm:$0xff]
  %v61 = vld [vmem:[%s0 + $0x160] sm:$0xff]
  %v62 = vld [vmem:[%s0 + $0x168] sm:$0xff]
  %v63 = vld [vmem:[%s0 + $0x170] sm:$0xff]
  %v64 = vld [vmem:[%s0 + $0x178] sm:$0xff]
  %v65 = vld [vmem:[%s1] sm:$0xf]
  %v66 = vld [vmem:[%s1 + $0x4] sm:$0xf]
  %v67 = vld [vmem:[%s1 + $0x8] sm:$0xf]
  %v68 = vld [vmem:[%s1 + $0xc] sm:$0xf]
  %v69 = vld [vmem:[%s1 + $0x10] sm:$0xf]
  %v70 = vld [vmem:[%s1 + $0x14] sm:$0xf]
  %v71 = vld [vmem:[%s1 + $0x18] sm:$0xf]
  %v72 = vld [vmem:[%s1 + $0x1c] sm:$0xf]
  %v73 = vld [vmem:[%s1 + $0x20] sm:$0xf]
  %v74 = vld [vmem:[%s1 + $0x24] sm:$0xf]
  %v75 = vld [vmem:[%s1 + $0x28] sm:$0xf]
  %v76 = vld [vmem:[%s1 + $0x2c] sm:$0xf]
  %v77 = vld [vmem:[%s1 + $0x30] sm:$0xf]
  %v78 = vld [vmem:[%s1 + $0x34] sm:$0xf]
  %v79 = vld [vmem:[%s1 + $0x38] sm:$0xf]
  %v80 = vld [vmem:[%s1 + $0x3c] sm:$0xf]
  %v81 = vld [vmem:[%s1 + $0x40] sm:$0xf]
  %v82 = vld [vmem:[%s1 + $0x44] sm:$0xf]
  %v83 = vld [vmem:[%s1 + $0x48] sm:$0xf]
  %v84 = vld [vmem:[%s1 + $0x4c] sm:$0xf]
  %v85 = vld [vmem:[%s1 + $0x50] sm:$0xf]
  %v86 = vld [vmem:[%s1 + $0x54] sm:$0xf]
  %v87 = vld [vmem:[%s1 + $0x58] sm:$0xf]
  %v88 = vld [vmem:[%s1 + $0x5c] sm:$0xf]
  %v89 = vld [vmem:[%s1 + $0x60] sm:$0xf]
  %v90 = vld [vmem:[%s1 + $0x64] sm:$0xf]
  %v91 = vld [vmem:[%s1 + $0x68] sm:$0xf]
  %v92 = vld [vmem:[%s1 + $0x6c] sm:$0xf]
  %v93 = vld [vmem:[%s1 + $0x70] sm:$0xf]
  %v94 = vld [vmem:[%s1 + $0x74] sm:$0xf]
  %v95 = vld [vmem:[%s1 + $0x78] sm:$0xf]
  %v96 = vld [vmem:[%s1 + $0x7c] sm:$0xf]
  %v97 = vld [vmem:[%s1 + $0x80] sm:$0xf]
  %v98 = vld [vmem:[%s1 + $0x84] sm:$0xf]
  %v99 = vld [vmem:[%s1 + $0x88] sm:$0xf]
  %v100 = vld [vmem:[%s1 + $0x8c] sm:$0xf]
  %v101 = vld [vmem:[%s1 + $0x90] sm:$0xf]
  %v102 = vld [vmem:[%s1 + $0x94] sm:$0xf]
  %v103 = vld [vmem:[%s1 + $0x98] sm:$0xf]
  %v104 = vld [vmem:[%s1 + $0x9c] sm:$0xf]
  %v105 = vld [vmem:[%s1 + $0xa0] sm:$0xf]
  %v106 = vld [vmem:[%s1 + $0xa4] sm:$0xf]
  %v107 = vld [vmem:[%s1 + $0xa8] sm:$0xf]
  %v108 = vld [vmem:[%s1 + $0xac] sm:$0xf]
  %v109 = vld [vmem:[%s1 + $0xb0] sm:$0xf]
  %v110 = vld [vmem:[%s1 + $0xb4] sm:$0xf]
  %v111 = vld [vmem:[%s1 + $0xb8] sm:$0xf]
  %v112 = vld [vmem:[%s1 + $0xbc] sm:$0xf]
  %v113 = vld [vmem:[%s1 + $0xc0] sm:$0xf]
  %v114 = vld [vmem:[%s1 + $0xc4] sm:$0xf]
  %v115 = vld [vmem:[%s1 + $0xc8] sm:$0xf]
  %v116 = vld [vmem:[%s1 + $0xcc] sm:$0xf]
  %v117 = vld [vmem:[%s1 + $0xd0] sm:$0xf]
  %v118 = vld [vmem:[%s1 + $0xd4] sm:$0xf]
  %v119 = vld [vmem:[%s1 + $0xd8] sm:$0xf]
  %v120 = vld [vmem:[%s1 + $0xdc] sm:$0xf]
  %v121 = vld [vmem:[%s1 + $0xe0] sm:$0xf]
  %v122 = vld [vmem:[%s1 + $0xe4] sm:$0xf]
  %v123 = vld [vmem:[%s1 + $0xe8] sm:$0xf]
  %v124 = vld [vmem:[%s1 + $0xec] sm:$0xf]
  %v125 = vld [vmem:[%s1 + $0xf0] sm:$0xf]
  %v126 = vld [vmem:[%s1 + $0xf4] sm:$0xf]
  %v127 = vld [vmem:[%s1 + $0xf8] sm:$0xf]
  %v128 = vld [vmem:[%s1 + $0xfc] sm:$0xf]
  %v129 = vld [vmem:[%s1 + $0x100] sm:$0xf]
  %v130 = vld [vmem:[%s1 + $0x104] sm:$0xf]
  %v131 = vld [vmem:[%s1 + $0x108] sm:$0xf]
  %v132 = vld [vmem:[%s1 + $0x10c] sm:$0xf]
  %v133 = vld [vmem:[%s1 + $0x110] sm:$0xf]
  %v134 = vld [vmem:[%s1 + $0x114] sm:$0xf]
  %v135 = vld [vmem:[%s1 + $0x118] sm:$0xf]
  %v136 = vld [vmem:[%s1 + $0x11c] sm:$0xf]
  %v137 = vld [vmem:[%s1 + $0x120] sm:$0xf]
  %v138 = vld [vmem:[%s1 + $0x124] sm:$0xf]
  %v139 = vld [vmem:[%s1 + $0x128] sm:$0xf]
  %v140 = vld [vmem:[%s1 + $0x12c] sm:$0xf]
  %v141 = vld [vmem:[%s1 + $0x130] sm:$0xf]
  %v142 = vld [vmem:[%s1 + $0x134] sm:$0xf]
  %v143 = vld [vmem:[%s1 + $0x138] sm:$0xf]
  %v144 = vld [vmem:[%s1 + $0x13c] sm:$0xf]
  %v145 = vld [vmem:[%s1 + $0x140] sm:$0xf]
  %v146 = vld [vmem:[%s1 + $0x144] sm:$0xf]
  %v147 = vld [vmem:[%s1 + $0x148] sm:$0xf]
  %v148 = vld [vmem:[%s1 + $0x14c] sm:$0xf]
  %v149 = vld [vmem:[%s1 + $0x150] sm:$0xf]
  %v150 = vld [vmem:[%s1 + $0x154] sm:$0xf]
  %v151 = vld [vmem:[%s1 + $0x158] sm:$0xf]
  %v152 = vld [vmem:[%s1 + $0x15c] sm:$0xf]
  %v153 = vld [vmem:[%s1 + $0x160] sm:$0xf]
  %v154 = vld [vmem:[%s1 + $0x164] sm:$0xf]
  %v155 = vld [vmem:[%s1 + $0x168] sm:$0xf]
  %v156 = vld [vmem:[%s1 + $0x16c] sm:$0xf]
  %v157 = vld [vmem:[%s1 + $0x170] sm:$0xf]
  %v158 = vld [vmem:[%s1 + $0x174] sm:$0xf]
  %v159 = vld [vmem:[%s1 + $0x178] sm:$0xf]
  %v160 = vld [vmem:[%s1 + $0x17c] sm:$0xf]
  %v161 = vld [vmem:[%s1 + $0x180] sm:$0xf]
  %v162 = vld [vmem:[%s1 + $0x184] sm:$0xf]
  %v163 = vld [vmem:[%s1 + $0x188] sm:$0xf]
  %v164 = vld [vmem:[%s1 + $0x18c] sm:$0xf]
  %v165 = vld [vmem:[%s1 + $0x190] sm:$0xf]
  %v166 = vld [vmem:[%s1 + $0x194] sm:$0xf]
  %v167 = vld [vmem:[%s1 + $0x198] sm:$0xf]
  %v168 = vld [vmem:[%s1 + $0x19c] sm:$0xf]
  %v169 = vld [vmem:[%s1 + $0x1a0] sm:$0xf]
  %v170 = vld [vmem:[%s1 + $0x1a4] sm:$0xf]
  %v171 = vld [vmem:[%s1 + $0x1a8] sm:$0xf]
  %v172 = vld [vmem:[%s1 + $0x1ac] sm:$0xf]
  %v173 = vld [vmem:[%s1 + $0x1b0] sm:$0xf]
  %v174 = vld [vmem:[%s1 + $0x1b4] sm:$0xf]
  %v175 = vld [vmem:[%s1 + $0x1b8] sm:$0xf]
  %v176 = vld [vmem:[%s1 + $0x1bc] sm:$0xf]
  %v177 = vld [vmem:[%s1 + $0x1c0] sm:$0xf]
  %v178 = vld [vmem:[%s1 + $0x1c4] sm:$0xf]
  %v179 = vld [vmem:[%s1 + $0x1c8] sm:$0xf]
  %v180 = vld [vmem:[%s1 + $0x1cc] sm:$0xf]
  %v181 = vld [vmem:[%s1 + $0x1d0] sm:$0xf]
  %v182 = vld [vmem:[%s1 + $0x1d4] sm:$0xf]
  %v183 = vld [vmem:[%s1 + $0x1d8] sm:$0xf]
  %v184 = vld [vmem:[%s1 + $0x1dc] sm:$0xf]
  %v185 = vld [vmem:[%s1 + $0x1e0] sm:$0xf]
  %v186 = vld [vmem:[%s1 + $0x1e4] sm:$0xf]
  %v187 = vld [vmem:[%s1 + $0x1e8] sm:$0xf]
  %v188 = vld [vmem:[%s1 + $0x1ec] sm:$0xf]
  %v189 = vld [vmem:[%s1 + $0x1f0] sm:$0xf]
  %v190 = vld [vmem:[%s1 + $0x1f4] sm:$0xf]
  %v191 = vld [vmem:[%s1 + $0x1f8] sm:$0xf]
  %v192 = vld [vmem:[%s1 + $0x1fc] sm:$0xf]
  %v193 = vld [vmem:[%s1 + $0x200] sm:$0xf]
  %v194 = vld [vmem:[%s1 + $0x204] sm:$0xf]
  %v195 = vld [vmem:[%s1 + $0x208] sm:$0xf]
  %v196 = vld [vmem:[%s1 + $0x20c] sm:$0xf]
  %v197 = vld [vmem:[%s1 + $0x210] sm:$0xf]
  %v198 = vld [vmem:[%s1 + $0x214] sm:$0xf]
  %v199 = vld [vmem:[%s1 + $0x218] sm:$0xf]
  %v200 = vld [vmem:[%s1 + $0x21c] sm:$0xf]
  %v201 = vld [vmem:[%s1 + $0x220] sm:$0xf]
  %v202 = vld [vmem:[%s1 + $0x224] sm:$0xf]
  %v203 = vld [vmem:[%s1 + $0x228] sm:$0xf]
  %v204 = vld [vmem:[%s1 + $0x22c] sm:$0xf]
  %v205 = vld [vmem:[%s1 + $0x230] sm:$0xf]
  %v206 = vld [vmem:[%s1 + $0x234] sm:$0xf]
  %v207 = vld [vmem:[%s1 + $0x238] sm:$0xf]
  %v208 = vld [vmem:[%s1 + $0x23c] sm:$0xf]
  %v209 = vld [vmem:[%s1 + $0x240] sm:$0xf]
  %v210 = vld [vmem:[%s1 + $0x244] sm:$0xf]
  %v211 = vld [vmem:[%s1 + $0x248] sm:$0xf]
  %v212 = vld [vmem:[%s1 + $0x24c] sm:$0xf]
  %v213 = vld [vmem:[%s1 + $0x250] sm:$0xf]
  %v214 = vld [vmem:[%s1 + $0x254] sm:$0xf]
  %v215 = vld [vmem:[%s1 + $0x258] sm:$0xf]
  %v216 = vld [vmem:[%s1 + $0x25c] sm:$0xf]
  %v217 = vld [vmem:[%s1 + $0x260] sm:$0xf]
  %v218 = vld [vmem:[%s1 + $0x264] sm:$0xf]
  %v219 = vld [vmem:[%s1 + $0x268] sm:$0xf]
  %v220 = vld [vmem:[%s1 + $0x26c] sm:$0xf]
  %v221 = vld [vmem:[%s1 + $0x270] sm:$0xf]
  %v222 = vld [vmem:[%s1 + $0x274] sm:$0xf]
  %v223 = vld [vmem:[%s1 + $0x278] sm:$0xf]
  %v224 = vld [vmem:[%s1 + $0x27c] sm:$0xf]
  %v225 = vld [vmem:[%s1 + $0x280] sm:$0xf]
  %v226 = vld [vmem:[%s1 + $0x284] sm:$0xf]
  %v227 = vld [vmem:[%s1 + $0x288] sm:$0xf]
  %v228 = vld [vmem:[%s1 + $0x28c] sm:$0xf]
  %v229 = vld [vmem:[%s1 + $0x290] sm:$0xf]
  %v230 = vld [vmem:[%s1 + $0x294] sm:$0xf]
  %v231 = vld [vmem:[%s1 + $0x298] sm:$0xf]
  %v232 = vld [vmem:[%s1 + $0x29c] sm:$0xf]
  %v233 = vld [vmem:[%s1 + $0x2a0] sm:$0xf]
  %v234 = vld [vmem:[%s1 + $0x2a4] sm:$0xf]
  %v235 = vld [vmem:[%s1 + $0x2a8] sm:$0xf]
  %v236 = vld [vmem:[%s1 + $0x2ac] sm:$0xf]
  %v237 = vld [vmem:[%s1 + $0x2b0] sm:$0xf]
  %v238 = vld [vmem:[%s1 + $0x2b4] sm:$0xf]
  %v239 = vld [vmem:[%s1 + $0x2b8] sm:$0xf]
  %v240 = vld [vmem:[%s1 + $0x2bc] sm:$0xf]
  %v241 = vld [vmem:[%s1 + $0x2c0] sm:$0xf]
  %v242 = vld [vmem:[%s1 + $0x2c4] sm:$0xf]
  %v243 = vld [vmem:[%s1 + $0x2c8] sm:$0xf]
  %v244 = vld [vmem:[%s1 + $0x2cc] sm:$0xf]
  %v245 = vld [vmem:[%s1 + $0x2d0] sm:$0xf]
  %v246 = vld [vmem:[%s1 + $0x2d4] sm:$0xf]
  %v247 = vld [vmem:[%s1 + $0x2d8] sm:$0xf]
  %v248 = vld [vmem:[%s1 + $0x2dc] sm:$0xf]
  %v249 = vld [vmem:[%s1 + $0x2e0] sm:$0xf]
  %v250 = vld [vmem:[%s1 + $0x2e4] sm:$0xf]
  %v251 = vld [vmem:[%s1 + $0x2e8] sm:$0xf]
  %v252 = vld [vmem:[%s1 + $0x2ec] sm:$0xf]
  %v253 = vld [vmem:[%s1 + $0x2f0] sm:$0xf]
  %v254 = vld [vmem:[%s1 + $0x2f4] sm:$0xf]
  %v255 = vld [vmem:[%s1 + $0x2f8] sm:$0xf]
  %v256 = vld [vmem:[%s1 + $0x2fc] sm:$0xf]
  %v257 = vld [vmem:[%s1 + $0x300] sm:$0xf]
  %v258 = vld [vmem:[%s1 + $0x304] sm:$0xf]
  %v259 = vld [vmem:[%s1 + $0x308] sm:$0xf]
  %v260 = vld [vmem:[%s1 + $0x30c] sm:$0xf]
  %v261 = vld [vmem:[%s1 + $0x310] sm:$0xf]
  %v262 = vld [vmem:[%s1 + $0x314] sm:$0xf]
  %v263 = vld [vmem:[%s1 + $0x318] sm:$0xf]
  %v264 = vld [vmem:[%s1 + $0x31c] sm:$0xf]
  %v265 = vld [vmem:[%s1 + $0x320] sm:$0xf]
  %v266 = vld [vmem:[%s1 + $0x324] sm:$0xf]
  %v267 = vld [vmem:[%s1 + $0x328] sm:$0xf]
  %v268 = vld [vmem:[%s1 + $0x32c] sm:$0xf]
  %v269 = vld [vmem:[%s1 + $0x330] sm:$0xf]
  %v270 = vld [vmem:[%s1 + $0x334] sm:$0xf]
  %v271 = vld [vmem:[%s1 + $0x338] sm:$0xf]
  %v272 = vld [vmem:[%s1 + $0x33c] sm:$0xf]
  %v273 = vld [vmem:[%s1 + $0x340] sm:$0xf]
  %v274 = vld [vmem:[%s1 + $0x344] sm:$0xf]
  %v275 = vld [vmem:[%s1 + $0x348] sm:$0xf]
  %v276 = vld [vmem:[%s1 + $0x34c] sm:$0xf]
  %v277 = vld [vmem:[%s1 + $0x350] sm:$0xf]
  %v278 = vld [vmem:[%s1 + $0x354] sm:$0xf]
  %v279 = vld [vmem:[%s1 + $0x358] sm:$0xf]
  %v280 = vld [vmem:[%s1 + $0x35c] sm:$0xf]
  %v281 = vld [vmem:[%s1 + $0x360] sm:$0xf]
  %v282 = vld [vmem:[%s1 + $0x364] sm:$0xf]
  %v283 = vld [vmem:[%s1 + $0x368] sm:$0xf]
  %v284 = vld [vmem:[%s1 + $0x36c] sm:$0xf]
  %v285 = vld [vmem:[%s1 + $0x370] sm:$0xf]
  %v286 = vld [vmem:[%s1 + $0x374] sm:$0xf]
  %v287 = vld [vmem:[%s1 + $0x378] sm:$0xf]
  %v288 = vld [vmem:[%s1 + $0x37c] sm:$0xf]
  %v289 = vld [vmem:[%s1 + $0x380] sm:$0xf]
  %v290 = vld [vmem:[%s1 + $0x384] sm:$0xf]
  %v291 = vld [vmem:[%s1 + $0x388] sm:$0xf]
  %v292 = vld [vmem:[%s1 + $0x38c] sm:$0xf]
  %v293 = vld [vmem:[%s1 + $0x390] sm:$0xf]
  %v294 = vld [vmem:[%s1 + $0x394] sm:$0xf]
  %v295 = vld [vmem:[%s1 + $0x398] sm:$0xf]
  %v296 = vld [vmem:[%s1 + $0x39c] sm:$0xf]
  %v297 = vld [vmem:[%s1 + $0x3a0] sm:$0xf]
  %v298 = vld [vmem:[%s1 + $0x3a4] sm:$0xf]
  %v299 = vld [vmem:[%s1 + $0x3a8] sm:$0xf]
  %v300 = vld [vmem:[%s1 + $0x3ac] sm:$0xf]
  %v301 = vld [vmem:[%s1 + $0x3b0] sm:$0xf]
  %v302 = vld [vmem:[%s1 + $0x3b4] sm:$0xf]
  %v303 = vld [vmem:[%s1 + $0x3b8] sm:$0xf]
  %v304 = vld [vmem:[%s1 + $0x3bc] sm:$0xf]
  %v305 = vld [vmem:[%s1 + $0x3c0] sm:$0xf]
  %v306 = vld [vmem:[%s1 + $0x3c4] sm:$0xf]
  %v307 = vld [vmem:[%s1 + $0x3c8] sm:$0xf]
  %v308 = vld [vmem:[%s1 + $0x3cc] sm:$0xf]
  %v309 = vld [vmem:[%s1 + $0x3d0] sm:$0xf]
  %v310 = vld [vmem:[%s1 + $0x3d4] sm:$0xf]
  %v311 = vld [vmem:[%s1 + $0x3d8] sm:$0xf]
  %v312 = vld [vmem:[%s1 + $0x3dc] sm:$0xf]
  %v313 = vld [vmem:[%s1 + $0x3e0] sm:$0xf]
  %v314 = vld [vmem:[%s1 + $0x3e4] sm:$0xf]
  %v315 = vld [vmem:[%s1 + $0x3e8] sm:$0xf]
  %v316 = vld [vmem:[%s1 + $0x3ec] sm:$0xf]
  %v317 = vld [vmem:[%s1 + $0x3f0] sm:$0xf]
  %v318 = vld [vmem:[%s1 + $0x3f4] sm:$0xf]
  %v319 = vld [vmem:[%s1 + $0x3f8] sm:$0xf]
  %v320 = vld [vmem:[%s1 + $0x3fc] sm:$0xf]
  %v321 = vld [vmem:[%s1 + $0x400] sm:$0xf]
  %v322 = vld [vmem:[%s1 + $0x404] sm:$0xf]
  %v323 = vld [vmem:[%s1 + $0x408] sm:$0xf]
  %v324 = vld [vmem:[%s1 + $0x40c] sm:$0xf]
  %v325 = vld [vmem:[%s1 + $0x410] sm:$0xf]
  %v326 = vld [vmem:[%s1 + $0x414] sm:$0xf]
  %v327 = vld [vmem:[%s1 + $0x418] sm:$0xf]
  %v328 = vld [vmem:[%s1 + $0x41c] sm:$0xf]
  %v329 = vld [vmem:[%s1 + $0x420] sm:$0xf]
  %v330 = vld [vmem:[%s1 + $0x424] sm:$0xf]
  %v331 = vld [vmem:[%s1 + $0x428] sm:$0xf]
  %v332 = vld [vmem:[%s1 + $0x42c] sm:$0xf]
  %v333 = vld [vmem:[%s1 + $0x430] sm:$0xf]
  %v334 = vld [vmem:[%s1 + $0x434] sm:$0xf]
  %v335 = vld [vmem:[%s1 + $0x438] sm:$0xf]
  %v336 = vld [vmem:[%s1 + $0x43c] sm:$0xf]
  %v337 = vld [vmem:[%s1 + $0x440] sm:$0xf]
  %v338 = vld [vmem:[%s1 + $0x444] sm:$0xf]
  %v339 = vld [vmem:[%s1 + $0x448] sm:$0xf]
  %v340 = vld [vmem:[%s1 + $0x44c] sm:$0xf]
  %v341 = vld [vmem:[%s1 + $0x450] sm:$0xf]
  %v342 = vld [vmem:[%s1 + $0x454] sm:$0xf]
  %v343 = vld [vmem:[%s1 + $0x458] sm:$0xf]
  %v344 = vld [vmem:[%s1 + $0x45c] sm:$0xf]
  %v345 = vld [vmem:[%s1 + $0x460] sm:$0xf]
  %v346 = vld [vmem:[%s1 + $0x464] sm:$0xf]
  %v347 = vld [vmem:[%s1 + $0x468] sm:$0xf]
  %v348 = vld [vmem:[%s1 + $0x46c] sm:$0xf]
  %v349 = vld [vmem:[%s1 + $0x470] sm:$0xf]
  %v350 = vld [vmem:[%s1 + $0x474] sm:$0xf]
  %v351 = vld [vmem:[%s1 + $0x478] sm:$0xf]
  %v352 = vld [vmem:[%s1 + $0x47c] sm:$0xf]
  %v353 = vld [vmem:[%s1 + $0x480] sm:$0xf]
  %v354 = vld [vmem:[%s1 + $0x484] sm:$0xf]
  %v355 = vld [vmem:[%s1 + $0x488] sm:$0xf]
  %v356 = vld [vmem:[%s1 + $0x48c] sm:$0xf]
  %v357 = vld [vmem:[%s1 + $0x490] sm:$0xf]
  %v358 = vld [vmem:[%s1 + $0x494] sm:$0xf]
  %v359 = vld [vmem:[%s1 + $0x498] sm:$0xf]
  %v360 = vld [vmem:[%s1 + $0x49c] sm:$0xf]
  %v361 = vld [vmem:[%s1 + $0x4a0] sm:$0xf]
  %v362 = vld [vmem:[%s1 + $0x4a4] sm:$0xf]
  %v363 = vld [vmem:[%s1 + $0x4a8] sm:$0xf]
  %v364 = vld [vmem:[%s1 + $0x4ac] sm:$0xf]
  %v365 = vld [vmem:[%s1 + $0x4b0] sm:$0xf]
  %v366 = vld [vmem:[%s1 + $0x4b4] sm:$0xf]
  %v367 = vld [vmem:[%s1 + $0x4b8] sm:$0xf]
  %v368 = vld [vmem:[%s1 + $0x4bc] sm:$0xf]
  %v369 = vld [vmem:[%s1 + $0x4c0] sm:$0xf]
  %v370 = vld [vmem:[%s1 + $0x4c4] sm:$0xf]
  %v371 = vld [vmem:[%s1 + $0x4c8] sm:$0xf]
  %v372 = vld [vmem:[%s1 + $0x4cc] sm:$0xf]
  %v373 = vld [vmem:[%s1 + $0x4d0] sm:$0xf]
  %v374 = vld [vmem:[%s1 + $0x4d4] sm:$0xf]
  %v375 = vld [vmem:[%s1 + $0x4d8] sm:$0xf]
  %v376 = vld [vmem:[%s1 + $0x4dc] sm:$0xf]
  %v377 = vld [vmem:[%s1 + $0x4e0] sm:$0xf]
  %v378 = vld [vmem:[%s1 + $0x4e4] sm:$0xf]
  %v379 = vld [vmem:[%s1 + $0x4e8] sm:$0xf]
  %v380 = vld [vmem:[%s1 + $0x4ec] sm:$0xf]
  %v381 = vld [vmem:[%s1 + $0x4f0] sm:$0xf]
  %v382 = vld [vmem:[%s1 + $0x4f4] sm:$0xf]
  %v383 = vld [vmem:[%s1 + $0x4f8] sm:$0xf]
  %v384 = vld [vmem:[%s1 + $0x4fc] sm:$0xf]
  %v385 = vld [vmem:[%s1 + $0x500] sm:$0xf]
  %v386 = vld [vmem:[%s1 + $0x504] sm:$0xf]
  %v387 = vld [vmem:[%s1 + $0x508] sm:$0xf]
  %v388 = vld [vmem:[%s1 + $0x50c] sm:$0xf]
  %v389 = vld [vmem:[%s1 + $0x510] sm:$0xf]
  %v390 = vld [vmem:[%s1 + $0x514] sm:$0xf]
  %v391 = vld [vmem:[%s1 + $0x518] sm:$0xf]
  %v392 = vld [vmem:[%s1 + $0x51c] sm:$0xf]
  %v393 = vld [vmem:[%s1 + $0x520] sm:$0xf]
  %v394 = vld [vmem:[%s1 + $0x524] sm:$0xf]
  %v395 = vld [vmem:[%s1 + $0x528] sm:$0xf]
  %v396 = vld [vmem:[%s1 + $0x52c] sm:$0xf]
  %v397 = vld [vmem:[%s1 + $0x530] sm:$0xf]
  %v398 = vld [vmem:[%s1 + $0x534] sm:$0xf]
  %v399 = vld [vmem:[%s1 + $0x538] sm:$0xf]
  %v400 = vld [vmem:[%s1 + $0x53c] sm:$0xf]
  %v401 = vld [vmem:[%s1 + $0x540] sm:$0xf]
  %v402 = vld [vmem:[%s1 + $0x544] sm:$0xf]
  %v403 = vld [vmem:[%s1 + $0x548] sm:$0xf]
  %v404 = vld [vmem:[%s1 + $0x54c] sm:$0xf]
  %v405 = vld [vmem:[%s1 + $0x550] sm:$0xf]
  %v406 = vld [vmem:[%s1 + $0x554] sm:$0xf]
  %v407 = vld [vmem:[%s1 + $0x558] sm:$0xf]
  %v408 = vld [vmem:[%s1 + $0x55c] sm:$0xf]
  %v409 = vld [vmem:[%s1 + $0x560] sm:$0xf]
  %v410 = vld [vmem:[%s1 + $0x564] sm:$0xf]
  %v411 = vld [vmem:[%s1 + $0x568] sm:$0xf]
  %v412 = vld [vmem:[%s1 + $0x56c] sm:$0xf]
  %v413 = vld [vmem:[%s1 + $0x570] sm:$0xf]
  %v414 = vld [vmem:[%s1 + $0x574] sm:$0xf]
  %v415 = vld [vmem:[%s1 + $0x578] sm:$0xf]
  %v416 = vld [vmem:[%s1 + $0x57c] sm:$0xf]
  %v417 = vld [vmem:[%s1 + $0x580] sm:$0xf]
  %v418 = vld [vmem:[%s1 + $0x584] sm:$0xf]
  %v419 = vld [vmem:[%s1 + $0x588] sm:$0xf]
  %v420 = vld [vmem:[%s1 + $0x58c] sm:$0xf]
  %v421 = vld [vmem:[%s1 + $0x590] sm:$0xf]
  %v422 = vld [vmem:[%s1 + $0x594] sm:$0xf]
  %v423 = vld [vmem:[%s1 + $0x598] sm:$0xf]
  %v424 = vld [vmem:[%s1 + $0x59c] sm:$0xf]
  %v425 = vld [vmem:[%s1 + $0x5a0] sm:$0xf]
  %v426 = vld [vmem:[%s1 + $0x5a4] sm:$0xf]
  %v427 = vld [vmem:[%s1 + $0x5a8] sm:$0xf]
  %v428 = vld [vmem:[%s1 + $0x5ac] sm:$0xf]
  %v429 = vld [vmem:[%s1 + $0x5b0] sm:$0xf]
  %v430 = vld [vmem:[%s1 + $0x5b4] sm:$0xf]
  %v431 = vld [vmem:[%s1 + $0x5b8] sm:$0xf]
  %v432 = vld [vmem:[%s1 + $0x5bc] sm:$0xf]
  %v433 = vld [vmem:[%s1 + $0x5c0] sm:$0xf]
  %v434 = vld [vmem:[%s1 + $0x5c4] sm:$0xf]
  %v435 = vld [vmem:[%s1 + $0x5c8] sm:$0xf]
  %v436 = vld [vmem:[%s1 + $0x5cc] sm:$0xf]
  %v437 = vld [vmem:[%s1 + $0x5d0] sm:$0xf]
  %v438 = vld [vmem:[%s1 + $0x5d4] sm:$0xf]
  %v439 = vld [vmem:[%s1 + $0x5d8] sm:$0xf]
  %v440 = vld [vmem:[%s1 + $0x5dc] sm:$0xf]
  %v441 = vld [vmem:[%s1 + $0x5e0] sm:$0xf]
  %v442 = vld [vmem:[%s1 + $0x5e4] sm:$0xf]
  %v443 = vld [vmem:[%s1 + $0x5e8] sm:$0xf]
  %v444 = vld [vmem:[%s1 + $0x5ec] sm:$0xf]
  %v445 = vld [vmem:[%s1 + $0x5f0] sm:$0xf]
  %v446 = vld [vmem:[%s1 + $0x5f4] sm:$0xf]
  %v447 = vld [vmem:[%s1 + $0x5f8] sm:$0xf]
  %v448 = vld [vmem:[%s1 + $0x5fc] sm:$0xf]
  %v461 = vunpack.c.l.b16 %v17
  %v462 = vunpack.c.h.b16 %v17
  %v463 = vunpack.c.l.b16 %v18
  %v464 = vunpack.c.h.b16 %v18
  %v465 = vunpack.c.l.b16 %v19
  %v466 = vunpack.c.h.b16 %v19
  %v467 = vunpack.c.l.b16 %v20
  %v468 = vunpack.c.h.b16 %v20
  %v469 = vunpack.c.l.b16 %v21
  %v470 = vunpack.c.h.b16 %v21
  %v471 = vunpack.c.l.b16 %v22
  %v472 = vunpack.c.h.b16 %v22
  %v473 = vunpack.c.l.b16 %v23
  %v474 = vunpack.c.h.b16 %v23
  %v475 = vunpack.c.l.b16 %v24
  %v476 = vunpack.c.h.b16 %v24
  %v477 = vunpack.c.l.b16 %v25
  %v478 = vunpack.c.h.b16 %v25
  %v479 = vunpack.c.l.b16 %v26
  %v480 = vunpack.c.h.b16 %v26
  %v481 = vunpack.c.l.b16 %v27
  %v482 = vunpack.c.h.b16 %v27
  %v483 = vunpack.c.l.b16 %v28
  %v484 = vunpack.c.h.b16 %v28
  %v485 = vpack.c.b16 %v467, %v461
  %v486 = vpack.c.b16 %v468, %v462
  %v487 = vpack.c.b16 %v469, %v463
  %v488 = vpack.c.b16 %v470, %v464
  %v489 = vpack.c.b16 %v471, %v465
  %v490 = vpack.c.b16 %v472, %v466
  %v491 = vpack.c.b16 %v479, %v473
  %v492 = vpack.c.b16 %v480, %v474
  %v493 = vpack.c.b16 %v481, %v475
  %v494 = vpack.c.b16 %v482, %v476
  %v495 = vpack.c.b16 %v483, %v477
  %v496 = vpack.c.b16 %v484, %v478
  %v605 = vunpack.c.l.b16 %v65
  %v606 = vunpack.c.l.b16 %v66
  %v607 = vunpack.c.l.b16 %v67
  %v608 = vunpack.c.l.b16 %v68
  %v609 = vunpack.c.l.b16 %v69
  %v610 = vunpack.c.l.b16 %v70
  %v611 = vunpack.c.l.b16 %v71
  %v612 = vunpack.c.l.b16 %v72
  %v613 = vunpack.c.l.b16 %v73
  %v614 = vunpack.c.l.b16 %v74
  %v615 = vunpack.c.l.b16 %v75
  %v616 = vunpack.c.l.b16 %v76
  %v617 = vunpack.c.l.b16 %v77
  %v618 = vunpack.c.l.b16 %v78
  %v619 = vunpack.c.l.b16 %v79
  %v620 = vunpack.c.l.b16 %v80
  %v621 = vunpack.c.l.b16 %v81
  %v622 = vunpack.c.l.b16 %v82
  %v623 = vunpack.c.l.b16 %v83
  %v624 = vunpack.c.l.b16 %v84
  %v625 = vunpack.c.l.b16 %v85
  %v626 = vunpack.c.l.b16 %v86
  %v627 = vunpack.c.l.b16 %v87
  %v628 = vunpack.c.l.b16 %v88
  %v629 = vunpack.c.l.b16 %v89
  %v630 = vunpack.c.l.b16 %v90
  %v631 = vunpack.c.l.b16 %v91
  %v632 = vunpack.c.l.b16 %v92
  %v633 = vunpack.c.l.b16 %v93
  %v634 = vunpack.c.l.b16 %v94
  %v635 = vunpack.c.l.b16 %v95
  %v636 = vunpack.c.l.b16 %v96
  %v637 = vunpack.c.l.b16 %v97
  %v638 = vunpack.c.l.b16 %v98
  %v639 = vunpack.c.l.b16 %v99
  %v640 = vunpack.c.l.b16 %v100
  %v641 = vunpack.c.l.b16 %v101
  %v642 = vunpack.c.l.b16 %v102
  %v643 = vunpack.c.l.b16 %v103
  %v644 = vunpack.c.l.b16 %v104
  %v645 = vunpack.c.l.b16 %v105
  %v646 = vunpack.c.l.b16 %v106
  %v647 = vunpack.c.l.b16 %v107
  %v648 = vunpack.c.l.b16 %v108
  %v649 = vunpack.c.l.b16 %v109
  %v650 = vunpack.c.l.b16 %v110
  %v651 = vunpack.c.l.b16 %v111
  %v652 = vunpack.c.l.b16 %v112
  %v653 = vunpack.c.l.b16 %v113
  %v654 = vunpack.c.l.b16 %v114
  %v655 = vunpack.c.l.b16 %v115
  %v656 = vunpack.c.l.b16 %v116
  %v657 = vunpack.c.l.b16 %v117
  %v658 = vunpack.c.l.b16 %v118
  %v659 = vunpack.c.l.b16 %v119
  %v660 = vunpack.c.l.b16 %v120
  %v661 = vunpack.c.l.b16 %v121
  %v662 = vunpack.c.l.b16 %v122
  %v663 = vunpack.c.l.b16 %v123
  %v664 = vunpack.c.l.b16 %v124
  %v665 = vunpack.c.l.b16 %v125
  %v666 = vunpack.c.l.b16 %v126
  %v667 = vunpack.c.l.b16 %v127
  %v668 = vunpack.c.l.b16 %v128
  %v669 = vunpack.c.l.b16 %v129
  %v670 = vunpack.c.l.b16 %v130
  %v671 = vunpack.c.l.b16 %v131
  %v672 = vunpack.c.l.b16 %v132
  %v673 = vunpack.c.l.b16 %v133
  %v674 = vunpack.c.l.b16 %v134
  %v675 = vunpack.c.l.b16 %v135
  %v676 = vunpack.c.l.b16 %v136
  %v677 = vunpack.c.l.b16 %v137
  %v678 = vunpack.c.l.b16 %v138
  %v679 = vunpack.c.l.b16 %v139
  %v680 = vunpack.c.l.b16 %v140
  %v681 = vunpack.c.l.b16 %v141
  %v682 = vunpack.c.l.b16 %v142
  %v683 = vunpack.c.l.b16 %v143
  %v684 = vunpack.c.l.b16 %v144
  %v685 = vunpack.c.l.b16 %v145
  %v686 = vunpack.c.l.b16 %v146
  %v687 = vunpack.c.l.b16 %v147
  %v688 = vunpack.c.l.b16 %v148
  %v689 = vunpack.c.l.b16 %v149
  %v690 = vunpack.c.l.b16 %v150
  %v691 = vunpack.c.l.b16 %v151
  %v692 = vunpack.c.l.b16 %v152
  %v693 = vunpack.c.l.b16 %v153
  %v694 = vunpack.c.l.b16 %v154
  %v695 = vunpack.c.l.b16 %v155
  %v696 = vunpack.c.l.b16 %v156
  %v697 = vunpack.c.l.b16 %v157
  %v698 = vunpack.c.l.b16 %v158
  %v699 = vunpack.c.l.b16 %v159
  %v700 = vunpack.c.l.b16 %v160
  %v701 = vpack.c.b16 %v606, %v605
  %v702 = vpack.c.b16 %v608, %v607
  %v703 = vpack.c.b16 %v610, %v609
  %v704 = vpack.c.b16 %v612, %v611
  %v705 = vpack.c.b16 %v614, %v613
  %v706 = vpack.c.b16 %v616, %v615
  %v707 = vpack.c.b16 %v618, %v617
  %v708 = vpack.c.b16 %v620, %v619
  %v709 = vpack.c.b16 %v622, %v621
  %v710 = vpack.c.b16 %v624, %v623
  %v711 = vpack.c.b16 %v626, %v625
  %v712 = vpack.c.b16 %v628, %v627
  %v713 = vpack.c.b16 %v630, %v629
  %v714 = vpack.c.b16 %v632, %v631
  %v715 = vpack.c.b16 %v634, %v633
  %v716 = vpack.c.b16 %v636, %v635
  %v717 = vpack.c.b16 %v638, %v637
  %v718 = vpack.c.b16 %v640, %v639
  %v719 = vpack.c.b16 %v642, %v641
  %v720 = vpack.c.b16 %v644, %v643
  %v721 = vpack.c.b16 %v646, %v645
  %v722 = vpack.c.b16 %v648, %v647
  %v723 = vpack.c.b16 %v650, %v649
  %v724 = vpack.c.b16 %v652, %v651
  %v725 = vpack.c.b16 %v654, %v653
  %v726 = vpack.c.b16 %v656, %v655
  %v727 = vpack.c.b16 %v658, %v657
  %v728 = vpack.c.b16 %v660, %v659
  %v729 = vpack.c.b16 %v662, %v661
  %v730 = vpack.c.b16 %v664, %v663
  %v731 = vpack.c.b16 %v666, %v665
  %v732 = vpack.c.b16 %v668, %v667
  %v733 = vpack.c.b16 %v670, %v669
  %v734 = vpack.c.b16 %v672, %v671
  %v735 = vpack.c.b16 %v674, %v673
  %v736 = vpack.c.b16 %v676, %v675
  %v737 = vpack.c.b16 %v678, %v677
  %v738 = vpack.c.b16 %v680, %v679
  %v739 = vpack.c.b16 %v682, %v681
  %v740 = vpack.c.b16 %v684, %v683
  %v741 = vpack.c.b16 %v686, %v685
  %v742 = vpack.c.b16 %v688, %v687
  %v743 = vpack.c.b16 %v690, %v689
  %v744 = vpack.c.b16 %v692, %v691
  %v745 = vpack.c.b16 %v694, %v693
  %v746 = vpack.c.b16 %v696, %v695
  %v747 = vpack.c.b16 %v698, %v697
  %v748 = vpack.c.b16 %v700, %v699
  %797 = vmatpush.bf16.msra.mxu0 %v708
  %798 = vmatpush.bf16.msra.mxu0 %v707
  %799 = vmatpush.bf16.msra.mxu0 %v706
  %800 = vmatpush.bf16.msra.mxu0 %v705
  %801 = vmatpush.bf16.msra.mxu0 %v704
  %802 = vmatpush.bf16.msra.mxu0 %v703
  %803 = vmatpush.bf16.msra.mxu0 %v702
  %804 = vmatpush.bf16.msra.mxu0 %v701
  %805 = vmatmul.bf16.gmra.mxu0 %v485
  %v806 = vpop.f32.mrf.mxu0
  %v807 = vadd.f32 0.0, %v806
  %v808 = vpop.f32.mrf.mxu0
  %v809 = vadd.f32 0.0, %v808
  %810 = vmatmul.bf16.gmra.mxu0 %v491
  %v811 = vpop.f32.mrf.mxu0
  %v812 = vadd.f32 0.0, %v811
  %v813 = vpop.f32.mrf.mxu0
  %v814 = vadd.f32 0.0, %v813
  %815 = vdwg.mxu0
  %816 = vmatpush.bf16.msra.mxu0 %v716
  %817 = vmatpush.bf16.msra.mxu0 %v715
  %818 = vmatpush.bf16.msra.mxu0 %v714
  %819 = vmatpush.bf16.msra.mxu0 %v713
  %820 = vmatpush.bf16.msra.mxu0 %v712
  %821 = vmatpush.bf16.msra.mxu0 %v711
  %822 = vmatpush.bf16.msra.mxu0 %v710
  %823 = vmatpush.bf16.msra.mxu0 %v709
  %824 = vmatmul.bf16.gmra.mxu0 %v486
  %v825 = vpop.f32.mrf.mxu0
  %v826 = vadd.f32 %v807, %v825
  %v827 = vpop.f32.mrf.mxu0
  %v828 = vadd.f32 %v809, %v827
  %829 = vmatmul.bf16.gmra.mxu0 %v492
  %v830 = vpop.f32.mrf.mxu0
  %v831 = vadd.f32 %v812, %v830
  %v832 = vpop.f32.mrf.mxu0
  %v833 = vadd.f32 %v814, %v832
  %834 = vdwg.mxu0
  %835 = vmatpush.bf16.msra.mxu0 %v724
  %836 = vmatpush.bf16.msra.mxu0 %v723
  %837 = vmatpush.bf16.msra.mxu0 %v722
  %838 = vmatpush.bf16.msra.mxu0 %v721
  %839 = vmatpush.bf16.msra.mxu0 %v720
  %840 = vmatpush.bf16.msra.mxu0 %v719
  %841 = vmatpush.bf16.msra.mxu0 %v718
  %842 = vmatpush.bf16.msra.mxu0 %v717
  %843 = vmatmul.bf16.gmra.mxu0 %v487
  %v844 = vpop.f32.mrf.mxu0
  %v845 = vadd.f32 %v826, %v844
  %v846 = vpop.f32.mrf.mxu0
  %v847 = vadd.f32 %v828, %v846
  %848 = vmatmul.bf16.gmra.mxu0 %v493
  %v849 = vpop.f32.mrf.mxu0
  %v850 = vadd.f32 %v831, %v849
  %v851 = vpop.f32.mrf.mxu0
  %v852 = vadd.f32 %v833, %v851
  %853 = vdwg.mxu0
  %854 = vmatpush.bf16.msra.mxu0 %v732
  %855 = vmatpush.bf16.msra.mxu0 %v731
  %856 = vmatpush.bf16.msra.mxu0 %v730
  %857 = vmatpush.bf16.msra.mxu0 %v729
  %858 = vmatpush.bf16.msra.mxu0 %v728
  %859 = vmatpush.bf16.msra.mxu0 %v727
  %860 = vmatpush.bf16.msra.mxu0 %v726
  %861 = vmatpush.bf16.msra.mxu0 %v725
  %862 = vmatmul.bf16.gmra.mxu0 %v488
  %v863 = vpop.f32.mrf.mxu0
  %v864 = vadd.f32 %v845, %v863
  %v865 = vpop.f32.mrf.mxu0
  %v866 = vadd.f32 %v847, %v865
  %867 = vmatmul.bf16.gmra.mxu0 %v494
  %v868 = vpop.f32.mrf.mxu0
  %v869 = vadd.f32 %v850, %v868
  %v870 = vpop.f32.mrf.mxu0
  %v871 = vadd.f32 %v852, %v870
  %872 = vdwg.mxu0
  %873 = vmatpush.bf16.msra.mxu0 %v740
  %874 = vmatpush.bf16.msra.mxu0 %v739
  %875 = vmatpush.bf16.msra.mxu0 %v738
  %876 = vmatpush.bf16.msra.mxu0 %v737
  %877 = vmatpush.bf16.msra.mxu0 %v736
  %878 = vmatpush.bf16.msra.mxu0 %v735
  %879 = vmatpush.bf16.msra.mxu0 %v734
  %880 = vmatpush.bf16.msra.mxu0 %v733
  %881 = vmatmul.bf16.gmra.mxu0 %v489
  %v882 = vpop.f32.mrf.mxu0
  %v883 = vadd.f32 %v864, %v882
  %v884 = vpop.f32.mrf.mxu0
  %v885 = vadd.f32 %v866, %v884
  %886 = vmatmul.bf16.gmra.mxu0 %v495
  %v887 = vpop.f32.mrf.mxu0
  %v888 = vadd.f32 %v869, %v887
  %v889 = vpop.f32.mrf.mxu0
  %v890 = vadd.f32 %v871, %v889
  %891 = vdwg.mxu0
  %892 = vmatpush.bf16.msra.mxu0 %v748
  %893 = vmatpush.bf16.msra.mxu0 %v747
  %894 = vmatpush.bf16.msra.mxu0 %v746
  %895 = vmatpush.bf16.msra.mxu0 %v745
  %896 = vmatpush.bf16.msra.mxu0 %v744
  %897 = vmatpush.bf16.msra.mxu0 %v743
  %898 = vmatpush.bf16.msra.mxu0 %v742
  %899 = vmatpush.bf16.msra.mxu0 %v741
  %900 = vmatmul.bf16.gmra.mxu0 %v490
  %v901 = vpop.f32.mrf.mxu0
  %v902 = vadd.f32 %v883, %v901
  %v903 = vpop.f32.mrf.mxu0
  %v904 = vadd.f32 %v885, %v903
  %905 = vmatmul.bf16.gmra.mxu0 %v496
  %v906 = vpop.f32.mrf.mxu0
  %v907 = vadd.f32 %v888, %v906
  %v908 = vpop.f32.mrf.mxu0
  %v909 = vadd.f32 %v890, %v908
  %910 = vdwg.mxu0
  %v923 = vunpack.c.l.b16 %v29
  %v924 = vunpack.c.h.b16 %v29
  %v925 = vunpack.c.l.b16 %v30
  %v926 = vunpack.c.h.b16 %v30
  %v927 = vunpack.c.l.b16 %v31
  %v928 = vunpack.c.h.b16 %v31
  %v929 = vunpack.c.l.b16 %v32
  %v930 = vunpack.c.h.b16 %v32
  %v931 = vunpack.c.l.b16 %v33
  %v932 = vunpack.c.h.b16 %v33
  %v933 = vunpack.c.l.b16 %v34
  %v934 = vunpack.c.h.b16 %v34
  %v935 = vunpack.c.l.b16 %v35
  %v936 = vunpack.c.h.b16 %v35
  %v937 = vunpack.c.l.b16 %v36
  %v938 = vunpack.c.h.b16 %v36
  %v939 = vunpack.c.l.b16 %v37
  %v940 = vunpack.c.h.b16 %v37
  %v941 = vunpack.c.l.b16 %v38
  %v942 = vunpack.c.h.b16 %v38
  %v943 = vunpack.c.l.b16 %v39
  %v944 = vunpack.c.h.b16 %v39
  %v945 = vunpack.c.l.b16 %v40
  %v946 = vunpack.c.h.b16 %v40
  %v947 = vpack.c.b16 %v929, %v923
  %v948 = vpack.c.b16 %v930, %v924
  %v949 = vpack.c.b16 %v931, %v925
  %v950 = vpack.c.b16 %v932, %v926
  %v951 = vpack.c.b16 %v933, %v927
  %v952 = vpack.c.b16 %v934, %v928
  %v953 = vpack.c.b16 %v941, %v935
  %v954 = vpack.c.b16 %v942, %v936
  %v955 = vpack.c.b16 %v943, %v937
  %v956 = vpack.c.b16 %v944, %v938
  %v957 = vpack.c.b16 %v945, %v939
  %v958 = vpack.c.b16 %v946, %v940
  %v1067 = vunpack.c.l.b16 %v161
  %v1068 = vunpack.c.l.b16 %v162
  %v1069 = vunpack.c.l.b16 %v163
  %v1070 = vunpack.c.l.b16 %v164
  %v1071 = vunpack.c.l.b16 %v165
  %v1072 = vunpack.c.l.b16 %v166
  %v1073 = vunpack.c.l.b16 %v167
  %v1074 = vunpack.c.l.b16 %v168
  %v1075 = vunpack.c.l.b16 %v169
  %v1076 = vunpack.c.l.b16 %v170
  %v1077 = vunpack.c.l.b16 %v171
  %v1078 = vunpack.c.l.b16 %v172
  %v1079 = vunpack.c.l.b16 %v173
  %v1080 = vunpack.c.l.b16 %v174
  %v1081 = vunpack.c.l.b16 %v175
  %v1082 = vunpack.c.l.b16 %v176
  %v1083 = vunpack.c.l.b16 %v177
  %v1084 = vunpack.c.l.b16 %v178
  %v1085 = vunpack.c.l.b16 %v179
  %v1086 = vunpack.c.l.b16 %v180
  %v1087 = vunpack.c.l.b16 %v181
  %v1088 = vunpack.c.l.b16 %v182
  %v1089 = vunpack.c.l.b16 %v183
  %v1090 = vunpack.c.l.b16 %v184
  %v1091 = vunpack.c.l.b16 %v185
  %v1092 = vunpack.c.l.b16 %v186
  %v1093 = vunpack.c.l.b16 %v187
  %v1094 = vunpack.c.l.b16 %v188
  %v1095 = vunpack.c.l.b16 %v189
  %v1096 = vunpack.c.l.b16 %v190
  %v1097 = vunpack.c.l.b16 %v191
  %v1098 = vunpack.c.l.b16 %v192
  %v1099 = vunpack.c.l.b16 %v193
  %v1100 = vunpack.c.l.b16 %v194
  %v1101 = vunpack.c.l.b16 %v195
  %v1102 = vunpack.c.l.b16 %v196
  %v1103 = vunpack.c.l.b16 %v197
  %v1104 = vunpack.c.l.b16 %v198
  %v1105 = vunpack.c.l.b16 %v199
  %v1106 = vunpack.c.l.b16 %v200
  %v1107 = vunpack.c.l.b16 %v201
  %v1108 = vunpack.c.l.b16 %v202
  %v1109 = vunpack.c.l.b16 %v203
  %v1110 = vunpack.c.l.b16 %v204
  %v1111 = vunpack.c.l.b16 %v205
  %v1112 = vunpack.c.l.b16 %v206
  %v1113 = vunpack.c.l.b16 %v207
  %v1114 = vunpack.c.l.b16 %v208
  %v1115 = vunpack.c.l.b16 %v209
  %v1116 = vunpack.c.l.b16 %v210
  %v1117 = vunpack.c.l.b16 %v211
  %v1118 = vunpack.c.l.b16 %v212
  %v1119 = vunpack.c.l.b16 %v213
  %v1120 = vunpack.c.l.b16 %v214
  %v1121 = vunpack.c.l.b16 %v215
  %v1122 = vunpack.c.l.b16 %v216
  %v1123 = vunpack.c.l.b16 %v217
  %v1124 = vunpack.c.l.b16 %v218
  %v1125 = vunpack.c.l.b16 %v219
  %v1126 = vunpack.c.l.b16 %v220
  %v1127 = vunpack.c.l.b16 %v221
  %v1128 = vunpack.c.l.b16 %v222
  %v1129 = vunpack.c.l.b16 %v223
  %v1130 = vunpack.c.l.b16 %v224
  %v1131 = vunpack.c.l.b16 %v225
  %v1132 = vunpack.c.l.b16 %v226
  %v1133 = vunpack.c.l.b16 %v227
  %v1134 = vunpack.c.l.b16 %v228
  %v1135 = vunpack.c.l.b16 %v229
  %v1136 = vunpack.c.l.b16 %v230
  %v1137 = vunpack.c.l.b16 %v231
  %v1138 = vunpack.c.l.b16 %v232
  %v1139 = vunpack.c.l.b16 %v233
  %v1140 = vunpack.c.l.b16 %v234
  %v1141 = vunpack.c.l.b16 %v235
  %v1142 = vunpack.c.l.b16 %v236
  %v1143 = vunpack.c.l.b16 %v237
  %v1144 = vunpack.c.l.b16 %v238
  %v1145 = vunpack.c.l.b16 %v239
  %v1146 = vunpack.c.l.b16 %v240
  %v1147 = vunpack.c.l.b16 %v241
  %v1148 = vunpack.c.l.b16 %v242
  %v1149 = vunpack.c.l.b16 %v243
  %v1150 = vunpack.c.l.b16 %v244
  %v1151 = vunpack.c.l.b16 %v245
  %v1152 = vunpack.c.l.b16 %v246
  %v1153 = vunpack.c.l.b16 %v247
  %v1154 = vunpack.c.l.b16 %v248
  %v1155 = vunpack.c.l.b16 %v249
  %v1156 = vunpack.c.l.b16 %v250
  %v1157 = vunpack.c.l.b16 %v251
  %v1158 = vunpack.c.l.b16 %v252
  %v1159 = vunpack.c.l.b16 %v253
  %v1160 = vunpack.c.l.b16 %v254
  %v1161 = vunpack.c.l.b16 %v255
  %v1162 = vunpack.c.l.b16 %v256
  %v1163 = vpack.c.b16 %v1068, %v1067
  %v1164 = vpack.c.b16 %v1070, %v1069
  %v1165 = vpack.c.b16 %v1072, %v1071
  %v1166 = vpack.c.b16 %v1074, %v1073
  %v1167 = vpack.c.b16 %v1076, %v1075
  %v1168 = vpack.c.b16 %v1078, %v1077
  %v1169 = vpack.c.b16 %v1080, %v1079
  %v1170 = vpack.c.b16 %v1082, %v1081
  %v1171 = vpack.c.b16 %v1084, %v1083
  %v1172 = vpack.c.b16 %v1086, %v1085
  %v1173 = vpack.c.b16 %v1088, %v1087
  %v1174 = vpack.c.b16 %v1090, %v1089
  %v1175 = vpack.c.b16 %v1092, %v1091
  %v1176 = vpack.c.b16 %v1094, %v1093
  %v1177 = vpack.c.b16 %v1096, %v1095
  %v1178 = vpack.c.b16 %v1098, %v1097
  %v1179 = vpack.c.b16 %v1100, %v1099
  %v1180 = vpack.c.b16 %v1102, %v1101
  %v1181 = vpack.c.b16 %v1104, %v1103
  %v1182 = vpack.c.b16 %v1106, %v1105
  %v1183 = vpack.c.b16 %v1108, %v1107
  %v1184 = vpack.c.b16 %v1110, %v1109
  %v1185 = vpack.c.b16 %v1112, %v1111
  %v1186 = vpack.c.b16 %v1114, %v1113
  %v1187 = vpack.c.b16 %v1116, %v1115
  %v1188 = vpack.c.b16 %v1118, %v1117
  %v1189 = vpack.c.b16 %v1120, %v1119
  %v1190 = vpack.c.b16 %v1122, %v1121
  %v1191 = vpack.c.b16 %v1124, %v1123
  %v1192 = vpack.c.b16 %v1126, %v1125
  %v1193 = vpack.c.b16 %v1128, %v1127
  %v1194 = vpack.c.b16 %v1130, %v1129
  %v1195 = vpack.c.b16 %v1132, %v1131
  %v1196 = vpack.c.b16 %v1134, %v1133
  %v1197 = vpack.c.b16 %v1136, %v1135
  %v1198 = vpack.c.b16 %v1138, %v1137
  %v1199 = vpack.c.b16 %v1140, %v1139
  %v1200 = vpack.c.b16 %v1142, %v1141
  %v1201 = vpack.c.b16 %v1144, %v1143
  %v1202 = vpack.c.b16 %v1146, %v1145
  %v1203 = vpack.c.b16 %v1148, %v1147
  %v1204 = vpack.c.b16 %v1150, %v1149
  %v1205 = vpack.c.b16 %v1152, %v1151
  %v1206 = vpack.c.b16 %v1154, %v1153
  %v1207 = vpack.c.b16 %v1156, %v1155
  %v1208 = vpack.c.b16 %v1158, %v1157
  %v1209 = vpack.c.b16 %v1160, %v1159
  %v1210 = vpack.c.b16 %v1162, %v1161
  %1259 = vmatpush.bf16.msra.mxu0 %v1170
  %1260 = vmatpush.bf16.msra.mxu0 %v1169
  %1261 = vmatpush.bf16.msra.mxu0 %v1168
  %1262 = vmatpush.bf16.msra.mxu0 %v1167
  %1263 = vmatpush.bf16.msra.mxu0 %v1166
  %1264 = vmatpush.bf16.msra.mxu0 %v1165
  %1265 = vmatpush.bf16.msra.mxu0 %v1164
  %1266 = vmatpush.bf16.msra.mxu0 %v1163
  %1267 = vmatmul.bf16.gmra.mxu0 %v947
  %v1268 = vpop.f32.mrf.mxu0
  %v1269 = vadd.f32 0.0, %v1268
  %v1270 = vpop.f32.mrf.mxu0
  %v1271 = vadd.f32 0.0, %v1270
  %1272 = vmatmul.bf16.gmra.mxu0 %v953
  %v1273 = vpop.f32.mrf.mxu0
  %v1274 = vadd.f32 0.0, %v1273
  %v1275 = vpop.f32.mrf.mxu0
  %v1276 = vadd.f32 0.0, %v1275
  %1277 = vdwg.mxu0
  %1278 = vmatpush.bf16.msra.mxu0 %v1178
  %1279 = vmatpush.bf16.msra.mxu0 %v1177
  %1280 = vmatpush.bf16.msra.mxu0 %v1176
  %1281 = vmatpush.bf16.msra.mxu0 %v1175
  %1282 = vmatpush.bf16.msra.mxu0 %v1174
  %1283 = vmatpush.bf16.msra.mxu0 %v1173
  %1284 = vmatpush.bf16.msra.mxu0 %v1172
  %1285 = vmatpush.bf16.msra.mxu0 %v1171
  %1286 = vmatmul.bf16.gmra.mxu0 %v948
  %v1287 = vpop.f32.mrf.mxu0
  %v1288 = vadd.f32 %v1269, %v1287
  %v1289 = vpop.f32.mrf.mxu0
  %v1290 = vadd.f32 %v1271, %v1289
  %1291 = vmatmul.bf16.gmra.mxu0 %v954
  %v1292 = vpop.f32.mrf.mxu0
  %v1293 = vadd.f32 %v1274, %v1292
  %v1294 = vpop.f32.mrf.mxu0
  %v1295 = vadd.f32 %v1276, %v1294
  %1296 = vdwg.mxu0
  %1297 = vmatpush.bf16.msra.mxu0 %v1186
  %1298 = vmatpush.bf16.msra.mxu0 %v1185
  %1299 = vmatpush.bf16.msra.mxu0 %v1184
  %1300 = vmatpush.bf16.msra.mxu0 %v1183
  %1301 = vmatpush.bf16.msra.mxu0 %v1182
  %1302 = vmatpush.bf16.msra.mxu0 %v1181
  %1303 = vmatpush.bf16.msra.mxu0 %v1180
  %1304 = vmatpush.bf16.msra.mxu0 %v1179
  %1305 = vmatmul.bf16.gmra.mxu0 %v949
  %v1306 = vpop.f32.mrf.mxu0
  %v1307 = vadd.f32 %v1288, %v1306
  %v1308 = vpop.f32.mrf.mxu0
  %v1309 = vadd.f32 %v1290, %v1308
  %1310 = vmatmul.bf16.gmra.mxu0 %v955
  %v1311 = vpop.f32.mrf.mxu0
  %v1312 = vadd.f32 %v1293, %v1311
  %v1313 = vpop.f32.mrf.mxu0
  %v1314 = vadd.f32 %v1295, %v1313
  %1315 = vdwg.mxu0
  %1316 = vmatpush.bf16.msra.mxu0 %v1194
  %1317 = vmatpush.bf16.msra.mxu0 %v1193
  %1318 = vmatpush.bf16.msra.mxu0 %v1192
  %1319 = vmatpush.bf16.msra.mxu0 %v1191
  %1320 = vmatpush.bf16.msra.mxu0 %v1190
  %1321 = vmatpush.bf16.msra.mxu0 %v1189
  %1322 = vmatpush.bf16.msra.mxu0 %v1188
  %1323 = vmatpush.bf16.msra.mxu0 %v1187
  %1324 = vmatmul.bf16.gmra.mxu0 %v950
  %v1325 = vpop.f32.mrf.mxu0
  %v1326 = vadd.f32 %v1307, %v1325
  %v1327 = vpop.f32.mrf.mxu0
  %v1328 = vadd.f32 %v1309, %v1327
  %1329 = vmatmul.bf16.gmra.mxu0 %v956
  %v1330 = vpop.f32.mrf.mxu0
  %v1331 = vadd.f32 %v1312, %v1330
  %v1332 = vpop.f32.mrf.mxu0
  %v1333 = vadd.f32 %v1314, %v1332
  %1334 = vdwg.mxu0
  %1335 = vmatpush.bf16.msra.mxu0 %v1202
  %1336 = vmatpush.bf16.msra.mxu0 %v1201
  %1337 = vmatpush.bf16.msra.mxu0 %v1200
  %1338 = vmatpush.bf16.msra.mxu0 %v1199
  %1339 = vmatpush.bf16.msra.mxu0 %v1198
  %1340 = vmatpush.bf16.msra.mxu0 %v1197
  %1341 = vmatpush.bf16.msra.mxu0 %v1196
  %1342 = vmatpush.bf16.msra.mxu0 %v1195
  %1343 = vmatmul.bf16.gmra.mxu0 %v951
  %v1344 = vpop.f32.mrf.mxu0
  %v1345 = vadd.f32 %v1326, %v1344
  %v1346 = vpop.f32.mrf.mxu0
  %v1347 = vadd.f32 %v1328, %v1346
  %1348 = vmatmul.bf16.gmra.mxu0 %v957
  %v1349 = vpop.f32.mrf.mxu0
  %v1350 = vadd.f32 %v1331, %v1349
  %v1351 = vpop.f32.mrf.mxu0
  %v1352 = vadd.f32 %v1333, %v1351
  %1353 = vdwg.mxu0
  %1354 = vmatpush.bf16.msra.mxu0 %v1210
  %1355 = vmatpush.bf16.msra.mxu0 %v1209
  %1356 = vmatpush.bf16.msra.mxu0 %v1208
  %1357 = vmatpush.bf16.msra.mxu0 %v1207
  %1358 = vmatpush.bf16.msra.mxu0 %v1206
  %1359 = vmatpush.bf16.msra.mxu0 %v1205
  %1360 = vmatpush.bf16.msra.mxu0 %v1204
  %1361 = vmatpush.bf16.msra.mxu0 %v1203
  %1362 = vmatmul.bf16.gmra.mxu0 %v952
  %v1363 = vpop.f32.mrf.mxu0
  %v1364 = vadd.f32 %v1345, %v1363
  %v1365 = vpop.f32.mrf.mxu0
  %v1366 = vadd.f32 %v1347, %v1365
  %1367 = vmatmul.bf16.gmra.mxu0 %v958
  %v1368 = vpop.f32.mrf.mxu0
  %v1369 = vadd.f32 %v1350, %v1368
  %v1370 = vpop.f32.mrf.mxu0
  %v1371 = vadd.f32 %v1352, %v1370
  %1372 = vdwg.mxu0
  %v1385 = vunpack.c.l.b16 %v41
  %v1386 = vunpack.c.h.b16 %v41
  %v1387 = vunpack.c.l.b16 %v42
  %v1388 = vunpack.c.h.b16 %v42
  %v1389 = vunpack.c.l.b16 %v43
  %v1390 = vunpack.c.h.b16 %v43
  %v1391 = vunpack.c.l.b16 %v44
  %v1392 = vunpack.c.h.b16 %v44
  %v1393 = vunpack.c.l.b16 %v45
  %v1394 = vunpack.c.h.b16 %v45
  %v1395 = vunpack.c.l.b16 %v46
  %v1396 = vunpack.c.h.b16 %v46
  %v1397 = vunpack.c.l.b16 %v47
  %v1398 = vunpack.c.h.b16 %v47
  %v1399 = vunpack.c.l.b16 %v48
  %v1400 = vunpack.c.h.b16 %v48
  %v1401 = vunpack.c.l.b16 %v49
  %v1402 = vunpack.c.h.b16 %v49
  %v1403 = vunpack.c.l.b16 %v50
  %v1404 = vunpack.c.h.b16 %v50
  %v1405 = vunpack.c.l.b16 %v51
  %v1406 = vunpack.c.h.b16 %v51
  %v1407 = vunpack.c.l.b16 %v52
  %v1408 = vunpack.c.h.b16 %v52
  %v1409 = vpack.c.b16 %v1391, %v1385
  %v1410 = vpack.c.b16 %v1392, %v1386
  %v1411 = vpack.c.b16 %v1393, %v1387
  %v1412 = vpack.c.b16 %v1394, %v1388
  %v1413 = vpack.c.b16 %v1395, %v1389
  %v1414 = vpack.c.b16 %v1396, %v1390
  %v1415 = vpack.c.b16 %v1403, %v1397
  %v1416 = vpack.c.b16 %v1404, %v1398
  %v1417 = vpack.c.b16 %v1405, %v1399
  %v1418 = vpack.c.b16 %v1406, %v1400
  %v1419 = vpack.c.b16 %v1407, %v1401
  %v1420 = vpack.c.b16 %v1408, %v1402
  %v1529 = vunpack.c.l.b16 %v257
  %v1530 = vunpack.c.l.b16 %v258
  %v1531 = vunpack.c.l.b16 %v259
  %v1532 = vunpack.c.l.b16 %v260
  %v1533 = vunpack.c.l.b16 %v261
  %v1534 = vunpack.c.l.b16 %v262
  %v1535 = vunpack.c.l.b16 %v263
  %v1536 = vunpack.c.l.b16 %v264
  %v1537 = vunpack.c.l.b16 %v265
  %v1538 = vunpack.c.l.b16 %v266
  %v1539 = vunpack.c.l.b16 %v267
  %v1540 = vunpack.c.l.b16 %v268
  %v1541 = vunpack.c.l.b16 %v269
  %v1542 = vunpack.c.l.b16 %v270
  %v1543 = vunpack.c.l.b16 %v271
  %v1544 = vunpack.c.l.b16 %v272
  %v1545 = vunpack.c.l.b16 %v273
  %v1546 = vunpack.c.l.b16 %v274
  %v1547 = vunpack.c.l.b16 %v275
  %v1548 = vunpack.c.l.b16 %v276
  %v1549 = vunpack.c.l.b16 %v277
  %v1550 = vunpack.c.l.b16 %v278
  %v1551 = vunpack.c.l.b16 %v279
  %v1552 = vunpack.c.l.b16 %v280
  %v1553 = vunpack.c.l.b16 %v281
  %v1554 = vunpack.c.l.b16 %v282
  %v1555 = vunpack.c.l.b16 %v283
  %v1556 = vunpack.c.l.b16 %v284
  %v1557 = vunpack.c.l.b16 %v285
  %v1558 = vunpack.c.l.b16 %v286
  %v1559 = vunpack.c.l.b16 %v287
  %v1560 = vunpack.c.l.b16 %v288
  %v1561 = vunpack.c.l.b16 %v289
  %v1562 = vunpack.c.l.b16 %v290
  %v1563 = vunpack.c.l.b16 %v291
  %v1564 = vunpack.c.l.b16 %v292
  %v1565 = vunpack.c.l.b16 %v293
  %v1566 = vunpack.c.l.b16 %v294
  %v1567 = vunpack.c.l.b16 %v295
  %v1568 = vunpack.c.l.b16 %v296
  %v1569 = vunpack.c.l.b16 %v297
  %v1570 = vunpack.c.l.b16 %v298
  %v1571 = vunpack.c.l.b16 %v299
  %v1572 = vunpack.c.l.b16 %v300
  %v1573 = vunpack.c.l.b16 %v301
  %v1574 = vunpack.c.l.b16 %v302
  %v1575 = vunpack.c.l.b16 %v303
  %v1576 = vunpack.c.l.b16 %v304
  %v1577 = vunpack.c.l.b16 %v305
  %v1578 = vunpack.c.l.b16 %v306
  %v1579 = vunpack.c.l.b16 %v307
  %v1580 = vunpack.c.l.b16 %v308
  %v1581 = vunpack.c.l.b16 %v309
  %v1582 = vunpack.c.l.b16 %v310
  %v1583 = vunpack.c.l.b16 %v311
  %v1584 = vunpack.c.l.b16 %v312
  %v1585 = vunpack.c.l.b16 %v313
  %v1586 = vunpack.c.l.b16 %v314
  %v1587 = vunpack.c.l.b16 %v315
  %v1588 = vunpack.c.l.b16 %v316
  %v1589 = vunpack.c.l.b16 %v317
  %v1590 = vunpack.c.l.b16 %v318
  %v1591 = vunpack.c.l.b16 %v319
  %v1592 = vunpack.c.l.b16 %v320
  %v1593 = vunpack.c.l.b16 %v321
  %v1594 = vunpack.c.l.b16 %v322
  %v1595 = vunpack.c.l.b16 %v323
  %v1596 = vunpack.c.l.b16 %v324
  %v1597 = vunpack.c.l.b16 %v325
  %v1598 = vunpack.c.l.b16 %v326
  %v1599 = vunpack.c.l.b16 %v327
  %v1600 = vunpack.c.l.b16 %v328
  %v1601 = vunpack.c.l.b16 %v329
  %v1602 = vunpack.c.l.b16 %v330
  %v1603 = vunpack.c.l.b16 %v331
  %v1604 = vunpack.c.l.b16 %v332
  %v1605 = vunpack.c.l.b16 %v333
  %v1606 = vunpack.c.l.b16 %v334
  %v1607 = vunpack.c.l.b16 %v335
  %v1608 = vunpack.c.l.b16 %v336
  %v1609 = vunpack.c.l.b16 %v337
  %v1610 = vunpack.c.l.b16 %v338
  %v1611 = vunpack.c.l.b16 %v339
  %v1612 = vunpack.c.l.b16 %v340
  %v1613 = vunpack.c.l.b16 %v341
  %v1614 = vunpack.c.l.b16 %v342
  %v1615 = vunpack.c.l.b16 %v343
  %v1616 = vunpack.c.l.b16 %v344
  %v1617 = vunpack.c.l.b16 %v345
  %v1618 = vunpack.c.l.b16 %v346
  %v1619 = vunpack.c.l.b16 %v347
  %v1620 = vunpack.c.l.b16 %v348
  %v1621 = vunpack.c.l.b16 %v349
  %v1622 = vunpack.c.l.b16 %v350
  %v1623 = vunpack.c.l.b16 %v351
  %v1624 = vunpack.c.l.b16 %v352
  %v1625 = vpack.c.b16 %v1530, %v1529
  %v1626 = vpack.c.b16 %v1532, %v1531
  %v1627 = vpack.c.b16 %v1534, %v1533
  %v1628 = vpack.c.b16 %v1536, %v1535
  %v1629 = vpack.c.b16 %v1538, %v1537
  %v1630 = vpack.c.b16 %v1540, %v1539
  %v1631 = vpack.c.b16 %v1542, %v1541
  %v1632 = vpack.c.b16 %v1544, %v1543
  %v1633 = vpack.c.b16 %v1546, %v1545
  %v1634 = vpack.c.b16 %v1548, %v1547
  %v1635 = vpack.c.b16 %v1550, %v1549
  %v1636 = vpack.c.b16 %v1552, %v1551
  %v1637 = vpack.c.b16 %v1554, %v1553
  %v1638 = vpack.c.b16 %v1556, %v1555
  %v1639 = vpack.c.b16 %v1558, %v1557
  %v1640 = vpack.c.b16 %v1560, %v1559
  %v1641 = vpack.c.b16 %v1562, %v1561
  %v1642 = vpack.c.b16 %v1564, %v1563
  %v1643 = vpack.c.b16 %v1566, %v1565
  %v1644 = vpack.c.b16 %v1568, %v1567
  %v1645 = vpack.c.b16 %v1570, %v1569
  %v1646 = vpack.c.b16 %v1572, %v1571
  %v1647 = vpack.c.b16 %v1574, %v1573
  %v1648 = vpack.c.b16 %v1576, %v1575
  %v1649 = vpack.c.b16 %v1578, %v1577
  %v1650 = vpack.c.b16 %v1580, %v1579
  %v1651 = vpack.c.b16 %v1582, %v1581
  %v1652 = vpack.c.b16 %v1584, %v1583
  %v1653 = vpack.c.b16 %v1586, %v1585
  %v1654 = vpack.c.b16 %v1588, %v1587
  %v1655 = vpack.c.b16 %v1590, %v1589
  %v1656 = vpack.c.b16 %v1592, %v1591
  %v1657 = vpack.c.b16 %v1594, %v1593
  %v1658 = vpack.c.b16 %v1596, %v1595
  %v1659 = vpack.c.b16 %v1598, %v1597
  %v1660 = vpack.c.b16 %v1600, %v1599
  %v1661 = vpack.c.b16 %v1602, %v1601
  %v1662 = vpack.c.b16 %v1604, %v1603
  %v1663 = vpack.c.b16 %v1606, %v1605
  %v1664 = vpack.c.b16 %v1608, %v1607
  %v1665 = vpack.c.b16 %v1610, %v1609
  %v1666 = vpack.c.b16 %v1612, %v1611
  %v1667 = vpack.c.b16 %v1614, %v1613
  %v1668 = vpack.c.b16 %v1616, %v1615
  %v1669 = vpack.c.b16 %v1618, %v1617
  %v1670 = vpack.c.b16 %v1620, %v1619
  %v1671 = vpack.c.b16 %v1622, %v1621
  %v1672 = vpack.c.b16 %v1624, %v1623
  %1721 = vmatpush.bf16.msra.mxu0 %v1632
  %1722 = vmatpush.bf16.msra.mxu0 %v1631
  %1723 = vmatpush.bf16.msra.mxu0 %v1630
  %1724 = vmatpush.bf16.msra.mxu0 %v1629
  %1725 = vmatpush.bf16.msra.mxu0 %v1628
  %1726 = vmatpush.bf16.msra.mxu0 %v1627
  %1727 = vmatpush.bf16.msra.mxu0 %v1626
  %1728 = vmatpush.bf16.msra.mxu0 %v1625
  %1729 = vmatmul.bf16.gmra.mxu0 %v1409
  %v1730 = vpop.f32.mrf.mxu0
  %v1731 = vadd.f32 0.0, %v1730
  %v1732 = vpop.f32.mrf.mxu0
  %v1733 = vadd.f32 0.0, %v1732
  %1734 = vmatmul.bf16.gmra.mxu0 %v1415
  %v1735 = vpop.f32.mrf.mxu0
  %v1736 = vadd.f32 0.0, %v1735
  %v1737 = vpop.f32.mrf.mxu0
  %v1738 = vadd.f32 0.0, %v1737
  %1739 = vdwg.mxu0
  %1740 = vmatpush.bf16.msra.mxu0 %v1640
  %1741 = vmatpush.bf16.msra.mxu0 %v1639
  %1742 = vmatpush.bf16.msra.mxu0 %v1638
  %1743 = vmatpush.bf16.msra.mxu0 %v1637
  %1744 = vmatpush.bf16.msra.mxu0 %v1636
  %1745 = vmatpush.bf16.msra.mxu0 %v1635
  %1746 = vmatpush.bf16.msra.mxu0 %v1634
  %1747 = vmatpush.bf16.msra.mxu0 %v1633
  %1748 = vmatmul.bf16.gmra.mxu0 %v1410
  %v1749 = vpop.f32.mrf.mxu0
  %v1750 = vadd.f32 %v1731, %v1749
  %v1751 = vpop.f32.mrf.mxu0
  %v1752 = vadd.f32 %v1733, %v1751
  %1753 = vmatmul.bf16.gmra.mxu0 %v1416
  %v1754 = vpop.f32.mrf.mxu0
  %v1755 = vadd.f32 %v1736, %v1754
  %v1756 = vpop.f32.mrf.mxu0
  %v1757 = vadd.f32 %v1738, %v1756
  %1758 = vdwg.mxu0
  %1759 = vmatpush.bf16.msra.mxu0 %v1648
  %1760 = vmatpush.bf16.msra.mxu0 %v1647
  %1761 = vmatpush.bf16.msra.mxu0 %v1646
  %1762 = vmatpush.bf16.msra.mxu0 %v1645
  %1763 = vmatpush.bf16.msra.mxu0 %v1644
  %1764 = vmatpush.bf16.msra.mxu0 %v1643
  %1765 = vmatpush.bf16.msra.mxu0 %v1642
  %1766 = vmatpush.bf16.msra.mxu0 %v1641
  %1767 = vmatmul.bf16.gmra.mxu0 %v1411
  %v1768 = vpop.f32.mrf.mxu0
  %v1769 = vadd.f32 %v1750, %v1768
  %v1770 = vpop.f32.mrf.mxu0
  %v1771 = vadd.f32 %v1752, %v1770
  %1772 = vmatmul.bf16.gmra.mxu0 %v1417
  %v1773 = vpop.f32.mrf.mxu0
  %v1774 = vadd.f32 %v1755, %v1773
  %v1775 = vpop.f32.mrf.mxu0
  %v1776 = vadd.f32 %v1757, %v1775
  %1777 = vdwg.mxu0
  %1778 = vmatpush.bf16.msra.mxu0 %v1656
  %1779 = vmatpush.bf16.msra.mxu0 %v1655
  %1780 = vmatpush.bf16.msra.mxu0 %v1654
  %1781 = vmatpush.bf16.msra.mxu0 %v1653
  %1782 = vmatpush.bf16.msra.mxu0 %v1652
  %1783 = vmatpush.bf16.msra.mxu0 %v1651
  %1784 = vmatpush.bf16.msra.mxu0 %v1650
  %1785 = vmatpush.bf16.msra.mxu0 %v1649
  %1786 = vmatmul.bf16.gmra.mxu0 %v1412
  %v1787 = vpop.f32.mrf.mxu0
  %v1788 = vadd.f32 %v1769, %v1787
  %v1789 = vpop.f32.mrf.mxu0
  %v1790 = vadd.f32 %v1771, %v1789
  %1791 = vmatmul.bf16.gmra.mxu0 %v1418
  %v1792 = vpop.f32.mrf.mxu0
  %v1793 = vadd.f32 %v1774, %v1792
  %v1794 = vpop.f32.mrf.mxu0
  %v1795 = vadd.f32 %v1776, %v1794
  %1796 = vdwg.mxu0
  %1797 = vmatpush.bf16.msra.mxu0 %v1664
  %1798 = vmatpush.bf16.msra.mxu0 %v1663
  %1799 = vmatpush.bf16.msra.mxu0 %v1662
  %1800 = vmatpush.bf16.msra.mxu0 %v1661
  %1801 = vmatpush.bf16.msra.mxu0 %v1660
  %1802 = vmatpush.bf16.msra.mxu0 %v1659
  %1803 = vmatpush.bf16.msra.mxu0 %v1658
  %1804 = vmatpush.bf16.msra.mxu0 %v1657
  %1805 = vmatmul.bf16.gmra.mxu0 %v1413
  %v1806 = vpop.f32.mrf.mxu0
  %v1807 = vadd.f32 %v1788, %v1806
  %v1808 = vpop.f32.mrf.mxu0
  %v1809 = vadd.f32 %v1790, %v1808
  %1810 = vmatmul.bf16.gmra.mxu0 %v1419
  %v1811 = vpop.f32.mrf.mxu0
  %v1812 = vadd.f32 %v1793, %v1811
  %v1813 = vpop.f32.mrf.mxu0
  %v1814 = vadd.f32 %v1795, %v1813
  %1815 = vdwg.mxu0
  %1816 = vmatpush.bf16.msra.mxu0 %v1672
  %1817 = vmatpush.bf16.msra.mxu0 %v1671
  %1818 = vmatpush.bf16.msra.mxu0 %v1670
  %1819 = vmatpush.bf16.msra.mxu0 %v1669
  %1820 = vmatpush.bf16.msra.mxu0 %v1668
  %1821 = vmatpush.bf16.msra.mxu0 %v1667
  %1822 = vmatpush.bf16.msra.mxu0 %v1666
  %1823 = vmatpush.bf16.msra.mxu0 %v1665
  %1824 = vmatmul.bf16.gmra.mxu0 %v1414
  %v1825 = vpop.f32.mrf.mxu0
  %v1826 = vadd.f32 %v1807, %v1825
  %v1827 = vpop.f32.mrf.mxu0
  %v1828 = vadd.f32 %v1809, %v1827
  %1829 = vmatmul.bf16.gmra.mxu0 %v1420
  %v1830 = vpop.f32.mrf.mxu0
  %v1831 = vadd.f32 %v1812, %v1830
  %v1832 = vpop.f32.mrf.mxu0
  %v1833 = vadd.f32 %v1814, %v1832
  %1834 = vdwg.mxu0
  %v1847 = vunpack.c.l.b16 %v53
  %v1848 = vunpack.c.h.b16 %v53
  %v1849 = vunpack.c.l.b16 %v54
  %v1850 = vunpack.c.h.b16 %v54
  %v1851 = vunpack.c.l.b16 %v55
  %v1852 = vunpack.c.h.b16 %v55
  %v1853 = vunpack.c.l.b16 %v56
  %v1854 = vunpack.c.h.b16 %v56
  %v1855 = vunpack.c.l.b16 %v57
  %v1856 = vunpack.c.h.b16 %v57
  %v1857 = vunpack.c.l.b16 %v58
  %v1858 = vunpack.c.h.b16 %v58
  %v1859 = vunpack.c.l.b16 %v59
  %v1860 = vunpack.c.h.b16 %v59
  %v1861 = vunpack.c.l.b16 %v60
  %v1862 = vunpack.c.h.b16 %v60
  %v1863 = vunpack.c.l.b16 %v61
  %v1864 = vunpack.c.h.b16 %v61
  %v1865 = vunpack.c.l.b16 %v62
  %v1866 = vunpack.c.h.b16 %v62
  %v1867 = vunpack.c.l.b16 %v63
  %v1868 = vunpack.c.h.b16 %v63
  %v1869 = vunpack.c.l.b16 %v64
  %v1870 = vunpack.c.h.b16 %v64
  %v1871 = vpack.c.b16 %v1853, %v1847
  %v1872 = vpack.c.b16 %v1854, %v1848
  %v1873 = vpack.c.b16 %v1855, %v1849
  %v1874 = vpack.c.b16 %v1856, %v1850
  %v1875 = vpack.c.b16 %v1857, %v1851
  %v1876 = vpack.c.b16 %v1858, %v1852
  %v1877 = vpack.c.b16 %v1865, %v1859
  %v1878 = vpack.c.b16 %v1866, %v1860
  %v1879 = vpack.c.b16 %v1867, %v1861
  %v1880 = vpack.c.b16 %v1868, %v1862
  %v1881 = vpack.c.b16 %v1869, %v1863
  %v1882 = vpack.c.b16 %v1870, %v1864
  %v1991 = vunpack.c.l.b16 %v353
  %v1992 = vunpack.c.l.b16 %v354
  %v1993 = vunpack.c.l.b16 %v355
  %v1994 = vunpack.c.l.b16 %v356
  %v1995 = vunpack.c.l.b16 %v357
  %v1996 = vunpack.c.l.b16 %v358
  %v1997 = vunpack.c.l.b16 %v359
  %v1998 = vunpack.c.l.b16 %v360
  %v1999 = vunpack.c.l.b16 %v361
  %v2000 = vunpack.c.l.b16 %v362
  %v2001 = vunpack.c.l.b16 %v363
  %v2002 = vunpack.c.l.b16 %v364
  %v2003 = vunpack.c.l.b16 %v365
  %v2004 = vunpack.c.l.b16 %v366
  %v2005 = vunpack.c.l.b16 %v367
  %v2006 = vunpack.c.l.b16 %v368
  %v2007 = vunpack.c.l.b16 %v369
  %v2008 = vunpack.c.l.b16 %v370
  %v2009 = vunpack.c.l.b16 %v371
  %v2010 = vunpack.c.l.b16 %v372
  %v2011 = vunpack.c.l.b16 %v373
  %v2012 = vunpack.c.l.b16 %v374
  %v2013 = vunpack.c.l.b16 %v375
  %v2014 = vunpack.c.l.b16 %v376
  %v2015 = vunpack.c.l.b16 %v377
  %v2016 = vunpack.c.l.b16 %v378
  %v2017 = vunpack.c.l.b16 %v379
  %v2018 = vunpack.c.l.b16 %v380
  %v2019 = vunpack.c.l.b16 %v381
  %v2020 = vunpack.c.l.b16 %v382
  %v2021 = vunpack.c.l.b16 %v383
  %v2022 = vunpack.c.l.b16 %v384
  %v2023 = vunpack.c.l.b16 %v385
  %v2024 = vunpack.c.l.b16 %v386
  %v2025 = vunpack.c.l.b16 %v387
  %v2026 = vunpack.c.l.b16 %v388
  %v2027 = vunpack.c.l.b16 %v389
  %v2028 = vunpack.c.l.b16 %v390
  %v2029 = vunpack.c.l.b16 %v391
  %v2030 = vunpack.c.l.b16 %v392
  %v2031 = vunpack.c.l.b16 %v393
  %v2032 = vunpack.c.l.b16 %v394
  %v2033 = vunpack.c.l.b16 %v395
  %v2034 = vunpack.c.l.b16 %v396
  %v2035 = vunpack.c.l.b16 %v397
  %v2036 = vunpack.c.l.b16 %v398
  %v2037 = vunpack.c.l.b16 %v399
  %v2038 = vunpack.c.l.b16 %v400
  %v2039 = vunpack.c.l.b16 %v401
  %v2040 = vunpack.c.l.b16 %v402
  %v2041 = vunpack.c.l.b16 %v403
  %v2042 = vunpack.c.l.b16 %v404
  %v2043 = vunpack.c.l.b16 %v405
  %v2044 = vunpack.c.l.b16 %v406
  %v2045 = vunpack.c.l.b16 %v407
  %v2046 = vunpack.c.l.b16 %v408
  %v2047 = vunpack.c.l.b16 %v409
  %v2048 = vunpack.c.l.b16 %v410
  %v2049 = vunpack.c.l.b16 %v411
  %v2050 = vunpack.c.l.b16 %v412
  %v2051 = vunpack.c.l.b16 %v413
  %v2052 = vunpack.c.l.b16 %v414
  %v2053 = vunpack.c.l.b16 %v415
  %v2054 = vunpack.c.l.b16 %v416
  %v2055 = vunpack.c.l.b16 %v417
  %v2056 = vunpack.c.l.b16 %v418
  %v2057 = vunpack.c.l.b16 %v419
  %v2058 = vunpack.c.l.b16 %v420
  %v2059 = vunpack.c.l.b16 %v421
  %v2060 = vunpack.c.l.b16 %v422
  %v2061 = vunpack.c.l.b16 %v423
  %v2062 = vunpack.c.l.b16 %v424
  %v2063 = vunpack.c.l.b16 %v425
  %v2064 = vunpack.c.l.b16 %v426
  %v2065 = vunpack.c.l.b16 %v427
  %v2066 = vunpack.c.l.b16 %v428
  %v2067 = vunpack.c.l.b16 %v429
  %v2068 = vunpack.c.l.b16 %v430
  %v2069 = vunpack.c.l.b16 %v431
  %v2070 = vunpack.c.l.b16 %v432
  %v2071 = vunpack.c.l.b16 %v433
  %v2072 = vunpack.c.l.b16 %v434
  %v2073 = vunpack.c.l.b16 %v435
  %v2074 = vunpack.c.l.b16 %v436
  %v2075 = vunpack.c.l.b16 %v437
  %v2076 = vunpack.c.l.b16 %v438
  %v2077 = vunpack.c.l.b16 %v439
  %v2078 = vunpack.c.l.b16 %v440
  %v2079 = vunpack.c.l.b16 %v441
  %v2080 = vunpack.c.l.b16 %v442
  %v2081 = vunpack.c.l.b16 %v443
  %v2082 = vunpack.c.l.b16 %v444
  %v2083 = vunpack.c.l.b16 %v445
  %v2084 = vunpack.c.l.b16 %v446
  %v2085 = vunpack.c.l.b16 %v447
  %v2086 = vunpack.c.l.b16 %v448
  %v2087 = vpack.c.b16 %v1992, %v1991
  %v2088 = vpack.c.b16 %v1994, %v1993
  %v2089 = vpack.c.b16 %v1996, %v1995
  %v2090 = vpack.c.b16 %v1998, %v1997
  %v2091 = vpack.c.b16 %v2000, %v1999
  %v2092 = vpack.c.b16 %v2002, %v2001
  %v2093 = vpack.c.b16 %v2004, %v2003
  %v2094 = vpack.c.b16 %v2006, %v2005
  %v2095 = vpack.c.b16 %v2008, %v2007
  %v2096 = vpack.c.b16 %v2010, %v2009
  %v2097 = vpack.c.b16 %v2012, %v2011
  %v2098 = vpack.c.b16 %v2014, %v2013
  %v2099 = vpack.c.b16 %v2016, %v2015
  %v2100 = vpack.c.b16 %v2018, %v2017
  %v2101 = vpack.c.b16 %v2020, %v2019
  %v2102 = vpack.c.b16 %v2022, %v2021
  %v2103 = vpack.c.b16 %v2024, %v2023
  %v2104 = vpack.c.b16 %v2026, %v2025
  %v2105 = vpack.c.b16 %v2028, %v2027
  %v2106 = vpack.c.b16 %v2030, %v2029
  %v2107 = vpack.c.b16 %v2032, %v2031
  %v2108 = vpack.c.b16 %v2034, %v2033
  %v2109 = vpack.c.b16 %v2036, %v2035
  %v2110 = vpack.c.b16 %v2038, %v2037
  %v2111 = vpack.c.b16 %v2040, %v2039
  %v2112 = vpack.c.b16 %v2042, %v2041
  %v2113 = vpack.c.b16 %v2044, %v2043
  %v2114 = vpack.c.b16 %v2046, %v2045
  %v2115 = vpack.c.b16 %v2048, %v2047
  %v2116 = vpack.c.b16 %v2050, %v2049
  %v2117 = vpack.c.b16 %v2052, %v2051
  %v2118 = vpack.c.b16 %v2054, %v2053
  %v2119 = vpack.c.b16 %v2056, %v2055
  %v2120 = vpack.c.b16 %v2058, %v2057
  %v2121 = vpack.c.b16 %v2060, %v2059
  %v2122 = vpack.c.b16 %v2062, %v2061
  %v2123 = vpack.c.b16 %v2064, %v2063
  %v2124 = vpack.c.b16 %v2066, %v2065
  %v2125 = vpack.c.b16 %v2068, %v2067
  %v2126 = vpack.c.b16 %v2070, %v2069
  %v2127 = vpack.c.b16 %v2072, %v2071
  %v2128 = vpack.c.b16 %v2074, %v2073
  %v2129 = vpack.c.b16 %v2076, %v2075
  %v2130 = vpack.c.b16 %v2078, %v2077
  %v2131 = vpack.c.b16 %v2080, %v2079
  %v2132 = vpack.c.b16 %v2082, %v2081
  %v2133 = vpack.c.b16 %v2084, %v2083
  %v2134 = vpack.c.b16 %v2086, %v2085
  %2183 = vmatpush.bf16.msra.mxu0 %v2094
  %2184 = vmatpush.bf16.msra.mxu0 %v2093
  %2185 = vmatpush.bf16.msra.mxu0 %v2092
  %2186 = vmatpush.bf16.msra.mxu0 %v2091
  %2187 = vmatpush.bf16.msra.mxu0 %v2090
  %2188 = vmatpush.bf16.msra.mxu0 %v2089
  %2189 = vmatpush.bf16.msra.mxu0 %v2088
  %2190 = vmatpush.bf16.msra.mxu0 %v2087
  %2191 = vmatmul.bf16.gmra.mxu0 %v1871
  %v2192 = vpop.f32.mrf.mxu0
  %v2193 = vadd.f32 0.0, %v2192
  %v2194 = vpop.f32.mrf.mxu0
  %v2195 = vadd.f32 0.0, %v2194
  %2196 = vmatmul.bf16.gmra.mxu0 %v1877
  %v2197 = vpop.f32.mrf.mxu0
  %v2198 = vadd.f32 0.0, %v2197
  %v2199 = vpop.f32.mrf.mxu0
  %v2200 = vadd.f32 0.0, %v2199
  %2201 = vdwg.mxu0
  %2202 = vmatpush.bf16.msra.mxu0 %v2102
  %2203 = vmatpush.bf16.msra.mxu0 %v2101
  %2204 = vmatpush.bf16.msra.mxu0 %v2100
  %2205 = vmatpush.bf16.msra.mxu0 %v2099
  %2206 = vmatpush.bf16.msra.mxu0 %v2098
  %2207 = vmatpush.bf16.msra.mxu0 %v2097
  %2208 = vmatpush.bf16.msra.mxu0 %v2096
  %2209 = vmatpush.bf16.msra.mxu0 %v2095
  %2210 = vmatmul.bf16.gmra.mxu0 %v1872
  %v2211 = vpop.f32.mrf.mxu0
  %v2212 = vadd.f32 %v2193, %v2211
  %v2213 = vpop.f32.mrf.mxu0
  %v2214 = vadd.f32 %v2195, %v2213
  %2215 = vmatmul.bf16.gmra.mxu0 %v1878
  %v2216 = vpop.f32.mrf.mxu0
  %v2217 = vadd.f32 %v2198, %v2216
  %v2218 = vpop.f32.mrf.mxu0
  %v2219 = vadd.f32 %v2200, %v2218
  %2220 = vdwg.mxu0
  %2221 = vmatpush.bf16.msra.mxu0 %v2110
  %2222 = vmatpush.bf16.msra.mxu0 %v2109
  %2223 = vmatpush.bf16.msra.mxu0 %v2108
  %2224 = vmatpush.bf16.msra.mxu0 %v2107
  %2225 = vmatpush.bf16.msra.mxu0 %v2106
  %2226 = vmatpush.bf16.msra.mxu0 %v2105
  %2227 = vmatpush.bf16.msra.mxu0 %v2104
  %2228 = vmatpush.bf16.msra.mxu0 %v2103
  %2229 = vmatmul.bf16.gmra.mxu0 %v1873
  %v2230 = vpop.f32.mrf.mxu0
  %v2231 = vadd.f32 %v2212, %v2230
  %v2232 = vpop.f32.mrf.mxu0
  %v2233 = vadd.f32 %v2214, %v2232
  %2234 = vmatmul.bf16.gmra.mxu0 %v1879
  %v2235 = vpop.f32.mrf.mxu0
  %v2236 = vadd.f32 %v2217, %v2235
  %v2237 = vpop.f32.mrf.mxu0
  %v2238 = vadd.f32 %v2219, %v2237
  %2239 = vdwg.mxu0
  %2240 = vmatpush.bf16.msra.mxu0 %v2118
  %2241 = vmatpush.bf16.msra.mxu0 %v2117
  %2242 = vmatpush.bf16.msra.mxu0 %v2116
  %2243 = vmatpush.bf16.msra.mxu0 %v2115
  %2244 = vmatpush.bf16.msra.mxu0 %v2114
  %2245 = vmatpush.bf16.msra.mxu0 %v2113
  %2246 = vmatpush.bf16.msra.mxu0 %v2112
  %2247 = vmatpush.bf16.msra.mxu0 %v2111
  %2248 = vmatmul.bf16.gmra.mxu0 %v1874
  %v2249 = vpop.f32.mrf.mxu0
  %v2250 = vadd.f32 %v2231, %v2249
  %v2251 = vpop.f32.mrf.mxu0
  %v2252 = vadd.f32 %v2233, %v2251
  %2253 = vmatmul.bf16.gmra.mxu0 %v1880
  %v2254 = vpop.f32.mrf.mxu0
  %v2255 = vadd.f32 %v2236, %v2254
  %v2256 = vpop.f32.mrf.mxu0
  %v2257 = vadd.f32 %v2238, %v2256
  %2258 = vdwg.mxu0
  %2259 = vmatpush.bf16.msra.mxu0 %v2126
  %2260 = vmatpush.bf16.msra.mxu0 %v2125
  %2261 = vmatpush.bf16.msra.mxu0 %v2124
  %2262 = vmatpush.bf16.msra.mxu0 %v2123
  %2263 = vmatpush.bf16.msra.mxu0 %v2122
  %2264 = vmatpush.bf16.msra.mxu0 %v2121
  %2265 = vmatpush.bf16.msra.mxu0 %v2120
  %2266 = vmatpush.bf16.msra.mxu0 %v2119
  %2267 = vmatmul.bf16.gmra.mxu0 %v1875
  %v2268 = vpop.f32.mrf.mxu0
  %v2269 = vadd.f32 %v2250, %v2268
  %v2270 = vpop.f32.mrf.mxu0
  %v2271 = vadd.f32 %v2252, %v2270
  %2272 = vmatmul.bf16.gmra.mxu0 %v1881
  %v2273 = vpop.f32.mrf.mxu0
  %v2274 = vadd.f32 %v2255, %v2273
  %v2275 = vpop.f32.mrf.mxu0
  %v2276 = vadd.f32 %v2257, %v2275
  %2277 = vdwg.mxu0
  %2278 = vmatpush.bf16.msra.mxu0 %v2134
  %2279 = vmatpush.bf16.msra.mxu0 %v2133
  %2280 = vmatpush.bf16.msra.mxu0 %v2132
  %2281 = vmatpush.bf16.msra.mxu0 %v2131
  %2282 = vmatpush.bf16.msra.mxu0 %v2130
  %2283 = vmatpush.bf16.msra.mxu0 %v2129
  %2284 = vmatpush.bf16.msra.mxu0 %v2128
  %2285 = vmatpush.bf16.msra.mxu0 %v2127
  %2286 = vmatmul.bf16.gmra.mxu0 %v1876
  %v2287 = vpop.f32.mrf.mxu0
  %v2288 = vadd.f32 %v2269, %v2287
  %v2289 = vpop.f32.mrf.mxu0
  %v2290 = vadd.f32 %v2271, %v2289
  %2291 = vmatmul.bf16.gmra.mxu0 %v1882
  %v2292 = vpop.f32.mrf.mxu0
  %v2293 = vadd.f32 %v2274, %v2292
  %v2294 = vpop.f32.mrf.mxu0
  %v2295 = vadd.f32 %v2276, %v2294
  %2296 = vdwg.mxu0
  %v2297 = vld [vmem:[%s2] sm:$0x1]
  %v2298 = vld [vmem:[%s3] sm:$0x1]
  %vm2299 = vcmask 785408
  %v2300 = vsel %vm2299, %v902, 0.0
  %v2301 = vsel %vm2299, %v1364, 0.0
  %v2302 = vadd.f32 %v2300, %v2301
  %v2303 = vsel %vm2299, %v1826, 0.0
  %v2304 = vadd.f32 %v2302, %v2303
  %v2305 = vsel %vm2299, %v2288, 0.0
  %v2306 = vadd.f32 %v2304, %v2305
  %v2307 = vsel %vm2299, %v904, 0.0
  %v2308 = vsel %vm2299, %v1366, 0.0
  %v2309 = vadd.f32 %v2307, %v2308
  %v2310 = vsel %vm2299, %v1828, 0.0
  %v2311 = vadd.f32 %v2309, %v2310
  %v2312 = vsel %vm2299, %v2290, 0.0
  %v2313 = vadd.f32 %v2311, %v2312
  %v2314 = vsel %vm2299, %v907, 0.0
  %v2315 = vsel %vm2299, %v1369, 0.0
  %v2316 = vadd.f32 %v2314, %v2315
  %v2317 = vsel %vm2299, %v1831, 0.0
  %v2318 = vadd.f32 %v2316, %v2317
  %v2319 = vsel %vm2299, %v2293, 0.0
  %v2320 = vadd.f32 %v2318, %v2319
  %v2321 = vsel %vm2299, %v909, 0.0
  %v2322 = vsel %vm2299, %v1371, 0.0
  %v2323 = vadd.f32 %v2321, %v2322
  %v2324 = vsel %vm2299, %v1833, 0.0
  %v2325 = vadd.f32 %v2323, %v2324
  %v2326 = vsel %vm2299, %v2295, 0.0
  %v2327 = vadd.f32 %v2325, %v2326
  %v2328 = vrcp.pop 4.0
  %v2329 = vmul.f32 4.0, %v2328
  %v2330 = vsub.f32 1.0, %v2329
  %v2331 = vmul.f32 %v2328, %v2330
  %v2332 = vadd.f32 %v2328, %v2331
  %vm2333 = vweird.f32 %v2328
  %v2334 = vsel %vm2333, %v2328, %v2332
  %v2335 = vmul.f32 %v2306, %v2334
  %v2336 = vmul.f32 %v2313, %v2334
  %v2337 = vmul.f32 %v2320, %v2334
  %v2338 = vmul.f32 %v2327, %v2334
  %v2339 = vsel %vm2299, %v2335, 0.0
  %v2340 = vsel %vm2299, %v2336, 0.0
  %v2341 = vadd.f32 %v2339, %v2340
  %v2342 = vsel %vm2299, %v2337, 0.0
  %v2343 = vadd.f32 %v2341, %v2342
  %v2344 = vsel %vm2299, %v2338, 0.0
  %v2345 = vadd.f32 %v2343, %v2344
  %v2346 = vrot.slane %v2345, 4
  %v2347 = vadd.f32 %v2345, %v2346
  %v2348 = vrot.slane %v2347, 2
  %v2349 = vadd.f32 %v2347, %v2348
  %v2350 = vrot.slane %v2349, 1
  %v2351 = vadd.f32 %v2349, %v2350
  %v2352 = vrcp.pop 32.0
  %v2353 = vmul.f32 32.0, %v2352
  %v2354 = vsub.f32 1.0, %v2353
  %v2355 = vmul.f32 %v2352, %v2354
  %v2356 = vadd.f32 %v2352, %v2355
  %vm2357 = vweird.f32 %v2352
  %v2358 = vsel %vm2357, %v2352, %v2356
  %v2359 = vmul.f32 %v2351, %v2358
  %v2360 = vsub.f32 %v902, %v2359
  %v2361 = vsub.f32 %v904, %v2359
  %v2362 = vsub.f32 %v907, %v2359
  %v2363 = vsub.f32 %v909, %v2359
  %v2364 = vsub.f32 %v1364, %v2359
  %v2365 = vsub.f32 %v1366, %v2359
  %v2366 = vsub.f32 %v1369, %v2359
  %v2367 = vsub.f32 %v1371, %v2359
  %v2368 = vsub.f32 %v1826, %v2359
  %v2369 = vsub.f32 %v1828, %v2359
  %v2370 = vsub.f32 %v1831, %v2359
  %v2371 = vsub.f32 %v1833, %v2359
  %v2372 = vsub.f32 %v2288, %v2359
  %v2373 = vsub.f32 %v2290, %v2359
  %v2374 = vsub.f32 %v2293, %v2359
  %v2375 = vsub.f32 %v2295, %v2359
  %v2376 = vmul.f32 %v2360, %v2360
  %v2377 = vmul.f32 %v2361, %v2361
  %v2378 = vmul.f32 %v2362, %v2362
  %v2379 = vmul.f32 %v2363, %v2363
  %v2380 = vmul.f32 %v2364, %v2364
  %v2381 = vmul.f32 %v2365, %v2365
  %v2382 = vmul.f32 %v2366, %v2366
  %v2383 = vmul.f32 %v2367, %v2367
  %v2384 = vmul.f32 %v2368, %v2368
  %v2385 = vmul.f32 %v2369, %v2369
  %v2386 = vmul.f32 %v2370, %v2370
  %v2387 = vmul.f32 %v2371, %v2371
  %v2388 = vmul.f32 %v2372, %v2372
  %v2389 = vmul.f32 %v2373, %v2373
  %v2390 = vmul.f32 %v2374, %v2374
  %v2391 = vmul.f32 %v2375, %v2375
  %v2392 = vsel %vm2299, %v2376, 0.0
  %v2393 = vsel %vm2299, %v2380, 0.0
  %v2394 = vadd.f32 %v2392, %v2393
  %v2395 = vsel %vm2299, %v2384, 0.0
  %v2396 = vadd.f32 %v2394, %v2395
  %v2397 = vsel %vm2299, %v2388, 0.0
  %v2398 = vadd.f32 %v2396, %v2397
  %v2399 = vsel %vm2299, %v2377, 0.0
  %v2400 = vsel %vm2299, %v2381, 0.0
  %v2401 = vadd.f32 %v2399, %v2400
  %v2402 = vsel %vm2299, %v2385, 0.0
  %v2403 = vadd.f32 %v2401, %v2402
  %v2404 = vsel %vm2299, %v2389, 0.0
  %v2405 = vadd.f32 %v2403, %v2404
  %v2406 = vsel %vm2299, %v2378, 0.0
  %v2407 = vsel %vm2299, %v2382, 0.0
  %v2408 = vadd.f32 %v2406, %v2407
  %v2409 = vsel %vm2299, %v2386, 0.0
  %v2410 = vadd.f32 %v2408, %v2409
  %v2411 = vsel %vm2299, %v2390, 0.0
  %v2412 = vadd.f32 %v2410, %v2411
  %v2413 = vsel %vm2299, %v2379, 0.0
  %v2414 = vsel %vm2299, %v2383, 0.0
  %v2415 = vadd.f32 %v2413, %v2414
  %v2416 = vsel %vm2299, %v2387, 0.0
  %v2417 = vadd.f32 %v2415, %v2416
  %v2418 = vsel %vm2299, %v2391, 0.0
  %v2419 = vadd.f32 %v2417, %v2418
  %v2420 = vmul.f32 %v2398, %v2334
  %v2421 = vmul.f32 %v2405, %v2334
  %v2422 = vmul.f32 %v2412, %v2334
  %v2423 = vmul.f32 %v2419, %v2334
  %v2424 = vsel %vm2299, %v2420, 0.0
  %v2425 = vsel %vm2299, %v2421, 0.0
  %v2426 = vadd.f32 %v2424, %v2425
  %v2427 = vsel %vm2299, %v2422, 0.0
  %v2428 = vadd.f32 %v2426, %v2427
  %v2429 = vsel %vm2299, %v2423, 0.0
  %v2430 = vadd.f32 %v2428, %v2429
  %v2431 = vrot.slane %v2430, 4
  %v2432 = vadd.f32 %v2430, %v2431
  %v2433 = vrot.slane %v2432, 2
  %v2434 = vadd.f32 %v2432, %v2433
  %v2435 = vrot.slane %v2434, 1
  %v2436 = vadd.f32 %v2434, %v2435
  %v2437 = vmul.f32 %v2436, %v2358
  %v2438 = vadd.f32 %v2437, 1e-05
  %v2439 = vrsqrt.pop %v2438
  %v2440 = vmul.f32 %v2439, %v2438
  %v2441 = vmul.f32 %v2440, %v2439
  %v2442 = vmul.f32 0.5, %v2441
  %v2443 = vsub.f32 1.5, %v2442
  %v2444 = vmul.f32 %v2439, %v2443
  %vm2445 = vweird.f32 %v2438
  %vm2446 = vweird.f32 %v2439
  %vm2447 = vmor %vm2445, %vm2446
  %v2448 = vsel %vm2447, %v2439, %v2444
  %v2449 = vmul.f32 %v2360, %v2448
  %v2450 = vmul.f32 %v2361, %v2448
  %v2451 = vmul.f32 %v2362, %v2448
  %v2452 = vmul.f32 %v2363, %v2448
  %v2453 = vmul.f32 %v2364, %v2448
  %v2454 = vmul.f32 %v2365, %v2448
  %v2455 = vmul.f32 %v2366, %v2448
  %v2456 = vmul.f32 %v2367, %v2448
  %v2457 = vmul.f32 %v2368, %v2448
  %v2458 = vmul.f32 %v2369, %v2448
  %v2459 = vmul.f32 %v2370, %v2448
  %v2460 = vmul.f32 %v2371, %v2448
  %v2461 = vmul.f32 %v2372, %v2448
  %v2462 = vmul.f32 %v2373, %v2448
  %v2463 = vmul.f32 %v2374, %v2448
  %v2464 = vmul.f32 %v2375, %v2448
  %v2466 = vperm.slane %v2297, 0
  %v2468 = vmul.f32 %v2449, %v2466
  %v2469 = vmul.f32 %v2450, %v2466
  %v2470 = vmul.f32 %v2451, %v2466
  %v2471 = vmul.f32 %v2452, %v2466
  %v2472 = vmul.f32 %v2453, %v2466
  %v2473 = vmul.f32 %v2454, %v2466
  %v2474 = vmul.f32 %v2455, %v2466
  %v2475 = vmul.f32 %v2456, %v2466
  %v2476 = vmul.f32 %v2457, %v2466
  %v2477 = vmul.f32 %v2458, %v2466
  %v2478 = vmul.f32 %v2459, %v2466
  %v2479 = vmul.f32 %v2460, %v2466
  %v2480 = vmul.f32 %v2461, %v2466
  %v2481 = vmul.f32 %v2462, %v2466
  %v2482 = vmul.f32 %v2463, %v2466
  %v2483 = vmul.f32 %v2464, %v2466
  %v2485 = vperm.slane %v2298, 0
  %v2487 = vadd.f32 %v2468, %v2485
  %v2488 = vadd.f32 %v2469, %v2485
  %v2489 = vadd.f32 %v2470, %v2485
  %v2490 = vadd.f32 %v2471, %v2485
  %v2491 = vadd.f32 %v2472, %v2485
  %v2492 = vadd.f32 %v2473, %v2485
  %v2493 = vadd.f32 %v2474, %v2485
  %v2494 = vadd.f32 %v2475, %v2485
  %v2495 = vadd.f32 %v2476, %v2485
  %v2496 = vadd.f32 %v2477, %v2485
  %v2497 = vadd.f32 %v2478, %v2485
  %v2498 = vadd.f32 %v2479, %v2485
  %v2499 = vadd.f32 %v2480, %v2485
  %v2500 = vadd.f32 %v2481, %v2485
  %v2501 = vadd.f32 %v2482, %v2485
  %v2502 = vadd.f32 %v2483, %v2485
  %v2503 = vmax.f32 %v2487, 0.0
  %v2504 = vmax.f32 %v2488, 0.0
  %v2505 = vmax.f32 %v2489, 0.0
  %v2506 = vmax.f32 %v2490, 0.0
  %v2507 = vmax.f32 %v2491, 0.0
  %v2508 = vmax.f32 %v2492, 0.0
  %v2509 = vmax.f32 %v2493, 0.0
  %v2510 = vmax.f32 %v2494, 0.0
  %v2511 = vmax.f32 %v2495, 0.0
  %v2512 = vmax.f32 %v2496, 0.0
  %v2513 = vmax.f32 %v2497, 0.0
  %v2514 = vmax.f32 %v2498, 0.0
  %v2515 = vmax.f32 %v2499, 0.0
  %v2516 = vmax.f32 %v2500, 0.0
  %v2517 = vmax.f32 %v2501, 0.0
  %v2518 = vmax.f32 %v2502, 0.0
  %v2519 = vpack.c.bf16 %v2503, %v2503
  %v2520 = vpack.c.bf16 %v2504, %v2504
  %v2521 = vpack.c.bf16 %v2505, %v2505
  %v2522 = vpack.c.bf16 %v2506, %v2506
  %v2523 = vpack.c.bf16 %v2507, %v2507
  %v2524 = vpack.c.bf16 %v2508, %v2508
  %v2525 = vpack.c.bf16 %v2509, %v2509
  %v2526 = vpack.c.bf16 %v2510, %v2510
  %v2527 = vpack.c.bf16 %v2511, %v2511
  %v2528 = vpack.c.bf16 %v2512, %v2512
  %v2529 = vpack.c.bf16 %v2513, %v2513
  %v2530 = vpack.c.bf16 %v2514, %v2514
  %v2531 = vpack.c.bf16 %v2515, %v2515
  %v2532 = vpack.c.bf16 %v2516, %v2516
  %v2533 = vpack.c.bf16 %v2517, %v2517
  %v2534 = vpack.c.bf16 %v2518, %v2518
  %vm2535 = vcmask 781312
  %2536 = vst.msk [vmem:[%s4] sm:$0xf] %vm2535, %v2519
  %2537 = vst.msk [vmem:[%s4 + $0x4] sm:$0xf] %vm2535, %v2520
  %2538 = vst.msk [vmem:[%s4 + $0x8] sm:$0xf] %vm2535, %v2521
  %2539 = vst.msk [vmem:[%s4 + $0xc] sm:$0xf] %vm2535, %v2522
  %2540 = vst.msk [vmem:[%s4 + $0x10] sm:$0xf] %vm2535, %v2523
  %2541 = vst.msk [vmem:[%s4 + $0x14] sm:$0xf] %vm2535, %v2524
  %2542 = vst.msk [vmem:[%s4 + $0x18] sm:$0xf] %vm2535, %v2525
  %2543 = vst.msk [vmem:[%s4 + $0x1c] sm:$0xf] %vm2535, %v2526
  %2544 = vst.msk [vmem:[%s4 + $0x20] sm:$0xf] %vm2535, %v2527
  %2545 = vst.msk [vmem:[%s4 + $0x24] sm:$0xf] %vm2535, %v2528
  %2546 = vst.msk [vmem:[%s4 + $0x28] sm:$0xf] %vm2535, %v2529
  %2547 = vst.msk [vmem:[%s4 + $0x2c] sm:$0xf] %vm2535, %v2530
  %2548 = vst.msk [vmem:[%s4 + $0x30] sm:$0xf] %vm2535, %v2531
  %2549 = vst.msk [vmem:[%s4 + $0x34] sm:$0xf] %vm2535, %v2532
  %2550 = vst.msk [vmem:[%s4 + $0x38] sm:$0xf] %vm2535, %v2533
  %2551 = vst.msk [vmem:[%s4 + $0x3c] sm:$0xf] %vm2535, %v2534
  // Predicated region
  $region18: #{generator_32_forward.5} parent=0 // pred_check
    _
  $region19: #{generator_32_forward.5} parent=0 // pred_check_branch
    %2553 = sbr.rel (0) target = $region21
  $region20: #{generator_32_forward.5} parent=0 // pred_region
    _
  $region21: #{generator_32_forward.5} parent=0 // pred_fallthru
    _
  // Predicated region
  $region22: #{generator_32_forward.5} parent=0 // pred_check
    _
  $region23: #{generator_32_forward.5} parent=0 // pred_check_branch
    %2555 = sbr.rel (0) target = $region25
  $region24: #{generator_32_forward.5} parent=0 // pred_region
    _
  $region25: #{generator_32_forward.5} parent=0 // pred_fallthru
    _

// kernel: generator_32_forward.4
$region0: #{generator_32_forward.4}
  #allocation0 [shape = 'u32[]', space=smem, size = 0x4, offset = 0x4, fixed_abs, tag = 'smem constant byte address 0x4 - core index']
  #allocation1 [shape = 'u32[72,128]{1,0:T(1,128)}', space=vmem, size = 0x9000, scoped, tag = 'internal scratch']
  %s0 = inlined_call_operand.vmem [shape: bf16[2,110], index: 0, kind: input, shape index: {}]
  %s1 = inlined_call_operand.vmem [shape: bf16[110,384], index: 1, kind: input, shape index: {}]
  %s2 = inlined_call_operand.vmem [shape: f32[1,384], index: 2, kind: input, shape index: {}]
  %s3 = inlined_call_operand.vmem [shape: bf16[16,384,192], index: 3, kind: input, shape index: {}]
  %s4 = inlined_call_operand.vmem [shape: f32[1,192], index: 4, kind: input, shape index: {}]
  %s5 = inlined_call_operand.vmem [shape: f32[1,192], index: 5, kind: input, shape index: {}]
  %s6 = inlined_call_operand.vmem [shape: bf16[16,2,192], index: 6, kind: output, shape index: {}]
  %s7 = sld [smem:[#allocation0]]
  $region34: #{generator_32_forward.4} parent=0
    _
  %s9 = ssub.s32 1, %s7
  %s10 = scalar_select 0, %s9, %s7
  // Predicated region
  $region2: #{generator_32_forward.4} parent=0 // pred_check
    _
  $region3: #{generator_32_forward.4} parent=0 // pred_check_branch
    %12 = sbr.rel (0) target = $region5
  $region4: #{generator_32_forward.4} parent=0 // pred_region
    _
  $region5: #{generator_32_forward.4} parent=0 // pred_fallthru
    _
  // Predicated region
  $region6: #{generator_32_forward.4} parent=0 // pred_check
    _
  $region7: #{generator_32_forward.4} parent=0 // pred_check_branch
    %14 = sbr.rel (0) target = $region9
  $region8: #{generator_32_forward.4} parent=0 // pred_region
    _
  $region9: #{generator_32_forward.4} parent=0 // pred_fallthru
    _
  // Predicated region
  $region10: #{generator_32_forward.4} parent=0 // pred_check
    _
  $region11: #{generator_32_forward.4} parent=0 // pred_check_branch
    %16 = sbr.rel (0) target = $region13
  $region12: #{generator_32_forward.4} parent=0 // pred_region
    _
  $region13: #{generator_32_forward.4} parent=0 // pred_fallthru
    _
  // Predicated region
  $region14: #{generator_32_forward.4} parent=0 // pred_check
    _
  $region15: #{generator_32_forward.4} parent=0 // pred_check_branch
    %18 = sbr.rel (0) target = $region17
  $region16: #{generator_32_forward.4} parent=0 // pred_region
    _
  $region17: #{generator_32_forward.4} parent=0 // pred_fallthru
    _
  // Predicated region
  $region18: #{generator_32_forward.4} parent=0 // pred_check
    _
  $region19: #{generator_32_forward.4} parent=0 // pred_check_branch
    %20 = sbr.rel (0) target = $region21
  $region20: #{generator_32_forward.4} parent=0 // pred_region
    _
  $region21: #{generator_32_forward.4} parent=0 // pred_fallthru
    _
  // Predicated region
  $region22: #{generator_32_forward.4} parent=0 // pred_check
    _
  $region23: #{generator_32_forward.4} parent=0 // pred_check_branch
    %22 = sbr.rel (0) target = $region25
  $region24: #{generator_32_forward.4} parent=0 // pred_region
    _
  $region25: #{generator_32_forward.4} parent=0 // pred_fallthru
    _
  %v24 = vld [vmem:[%s0] sm:$0x1]
  %v25 = vld [vmem:[%s1] sm:$0xff]
  %v26 = vld [vmem:[%s1 + $0x8] sm:$0xf]
  %v27 = vld [vmem:[%s1 + $0xc] sm:$0xff]
  %v28 = vld [vmem:[%s1 + $0x14] sm:$0xf]
  %v29 = vld [vmem:[%s1 + $0x18] sm:$0xff]
  %v30 = vld [vmem:[%s1 + $0x20] sm:$0xf]
  %v31 = vld [vmem:[%s1 + $0x24] sm:$0xff]
  %v32 = vld [vmem:[%s1 + $0x2c] sm:$0xf]
  %v33 = vld [vmem:[%s1 + $0x30] sm:$0xff]
  %v34 = vld [vmem:[%s1 + $0x38] sm:$0xf]
  %v35 = vld [vmem:[%s1 + $0x3c] sm:$0xff]
  %v36 = vld [vmem:[%s1 + $0x44] sm:$0xf]
  %v37 = vld [vmem:[%s1 + $0x48] sm:$0xff]
  %v38 = vld [vmem:[%s1 + $0x50] sm:$0xf]
  %v39 = vld [vmem:[%s1 + $0x54] sm:$0xff]
  %v40 = vld [vmem:[%s1 + $0x5c] sm:$0xf]
  %v41 = vld [vmem:[%s1 + $0x60] sm:$0xff]
  %v42 = vld [vmem:[%s1 + $0x68] sm:$0xf]
  %v43 = vld [vmem:[%s1 + $0x6c] sm:$0xff]
  %v44 = vld [vmem:[%s1 + $0x74] sm:$0xf]
  %v45 = vld [vmem:[%s1 + $0x78] sm:$0xff]
  %v46 = vld [vmem:[%s1 + $0x80] sm:$0xf]
  %v47 = vld [vmem:[%s1 + $0x84] sm:$0xff]
  %v48 = vld [vmem:[%s1 + $0x8c] sm:$0xf]
  %v49 = vld [vmem:[%s1 + $0x90] sm:$0xff]
  %v50 = vld [vmem:[%s1 + $0x98] sm:$0xf]
  %v51 = vld [vmem:[%s1 + $0x9c] sm:$0x77]
  %v52 = vld [vmem:[%s1 + $0xa4] sm:$0x7]
  %v53 = vld [vmem:[%s2] sm:$0x7]
  %v55 = vperm.slane %v53, 0
  %v56 = vperm.slane %v53, 1
  %v57 = vperm.slane %v53, 2
  %v89 = vunpack.c.l.b16 %v25
  %v90 = vunpack.c.h.b16 %v25
  %v91 = vunpack.c.l.b16 %v26
  %v92 = vunpack.c.l.b16 %v27
  %v93 = vunpack.c.h.b16 %v27
  %v94 = vunpack.c.l.b16 %v28
  %v95 = vunpack.c.l.b16 %v29
  %v96 = vunpack.c.h.b16 %v29
  %v97 = vunpack.c.l.b16 %v30
  %v98 = vunpack.c.l.b16 %v31
  %v99 = vunpack.c.h.b16 %v31
  %v100 = vunpack.c.l.b16 %v32
  %v101 = vunpack.c.l.b16 %v33
  %v102 = vunpack.c.h.b16 %v33
  %v103 = vunpack.c.l.b16 %v34
  %v104 = vunpack.c.l.b16 %v35
  %v105 = vunpack.c.h.b16 %v35
  %v106 = vunpack.c.l.b16 %v36
  %v107 = vunpack.c.l.b16 %v37
  %v108 = vunpack.c.h.b16 %v37
  %v109 = vunpack.c.l.b16 %v38
  %v110 = vunpack.c.l.b16 %v39
  %v111 = vunpack.c.h.b16 %v39
  %v112 = vunpack.c.l.b16 %v40
  %v113 = vunpack.c.l.b16 %v41
  %v114 = vunpack.c.h.b16 %v41
  %v115 = vunpack.c.l.b16 %v42
  %v116 = vunpack.c.l.b16 %v43
  %v117 = vunpack.c.h.b16 %v43
  %v118 = vunpack.c.l.b16 %v44
  %v119 = vunpack.c.l.b16 %v45
  %v120 = vunpack.c.h.b16 %v45
  %v121 = vunpack.c.l.b16 %v46
  %v122 = vunpack.c.l.b16 %v47
  %v123 = vunpack.c.h.b16 %v47
  %v124 = vunpack.c.l.b16 %v48
  %v125 = vunpack.c.l.b16 %v49
  %v126 = vunpack.c.h.b16 %v49
  %v127 = vunpack.c.l.b16 %v50
  %v128 = vunpack.c.l.b16 %v51
  %v129 = vunpack.c.h.b16 %v51
  %v130 = vunpack.c.l.b16 %v52
  %v131 = vpack.c.b16 %v92, %v89
  %v132 = vpack.c.b16 %v93, %v90
  %v133 = vpack.c.b16 %v94, %v91
  %v134 = vpack.c.b16 %v98, %v95
  %v135 = vpack.c.b16 %v99, %v96
  %v136 = vpack.c.b16 %v100, %v97
  %v137 = vpack.c.b16 %v104, %v101
  %v138 = vpack.c.b16 %v105, %v102
  %v139 = vpack.c.b16 %v106, %v103
  %v140 = vpack.c.b16 %v110, %v107
  %v141 = vpack.c.b16 %v111, %v108
  %v142 = vpack.c.b16 %v112, %v109
  %v143 = vpack.c.b16 %v116, %v113
  %v144 = vpack.c.b16 %v117, %v114
  %v145 = vpack.c.b16 %v118, %v115
  %v146 = vpack.c.b16 %v122, %v119
  %v147 = vpack.c.b16 %v123, %v120
  %v148 = vpack.c.b16 %v124, %v121
  %v149 = vpack.c.b16 %v128, %v125
  %v150 = vpack.c.b16 %v129, %v126
  %v151 = vpack.c.b16 %v130, %v127
  %vm170 = vcmask 900096
  %v172 = vsel %vm170, %v24, 0
  %vm174 = vcmask 1046528
  %v176 = vsel %vm174, %v149, 0
  %v179 = vsel %vm174, %v150, 0
  %v182 = vsel %vm174, %v151, 0
  %184 = vmatpush.bf16.msra.mxu0 0
  %185 = vmatpush.bf16.msra.mxu0 %v176
  %186 = vmatpush.bf16.msra.mxu0 %v146
  %187 = vmatpush.bf16.msra.mxu0 %v143
  %188 = vmatpush.bf16.msra.mxu0 %v140
  %189 = vmatpush.bf16.msra.mxu0 %v137
  %190 = vmatpush.bf16.msra.mxu0 %v134
  %191 = vmatpush.bf16.msra.mxu0 %v131
  %192 = vmatmul.bf16.gmra.mxu0 %v172
  %v193 = vpop.f32.mrf.mxu0
  %v194 = vadd.f32 %v55, %v193
  %v195 = vpop.f32.mrf.mxu0
  %196 = vdwg.mxu0
  %197 = vmatpush.bf16.msra.mxu0 0
  %198 = vmatpush.bf16.msra.mxu0 %v179
  %199 = vmatpush.bf16.msra.mxu0 %v147
  %200 = vmatpush.bf16.msra.mxu0 %v144
  %201 = vmatpush.bf16.msra.mxu0 %v141
  %202 = vmatpush.bf16.msra.mxu0 %v138
  %203 = vmatpush.bf16.msra.mxu0 %v135
  %204 = vmatpush.bf16.msra.mxu0 %v132
  %205 = vmatmul.bf16.gmra.mxu0 %v172
  %v206 = vpop.f32.mrf.mxu0
  %v207 = vadd.f32 %v56, %v206
  %v208 = vpop.f32.mrf.mxu0
  %209 = vdwg.mxu0
  %210 = vmatpush.bf16.msra.mxu0 0
  %211 = vmatpush.bf16.msra.mxu0 %v182
  %212 = vmatpush.bf16.msra.mxu0 %v148
  %213 = vmatpush.bf16.msra.mxu0 %v145
  %214 = vmatpush.bf16.msra.mxu0 %v142
  %215 = vmatpush.bf16.msra.mxu0 %v139
  %216 = vmatpush.bf16.msra.mxu0 %v136
  %217 = vmatpush.bf16.msra.mxu0 %v133
  %218 = vmatmul.bf16.gmra.mxu0 %v172
  %v219 = vpop.f32.mrf.mxu0
  %v220 = vadd.f32 %v57, %v219
  %v221 = vpop.f32.mrf.mxu0
  %222 = vdwg.mxu0
  %v223 = vpack.c.bf16 %v207, %v194
  %v224 = vpack.c.bf16 %v220, %v220
  %v225 = vld [vmem:[%s3] sm:$0xff]
  %v226 = vld [vmem:[%s3 + $0x8] sm:$0xff]
  %v227 = vld [vmem:[%s3 + $0x10] sm:$0xff]
  %v228 = vld [vmem:[%s3 + $0x18] sm:$0xff]
  %v229 = vld [vmem:[%s3 + $0x20] sm:$0xff]
  %v230 = vld [vmem:[%s3 + $0x28] sm:$0xff]
  %v231 = vld [vmem:[%s3 + $0x30] sm:$0xff]
  %v232 = vld [vmem:[%s3 + $0x38] sm:$0xff]
  %v233 = vld [vmem:[%s3 + $0x40] sm:$0xff]
  %v234 = vld [vmem:[%s3 + $0x48] sm:$0xff]
  %v235 = vld [vmem:[%s3 + $0x50] sm:$0xff]
  %v236 = vld [vmem:[%s3 + $0x58] sm:$0xff]
  %v237 = vld [vmem:[%s3 + $0x60] sm:$0xff]
  %v238 = vld [vmem:[%s3 + $0x68] sm:$0xff]
  %v239 = vld [vmem:[%s3 + $0x70] sm:$0xff]
  %v240 = vld [vmem:[%s3 + $0x78] sm:$0xff]
  %v241 = vld [vmem:[%s3 + $0x80] sm:$0xff]
  %v242 = vld [vmem:[%s3 + $0x88] sm:$0xff]
  %v243 = vld [vmem:[%s3 + $0x90] sm:$0xff]
  %v244 = vld [vmem:[%s3 + $0x98] sm:$0xff]
  %v245 = vld [vmem:[%s3 + $0xa0] sm:$0xff]
  %v246 = vld [vmem:[%s3 + $0xa8] sm:$0xff]
  %v247 = vld [vmem:[%s3 + $0xb0] sm:$0xff]
  %v248 = vld [vmem:[%s3 + $0xb8] sm:$0xff]
  %v249 = vld [vmem:[%s3 + $0xc0] sm:$0xff]
  %v250 = vld [vmem:[%s3 + $0xc8] sm:$0xff]
  %v251 = vld [vmem:[%s3 + $0xd0] sm:$0xff]
  %v252 = vld [vmem:[%s3 + $0xd8] sm:$0xff]
  %v253 = vld [vmem:[%s3 + $0xe0] sm:$0xff]
  %v254 = vld [vmem:[%s3 + $0xe8] sm:$0xff]
  %v255 = vld [vmem:[%s3 + $0xf0] sm:$0xff]
  %v256 = vld [vmem:[%s3 + $0xf8] sm:$0xff]
  %v257 = vld [vmem:[%s3 + $0x100] sm:$0xff]
  %v258 = vld [vmem:[%s3 + $0x108] sm:$0xff]
  %v259 = vld [vmem:[%s3 + $0x110] sm:$0xff]
  %v260 = vld [vmem:[%s3 + $0x118] sm:$0xff]
  %v261 = vld [vmem:[%s3 + $0x120] sm:$0xff]
  %v262 = vld [vmem:[%s3 + $0x128] sm:$0xff]
  %v263 = vld [vmem:[%s3 + $0x130] sm:$0xff]
  %v264 = vld [vmem:[%s3 + $0x138] sm:$0xff]
  %v265 = vld [vmem:[%s3 + $0x140] sm:$0xff]
  %v266 = vld [vmem:[%s3 + $0x148] sm:$0xff]
  %v267 = vld [vmem:[%s3 + $0x150] sm:$0xff]
  %v268 = vld [vmem:[%s3 + $0x158] sm:$0xff]
  %v269 = vld [vmem:[%s3 + $0x160] sm:$0xff]
  %v270 = vld [vmem:[%s3 + $0x168] sm:$0xff]
  %v271 = vld [vmem:[%s3 + $0x170] sm:$0xff]
  %v272 = vld [vmem:[%s3 + $0x178] sm:$0xff]
  %v273 = vld [vmem:[%s3 + $0x180] sm:$0xff]
  %v274 = vld [vmem:[%s3 + $0x188] sm:$0xff]
  %v275 = vld [vmem:[%s3 + $0x190] sm:$0xff]
  %v276 = vld [vmem:[%s3 + $0x198] sm:$0xff]
  %v277 = vld [vmem:[%s3 + $0x1a0] sm:$0xff]
  %v278 = vld [vmem:[%s3 + $0x1a8] sm:$0xff]
  %v279 = vld [vmem:[%s3 + $0x1b0] sm:$0xff]
  %v280 = vld [vmem:[%s3 + $0x1b8] sm:$0xff]
  %v281 = vld [vmem:[%s3 + $0x1c0] sm:$0xff]
  %v282 = vld [vmem:[%s3 + $0x1c8] sm:$0xff]
  %v283 = vld [vmem:[%s3 + $0x1d0] sm:$0xff]
  %v284 = vld [vmem:[%s3 + $0x1d8] sm:$0xff]
  %v285 = vld [vmem:[%s3 + $0x1e0] sm:$0xff]
  %v286 = vld [vmem:[%s3 + $0x1e8] sm:$0xff]
  %v287 = vld [vmem:[%s3 + $0x1f0] sm:$0xff]
  %v288 = vld [vmem:[%s3 + $0x1f8] sm:$0xff]
  %v289 = vld [vmem:[%s3 + $0x200] sm:$0xff]
  %v290 = vld [vmem:[%s3 + $0x208] sm:$0xff]
  %v291 = vld [vmem:[%s3 + $0x210] sm:$0xff]
  %v292 = vld [vmem:[%s3 + $0x218] sm:$0xff]
  %v293 = vld [vmem:[%s3 + $0x220] sm:$0xff]
  %v294 = vld [vmem:[%s3 + $0x228] sm:$0xff]
  %v295 = vld [vmem:[%s3 + $0x230] sm:$0xff]
  %v296 = vld [vmem:[%s3 + $0x238] sm:$0xff]
  %v297 = vld [vmem:[%s3 + $0x240] sm:$0xff]
  %v298 = vld [vmem:[%s3 + $0x248] sm:$0xff]
  %v299 = vld [vmem:[%s3 + $0x250] sm:$0xff]
  %v300 = vld [vmem:[%s3 + $0x258] sm:$0xff]
  %v301 = vld [vmem:[%s3 + $0x260] sm:$0xff]
  %v302 = vld [vmem:[%s3 + $0x268] sm:$0xff]
  %v303 = vld [vmem:[%s3 + $0x270] sm:$0xff]
  %v304 = vld [vmem:[%s3 + $0x278] sm:$0xff]
  %v305 = vld [vmem:[%s3 + $0x280] sm:$0xff]
  %v306 = vld [vmem:[%s3 + $0x288] sm:$0xff]
  %v307 = vld [vmem:[%s3 + $0x290] sm:$0xff]
  %v308 = vld [vmem:[%s3 + $0x298] sm:$0xff]
  %v309 = vld [vmem:[%s3 + $0x2a0] sm:$0xff]
  %v310 = vld [vmem:[%s3 + $0x2a8] sm:$0xff]
  %v311 = vld [vmem:[%s3 + $0x2b0] sm:$0xff]
  %v312 = vld [vmem:[%s3 + $0x2b8] sm:$0xff]
  %v313 = vld [vmem:[%s3 + $0x2c0] sm:$0xff]
  %v314 = vld [vmem:[%s3 + $0x2c8] sm:$0xff]
  %v315 = vld [vmem:[%s3 + $0x2d0] sm:$0xff]
  %v316 = vld [vmem:[%s3 + $0x2d8] sm:$0xff]
  %v317 = vld [vmem:[%s3 + $0x2e0] sm:$0xff]
  %v318 = vld [vmem:[%s3 + $0x2e8] sm:$0xff]
  %v319 = vld [vmem:[%s3 + $0x2f0] sm:$0xff]
  %v320 = vld [vmem:[%s3 + $0x2f8] sm:$0xff]
  %v321 = vld [vmem:[%s3 + $0x300] sm:$0xff]
  %v322 = vld [vmem:[%s3 + $0x308] sm:$0xff]
  %v323 = vld [vmem:[%s3 + $0x310] sm:$0xff]
  %v324 = vld [vmem:[%s3 + $0x318] sm:$0xff]
  %v325 = vld [vmem:[%s3 + $0x320] sm:$0xff]
  %v326 = vld [vmem:[%s3 + $0x328] sm:$0xff]
  %v327 = vld [vmem:[%s3 + $0x330] sm:$0xff]
  %v328 = vld [vmem:[%s3 + $0x338] sm:$0xff]
  %v329 = vld [vmem:[%s3 + $0x340] sm:$0xff]
  %v330 = vld [vmem:[%s3 + $0x348] sm:$0xff]
  %v331 = vld [vmem:[%s3 + $0x350] sm:$0xff]
  %v332 = vld [vmem:[%s3 + $0x358] sm:$0xff]
  %v333 = vld [vmem:[%s3 + $0x360] sm:$0xff]
  %v334 = vld [vmem:[%s3 + $0x368] sm:$0xff]
  %v335 = vld [vmem:[%s3 + $0x370] sm:$0xff]
  %v336 = vld [vmem:[%s3 + $0x378] sm:$0xff]
  %v337 = vld [vmem:[%s3 + $0x380] sm:$0xff]
  %v338 = vld [vmem:[%s3 + $0x388] sm:$0xff]
  %v339 = vld [vmem:[%s3 + $0x390] sm:$0xff]
  %v340 = vld [vmem:[%s3 + $0x398] sm:$0xff]
  %v341 = vld [vmem:[%s3 + $0x3a0] sm:$0xff]
  %v342 = vld [vmem:[%s3 + $0x3a8] sm:$0xff]
  %v343 = vld [vmem:[%s3 + $0x3b0] sm:$0xff]
  %v344 = vld [vmem:[%s3 + $0x3b8] sm:$0xff]
  %v345 = vld [vmem:[%s3 + $0x3c0] sm:$0xff]
  %v346 = vld [vmem:[%s3 + $0x3c8] sm:$0xff]
  %v347 = vld [vmem:[%s3 + $0x3d0] sm:$0xff]
  %v348 = vld [vmem:[%s3 + $0x3d8] sm:$0xff]
  %v349 = vld [vmem:[%s3 + $0x3e0] sm:$0xff]
  %v350 = vld [vmem:[%s3 + $0x3e8] sm:$0xff]
  %v351 = vld [vmem:[%s3 + $0x3f0] sm:$0xff]
  %v352 = vld [vmem:[%s3 + $0x3f8] sm:$0xff]
  %v353 = vld [vmem:[%s3 + $0x400] sm:$0xff]
  %v354 = vld [vmem:[%s3 + $0x408] sm:$0xff]
  %v355 = vld [vmem:[%s3 + $0x410] sm:$0xff]
  %v356 = vld [vmem:[%s3 + $0x418] sm:$0xff]
  %v357 = vld [vmem:[%s3 + $0x420] sm:$0xff]
  %v358 = vld [vmem:[%s3 + $0x428] sm:$0xff]
  %v359 = vld [vmem:[%s3 + $0x430] sm:$0xff]
  %v360 = vld [vmem:[%s3 + $0x438] sm:$0xff]
  %v361 = vld [vmem:[%s3 + $0x440] sm:$0xff]
  %v362 = vld [vmem:[%s3 + $0x448] sm:$0xff]
  %v363 = vld [vmem:[%s3 + $0x450] sm:$0xff]
  %v364 = vld [vmem:[%s3 + $0x458] sm:$0xff]
  %v365 = vld [vmem:[%s3 + $0x460] sm:$0xff]
  %v366 = vld [vmem:[%s3 + $0x468] sm:$0xff]
  %v367 = vld [vmem:[%s3 + $0x470] sm:$0xff]
  %v368 = vld [vmem:[%s3 + $0x478] sm:$0xff]
  %v369 = vld [vmem:[%s3 + $0x480] sm:$0xff]
  %v370 = vld [vmem:[%s3 + $0x488] sm:$0xff]
  %v371 = vld [vmem:[%s3 + $0x490] sm:$0xff]
  %v372 = vld [vmem:[%s3 + $0x498] sm:$0xff]
  %v373 = vld [vmem:[%s3 + $0x4a0] sm:$0xff]
  %v374 = vld [vmem:[%s3 + $0x4a8] sm:$0xff]
  %v375 = vld [vmem:[%s3 + $0x4b0] sm:$0xff]
  %v376 = vld [vmem:[%s3 + $0x4b8] sm:$0xff]
  %v377 = vld [vmem:[%s3 + $0x4c0] sm:$0xff]
  %v378 = vld [vmem:[%s3 + $0x4c8] sm:$0xff]
  %v379 = vld [vmem:[%s3 + $0x4d0] sm:$0xff]
  %v380 = vld [vmem:[%s3 + $0x4d8] sm:$0xff]
  %v381 = vld [vmem:[%s3 + $0x4e0] sm:$0xff]
  %v382 = vld [vmem:[%s3 + $0x4e8] sm:$0xff]
  %v383 = vld [vmem:[%s3 + $0x4f0] sm:$0xff]
  %v384 = vld [vmem:[%s3 + $0x4f8] sm:$0xff]
  %v385 = vld [vmem:[%s3 + $0x500] sm:$0xff]
  %v386 = vld [vmem:[%s3 + $0x508] sm:$0xff]
  %v387 = vld [vmem:[%s3 + $0x510] sm:$0xff]
  %v388 = vld [vmem:[%s3 + $0x518] sm:$0xff]
  %v389 = vld [vmem:[%s3 + $0x520] sm:$0xff]
  %v390 = vld [vmem:[%s3 + $0x528] sm:$0xff]
  %v391 = vld [vmem:[%s3 + $0x530] sm:$0xff]
  %v392 = vld [vmem:[%s3 + $0x538] sm:$0xff]
  %v393 = vld [vmem:[%s3 + $0x540] sm:$0xff]
  %v394 = vld [vmem:[%s3 + $0x548] sm:$0xff]
  %v395 = vld [vmem:[%s3 + $0x550] sm:$0xff]
  %v396 = vld [vmem:[%s3 + $0x558] sm:$0xff]
  %v397 = vld [vmem:[%s3 + $0x560] sm:$0xff]
  %v398 = vld [vmem:[%s3 + $0x568] sm:$0xff]
  %v399 = vld [vmem:[%s3 + $0x570] sm:$0xff]
  %v400 = vld [vmem:[%s3 + $0x578] sm:$0xff]
  %v401 = vld [vmem:[%s3 + $0x580] sm:$0xff]
  %v402 = vld [vmem:[%s3 + $0x588] sm:$0xff]
  %v403 = vld [vmem:[%s3 + $0x590] sm:$0xff]
  %v404 = vld [vmem:[%s3 + $0x598] sm:$0xff]
  %v405 = vld [vmem:[%s3 + $0x5a0] sm:$0xff]
  %v406 = vld [vmem:[%s3 + $0x5a8] sm:$0xff]
  %v407 = vld [vmem:[%s3 + $0x5b0] sm:$0xff]
  %v408 = vld [vmem:[%s3 + $0x5b8] sm:$0xff]
  %v409 = vld [vmem:[%s3 + $0x5c0] sm:$0xff]
  %v410 = vld [vmem:[%s3 + $0x5c8] sm:$0xff]
  %v411 = vld [vmem:[%s3 + $0x5d0] sm:$0xff]
  %v412 = vld [vmem:[%s3 + $0x5d8] sm:$0xff]
  %v413 = vld [vmem:[%s3 + $0x5e0] sm:$0xff]
  %v414 = vld [vmem:[%s3 + $0x5e8] sm:$0xff]
  %v415 = vld [vmem:[%s3 + $0x5f0] sm:$0xff]
  %v416 = vld [vmem:[%s3 + $0x5f8] sm:$0xff]
  %v417 = vld [vmem:[%s3 + $0x600] sm:$0xff]
  %v418 = vld [vmem:[%s3 + $0x608] sm:$0xff]
  %v419 = vld [vmem:[%s3 + $0x610] sm:$0xff]
  %v420 = vld [vmem:[%s3 + $0x618] sm:$0xff]
  %v421 = vld [vmem:[%s3 + $0x620] sm:$0xff]
  %v422 = vld [vmem:[%s3 + $0x628] sm:$0xff]
  %v423 = vld [vmem:[%s3 + $0x630] sm:$0xff]
  %v424 = vld [vmem:[%s3 + $0x638] sm:$0xff]
  %v425 = vld [vmem:[%s3 + $0x640] sm:$0xff]
  %v426 = vld [vmem:[%s3 + $0x648] sm:$0xff]
  %v427 = vld [vmem:[%s3 + $0x650] sm:$0xff]
  %v428 = vld [vmem:[%s3 + $0x658] sm:$0xff]
  %v429 = vld [vmem:[%s3 + $0x660] sm:$0xff]
  %v430 = vld [vmem:[%s3 + $0x668] sm:$0xff]
  %v431 = vld [vmem:[%s3 + $0x670] sm:$0xff]
  %v432 = vld [vmem:[%s3 + $0x678] sm:$0xff]
  %v433 = vld [vmem:[%s3 + $0x680] sm:$0xff]
  %v434 = vld [vmem:[%s3 + $0x688] sm:$0xff]
  %v435 = vld [vmem:[%s3 + $0x690] sm:$0xff]
  %v436 = vld [vmem:[%s3 + $0x698] sm:$0xff]
  %v437 = vld [vmem:[%s3 + $0x6a0] sm:$0xff]
  %v438 = vld [vmem:[%s3 + $0x6a8] sm:$0xff]
  %v439 = vld [vmem:[%s3 + $0x6b0] sm:$0xff]
  %v440 = vld [vmem:[%s3 + $0x6b8] sm:$0xff]
  %v441 = vld [vmem:[%s3 + $0x6c0] sm:$0xff]
  %v442 = vld [vmem:[%s3 + $0x6c8] sm:$0xff]
  %v443 = vld [vmem:[%s3 + $0x6d0] sm:$0xff]
  %v444 = vld [vmem:[%s3 + $0x6d8] sm:$0xff]
  %v445 = vld [vmem:[%s3 + $0x6e0] sm:$0xff]
  %v446 = vld [vmem:[%s3 + $0x6e8] sm:$0xff]
  %v447 = vld [vmem:[%s3 + $0x6f0] sm:$0xff]
  %v448 = vld [vmem:[%s3 + $0x6f8] sm:$0xff]
  %v449 = vld [vmem:[%s3 + $0x700] sm:$0xff]
  %v450 = vld [vmem:[%s3 + $0x708] sm:$0xff]
  %v451 = vld [vmem:[%s3 + $0x710] sm:$0xff]
  %v452 = vld [vmem:[%s3 + $0x718] sm:$0xff]
  %v453 = vld [vmem:[%s3 + $0x720] sm:$0xff]
  %v454 = vld [vmem:[%s3 + $0x728] sm:$0xff]
  %v455 = vld [vmem:[%s3 + $0x730] sm:$0xff]
  %v456 = vld [vmem:[%s3 + $0x738] sm:$0xff]
  %v457 = vld [vmem:[%s3 + $0x740] sm:$0xff]
  %v458 = vld [vmem:[%s3 + $0x748] sm:$0xff]
  %v459 = vld [vmem:[%s3 + $0x750] sm:$0xff]
  %v460 = vld [vmem:[%s3 + $0x758] sm:$0xff]
  %v461 = vld [vmem:[%s3 + $0x760] sm:$0xff]
  %v462 = vld [vmem:[%s3 + $0x768] sm:$0xff]
  %v463 = vld [vmem:[%s3 + $0x770] sm:$0xff]
  %v464 = vld [vmem:[%s3 + $0x778] sm:$0xff]
  %v465 = vld [vmem:[%s3 + $0x780] sm:$0xff]
  %v466 = vld [vmem:[%s3 + $0x788] sm:$0xff]
  %v467 = vld [vmem:[%s3 + $0x790] sm:$0xff]
  %v468 = vld [vmem:[%s3 + $0x798] sm:$0xff]
  %v469 = vld [vmem:[%s3 + $0x7a0] sm:$0xff]
  %v470 = vld [vmem:[%s3 + $0x7a8] sm:$0xff]
  %v471 = vld [vmem:[%s3 + $0x7b0] sm:$0xff]
  %v472 = vld [vmem:[%s3 + $0x7b8] sm:$0xff]
  %v473 = vld [vmem:[%s3 + $0x7c0] sm:$0xff]
  %v474 = vld [vmem:[%s3 + $0x7c8] sm:$0xff]
  %v475 = vld [vmem:[%s3 + $0x7d0] sm:$0xff]
  %v476 = vld [vmem:[%s3 + $0x7d8] sm:$0xff]
  %v477 = vld [vmem:[%s3 + $0x7e0] sm:$0xff]
  %v478 = vld [vmem:[%s3 + $0x7e8] sm:$0xff]
  %v479 = vld [vmem:[%s3 + $0x7f0] sm:$0xff]
  %v480 = vld [vmem:[%s3 + $0x7f8] sm:$0xff]
  %v481 = vld [vmem:[%s3 + $0x800] sm:$0xff]
  %v482 = vld [vmem:[%s3 + $0x808] sm:$0xff]
  %v483 = vld [vmem:[%s3 + $0x810] sm:$0xff]
  %v484 = vld [vmem:[%s3 + $0x818] sm:$0xff]
  %v485 = vld [vmem:[%s3 + $0x820] sm:$0xff]
  %v486 = vld [vmem:[%s3 + $0x828] sm:$0xff]
  %v487 = vld [vmem:[%s3 + $0x830] sm:$0xff]
  %v488 = vld [vmem:[%s3 + $0x838] sm:$0xff]
  %v489 = vld [vmem:[%s3 + $0x840] sm:$0xff]
  %v490 = vld [vmem:[%s3 + $0x848] sm:$0xff]
  %v491 = vld [vmem:[%s3 + $0x850] sm:$0xff]
  %v492 = vld [vmem:[%s3 + $0x858] sm:$0xff]
  %v493 = vld [vmem:[%s3 + $0x860] sm:$0xff]
  %v494 = vld [vmem:[%s3 + $0x868] sm:$0xff]
  %v495 = vld [vmem:[%s3 + $0x870] sm:$0xff]
  %v496 = vld [vmem:[%s3 + $0x878] sm:$0xff]
  %v497 = vld [vmem:[%s3 + $0x880] sm:$0xff]
  %v498 = vld [vmem:[%s3 + $0x888] sm:$0xff]
  %v499 = vld [vmem:[%s3 + $0x890] sm:$0xff]
  %v500 = vld [vmem:[%s3 + $0x898] sm:$0xff]
  %v501 = vld [vmem:[%s3 + $0x8a0] sm:$0xff]
  %v502 = vld [vmem:[%s3 + $0x8a8] sm:$0xff]
  %v503 = vld [vmem:[%s3 + $0x8b0] sm:$0xff]
  %v504 = vld [vmem:[%s3 + $0x8b8] sm:$0xff]
  %v505 = vld [vmem:[%s3 + $0x8c0] sm:$0xff]
  %v506 = vld [vmem:[%s3 + $0x8c8] sm:$0xff]
  %v507 = vld [vmem:[%s3 + $0x8d0] sm:$0xff]
  %v508 = vld [vmem:[%s3 + $0x8d8] sm:$0xff]
  %v509 = vld [vmem:[%s3 + $0x8e0] sm:$0xff]
  %v510 = vld [vmem:[%s3 + $0x8e8] sm:$0xff]
  %v511 = vld [vmem:[%s3 + $0x8f0] sm:$0xff]
  %v512 = vld [vmem:[%s3 + $0x8f8] sm:$0xff]
  %v513 = vld [vmem:[%s3 + $0x900] sm:$0xff]
  %v514 = vld [vmem:[%s3 + $0x908] sm:$0xff]
  %v515 = vld [vmem:[%s3 + $0x910] sm:$0xff]
  %v516 = vld [vmem:[%s3 + $0x918] sm:$0xff]
  %v517 = vld [vmem:[%s3 + $0x920] sm:$0xff]
  %v518 = vld [vmem:[%s3 + $0x928] sm:$0xff]
  %v519 = vld [vmem:[%s3 + $0x930] sm:$0xff]
  %v520 = vld [vmem:[%s3 + $0x938] sm:$0xff]
  %v521 = vld [vmem:[%s3 + $0x940] sm:$0xff]
  %v522 = vld [vmem:[%s3 + $0x948] sm:$0xff]
  %v523 = vld [vmem:[%s3 + $0x950] sm:$0xff]
  %v524 = vld [vmem:[%s3 + $0x958] sm:$0xff]
  %v525 = vld [vmem:[%s3 + $0x960] sm:$0xff]
  %v526 = vld [vmem:[%s3 + $0x968] sm:$0xff]
  %v527 = vld [vmem:[%s3 + $0x970] sm:$0xff]
  %v528 = vld [vmem:[%s3 + $0x978] sm:$0xff]
  %v529 = vld [vmem:[%s3 + $0x980] sm:$0xff]
  %v530 = vld [vmem:[%s3 + $0x988] sm:$0xff]
  %v531 = vld [vmem:[%s3 + $0x990] sm:$0xff]
  %v532 = vld [vmem:[%s3 + $0x998] sm:$0xff]
  %v533 = vld [vmem:[%s3 + $0x9a0] sm:$0xff]
  %v534 = vld [vmem:[%s3 + $0x9a8] sm:$0xff]
  %v535 = vld [vmem:[%s3 + $0x9b0] sm:$0xff]
  %v536 = vld [vmem:[%s3 + $0x9b8] sm:$0xff]
  %v537 = vld [vmem:[%s3 + $0x9c0] sm:$0xff]
  %v538 = vld [vmem:[%s3 + $0x9c8] sm:$0xff]
  %v539 = vld [vmem:[%s3 + $0x9d0] sm:$0xff]
  %v540 = vld [vmem:[%s3 + $0x9d8] sm:$0xff]
  %v541 = vld [vmem:[%s3 + $0x9e0] sm:$0xff]
  %v542 = vld [vmem:[%s3 + $0x9e8] sm:$0xff]
  %v543 = vld [vmem:[%s3 + $0x9f0] sm:$0xff]
  %v544 = vld [vmem:[%s3 + $0x9f8] sm:$0xff]
  %v545 = vld [vmem:[%s3 + $0xa00] sm:$0xff]
  %v546 = vld [vmem:[%s3 + $0xa08] sm:$0xff]
  %v547 = vld [vmem:[%s3 + $0xa10] sm:$0xff]
  %v548 = vld [vmem:[%s3 + $0xa18] sm:$0xff]
  %v549 = vld [vmem:[%s3 + $0xa20] sm:$0xff]
  %v550 = vld [vmem:[%s3 + $0xa28] sm:$0xff]
  %v551 = vld [vmem:[%s3 + $0xa30] sm:$0xff]
  %v552 = vld [vmem:[%s3 + $0xa38] sm:$0xff]
  %v553 = vld [vmem:[%s3 + $0xa40] sm:$0xff]
  %v554 = vld [vmem:[%s3 + $0xa48] sm:$0xff]
  %v555 = vld [vmem:[%s3 + $0xa50] sm:$0xff]
  %v556 = vld [vmem:[%s3 + $0xa58] sm:$0xff]
  %v557 = vld [vmem:[%s3 + $0xa60] sm:$0xff]
  %v558 = vld [vmem:[%s3 + $0xa68] sm:$0xff]
  %v559 = vld [vmem:[%s3 + $0xa70] sm:$0xff]
  %v560 = vld [vmem:[%s3 + $0xa78] sm:$0xff]
  %v561 = vld [vmem:[%s3 + $0xa80] sm:$0xff]
  %v562 = vld [vmem:[%s3 + $0xa88] sm:$0xff]
  %v563 = vld [vmem:[%s3 + $0xa90] sm:$0xff]
  %v564 = vld [vmem:[%s3 + $0xa98] sm:$0xff]
  %v565 = vld [vmem:[%s3 + $0xaa0] sm:$0xff]
  %v566 = vld [vmem:[%s3 + $0xaa8] sm:$0xff]
  %v567 = vld [vmem:[%s3 + $0xab0] sm:$0xff]
  %v568 = vld [vmem:[%s3 + $0xab8] sm:$0xff]
  %v569 = vld [vmem:[%s3 + $0xac0] sm:$0xff]
  %v570 = vld [vmem:[%s3 + $0xac8] sm:$0xff]
  %v571 = vld [vmem:[%s3 + $0xad0] sm:$0xff]
  %v572 = vld [vmem:[%s3 + $0xad8] sm:$0xff]
  %v573 = vld [vmem:[%s3 + $0xae0] sm:$0xff]
  %v574 = vld [vmem:[%s3 + $0xae8] sm:$0xff]
  %v575 = vld [vmem:[%s3 + $0xaf0] sm:$0xff]
  %v576 = vld [vmem:[%s3 + $0xaf8] sm:$0xff]
  %v577 = vld [vmem:[%s3 + $0xb00] sm:$0xff]
  %v578 = vld [vmem:[%s3 + $0xb08] sm:$0xff]
  %v579 = vld [vmem:[%s3 + $0xb10] sm:$0xff]
  %v580 = vld [vmem:[%s3 + $0xb18] sm:$0xff]
  %v581 = vld [vmem:[%s3 + $0xb20] sm:$0xff]
  %v582 = vld [vmem:[%s3 + $0xb28] sm:$0xff]
  %v583 = vld [vmem:[%s3 + $0xb30] sm:$0xff]
  %v584 = vld [vmem:[%s3 + $0xb38] sm:$0xff]
  %v585 = vld [vmem:[%s3 + $0xb40] sm:$0xff]
  %v586 = vld [vmem:[%s3 + $0xb48] sm:$0xff]
  %v587 = vld [vmem:[%s3 + $0xb50] sm:$0xff]
  %v588 = vld [vmem:[%s3 + $0xb58] sm:$0xff]
  %v589 = vld [vmem:[%s3 + $0xb60] sm:$0xff]
  %v590 = vld [vmem:[%s3 + $0xb68] sm:$0xff]
  %v591 = vld [vmem:[%s3 + $0xb70] sm:$0xff]
  %v592 = vld [vmem:[%s3 + $0xb78] sm:$0xff]
  %v593 = vld [vmem:[%s3 + $0xb80] sm:$0xff]
  %v594 = vld [vmem:[%s3 + $0xb88] sm:$0xff]
  %v595 = vld [vmem:[%s3 + $0xb90] sm:$0xff]
  %v596 = vld [vmem:[%s3 + $0xb98] sm:$0xff]
  %v597 = vld [vmem:[%s3 + $0xba0] sm:$0xff]
  %v598 = vld [vmem:[%s3 + $0xba8] sm:$0xff]
  %v599 = vld [vmem:[%s3 + $0xbb0] sm:$0xff]
  %v600 = vld [vmem:[%s3 + $0xbb8] sm:$0xff]
  %v601 = vld [vmem:[%s3 + $0xbc0] sm:$0xff]
  %v602 = vld [vmem:[%s3 + $0xbc8] sm:$0xff]
  %v603 = vld [vmem:[%s3 + $0xbd0] sm:$0xff]
  %v604 = vld [vmem:[%s3 + $0xbd8] sm:$0xff]
  %v605 = vld [vmem:[%s3 + $0xbe0] sm:$0xff]
  %v606 = vld [vmem:[%s3 + $0xbe8] sm:$0xff]
  %v607 = vld [vmem:[%s3 + $0xbf0] sm:$0xff]
  %v608 = vld [vmem:[%s3 + $0xbf8] sm:$0xff]
  %v609 = vld [vmem:[%s3 + $0xc00] sm:$0xff]
  %v610 = vld [vmem:[%s3 + $0xc08] sm:$0xff]
  %v611 = vld [vmem:[%s3 + $0xc10] sm:$0xff]
  %v612 = vld [vmem:[%s3 + $0xc18] sm:$0xff]
  %v613 = vld [vmem:[%s3 + $0xc20] sm:$0xff]
  %v614 = vld [vmem:[%s3 + $0xc28] sm:$0xff]
  %v615 = vld [vmem:[%s3 + $0xc30] sm:$0xff]
  %v616 = vld [vmem:[%s3 + $0xc38] sm:$0xff]
  %v617 = vld [vmem:[%s3 + $0xc40] sm:$0xff]
  %v618 = vld [vmem:[%s3 + $0xc48] sm:$0xff]
  %v619 = vld [vmem:[%s3 + $0xc50] sm:$0xff]
  %v620 = vld [vmem:[%s3 + $0xc58] sm:$0xff]
  %v621 = vld [vmem:[%s3 + $0xc60] sm:$0xff]
  %v622 = vld [vmem:[%s3 + $0xc68] sm:$0xff]
  %v623 = vld [vmem:[%s3 + $0xc70] sm:$0xff]
  %v624 = vld [vmem:[%s3 + $0xc78] sm:$0xff]
  %v625 = vld [vmem:[%s3 + $0xc80] sm:$0xff]
  %v626 = vld [vmem:[%s3 + $0xc88] sm:$0xff]
  %v627 = vld [vmem:[%s3 + $0xc90] sm:$0xff]
  %v628 = vld [vmem:[%s3 + $0xc98] sm:$0xff]
  %v629 = vld [vmem:[%s3 + $0xca0] sm:$0xff]
  %v630 = vld [vmem:[%s3 + $0xca8] sm:$0xff]
  %v631 = vld [vmem:[%s3 + $0xcb0] sm:$0xff]
  %v632 = vld [vmem:[%s3 + $0xcb8] sm:$0xff]
  %v633 = vld [vmem:[%s3 + $0xcc0] sm:$0xff]
  %v634 = vld [vmem:[%s3 + $0xcc8] sm:$0xff]
  %v635 = vld [vmem:[%s3 + $0xcd0] sm:$0xff]
  %v636 = vld [vmem:[%s3 + $0xcd8] sm:$0xff]
  %v637 = vld [vmem:[%s3 + $0xce0] sm:$0xff]
  %v638 = vld [vmem:[%s3 + $0xce8] sm:$0xff]
  %v639 = vld [vmem:[%s3 + $0xcf0] sm:$0xff]
  %v640 = vld [vmem:[%s3 + $0xcf8] sm:$0xff]
  %v641 = vld [vmem:[%s3 + $0xd00] sm:$0xff]
  %v642 = vld [vmem:[%s3 + $0xd08] sm:$0xff]
  %v643 = vld [vmem:[%s3 + $0xd10] sm:$0xff]
  %v644 = vld [vmem:[%s3 + $0xd18] sm:$0xff]
  %v645 = vld [vmem:[%s3 + $0xd20] sm:$0xff]
  %v646 = vld [vmem:[%s3 + $0xd28] sm:$0xff]
  %v647 = vld [vmem:[%s3 + $0xd30] sm:$0xff]
  %v648 = vld [vmem:[%s3 + $0xd38] sm:$0xff]
  %v649 = vld [vmem:[%s3 + $0xd40] sm:$0xff]
  %v650 = vld [vmem:[%s3 + $0xd48] sm:$0xff]
  %v651 = vld [vmem:[%s3 + $0xd50] sm:$0xff]
  %v652 = vld [vmem:[%s3 + $0xd58] sm:$0xff]
  %v653 = vld [vmem:[%s3 + $0xd60] sm:$0xff]
  %v654 = vld [vmem:[%s3 + $0xd68] sm:$0xff]
  %v655 = vld [vmem:[%s3 + $0xd70] sm:$0xff]
  %v656 = vld [vmem:[%s3 + $0xd78] sm:$0xff]
  %v657 = vld [vmem:[%s3 + $0xd80] sm:$0xff]
  %v658 = vld [vmem:[%s3 + $0xd88] sm:$0xff]
  %v659 = vld [vmem:[%s3 + $0xd90] sm:$0xff]
  %v660 = vld [vmem:[%s3 + $0xd98] sm:$0xff]
  %v661 = vld [vmem:[%s3 + $0xda0] sm:$0xff]
  %v662 = vld [vmem:[%s3 + $0xda8] sm:$0xff]
  %v663 = vld [vmem:[%s3 + $0xdb0] sm:$0xff]
  %v664 = vld [vmem:[%s3 + $0xdb8] sm:$0xff]
  %v665 = vld [vmem:[%s3 + $0xdc0] sm:$0xff]
  %v666 = vld [vmem:[%s3 + $0xdc8] sm:$0xff]
  %v667 = vld [vmem:[%s3 + $0xdd0] sm:$0xff]
  %v668 = vld [vmem:[%s3 + $0xdd8] sm:$0xff]
  %v669 = vld [vmem:[%s3 + $0xde0] sm:$0xff]
  %v670 = vld [vmem:[%s3 + $0xde8] sm:$0xff]
  %v671 = vld [vmem:[%s3 + $0xdf0] sm:$0xff]
  %v672 = vld [vmem:[%s3 + $0xdf8] sm:$0xff]
  %v673 = vld [vmem:[%s3 + $0xe00] sm:$0xff]
  %v674 = vld [vmem:[%s3 + $0xe08] sm:$0xff]
  %v675 = vld [vmem:[%s3 + $0xe10] sm:$0xff]
  %v676 = vld [vmem:[%s3 + $0xe18] sm:$0xff]
  %v677 = vld [vmem:[%s3 + $0xe20] sm:$0xff]
  %v678 = vld [vmem:[%s3 + $0xe28] sm:$0xff]
  %v679 = vld [vmem:[%s3 + $0xe30] sm:$0xff]
  %v680 = vld [vmem:[%s3 + $0xe38] sm:$0xff]
  %v681 = vld [vmem:[%s3 + $0xe40] sm:$0xff]
  %v682 = vld [vmem:[%s3 + $0xe48] sm:$0xff]
  %v683 = vld [vmem:[%s3 + $0xe50] sm:$0xff]
  %v684 = vld [vmem:[%s3 + $0xe58] sm:$0xff]
  %v685 = vld [vmem:[%s3 + $0xe60] sm:$0xff]
  %v686 = vld [vmem:[%s3 + $0xe68] sm:$0xff]
  %v687 = vld [vmem:[%s3 + $0xe70] sm:$0xff]
  %v688 = vld [vmem:[%s3 + $0xe78] sm:$0xff]
  %v689 = vld [vmem:[%s3 + $0xe80] sm:$0xff]
  %v690 = vld [vmem:[%s3 + $0xe88] sm:$0xff]
  %v691 = vld [vmem:[%s3 + $0xe90] sm:$0xff]
  %v692 = vld [vmem:[%s3 + $0xe98] sm:$0xff]
  %v693 = vld [vmem:[%s3 + $0xea0] sm:$0xff]
  %v694 = vld [vmem:[%s3 + $0xea8] sm:$0xff]
  %v695 = vld [vmem:[%s3 + $0xeb0] sm:$0xff]
  %v696 = vld [vmem:[%s3 + $0xeb8] sm:$0xff]
  %v697 = vld [vmem:[%s3 + $0xec0] sm:$0xff]
  %v698 = vld [vmem:[%s3 + $0xec8] sm:$0xff]
  %v699 = vld [vmem:[%s3 + $0xed0] sm:$0xff]
  %v700 = vld [vmem:[%s3 + $0xed8] sm:$0xff]
  %v701 = vld [vmem:[%s3 + $0xee0] sm:$0xff]
  %v702 = vld [vmem:[%s3 + $0xee8] sm:$0xff]
  %v703 = vld [vmem:[%s3 + $0xef0] sm:$0xff]
  %v704 = vld [vmem:[%s3 + $0xef8] sm:$0xff]
  %v705 = vld [vmem:[%s3 + $0xf00] sm:$0xff]
  %v706 = vld [vmem:[%s3 + $0xf08] sm:$0xff]
  %v707 = vld [vmem:[%s3 + $0xf10] sm:$0xff]
  %v708 = vld [vmem:[%s3 + $0xf18] sm:$0xff]
  %v709 = vld [vmem:[%s3 + $0xf20] sm:$0xff]
  %v710 = vld [vmem:[%s3 + $0xf28] sm:$0xff]
  %v711 = vld [vmem:[%s3 + $0xf30] sm:$0xff]
  %v712 = vld [vmem:[%s3 + $0xf38] sm:$0xff]
  %v713 = vld [vmem:[%s3 + $0xf40] sm:$0xff]
  %v714 = vld [vmem:[%s3 + $0xf48] sm:$0xff]
  %v715 = vld [vmem:[%s3 + $0xf50] sm:$0xff]
  %v716 = vld [vmem:[%s3 + $0xf58] sm:$0xff]
  %v717 = vld [vmem:[%s3 + $0xf60] sm:$0xff]
  %v718 = vld [vmem:[%s3 + $0xf68] sm:$0xff]
  %v719 = vld [vmem:[%s3 + $0xf70] sm:$0xff]
  %v720 = vld [vmem:[%s3 + $0xf78] sm:$0xff]
  %v721 = vld [vmem:[%s3 + $0xf80] sm:$0xff]
  %v722 = vld [vmem:[%s3 + $0xf88] sm:$0xff]
  %v723 = vld [vmem:[%s3 + $0xf90] sm:$0xff]
  %v724 = vld [vmem:[%s3 + $0xf98] sm:$0xff]
  %v725 = vld [vmem:[%s3 + $0xfa0] sm:$0xff]
  %v726 = vld [vmem:[%s3 + $0xfa8] sm:$0xff]
  %v727 = vld [vmem:[%s3 + $0xfb0] sm:$0xff]
  %v728 = vld [vmem:[%s3 + $0xfb8] sm:$0xff]
  %v729 = vld [vmem:[%s3 + $0xfc0] sm:$0xff]
  %v730 = vld [vmem:[%s3 + $0xfc8] sm:$0xff]
  %v731 = vld [vmem:[%s3 + $0xfd0] sm:$0xff]
  %v732 = vld [vmem:[%s3 + $0xfd8] sm:$0xff]
  %v733 = vld [vmem:[%s3 + $0xfe0] sm:$0xff]
  %v734 = vld [vmem:[%s3 + $0xfe8] sm:$0xff]
  %v735 = vld [vmem:[%s3 + $0xff0] sm:$0xff]
  %v736 = vld [vmem:[%s3 + $0xff8] sm:$0xff]
  %v737 = vld [vmem:[%s3 + $0x1000] sm:$0xff]
  %v738 = vld [vmem:[%s3 + $0x1008] sm:$0xff]
  %v739 = vld [vmem:[%s3 + $0x1010] sm:$0xff]
  %v740 = vld [vmem:[%s3 + $0x1018] sm:$0xff]
  %v741 = vld [vmem:[%s3 + $0x1020] sm:$0xff]
  %v742 = vld [vmem:[%s3 + $0x1028] sm:$0xff]
  %v743 = vld [vmem:[%s3 + $0x1030] sm:$0xff]
  %v744 = vld [vmem:[%s3 + $0x1038] sm:$0xff]
  %v745 = vld [vmem:[%s3 + $0x1040] sm:$0xff]
  %v746 = vld [vmem:[%s3 + $0x1048] sm:$0xff]
  %v747 = vld [vmem:[%s3 + $0x1050] sm:$0xff]
  %v748 = vld [vmem:[%s3 + $0x1058] sm:$0xff]
  %v749 = vld [vmem:[%s3 + $0x1060] sm:$0xff]
  %v750 = vld [vmem:[%s3 + $0x1068] sm:$0xff]
  %v751 = vld [vmem:[%s3 + $0x1070] sm:$0xff]
  %v752 = vld [vmem:[%s3 + $0x1078] sm:$0xff]
  %v753 = vld [vmem:[%s3 + $0x1080] sm:$0xff]
  %v754 = vld [vmem:[%s3 + $0x1088] sm:$0xff]
  %v755 = vld [vmem:[%s3 + $0x1090] sm:$0xff]
  %v756 = vld [vmem:[%s3 + $0x1098] sm:$0xff]
  %v757 = vld [vmem:[%s3 + $0x10a0] sm:$0xff]
  %v758 = vld [vmem:[%s3 + $0x10a8] sm:$0xff]
  %v759 = vld [vmem:[%s3 + $0x10b0] sm:$0xff]
  %v760 = vld [vmem:[%s3 + $0x10b8] sm:$0xff]
  %v761 = vld [vmem:[%s3 + $0x10c0] sm:$0xff]
  %v762 = vld [vmem:[%s3 + $0x10c8] sm:$0xff]
  %v763 = vld [vmem:[%s3 + $0x10d0] sm:$0xff]
  %v764 = vld [vmem:[%s3 + $0x10d8] sm:$0xff]
  %v765 = vld [vmem:[%s3 + $0x10e0] sm:$0xff]
  %v766 = vld [vmem:[%s3 + $0x10e8] sm:$0xff]
  %v767 = vld [vmem:[%s3 + $0x10f0] sm:$0xff]
  %v768 = vld [vmem:[%s3 + $0x10f8] sm:$0xff]
  %v769 = vld [vmem:[%s3 + $0x1100] sm:$0xff]
  %v770 = vld [vmem:[%s3 + $0x1108] sm:$0xff]
  %v771 = vld [vmem:[%s3 + $0x1110] sm:$0xff]
  %v772 = vld [vmem:[%s3 + $0x1118] sm:$0xff]
  %v773 = vld [vmem:[%s3 + $0x1120] sm:$0xff]
  %v774 = vld [vmem:[%s3 + $0x1128] sm:$0xff]
  %v775 = vld [vmem:[%s3 + $0x1130] sm:$0xff]
  %v776 = vld [vmem:[%s3 + $0x1138] sm:$0xff]
  %v777 = vld [vmem:[%s3 + $0x1140] sm:$0xff]
  %v778 = vld [vmem:[%s3 + $0x1148] sm:$0xff]
  %v779 = vld [vmem:[%s3 + $0x1150] sm:$0xff]
  %v780 = vld [vmem:[%s3 + $0x1158] sm:$0xff]
  %v781 = vld [vmem:[%s3 + $0x1160] sm:$0xff]
  %v782 = vld [vmem:[%s3 + $0x1168] sm:$0xff]
  %v783 = vld [vmem:[%s3 + $0x1170] sm:$0xff]
  %v784 = vld [vmem:[%s3 + $0x1178] sm:$0xff]
  %v785 = vld [vmem:[%s3 + $0x1180] sm:$0xff]
  %v786 = vld [vmem:[%s3 + $0x1188] sm:$0xff]
  %v787 = vld [vmem:[%s3 + $0x1190] sm:$0xff]
  %v788 = vld [vmem:[%s3 + $0x1198] sm:$0xff]
  %v789 = vld [vmem:[%s3 + $0x11a0] sm:$0xff]
  %v790 = vld [vmem:[%s3 + $0x11a8] sm:$0xff]
  %v791 = vld [vmem:[%s3 + $0x11b0] sm:$0xff]
  %v792 = vld [vmem:[%s3 + $0x11b8] sm:$0xff]
  %v793 = vld [vmem:[%s3 + $0x11c0] sm:$0xff]
  %v794 = vld [vmem:[%s3 + $0x11c8] sm:$0xff]
  %v795 = vld [vmem:[%s3 + $0x11d0] sm:$0xff]
  %v796 = vld [vmem:[%s3 + $0x11d8] sm:$0xff]
  %v797 = vld [vmem:[%s3 + $0x11e0] sm:$0xff]
  %v798 = vld [vmem:[%s3 + $0x11e8] sm:$0xff]
  %v799 = vld [vmem:[%s3 + $0x11f0] sm:$0xff]
  %v800 = vld [vmem:[%s3 + $0x11f8] sm:$0xff]
  %v801 = vld [vmem:[%s3 + $0x1200] sm:$0xff]
  %v802 = vld [vmem:[%s3 + $0x1208] sm:$0xff]
  %v803 = vld [vmem:[%s3 + $0x1210] sm:$0xff]
  %v804 = vld [vmem:[%s3 + $0x1218] sm:$0xff]
  %v805 = vld [vmem:[%s3 + $0x1220] sm:$0xff]
  %v806 = vld [vmem:[%s3 + $0x1228] sm:$0xff]
  %v807 = vld [vmem:[%s3 + $0x1230] sm:$0xff]
  %v808 = vld [vmem:[%s3 + $0x1238] sm:$0xff]
  %v809 = vld [vmem:[%s3 + $0x1240] sm:$0xff]
  %v810 = vld [vmem:[%s3 + $0x1248] sm:$0xff]
  %v811 = vld [vmem:[%s3 + $0x1250] sm:$0xff]
  %v812 = vld [vmem:[%s3 + $0x1258] sm:$0xff]
  %v813 = vld [vmem:[%s3 + $0x1260] sm:$0xff]
  %v814 = vld [vmem:[%s3 + $0x1268] sm:$0xff]
  %v815 = vld [vmem:[%s3 + $0x1270] sm:$0xff]
  %v816 = vld [vmem:[%s3 + $0x1278] sm:$0xff]
  %v817 = vld [vmem:[%s3 + $0x1280] sm:$0xff]
  %v818 = vld [vmem:[%s3 + $0x1288] sm:$0xff]
  %v819 = vld [vmem:[%s3 + $0x1290] sm:$0xff]
  %v820 = vld [vmem:[%s3 + $0x1298] sm:$0xff]
  %v821 = vld [vmem:[%s3 + $0x12a0] sm:$0xff]
  %v822 = vld [vmem:[%s3 + $0x12a8] sm:$0xff]
  %v823 = vld [vmem:[%s3 + $0x12b0] sm:$0xff]
  %v824 = vld [vmem:[%s3 + $0x12b8] sm:$0xff]
  %v825 = vld [vmem:[%s3 + $0x12c0] sm:$0xff]
  %v826 = vld [vmem:[%s3 + $0x12c8] sm:$0xff]
  %v827 = vld [vmem:[%s3 + $0x12d0] sm:$0xff]
  %v828 = vld [vmem:[%s3 + $0x12d8] sm:$0xff]
  %v829 = vld [vmem:[%s3 + $0x12e0] sm:$0xff]
  %v830 = vld [vmem:[%s3 + $0x12e8] sm:$0xff]
  %v831 = vld [vmem:[%s3 + $0x12f0] sm:$0xff]
  %v832 = vld [vmem:[%s3 + $0x12f8] sm:$0xff]
  %v833 = vld [vmem:[%s3 + $0x1300] sm:$0xff]
  %v834 = vld [vmem:[%s3 + $0x1308] sm:$0xff]
  %v835 = vld [vmem:[%s3 + $0x1310] sm:$0xff]
  %v836 = vld [vmem:[%s3 + $0x1318] sm:$0xff]
  %v837 = vld [vmem:[%s3 + $0x1320] sm:$0xff]
  %v838 = vld [vmem:[%s3 + $0x1328] sm:$0xff]
  %v839 = vld [vmem:[%s3 + $0x1330] sm:$0xff]
  %v840 = vld [vmem:[%s3 + $0x1338] sm:$0xff]
  %v841 = vld [vmem:[%s3 + $0x1340] sm:$0xff]
  %v842 = vld [vmem:[%s3 + $0x1348] sm:$0xff]
  %v843 = vld [vmem:[%s3 + $0x1350] sm:$0xff]
  %v844 = vld [vmem:[%s3 + $0x1358] sm:$0xff]
  %v845 = vld [vmem:[%s3 + $0x1360] sm:$0xff]
  %v846 = vld [vmem:[%s3 + $0x1368] sm:$0xff]
  %v847 = vld [vmem:[%s3 + $0x1370] sm:$0xff]
  %v848 = vld [vmem:[%s3 + $0x1378] sm:$0xff]
  %v849 = vld [vmem:[%s3 + $0x1380] sm:$0xff]
  %v850 = vld [vmem:[%s3 + $0x1388] sm:$0xff]
  %v851 = vld [vmem:[%s3 + $0x1390] sm:$0xff]
  %v852 = vld [vmem:[%s3 + $0x1398] sm:$0xff]
  %v853 = vld [vmem:[%s3 + $0x13a0] sm:$0xff]
  %v854 = vld [vmem:[%s3 + $0x13a8] sm:$0xff]
  %v855 = vld [vmem:[%s3 + $0x13b0] sm:$0xff]
  %v856 = vld [vmem:[%s3 + $0x13b8] sm:$0xff]
  %v857 = vld [vmem:[%s3 + $0x13c0] sm:$0xff]
  %v858 = vld [vmem:[%s3 + $0x13c8] sm:$0xff]
  %v859 = vld [vmem:[%s3 + $0x13d0] sm:$0xff]
  %v860 = vld [vmem:[%s3 + $0x13d8] sm:$0xff]
  %v861 = vld [vmem:[%s3 + $0x13e0] sm:$0xff]
  %v862 = vld [vmem:[%s3 + $0x13e8] sm:$0xff]
  %v863 = vld [vmem:[%s3 + $0x13f0] sm:$0xff]
  %v864 = vld [vmem:[%s3 + $0x13f8] sm:$0xff]
  %v865 = vld [vmem:[%s3 + $0x1400] sm:$0xff]
  %v866 = vld [vmem:[%s3 + $0x1408] sm:$0xff]
  %v867 = vld [vmem:[%s3 + $0x1410] sm:$0xff]
  %v868 = vld [vmem:[%s3 + $0x1418] sm:$0xff]
  %v869 = vld [vmem:[%s3 + $0x1420] sm:$0xff]
  %v870 = vld [vmem:[%s3 + $0x1428] sm:$0xff]
  %v871 = vld [vmem:[%s3 + $0x1430] sm:$0xff]
  %v872 = vld [vmem:[%s3 + $0x1438] sm:$0xff]
  %v873 = vld [vmem:[%s3 + $0x1440] sm:$0xff]
  %v874 = vld [vmem:[%s3 + $0x1448] sm:$0xff]
  %v875 = vld [vmem:[%s3 + $0x1450] sm:$0xff]
  %v876 = vld [vmem:[%s3 + $0x1458] sm:$0xff]
  %v877 = vld [vmem:[%s3 + $0x1460] sm:$0xff]
  %v878 = vld [vmem:[%s3 + $0x1468] sm:$0xff]
  %v879 = vld [vmem:[%s3 + $0x1470] sm:$0xff]
  %v880 = vld [vmem:[%s3 + $0x1478] sm:$0xff]
  %v881 = vld [vmem:[%s3 + $0x1480] sm:$0xff]
  %v882 = vld [vmem:[%s3 + $0x1488] sm:$0xff]
  %v883 = vld [vmem:[%s3 + $0x1490] sm:$0xff]
  %v884 = vld [vmem:[%s3 + $0x1498] sm:$0xff]
  %v885 = vld [vmem:[%s3 + $0x14a0] sm:$0xff]
  %v886 = vld [vmem:[%s3 + $0x14a8] sm:$0xff]
  %v887 = vld [vmem:[%s3 + $0x14b0] sm:$0xff]
  %v888 = vld [vmem:[%s3 + $0x14b8] sm:$0xff]
  %v889 = vld [vmem:[%s3 + $0x14c0] sm:$0xff]
  %v890 = vld [vmem:[%s3 + $0x14c8] sm:$0xff]
  %v891 = vld [vmem:[%s3 + $0x14d0] sm:$0xff]
  %v892 = vld [vmem:[%s3 + $0x14d8] sm:$0xff]
  %v893 = vld [vmem:[%s3 + $0x14e0] sm:$0xff]
  %v894 = vld [vmem:[%s3 + $0x14e8] sm:$0xff]
  %v895 = vld [vmem:[%s3 + $0x14f0] sm:$0xff]
  %v896 = vld [vmem:[%s3 + $0x14f8] sm:$0xff]
  %v897 = vld [vmem:[%s3 + $0x1500] sm:$0xff]
  %v898 = vld [vmem:[%s3 + $0x1508] sm:$0xff]
  %v899 = vld [vmem:[%s3 + $0x1510] sm:$0xff]
  %v900 = vld [vmem:[%s3 + $0x1518] sm:$0xff]
  %v901 = vld [vmem:[%s3 + $0x1520] sm:$0xff]
  %v902 = vld [vmem:[%s3 + $0x1528] sm:$0xff]
  %v903 = vld [vmem:[%s3 + $0x1530] sm:$0xff]
  %v904 = vld [vmem:[%s3 + $0x1538] sm:$0xff]
  %v905 = vld [vmem:[%s3 + $0x1540] sm:$0xff]
  %v906 = vld [vmem:[%s3 + $0x1548] sm:$0xff]
  %v907 = vld [vmem:[%s3 + $0x1550] sm:$0xff]
  %v908 = vld [vmem:[%s3 + $0x1558] sm:$0xff]
  %v909 = vld [vmem:[%s3 + $0x1560] sm:$0xff]
  %v910 = vld [vmem:[%s3 + $0x1568] sm:$0xff]
  %v911 = vld [vmem:[%s3 + $0x1570] sm:$0xff]
  %v912 = vld [vmem:[%s3 + $0x1578] sm:$0xff]
  %v913 = vld [vmem:[%s3 + $0x1580] sm:$0xff]
  %v914 = vld [vmem:[%s3 + $0x1588] sm:$0xff]
  %v915 = vld [vmem:[%s3 + $0x1590] sm:$0xff]
  %v916 = vld [vmem:[%s3 + $0x1598] sm:$0xff]
  %v917 = vld [vmem:[%s3 + $0x15a0] sm:$0xff]
  %v918 = vld [vmem:[%s3 + $0x15a8] sm:$0xff]
  %v919 = vld [vmem:[%s3 + $0x15b0] sm:$0xff]
  %v920 = vld [vmem:[%s3 + $0x15b8] sm:$0xff]
  %v921 = vld [vmem:[%s3 + $0x15c0] sm:$0xff]
  %v922 = vld [vmem:[%s3 + $0x15c8] sm:$0xff]
  %v923 = vld [vmem:[%s3 + $0x15d0] sm:$0xff]
  %v924 = vld [vmem:[%s3 + $0x15d8] sm:$0xff]
  %v925 = vld [vmem:[%s3 + $0x15e0] sm:$0xff]
  %v926 = vld [vmem:[%s3 + $0x15e8] sm:$0xff]
  %v927 = vld [vmem:[%s3 + $0x15f0] sm:$0xff]
  %v928 = vld [vmem:[%s3 + $0x15f8] sm:$0xff]
  %v929 = vld [vmem:[%s3 + $0x1600] sm:$0xff]
  %v930 = vld [vmem:[%s3 + $0x1608] sm:$0xff]
  %v931 = vld [vmem:[%s3 + $0x1610] sm:$0xff]
  %v932 = vld [vmem:[%s3 + $0x1618] sm:$0xff]
  %v933 = vld [vmem:[%s3 + $0x1620] sm:$0xff]
  %v934 = vld [vmem:[%s3 + $0x1628] sm:$0xff]
  %v935 = vld [vmem:[%s3 + $0x1630] sm:$0xff]
  %v936 = vld [vmem:[%s3 + $0x1638] sm:$0xff]
  %v937 = vld [vmem:[%s3 + $0x1640] sm:$0xff]
  %v938 = vld [vmem:[%s3 + $0x1648] sm:$0xff]
  %v939 = vld [vmem:[%s3 + $0x1650] sm:$0xff]
  %v940 = vld [vmem:[%s3 + $0x1658] sm:$0xff]
  %v941 = vld [vmem:[%s3 + $0x1660] sm:$0xff]
  %v942 = vld [vmem:[%s3 + $0x1668] sm:$0xff]
  %v943 = vld [vmem:[%s3 + $0x1670] sm:$0xff]
  %v944 = vld [vmem:[%s3 + $0x1678] sm:$0xff]
  %v945 = vld [vmem:[%s3 + $0x1680] sm:$0xff]
  %v946 = vld [vmem:[%s3 + $0x1688] sm:$0xff]
  %v947 = vld [vmem:[%s3 + $0x1690] sm:$0xff]
  %v948 = vld [vmem:[%s3 + $0x1698] sm:$0xff]
  %v949 = vld [vmem:[%s3 + $0x16a0] sm:$0xff]
  %v950 = vld [vmem:[%s3 + $0x16a8] sm:$0xff]
  %v951 = vld [vmem:[%s3 + $0x16b0] sm:$0xff]
  %v952 = vld [vmem:[%s3 + $0x16b8] sm:$0xff]
  %v953 = vld [vmem:[%s3 + $0x16c0] sm:$0xff]
  %v954 = vld [vmem:[%s3 + $0x16c8] sm:$0xff]
  %v955 = vld [vmem:[%s3 + $0x16d0] sm:$0xff]
  %v956 = vld [vmem:[%s3 + $0x16d8] sm:$0xff]
  %v957 = vld [vmem:[%s3 + $0x16e0] sm:$0xff]
  %v958 = vld [vmem:[%s3 + $0x16e8] sm:$0xff]
  %v959 = vld [vmem:[%s3 + $0x16f0] sm:$0xff]
  %v960 = vld [vmem:[%s3 + $0x16f8] sm:$0xff]
  %v961 = vld [vmem:[%s3 + $0x1700] sm:$0xff]
  %v962 = vld [vmem:[%s3 + $0x1708] sm:$0xff]
  %v963 = vld [vmem:[%s3 + $0x1710] sm:$0xff]
  %v964 = vld [vmem:[%s3 + $0x1718] sm:$0xff]
  %v965 = vld [vmem:[%s3 + $0x1720] sm:$0xff]
  %v966 = vld [vmem:[%s3 + $0x1728] sm:$0xff]
  %v967 = vld [vmem:[%s3 + $0x1730] sm:$0xff]
  %v968 = vld [vmem:[%s3 + $0x1738] sm:$0xff]
  %v969 = vld [vmem:[%s3 + $0x1740] sm:$0xff]
  %v970 = vld [vmem:[%s3 + $0x1748] sm:$0xff]
  %v971 = vld [vmem:[%s3 + $0x1750] sm:$0xff]
  %v972 = vld [vmem:[%s3 + $0x1758] sm:$0xff]
  %v973 = vld [vmem:[%s3 + $0x1760] sm:$0xff]
  %v974 = vld [vmem:[%s3 + $0x1768] sm:$0xff]
  %v975 = vld [vmem:[%s3 + $0x1770] sm:$0xff]
  %v976 = vld [vmem:[%s3 + $0x1778] sm:$0xff]
  %v977 = vld [vmem:[%s3 + $0x1780] sm:$0xff]
  %v978 = vld [vmem:[%s3 + $0x1788] sm:$0xff]
  %v979 = vld [vmem:[%s3 + $0x1790] sm:$0xff]
  %v980 = vld [vmem:[%s3 + $0x1798] sm:$0xff]
  %v981 = vld [vmem:[%s3 + $0x17a0] sm:$0xff]
  %v982 = vld [vmem:[%s3 + $0x17a8] sm:$0xff]
  %v983 = vld [vmem:[%s3 + $0x17b0] sm:$0xff]
  %v984 = vld [vmem:[%s3 + $0x17b8] sm:$0xff]
  %v985 = vld [vmem:[%s3 + $0x17c0] sm:$0xff]
  %v986 = vld [vmem:[%s3 + $0x17c8] sm:$0xff]
  %v987 = vld [vmem:[%s3 + $0x17d0] sm:$0xff]
  %v988 = vld [vmem:[%s3 + $0x17d8] sm:$0xff]
  %v989 = vld [vmem:[%s3 + $0x17e0] sm:$0xff]
  %v990 = vld [vmem:[%s3 + $0x17e8] sm:$0xff]
  %v991 = vld [vmem:[%s3 + $0x17f0] sm:$0xff]
  %v992 = vld [vmem:[%s3 + $0x17f8] sm:$0xff]
  %v995 = vunpack.c.l.b16 %v223
  %v996 = vunpack.c.h.b16 %v223
  %v997 = vunpack.c.l.b16 %v224
  %v998 = vpack.c.b16 %v995, %v995
  %v999 = vpack.c.b16 %v996, %v996
  %v1000 = vpack.c.b16 %v997, %v997
  %v1052 = vunpack.c.l.b16 %v225
  %v1053 = vunpack.c.h.b16 %v225
  %v1054 = vunpack.c.l.b16 %v226
  %v1055 = vunpack.c.h.b16 %v226
  %v1056 = vunpack.c.l.b16 %v227
  %v1057 = vunpack.c.h.b16 %v227
  %v1058 = vunpack.c.l.b16 %v228
  %v1059 = vunpack.c.h.b16 %v228
  %v1060 = vunpack.c.l.b16 %v229
  %v1061 = vunpack.c.h.b16 %v229
  %v1062 = vunpack.c.l.b16 %v230
  %v1063 = vunpack.c.h.b16 %v230
  %v1064 = vunpack.c.l.b16 %v231
  %v1065 = vunpack.c.h.b16 %v231
  %v1066 = vunpack.c.l.b16 %v232
  %v1067 = vunpack.c.h.b16 %v232
  %v1068 = vunpack.c.l.b16 %v233
  %v1069 = vunpack.c.h.b16 %v233
  %v1070 = vunpack.c.l.b16 %v234
  %v1071 = vunpack.c.h.b16 %v234
  %v1072 = vunpack.c.l.b16 %v235
  %v1073 = vunpack.c.h.b16 %v235
  %v1074 = vunpack.c.l.b16 %v236
  %v1075 = vunpack.c.h.b16 %v236
  %v1076 = vunpack.c.l.b16 %v237
  %v1077 = vunpack.c.h.b16 %v237
  %v1078 = vunpack.c.l.b16 %v238
  %v1079 = vunpack.c.h.b16 %v238
  %v1080 = vunpack.c.l.b16 %v239
  %v1081 = vunpack.c.h.b16 %v239
  %v1082 = vunpack.c.l.b16 %v240
  %v1083 = vunpack.c.h.b16 %v240
  %v1084 = vunpack.c.l.b16 %v241
  %v1085 = vunpack.c.h.b16 %v241
  %v1086 = vunpack.c.l.b16 %v242
  %v1087 = vunpack.c.h.b16 %v242
  %v1088 = vunpack.c.l.b16 %v243
  %v1089 = vunpack.c.h.b16 %v243
  %v1090 = vunpack.c.l.b16 %v244
  %v1091 = vunpack.c.h.b16 %v244
  %v1092 = vunpack.c.l.b16 %v245
  %v1093 = vunpack.c.h.b16 %v245
  %v1094 = vunpack.c.l.b16 %v246
  %v1095 = vunpack.c.h.b16 %v246
  %v1096 = vunpack.c.l.b16 %v247
  %v1097 = vunpack.c.h.b16 %v247
  %v1098 = vunpack.c.l.b16 %v248
  %v1099 = vunpack.c.h.b16 %v248
  %v1100 = vunpack.c.l.b16 %v249
  %v1101 = vunpack.c.h.b16 %v249
  %v1102 = vunpack.c.l.b16 %v250
  %v1103 = vunpack.c.h.b16 %v250
  %v1104 = vunpack.c.l.b16 %v251
  %v1105 = vunpack.c.h.b16 %v251
  %v1106 = vunpack.c.l.b16 %v252
  %v1107 = vunpack.c.h.b16 %v252
  %v1108 = vunpack.c.l.b16 %v253
  %v1109 = vunpack.c.h.b16 %v253
  %v1110 = vunpack.c.l.b16 %v254
  %v1111 = vunpack.c.h.b16 %v254
  %v1112 = vunpack.c.l.b16 %v255
  %v1113 = vunpack.c.h.b16 %v255
  %v1114 = vunpack.c.l.b16 %v256
  %v1115 = vunpack.c.h.b16 %v256
  %v1116 = vunpack.c.l.b16 %v257
  %v1117 = vunpack.c.h.b16 %v257
  %v1118 = vunpack.c.l.b16 %v258
  %v1119 = vunpack.c.h.b16 %v258
  %v1120 = vunpack.c.l.b16 %v259
  %v1121 = vunpack.c.h.b16 %v259
  %v1122 = vunpack.c.l.b16 %v260
  %v1123 = vunpack.c.h.b16 %v260
  %v1124 = vunpack.c.l.b16 %v261
  %v1125 = vunpack.c.h.b16 %v261
  %v1126 = vunpack.c.l.b16 %v262
  %v1127 = vunpack.c.h.b16 %v262
  %v1128 = vunpack.c.l.b16 %v263
  %v1129 = vunpack.c.h.b16 %v263
  %v1130 = vunpack.c.l.b16 %v264
  %v1131 = vunpack.c.h.b16 %v264
  %v1132 = vunpack.c.l.b16 %v265
  %v1133 = vunpack.c.h.b16 %v265
  %v1134 = vunpack.c.l.b16 %v266
  %v1135 = vunpack.c.h.b16 %v266
  %v1136 = vunpack.c.l.b16 %v267
  %v1137 = vunpack.c.h.b16 %v267
  %v1138 = vunpack.c.l.b16 %v268
  %v1139 = vunpack.c.h.b16 %v268
  %v1140 = vunpack.c.l.b16 %v269
  %v1141 = vunpack.c.h.b16 %v269
  %v1142 = vunpack.c.l.b16 %v270
  %v1143 = vunpack.c.h.b16 %v270
  %v1144 = vunpack.c.l.b16 %v271
  %v1145 = vunpack.c.h.b16 %v271
  %v1146 = vunpack.c.l.b16 %v272
  %v1147 = vunpack.c.h.b16 %v272
  %v1148 = vpack.c.b16 %v1054, %v1052
  %v1149 = vpack.c.b16 %v1055, %v1053
  %v1150 = vpack.c.b16 %v1058, %v1056
  %v1151 = vpack.c.b16 %v1059, %v1057
  %v1152 = vpack.c.b16 %v1062, %v1060
  %v1153 = vpack.c.b16 %v1063, %v1061
  %v1154 = vpack.c.b16 %v1066, %v1064
  %v1155 = vpack.c.b16 %v1067, %v1065
  %v1156 = vpack.c.b16 %v1070, %v1068
  %v1157 = vpack.c.b16 %v1071, %v1069
  %v1158 = vpack.c.b16 %v1074, %v1072
  %v1159 = vpack.c.b16 %v1075, %v1073
  %v1160 = vpack.c.b16 %v1078, %v1076
  %v1161 = vpack.c.b16 %v1079, %v1077
  %v1162 = vpack.c.b16 %v1082, %v1080
  %v1163 = vpack.c.b16 %v1083, %v1081
  %v1164 = vpack.c.b16 %v1086, %v1084
  %v1165 = vpack.c.b16 %v1087, %v1085
  %v1166 = vpack.c.b16 %v1090, %v1088
  %v1167 = vpack.c.b16 %v1091, %v1089
  %v1168 = vpack.c.b16 %v1094, %v1092
  %v1169 = vpack.c.b16 %v1095, %v1093
  %v1170 = vpack.c.b16 %v1098, %v1096
  %v1171 = vpack.c.b16 %v1099, %v1097
  %v1172 = vpack.c.b16 %v1102, %v1100
  %v1173 = vpack.c.b16 %v1103, %v1101
  %v1174 = vpack.c.b16 %v1106, %v1104
  %v1175 = vpack.c.b16 %v1107, %v1105
  %v1176 = vpack.c.b16 %v1110, %v1108
  %v1177 = vpack.c.b16 %v1111, %v1109
  %v1178 = vpack.c.b16 %v1114, %v1112
  %v1179 = vpack.c.b16 %v1115, %v1113
  %v1180 = vpack.c.b16 %v1118, %v1116
  %v1181 = vpack.c.b16 %v1119, %v1117
  %v1182 = vpack.c.b16 %v1122, %v1120
  %v1183 = vpack.c.b16 %v1123, %v1121
  %v1184 = vpack.c.b16 %v1126, %v1124
  %v1185 = vpack.c.b16 %v1127, %v1125
  %v1186 = vpack.c.b16 %v1130, %v1128
  %v1187 = vpack.c.b16 %v1131, %v1129
  %v1188 = vpack.c.b16 %v1134, %v1132
  %v1189 = vpack.c.b16 %v1135, %v1133
  %v1190 = vpack.c.b16 %v1138, %v1136
  %v1191 = vpack.c.b16 %v1139, %v1137
  %v1192 = vpack.c.b16 %v1142, %v1140
  %v1193 = vpack.c.b16 %v1143, %v1141
  %v1194 = vpack.c.b16 %v1146, %v1144
  %v1195 = vpack.c.b16 %v1147, %v1145
  %1244 = vmatpush.bf16.msra.mxu0 %v1162
  %1245 = vmatpush.bf16.msra.mxu0 %v1160
  %1246 = vmatpush.bf16.msra.mxu0 %v1158
  %1247 = vmatpush.bf16.msra.mxu0 %v1156
  %1248 = vmatpush.bf16.msra.mxu0 %v1154
  %1249 = vmatpush.bf16.msra.mxu0 %v1152
  %1250 = vmatpush.bf16.msra.mxu0 %v1150
  %1251 = vmatpush.bf16.msra.mxu0 %v1148
  %1252 = vmatmul.bf16.gmra.mxu0 %v998
  %v1253 = vpop.f32.mrf.mxu0
  %v1254 = vadd.f32 0.0, %v1253
  %v1255 = vpop.f32.mrf.mxu0
  %1256 = vdwg.mxu0
  %1257 = vmatpush.bf16.msra.mxu0 %v1178
  %1258 = vmatpush.bf16.msra.mxu0 %v1176
  %1259 = vmatpush.bf16.msra.mxu0 %v1174
  %1260 = vmatpush.bf16.msra.mxu0 %v1172
  %1261 = vmatpush.bf16.msra.mxu0 %v1170
  %1262 = vmatpush.bf16.msra.mxu0 %v1168
  %1263 = vmatpush.bf16.msra.mxu0 %v1166
  %1264 = vmatpush.bf16.msra.mxu0 %v1164
  %1265 = vmatmul.bf16.gmra.mxu0 %v999
  %v1266 = vpop.f32.mrf.mxu0
  %v1267 = vadd.f32 %v1254, %v1266
  %v1268 = vpop.f32.mrf.mxu0
  %1269 = vdwg.mxu0
  %1270 = vmatpush.bf16.msra.mxu0 %v1194
  %1271 = vmatpush.bf16.msra.mxu0 %v1192
  %1272 = vmatpush.bf16.msra.mxu0 %v1190
  %1273 = vmatpush.bf16.msra.mxu0 %v1188
  %1274 = vmatpush.bf16.msra.mxu0 %v1186
  %1275 = vmatpush.bf16.msra.mxu0 %v1184
  %1276 = vmatpush.bf16.msra.mxu0 %v1182
  %1277 = vmatpush.bf16.msra.mxu0 %v1180
  %1278 = vmatmul.bf16.gmra.mxu0 %v1000
  %v1279 = vpop.f32.mrf.mxu0
  %v1280 = vadd.f32 %v1267, %v1279
  %v1281 = vpop.f32.mrf.mxu0
  %1282 = vdwg.mxu0
  %1283 = vmatpush.bf16.msra.mxu0 %v1163
  %1284 = vmatpush.bf16.msra.mxu0 %v1161
  %1285 = vmatpush.bf16.msra.mxu0 %v1159
  %1286 = vmatpush.bf16.msra.mxu0 %v1157
  %1287 = vmatpush.bf16.msra.mxu0 %v1155
  %1288 = vmatpush.bf16.msra.mxu0 %v1153
  %1289 = vmatpush.bf16.msra.mxu0 %v1151
  %1290 = vmatpush.bf16.msra.mxu0 %v1149
  %1291 = vmatmul.bf16.gmra.mxu0 %v998
  %v1292 = vpop.f32.mrf.mxu0
  %v1293 = vadd.f32 0.0, %v1292
  %v1294 = vpop.f32.mrf.mxu0
  %1295 = vdwg.mxu0
  %1296 = vmatpush.bf16.msra.mxu0 %v1179
  %1297 = vmatpush.bf16.msra.mxu0 %v1177
  %1298 = vmatpush.bf16.msra.mxu0 %v1175
  %1299 = vmatpush.bf16.msra.mxu0 %v1173
  %1300 = vmatpush.bf16.msra.mxu0 %v1171
  %1301 = vmatpush.bf16.msra.mxu0 %v1169
  %1302 = vmatpush.bf16.msra.mxu0 %v1167
  %1303 = vmatpush.bf16.msra.mxu0 %v1165
  %1304 = vmatmul.bf16.gmra.mxu0 %v999
  %v1305 = vpop.f32.mrf.mxu0
  %v1306 = vadd.f32 %v1293, %v1305
  %v1307 = vpop.f32.mrf.mxu0
  %1308 = vdwg.mxu0
  %1309 = vmatpush.bf16.msra.mxu0 %v1195
  %1310 = vmatpush.bf16.msra.mxu0 %v1193
  %1311 = vmatpush.bf16.msra.mxu0 %v1191
  %1312 = vmatpush.bf16.msra.mxu0 %v1189
  %1313 = vmatpush.bf16.msra.mxu0 %v1187
  %1314 = vmatpush.bf16.msra.mxu0 %v1185
  %1315 = vmatpush.bf16.msra.mxu0 %v1183
  %1316 = vmatpush.bf16.msra.mxu0 %v1181
  %1317 = vmatmul.bf16.gmra.mxu0 %v1000
  %v1318 = vpop.f32.mrf.mxu0
  %v1319 = vadd.f32 %v1306, %v1318
  %v1320 = vpop.f32.mrf.mxu0
  %1321 = vdwg.mxu0
  %v1370 = vunpack.c.l.b16 %v273
  %v1371 = vunpack.c.h.b16 %v273
  %v1372 = vunpack.c.l.b16 %v274
  %v1373 = vunpack.c.h.b16 %v274
  %v1374 = vunpack.c.l.b16 %v275
  %v1375 = vunpack.c.h.b16 %v275
  %v1376 = vunpack.c.l.b16 %v276
  %v1377 = vunpack.c.h.b16 %v276
  %v1378 = vunpack.c.l.b16 %v277
  %v1379 = vunpack.c.h.b16 %v277
  %v1380 = vunpack.c.l.b16 %v278
  %v1381 = vunpack.c.h.b16 %v278
  %v1382 = vunpack.c.l.b16 %v279
  %v1383 = vunpack.c.h.b16 %v279
  %v1384 = vunpack.c.l.b16 %v280
  %v1385 = vunpack.c.h.b16 %v280
  %v1386 = vunpack.c.l.b16 %v281
  %v1387 = vunpack.c.h.b16 %v281
  %v1388 = vunpack.c.l.b16 %v282
  %v1389 = vunpack.c.h.b16 %v282
  %v1390 = vunpack.c.l.b16 %v283
  %v1391 = vunpack.c.h.b16 %v283
  %v1392 = vunpack.c.l.b16 %v284
  %v1393 = vunpack.c.h.b16 %v284
  %v1394 = vunpack.c.l.b16 %v285
  %v1395 = vunpack.c.h.b16 %v285
  %v1396 = vunpack.c.l.b16 %v286
  %v1397 = vunpack.c.h.b16 %v286
  %v1398 = vunpack.c.l.b16 %v287
  %v1399 = vunpack.c.h.b16 %v287
  %v1400 = vunpack.c.l.b16 %v288
  %v1401 = vunpack.c.h.b16 %v288
  %v1402 = vunpack.c.l.b16 %v289
  %v1403 = vunpack.c.h.b16 %v289
  %v1404 = vunpack.c.l.b16 %v290
  %v1405 = vunpack.c.h.b16 %v290
  %v1406 = vunpack.c.l.b16 %v291
  %v1407 = vunpack.c.h.b16 %v291
  %v1408 = vunpack.c.l.b16 %v292
  %v1409 = vunpack.c.h.b16 %v292
  %v1410 = vunpack.c.l.b16 %v293
  %v1411 = vunpack.c.h.b16 %v293
  %v1412 = vunpack.c.l.b16 %v294
  %v1413 = vunpack.c.h.b16 %v294
  %v1414 = vunpack.c.l.b16 %v295
  %v1415 = vunpack.c.h.b16 %v295
  %v1416 = vunpack.c.l.b16 %v296
  %v1417 = vunpack.c.h.b16 %v296
  %v1418 = vunpack.c.l.b16 %v297
  %v1419 = vunpack.c.h.b16 %v297
  %v1420 = vunpack.c.l.b16 %v298
  %v1421 = vunpack.c.h.b16 %v298
  %v1422 = vunpack.c.l.b16 %v299
  %v1423 = vunpack.c.h.b16 %v299
  %v1424 = vunpack.c.l.b16 %v300
  %v1425 = vunpack.c.h.b16 %v300
  %v1426 = vunpack.c.l.b16 %v301
  %v1427 = vunpack.c.h.b16 %v301
  %v1428 = vunpack.c.l.b16 %v302
  %v1429 = vunpack.c.h.b16 %v302
  %v1430 = vunpack.c.l.b16 %v303
  %v1431 = vunpack.c.h.b16 %v303
  %v1432 = vunpack.c.l.b16 %v304
  %v1433 = vunpack.c.h.b16 %v304
  %v1434 = vunpack.c.l.b16 %v305
  %v1435 = vunpack.c.h.b16 %v305
  %v1436 = vunpack.c.l.b16 %v306
  %v1437 = vunpack.c.h.b16 %v306
  %v1438 = vunpack.c.l.b16 %v307
  %v1439 = vunpack.c.h.b16 %v307
  %v1440 = vunpack.c.l.b16 %v308
  %v1441 = vunpack.c.h.b16 %v308
  %v1442 = vunpack.c.l.b16 %v309
  %v1443 = vunpack.c.h.b16 %v309
  %v1444 = vunpack.c.l.b16 %v310
  %v1445 = vunpack.c.h.b16 %v310
  %v1446 = vunpack.c.l.b16 %v311
  %v1447 = vunpack.c.h.b16 %v311
  %v1448 = vunpack.c.l.b16 %v312
  %v1449 = vunpack.c.h.b16 %v312
  %v1450 = vunpack.c.l.b16 %v313
  %v1451 = vunpack.c.h.b16 %v313
  %v1452 = vunpack.c.l.b16 %v314
  %v1453 = vunpack.c.h.b16 %v314
  %v1454 = vunpack.c.l.b16 %v315
  %v1455 = vunpack.c.h.b16 %v315
  %v1456 = vunpack.c.l.b16 %v316
  %v1457 = vunpack.c.h.b16 %v316
  %v1458 = vunpack.c.l.b16 %v317
  %v1459 = vunpack.c.h.b16 %v317
  %v1460 = vunpack.c.l.b16 %v318
  %v1461 = vunpack.c.h.b16 %v318
  %v1462 = vunpack.c.l.b16 %v319
  %v1463 = vunpack.c.h.b16 %v319
  %v1464 = vunpack.c.l.b16 %v320
  %v1465 = vunpack.c.h.b16 %v320
  %v1466 = vpack.c.b16 %v1372, %v1370
  %v1467 = vpack.c.b16 %v1373, %v1371
  %v1468 = vpack.c.b16 %v1376, %v1374
  %v1469 = vpack.c.b16 %v1377, %v1375
  %v1470 = vpack.c.b16 %v1380, %v1378
  %v1471 = vpack.c.b16 %v1381, %v1379
  %v1472 = vpack.c.b16 %v1384, %v1382
  %v1473 = vpack.c.b16 %v1385, %v1383
  %v1474 = vpack.c.b16 %v1388, %v1386
  %v1475 = vpack.c.b16 %v1389, %v1387
  %v1476 = vpack.c.b16 %v1392, %v1390
  %v1477 = vpack.c.b16 %v1393, %v1391
  %v1478 = vpack.c.b16 %v1396, %v1394
  %v1479 = vpack.c.b16 %v1397, %v1395
  %v1480 = vpack.c.b16 %v1400, %v1398
  %v1481 = vpack.c.b16 %v1401, %v1399
  %v1482 = vpack.c.b16 %v1404, %v1402
  %v1483 = vpack.c.b16 %v1405, %v1403
  %v1484 = vpack.c.b16 %v1408, %v1406
  %v1485 = vpack.c.b16 %v1409, %v1407
  %v1486 = vpack.c.b16 %v1412, %v1410
  %v1487 = vpack.c.b16 %v1413, %v1411
  %v1488 = vpack.c.b16 %v1416, %v1414
  %v1489 = vpack.c.b16 %v1417, %v1415
  %v1490 = vpack.c.b16 %v1420, %v1418
  %v1491 = vpack.c.b16 %v1421, %v1419
  %v1492 = vpack.c.b16 %v1424, %v1422
  %v1493 = vpack.c.b16 %v1425, %v1423
  %v1494 = vpack.c.b16 %v1428, %v1426
  %v1495 = vpack.c.b16 %v1429, %v1427
  %v1496 = vpack.c.b16 %v1432, %v1430
  %v1497 = vpack.c.b16 %v1433, %v1431
  %v1498 = vpack.c.b16 %v1436, %v1434
  %v1499 = vpack.c.b16 %v1437, %v1435
  %v1500 = vpack.c.b16 %v1440, %v1438
  %v1501 = vpack.c.b16 %v1441, %v1439
  %v1502 = vpack.c.b16 %v1444, %v1442
  %v1503 = vpack.c.b16 %v1445, %v1443
  %v1504 = vpack.c.b16 %v1448, %v1446
  %v1505 = vpack.c.b16 %v1449, %v1447
  %v1506 = vpack.c.b16 %v1452, %v1450
  %v1507 = vpack.c.b16 %v1453, %v1451
  %v1508 = vpack.c.b16 %v1456, %v1454
  %v1509 = vpack.c.b16 %v1457, %v1455
  %v1510 = vpack.c.b16 %v1460, %v1458
  %v1511 = vpack.c.b16 %v1461, %v1459
  %v1512 = vpack.c.b16 %v1464, %v1462
  %v1513 = vpack.c.b16 %v1465, %v1463
  %1562 = vmatpush.bf16.msra.mxu0 %v1480
  %1563 = vmatpush.bf16.msra.mxu0 %v1478
  %1564 = vmatpush.bf16.msra.mxu0 %v1476
  %1565 = vmatpush.bf16.msra.mxu0 %v1474
  %1566 = vmatpush.bf16.msra.mxu0 %v1472
  %1567 = vmatpush.bf16.msra.mxu0 %v1470
  %1568 = vmatpush.bf16.msra.mxu0 %v1468
  %1569 = vmatpush.bf16.msra.mxu0 %v1466
  %1570 = vmatmul.bf16.gmra.mxu0 %v998
  %v1571 = vpop.f32.mrf.mxu0
  %v1572 = vadd.f32 0.0, %v1571
  %v1573 = vpop.f32.mrf.mxu0
  %1574 = vdwg.mxu0
  %1575 = vmatpush.bf16.msra.mxu0 %v1496
  %1576 = vmatpush.bf16.msra.mxu0 %v1494
  %1577 = vmatpush.bf16.msra.mxu0 %v1492
  %1578 = vmatpush.bf16.msra.mxu0 %v1490
  %1579 = vmatpush.bf16.msra.mxu0 %v1488
  %1580 = vmatpush.bf16.msra.mxu0 %v1486
  %1581 = vmatpush.bf16.msra.mxu0 %v1484
  %1582 = vmatpush.bf16.msra.mxu0 %v1482
  %1583 = vmatmul.bf16.gmra.mxu0 %v999
  %v1584 = vpop.f32.mrf.mxu0
  %v1585 = vadd.f32 %v1572, %v1584
  %v1586 = vpop.f32.mrf.mxu0
  %1587 = vdwg.mxu0
  %1588 = vmatpush.bf16.msra.mxu0 %v1512
  %1589 = vmatpush.bf16.msra.mxu0 %v1510
  %1590 = vmatpush.bf16.msra.mxu0 %v1508
  %1591 = vmatpush.bf16.msra.mxu0 %v1506
  %1592 = vmatpush.bf16.msra.mxu0 %v1504
  %1593 = vmatpush.bf16.msra.mxu0 %v1502
  %1594 = vmatpush.bf16.msra.mxu0 %v1500
  %1595 = vmatpush.bf16.msra.mxu0 %v1498
  %1596 = vmatmul.bf16.gmra.mxu0 %v1000
  %v1597 = vpop.f32.mrf.mxu0
  %v1598 = vadd.f32 %v1585, %v1597
  %v1599 = vpop.f32.mrf.mxu0
  %1600 = vdwg.mxu0
  %1601 = vmatpush.bf16.msra.mxu0 %v1481
  %1602 = vmatpush.bf16.msra.mxu0 %v1479
  %1603 = vmatpush.bf16.msra.mxu0 %v1477
  %1604 = vmatpush.bf16.msra.mxu0 %v1475
  %1605 = vmatpush.bf16.msra.mxu0 %v1473
  %1606 = vmatpush.bf16.msra.mxu0 %v1471
  %1607 = vmatpush.bf16.msra.mxu0 %v1469
  %1608 = vmatpush.bf16.msra.mxu0 %v1467
  %1609 = vmatmul.bf16.gmra.mxu0 %v998
  %v1610 = vpop.f32.mrf.mxu0
  %v1611 = vadd.f32 0.0, %v1610
  %v1612 = vpop.f32.mrf.mxu0
  %1613 = vdwg.mxu0
  %1614 = vmatpush.bf16.msra.mxu0 %v1497
  %1615 = vmatpush.bf16.msra.mxu0 %v1495
  %1616 = vmatpush.bf16.msra.mxu0 %v1493
  %1617 = vmatpush.bf16.msra.mxu0 %v1491
  %1618 = vmatpush.bf16.msra.mxu0 %v1489
  %1619 = vmatpush.bf16.msra.mxu0 %v1487
  %1620 = vmatpush.bf16.msra.mxu0 %v1485
  %1621 = vmatpush.bf16.msra.mxu0 %v1483
  %1622 = vmatmul.bf16.gmra.mxu0 %v999
  %v1623 = vpop.f32.mrf.mxu0
  %v1624 = vadd.f32 %v1611, %v1623
  %v1625 = vpop.f32.mrf.mxu0
  %1626 = vdwg.mxu0
  %1627 = vmatpush.bf16.msra.mxu0 %v1513
  %1628 = vmatpush.bf16.msra.mxu0 %v1511
  %1629 = vmatpush.bf16.msra.mxu0 %v1509
  %1630 = vmatpush.bf16.msra.mxu0 %v1507
  %1631 = vmatpush.bf16.msra.mxu0 %v1505
  %1632 = vmatpush.bf16.msra.mxu0 %v1503
  %1633 = vmatpush.bf16.msra.mxu0 %v1501
  %1634 = vmatpush.bf16.msra.mxu0 %v1499
  %1635 = vmatmul.bf16.gmra.mxu0 %v1000
  %v1636 = vpop.f32.mrf.mxu0
  %v1637 = vadd.f32 %v1624, %v1636
  %v1638 = vpop.f32.mrf.mxu0
  %1639 = vdwg.mxu0
  %v1688 = vunpack.c.l.b16 %v321
  %v1689 = vunpack.c.h.b16 %v321
  %v1690 = vunpack.c.l.b16 %v322
  %v1691 = vunpack.c.h.b16 %v322
  %v1692 = vunpack.c.l.b16 %v323
  %v1693 = vunpack.c.h.b16 %v323
  %v1694 = vunpack.c.l.b16 %v324
  %v1695 = vunpack.c.h.b16 %v324
  %v1696 = vunpack.c.l.b16 %v325
  %v1697 = vunpack.c.h.b16 %v325
  %v1698 = vunpack.c.l.b16 %v326
  %v1699 = vunpack.c.h.b16 %v326
  %v1700 = vunpack.c.l.b16 %v327
  %v1701 = vunpack.c.h.b16 %v327
  %v1702 = vunpack.c.l.b16 %v328
  %v1703 = vunpack.c.h.b16 %v328
  %v1704 = vunpack.c.l.b16 %v329
  %v1705 = vunpack.c.h.b16 %v329
  %v1706 = vunpack.c.l.b16 %v330
  %v1707 = vunpack.c.h.b16 %v330
  %v1708 = vunpack.c.l.b16 %v331
  %v1709 = vunpack.c.h.b16 %v331
  %v1710 = vunpack.c.l.b16 %v332
  %v1711 = vunpack.c.h.b16 %v332
  %v1712 = vunpack.c.l.b16 %v333
  %v1713 = vunpack.c.h.b16 %v333
  %v1714 = vunpack.c.l.b16 %v334
  %v1715 = vunpack.c.h.b16 %v334
  %v1716 = vunpack.c.l.b16 %v335
  %v1717 = vunpack.c.h.b16 %v335
  %v1718 = vunpack.c.l.b16 %v336
  %v1719 = vunpack.c.h.b16 %v336
  %v1720 = vunpack.c.l.b16 %v337
  %v1721 = vunpack.c.h.b16 %v337
  %v1722 = vunpack.c.l.b16 %v338
  %v1723 = vunpack.c.h.b16 %v338
  %v1724 = vunpack.c.l.b16 %v339
  %v1725 = vunpack.c.h.b16 %v339
  %v1726 = vunpack.c.l.b16 %v340
  %v1727 = vunpack.c.h.b16 %v340
  %v1728 = vunpack.c.l.b16 %v341
  %v1729 = vunpack.c.h.b16 %v341
  %v1730 = vunpack.c.l.b16 %v342
  %v1731 = vunpack.c.h.b16 %v342
  %v1732 = vunpack.c.l.b16 %v343
  %v1733 = vunpack.c.h.b16 %v343
  %v1734 = vunpack.c.l.b16 %v344
  %v1735 = vunpack.c.h.b16 %v344
  %v1736 = vunpack.c.l.b16 %v345
  %v1737 = vunpack.c.h.b16 %v345
  %v1738 = vunpack.c.l.b16 %v346
  %v1739 = vunpack.c.h.b16 %v346
  %v1740 = vunpack.c.l.b16 %v347
  %v1741 = vunpack.c.h.b16 %v347
  %v1742 = vunpack.c.l.b16 %v348
  %v1743 = vunpack.c.h.b16 %v348
  %v1744 = vunpack.c.l.b16 %v349
  %v1745 = vunpack.c.h.b16 %v349
  %v1746 = vunpack.c.l.b16 %v350
  %v1747 = vunpack.c.h.b16 %v350
  %v1748 = vunpack.c.l.b16 %v351
  %v1749 = vunpack.c.h.b16 %v351
  %v1750 = vunpack.c.l.b16 %v352
  %v1751 = vunpack.c.h.b16 %v352
  %v1752 = vunpack.c.l.b16 %v353
  %v1753 = vunpack.c.h.b16 %v353
  %v1754 = vunpack.c.l.b16 %v354
  %v1755 = vunpack.c.h.b16 %v354
  %v1756 = vunpack.c.l.b16 %v355
  %v1757 = vunpack.c.h.b16 %v355
  %v1758 = vunpack.c.l.b16 %v356
  %v1759 = vunpack.c.h.b16 %v356
  %v1760 = vunpack.c.l.b16 %v357
  %v1761 = vunpack.c.h.b16 %v357
  %v1762 = vunpack.c.l.b16 %v358
  %v1763 = vunpack.c.h.b16 %v358
  %v1764 = vunpack.c.l.b16 %v359
  %v1765 = vunpack.c.h.b16 %v359
  %v1766 = vunpack.c.l.b16 %v360
  %v1767 = vunpack.c.h.b16 %v360
  %v1768 = vunpack.c.l.b16 %v361
  %v1769 = vunpack.c.h.b16 %v361
  %v1770 = vunpack.c.l.b16 %v362
  %v1771 = vunpack.c.h.b16 %v362
  %v1772 = vunpack.c.l.b16 %v363
  %v1773 = vunpack.c.h.b16 %v363
  %v1774 = vunpack.c.l.b16 %v364
  %v1775 = vunpack.c.h.b16 %v364
  %v1776 = vunpack.c.l.b16 %v365
  %v1777 = vunpack.c.h.b16 %v365
  %v1778 = vunpack.c.l.b16 %v366
  %v1779 = vunpack.c.h.b16 %v366
  %v1780 = vunpack.c.l.b16 %v367
  %v1781 = vunpack.c.h.b16 %v367
  %v1782 = vunpack.c.l.b16 %v368
  %v1783 = vunpack.c.h.b16 %v368
  %v1784 = vpack.c.b16 %v1690, %v1688
  %v1785 = vpack.c.b16 %v1691, %v1689
  %v1786 = vpack.c.b16 %v1694, %v1692
  %v1787 = vpack.c.b16 %v1695, %v1693
  %v1788 = vpack.c.b16 %v1698, %v1696
  %v1789 = vpack.c.b16 %v1699, %v1697
  %v1790 = vpack.c.b16 %v1702, %v1700
  %v1791 = vpack.c.b16 %v1703, %v1701
  %v1792 = vpack.c.b16 %v1706, %v1704
  %v1793 = vpack.c.b16 %v1707, %v1705
  %v1794 = vpack.c.b16 %v1710, %v1708
  %v1795 = vpack.c.b16 %v1711, %v1709
  %v1796 = vpack.c.b16 %v1714, %v1712
  %v1797 = vpack.c.b16 %v1715, %v1713
  %v1798 = vpack.c.b16 %v1718, %v1716
  %v1799 = vpack.c.b16 %v1719, %v1717
  %v1800 = vpack.c.b16 %v1722, %v1720
  %v1801 = vpack.c.b16 %v1723, %v1721
  %v1802 = vpack.c.b16 %v1726, %v1724
  %v1803 = vpack.c.b16 %v1727, %v1725
  %v1804 = vpack.c.b16 %v1730, %v1728
  %v1805 = vpack.c.b16 %v1731, %v1729
  %v1806 = vpack.c.b16 %v1734, %v1732
  %v1807 = vpack.c.b16 %v1735, %v1733
  %v1808 = vpack.c.b16 %v1738, %v1736
  %v1809 = vpack.c.b16 %v1739, %v1737
  %v1810 = vpack.c.b16 %v1742, %v1740
  %v1811 = vpack.c.b16 %v1743, %v1741
  %v1812 = vpack.c.b16 %v1746, %v1744
  %v1813 = vpack.c.b16 %v1747, %v1745
  %v1814 = vpack.c.b16 %v1750, %v1748
  %v1815 = vpack.c.b16 %v1751, %v1749
  %v1816 = vpack.c.b16 %v1754, %v1752
  %v1817 = vpack.c.b16 %v1755, %v1753
  %v1818 = vpack.c.b16 %v1758, %v1756
  %v1819 = vpack.c.b16 %v1759, %v1757
  %v1820 = vpack.c.b16 %v1762, %v1760
  %v1821 = vpack.c.b16 %v1763, %v1761
  %v1822 = vpack.c.b16 %v1766, %v1764
  %v1823 = vpack.c.b16 %v1767, %v1765
  %v1824 = vpack.c.b16 %v1770, %v1768
  %v1825 = vpack.c.b16 %v1771, %v1769
  %v1826 = vpack.c.b16 %v1774, %v1772
  %v1827 = vpack.c.b16 %v1775, %v1773
  %v1828 = vpack.c.b16 %v1778, %v1776
  %v1829 = vpack.c.b16 %v1779, %v1777
  %v1830 = vpack.c.b16 %v1782, %v1780
  %v1831 = vpack.c.b16 %v1783, %v1781
  %1880 = vmatpush.bf16.msra.mxu0 %v1798
  %1881 = vmatpush.bf16.msra.mxu0 %v1796
  %1882 = vmatpush.bf16.msra.mxu0 %v1794
  %1883 = vmatpush.bf16.msra.mxu0 %v1792
  %1884 = vmatpush.bf16.msra.mxu0 %v1790
  %1885 = vmatpush.bf16.msra.mxu0 %v1788
  %1886 = vmatpush.bf16.msra.mxu0 %v1786
  %1887 = vmatpush.bf16.msra.mxu0 %v1784
  %1888 = vmatmul.bf16.gmra.mxu0 %v998
  %v1889 = vpop.f32.mrf.mxu0
  %v1890 = vadd.f32 0.0, %v1889
  %v1891 = vpop.f32.mrf.mxu0
  %1892 = vdwg.mxu0
  %1893 = vmatpush.bf16.msra.mxu0 %v1814
  %1894 = vmatpush.bf16.msra.mxu0 %v1812
  %1895 = vmatpush.bf16.msra.mxu0 %v1810
  %1896 = vmatpush.bf16.msra.mxu0 %v1808
  %1897 = vmatpush.bf16.msra.mxu0 %v1806
  %1898 = vmatpush.bf16.msra.mxu0 %v1804
  %1899 = vmatpush.bf16.msra.mxu0 %v1802
  %1900 = vmatpush.bf16.msra.mxu0 %v1800
  %1901 = vmatmul.bf16.gmra.mxu0 %v999
  %v1902 = vpop.f32.mrf.mxu0
  %v1903 = vadd.f32 %v1890, %v1902
  %v1904 = vpop.f32.mrf.mxu0
  %1905 = vdwg.mxu0
  %1906 = vmatpush.bf16.msra.mxu0 %v1830
  %1907 = vmatpush.bf16.msra.mxu0 %v1828
  %1908 = vmatpush.bf16.msra.mxu0 %v1826
  %1909 = vmatpush.bf16.msra.mxu0 %v1824
  %1910 = vmatpush.bf16.msra.mxu0 %v1822
  %1911 = vmatpush.bf16.msra.mxu0 %v1820
  %1912 = vmatpush.bf16.msra.mxu0 %v1818
  %1913 = vmatpush.bf16.msra.mxu0 %v1816
  %1914 = vmatmul.bf16.gmra.mxu0 %v1000
  %v1915 = vpop.f32.mrf.mxu0
  %v1916 = vadd.f32 %v1903, %v1915
  %v1917 = vpop.f32.mrf.mxu0
  %1918 = vdwg.mxu0
  %1919 = vmatpush.bf16.msra.mxu0 %v1799
  %1920 = vmatpush.bf16.msra.mxu0 %v1797
  %1921 = vmatpush.bf16.msra.mxu0 %v1795
  %1922 = vmatpush.bf16.msra.mxu0 %v1793
  %1923 = vmatpush.bf16.msra.mxu0 %v1791
  %1924 = vmatpush.bf16.msra.mxu0 %v1789
  %1925 = vmatpush.bf16.msra.mxu0 %v1787
  %1926 = vmatpush.bf16.msra.mxu0 %v1785
  %1927 = vmatmul.bf16.gmra.mxu0 %v998
  %v1928 = vpop.f32.mrf.mxu0
  %v1929 = vadd.f32 0.0, %v1928
  %v1930 = vpop.f32.mrf.mxu0
  %1931 = vdwg.mxu0
  %1932 = vmatpush.bf16.msra.mxu0 %v1815
  %1933 = vmatpush.bf16.msra.mxu0 %v1813
  %1934 = vmatpush.bf16.msra.mxu0 %v1811
  %1935 = vmatpush.bf16.msra.mxu0 %v1809
  %1936 = vmatpush.bf16.msra.mxu0 %v1807
  %1937 = vmatpush.bf16.msra.mxu0 %v1805
  %1938 = vmatpush.bf16.msra.mxu0 %v1803
  %1939 = vmatpush.bf16.msra.mxu0 %v1801
  %1940 = vmatmul.bf16.gmra.mxu0 %v999
  %v1941 = vpop.f32.mrf.mxu0
  %v1942 = vadd.f32 %v1929, %v1941
  %v1943 = vpop.f32.mrf.mxu0
  %1944 = vdwg.mxu0
  %1945 = vmatpush.bf16.msra.mxu0 %v1831
  %1946 = vmatpush.bf16.msra.mxu0 %v1829
  %1947 = vmatpush.bf16.msra.mxu0 %v1827
  %1948 = vmatpush.bf16.msra.mxu0 %v1825
  %1949 = vmatpush.bf16.msra.mxu0 %v1823
  %1950 = vmatpush.bf16.msra.mxu0 %v1821
  %1951 = vmatpush.bf16.msra.mxu0 %v1819
  %1952 = vmatpush.bf16.msra.mxu0 %v1817
  %1953 = vmatmul.bf16.gmra.mxu0 %v1000
  %v1954 = vpop.f32.mrf.mxu0
  %v1955 = vadd.f32 %v1942, %v1954
  %v1956 = vpop.f32.mrf.mxu0
  %1957 = vdwg.mxu0
  %v2006 = vunpack.c.l.b16 %v369
  %v2007 = vunpack.c.h.b16 %v369
  %v2008 = vunpack.c.l.b16 %v370
  %v2009 = vunpack.c.h.b16 %v370
  %v2010 = vunpack.c.l.b16 %v371
  %v2011 = vunpack.c.h.b16 %v371
  %v2012 = vunpack.c.l.b16 %v372
  %v2013 = vunpack.c.h.b16 %v372
  %v2014 = vunpack.c.l.b16 %v373
  %v2015 = vunpack.c.h.b16 %v373
  %v2016 = vunpack.c.l.b16 %v374
  %v2017 = vunpack.c.h.b16 %v374
  %v2018 = vunpack.c.l.b16 %v375
  %v2019 = vunpack.c.h.b16 %v375
  %v2020 = vunpack.c.l.b16 %v376
  %v2021 = vunpack.c.h.b16 %v376
  %v2022 = vunpack.c.l.b16 %v377
  %v2023 = vunpack.c.h.b16 %v377
  %v2024 = vunpack.c.l.b16 %v378
  %v2025 = vunpack.c.h.b16 %v378
  %v2026 = vunpack.c.l.b16 %v379
  %v2027 = vunpack.c.h.b16 %v379
  %v2028 = vunpack.c.l.b16 %v380
  %v2029 = vunpack.c.h.b16 %v380
  %v2030 = vunpack.c.l.b16 %v381
  %v2031 = vunpack.c.h.b16 %v381
  %v2032 = vunpack.c.l.b16 %v382
  %v2033 = vunpack.c.h.b16 %v382
  %v2034 = vunpack.c.l.b16 %v383
  %v2035 = vunpack.c.h.b16 %v383
  %v2036 = vunpack.c.l.b16 %v384
  %v2037 = vunpack.c.h.b16 %v384
  %v2038 = vunpack.c.l.b16 %v385
  %v2039 = vunpack.c.h.b16 %v385
  %v2040 = vunpack.c.l.b16 %v386
  %v2041 = vunpack.c.h.b16 %v386
  %v2042 = vunpack.c.l.b16 %v387
  %v2043 = vunpack.c.h.b16 %v387
  %v2044 = vunpack.c.l.b16 %v388
  %v2045 = vunpack.c.h.b16 %v388
  %v2046 = vunpack.c.l.b16 %v389
  %v2047 = vunpack.c.h.b16 %v389
  %v2048 = vunpack.c.l.b16 %v390
  %v2049 = vunpack.c.h.b16 %v390
  %v2050 = vunpack.c.l.b16 %v391
  %v2051 = vunpack.c.h.b16 %v391
  %v2052 = vunpack.c.l.b16 %v392
  %v2053 = vunpack.c.h.b16 %v392
  %v2054 = vunpack.c.l.b16 %v393
  %v2055 = vunpack.c.h.b16 %v393
  %v2056 = vunpack.c.l.b16 %v394
  %v2057 = vunpack.c.h.b16 %v394
  %v2058 = vunpack.c.l.b16 %v395
  %v2059 = vunpack.c.h.b16 %v395
  %v2060 = vunpack.c.l.b16 %v396
  %v2061 = vunpack.c.h.b16 %v396
  %v2062 = vunpack.c.l.b16 %v397
  %v2063 = vunpack.c.h.b16 %v397
  %v2064 = vunpack.c.l.b16 %v398
  %v2065 = vunpack.c.h.b16 %v398
  %v2066 = vunpack.c.l.b16 %v399
  %v2067 = vunpack.c.h.b16 %v399
  %v2068 = vunpack.c.l.b16 %v400
  %v2069 = vunpack.c.h.b16 %v400
  %v2070 = vunpack.c.l.b16 %v401
  %v2071 = vunpack.c.h.b16 %v401
  %v2072 = vunpack.c.l.b16 %v402
  %v2073 = vunpack.c.h.b16 %v402
  %v2074 = vunpack.c.l.b16 %v403
  %v2075 = vunpack.c.h.b16 %v403
  %v2076 = vunpack.c.l.b16 %v404
  %v2077 = vunpack.c.h.b16 %v404
  %v2078 = vunpack.c.l.b16 %v405
  %v2079 = vunpack.c.h.b16 %v405
  %v2080 = vunpack.c.l.b16 %v406
  %v2081 = vunpack.c.h.b16 %v406
  %v2082 = vunpack.c.l.b16 %v407
  %v2083 = vunpack.c.h.b16 %v407
  %v2084 = vunpack.c.l.b16 %v408
  %v2085 = vunpack.c.h.b16 %v408
  %v2086 = vunpack.c.l.b16 %v409
  %v2087 = vunpack.c.h.b16 %v409
  %v2088 = vunpack.c.l.b16 %v410
  %v2089 = vunpack.c.h.b16 %v410
  %v2090 = vunpack.c.l.b16 %v411
  %v2091 = vunpack.c.h.b16 %v411
  %v2092 = vunpack.c.l.b16 %v412
  %v2093 = vunpack.c.h.b16 %v412
  %v2094 = vunpack.c.l.b16 %v413
  %v2095 = vunpack.c.h.b16 %v413
  %v2096 = vunpack.c.l.b16 %v414
  %v2097 = vunpack.c.h.b16 %v414
  %v2098 = vunpack.c.l.b16 %v415
  %v2099 = vunpack.c.h.b16 %v415
  %v2100 = vunpack.c.l.b16 %v416
  %v2101 = vunpack.c.h.b16 %v416
  %v2102 = vpack.c.b16 %v2008, %v2006
  %v2103 = vpack.c.b16 %v2009, %v2007
  %v2104 = vpack.c.b16 %v2012, %v2010
  %v2105 = vpack.c.b16 %v2013, %v2011
  %v2106 = vpack.c.b16 %v2016, %v2014
  %v2107 = vpack.c.b16 %v2017, %v2015
  %v2108 = vpack.c.b16 %v2020, %v2018
  %v2109 = vpack.c.b16 %v2021, %v2019
  %v2110 = vpack.c.b16 %v2024, %v2022
  %v2111 = vpack.c.b16 %v2025, %v2023
  %v2112 = vpack.c.b16 %v2028, %v2026
  %v2113 = vpack.c.b16 %v2029, %v2027
  %v2114 = vpack.c.b16 %v2032, %v2030
  %v2115 = vpack.c.b16 %v2033, %v2031
  %v2116 = vpack.c.b16 %v2036, %v2034
  %v2117 = vpack.c.b16 %v2037, %v2035
  %v2118 = vpack.c.b16 %v2040, %v2038
  %v2119 = vpack.c.b16 %v2041, %v2039
  %v2120 = vpack.c.b16 %v2044, %v2042
  %v2121 = vpack.c.b16 %v2045, %v2043
  %v2122 = vpack.c.b16 %v2048, %v2046
  %v2123 = vpack.c.b16 %v2049, %v2047
  %v2124 = vpack.c.b16 %v2052, %v2050
  %v2125 = vpack.c.b16 %v2053, %v2051
  %v2126 = vpack.c.b16 %v2056, %v2054
  %v2127 = vpack.c.b16 %v2057, %v2055
  %v2128 = vpack.c.b16 %v2060, %v2058
  %v2129 = vpack.c.b16 %v2061, %v2059
  %v2130 = vpack.c.b16 %v2064, %v2062
  %v2131 = vpack.c.b16 %v2065, %v2063
  %v2132 = vpack.c.b16 %v2068, %v2066
  %v2133 = vpack.c.b16 %v2069, %v2067
  %v2134 = vpack.c.b16 %v2072, %v2070
  %v2135 = vpack.c.b16 %v2073, %v2071
  %v2136 = vpack.c.b16 %v2076, %v2074
  %v2137 = vpack.c.b16 %v2077, %v2075
  %v2138 = vpack.c.b16 %v2080, %v2078
  %v2139 = vpack.c.b16 %v2081, %v2079
  %v2140 = vpack.c.b16 %v2084, %v2082
  %v2141 = vpack.c.b16 %v2085, %v2083
  %v2142 = vpack.c.b16 %v2088, %v2086
  %v2143 = vpack.c.b16 %v2089, %v2087
  %v2144 = vpack.c.b16 %v2092, %v2090
  %v2145 = vpack.c.b16 %v2093, %v2091
  %v2146 = vpack.c.b16 %v2096, %v2094
  %v2147 = vpack.c.b16 %v2097, %v2095
  %v2148 = vpack.c.b16 %v2100, %v2098
  %v2149 = vpack.c.b16 %v2101, %v2099
  %2198 = vmatpush.bf16.msra.mxu0 %v2116
  %2199 = vmatpush.bf16.msra.mxu0 %v2114
  %2200 = vmatpush.bf16.msra.mxu0 %v2112
  %2201 = vmatpush.bf16.msra.mxu0 %v2110
  %2202 = vmatpush.bf16.msra.mxu0 %v2108
  %2203 = vmatpush.bf16.msra.mxu0 %v2106
  %2204 = vmatpush.bf16.msra.mxu0 %v2104
  %2205 = vmatpush.bf16.msra.mxu0 %v2102
  %2206 = vmatmul.bf16.gmra.mxu0 %v998
  %v2207 = vpop.f32.mrf.mxu0
  %v2208 = vadd.f32 0.0, %v2207
  %v2209 = vpop.f32.mrf.mxu0
  %2210 = vdwg.mxu0
  %2211 = vmatpush.bf16.msra.mxu0 %v2132
  %2212 = vmatpush.bf16.msra.mxu0 %v2130
  %2213 = vmatpush.bf16.msra.mxu0 %v2128
  %2214 = vmatpush.bf16.msra.mxu0 %v2126
  %2215 = vmatpush.bf16.msra.mxu0 %v2124
  %2216 = vmatpush.bf16.msra.mxu0 %v2122
  %2217 = vmatpush.bf16.msra.mxu0 %v2120
  %2218 = vmatpush.bf16.msra.mxu0 %v2118
  %2219 = vmatmul.bf16.gmra.mxu0 %v999
  %v2220 = vpop.f32.mrf.mxu0
  %v2221 = vadd.f32 %v2208, %v2220
  %v2222 = vpop.f32.mrf.mxu0
  %2223 = vdwg.mxu0
  %2224 = vmatpush.bf16.msra.mxu0 %v2148
  %2225 = vmatpush.bf16.msra.mxu0 %v2146
  %2226 = vmatpush.bf16.msra.mxu0 %v2144
  %2227 = vmatpush.bf16.msra.mxu0 %v2142
  %2228 = vmatpush.bf16.msra.mxu0 %v2140
  %2229 = vmatpush.bf16.msra.mxu0 %v2138
  %2230 = vmatpush.bf16.msra.mxu0 %v2136
  %2231 = vmatpush.bf16.msra.mxu0 %v2134
  %2232 = vmatmul.bf16.gmra.mxu0 %v1000
  %v2233 = vpop.f32.mrf.mxu0
  %v2234 = vadd.f32 %v2221, %v2233
  %v2235 = vpop.f32.mrf.mxu0
  %2236 = vdwg.mxu0
  %2237 = vmatpush.bf16.msra.mxu0 %v2117
  %2238 = vmatpush.bf16.msra.mxu0 %v2115
  %2239 = vmatpush.bf16.msra.mxu0 %v2113
  %2240 = vmatpush.bf16.msra.mxu0 %v2111
  %2241 = vmatpush.bf16.msra.mxu0 %v2109
  %2242 = vmatpush.bf16.msra.mxu0 %v2107
  %2243 = vmatpush.bf16.msra.mxu0 %v2105
  %2244 = vmatpush.bf16.msra.mxu0 %v2103
  %2245 = vmatmul.bf16.gmra.mxu0 %v998
  %v2246 = vpop.f32.mrf.mxu0
  %v2247 = vadd.f32 0.0, %v2246
  %v2248 = vpop.f32.mrf.mxu0
  %2249 = vdwg.mxu0
  %2250 = vmatpush.bf16.msra.mxu0 %v2133
  %2251 = vmatpush.bf16.msra.mxu0 %v2131
  %2252 = vmatpush.bf16.msra.mxu0 %v2129
  %2253 = vmatpush.bf16.msra.mxu0 %v2127
  %2254 = vmatpush.bf16.msra.mxu0 %v2125
  %2255 = vmatpush.bf16.msra.mxu0 %v2123
  %2256 = vmatpush.bf16.msra.mxu0 %v2121
  %2257 = vmatpush.bf16.msra.mxu0 %v2119
  %2258 = vmatmul.bf16.gmra.mxu0 %v999
  %v2259 = vpop.f32.mrf.mxu0
  %v2260 = vadd.f32 %v2247, %v2259
  %v2261 = vpop.f32.mrf.mxu0
  %2262 = vdwg.mxu0
  %2263 = vmatpush.bf16.msra.mxu0 %v2149
  %2264 = vmatpush.bf16.msra.mxu0 %v2147
  %2265 = vmatpush.bf16.msra.mxu0 %v2145
  %2266 = vmatpush.bf16.msra.mxu0 %v2143
  %2267 = vmatpush.bf16.msra.mxu0 %v2141
  %2268 = vmatpush.bf16.msra.mxu0 %v2139
  %2269 = vmatpush.bf16.msra.mxu0 %v2137
  %2270 = vmatpush.bf16.msra.mxu0 %v2135
  %2271 = vmatmul.bf16.gmra.mxu0 %v1000
  %v2272 = vpop.f32.mrf.mxu0
  %v2273 = vadd.f32 %v2260, %v2272
  %v2274 = vpop.f32.mrf.mxu0
  %2275 = vdwg.mxu0
  %v2324 = vunpack.c.l.b16 %v417
  %v2325 = vunpack.c.h.b16 %v417
  %v2326 = vunpack.c.l.b16 %v418
  %v2327 = vunpack.c.h.b16 %v418
  %v2328 = vunpack.c.l.b16 %v419
  %v2329 = vunpack.c.h.b16 %v419
  %v2330 = vunpack.c.l.b16 %v420
  %v2331 = vunpack.c.h.b16 %v420
  %v2332 = vunpack.c.l.b16 %v421
  %v2333 = vunpack.c.h.b16 %v421
  %v2334 = vunpack.c.l.b16 %v422
  %v2335 = vunpack.c.h.b16 %v422
  %v2336 = vunpack.c.l.b16 %v423
  %v2337 = vunpack.c.h.b16 %v423
  %v2338 = vunpack.c.l.b16 %v424
  %v2339 = vunpack.c.h.b16 %v424
  %v2340 = vunpack.c.l.b16 %v425
  %v2341 = vunpack.c.h.b16 %v425
  %v2342 = vunpack.c.l.b16 %v426
  %v2343 = vunpack.c.h.b16 %v426
  %v2344 = vunpack.c.l.b16 %v427
  %v2345 = vunpack.c.h.b16 %v427
  %v2346 = vunpack.c.l.b16 %v428
  %v2347 = vunpack.c.h.b16 %v428
  %v2348 = vunpack.c.l.b16 %v429
  %v2349 = vunpack.c.h.b16 %v429
  %v2350 = vunpack.c.l.b16 %v430
  %v2351 = vunpack.c.h.b16 %v430
  %v2352 = vunpack.c.l.b16 %v431
  %v2353 = vunpack.c.h.b16 %v431
  %v2354 = vunpack.c.l.b16 %v432
  %v2355 = vunpack.c.h.b16 %v432
  %v2356 = vunpack.c.l.b16 %v433
  %v2357 = vunpack.c.h.b16 %v433
  %v2358 = vunpack.c.l.b16 %v434
  %v2359 = vunpack.c.h.b16 %v434
  %v2360 = vunpack.c.l.b16 %v435
  %v2361 = vunpack.c.h.b16 %v435
  %v2362 = vunpack.c.l.b16 %v436
  %v2363 = vunpack.c.h.b16 %v436
  %v2364 = vunpack.c.l.b16 %v437
  %v2365 = vunpack.c.h.b16 %v437
  %v2366 = vunpack.c.l.b16 %v438
  %v2367 = vunpack.c.h.b16 %v438
  %v2368 = vunpack.c.l.b16 %v439
  %v2369 = vunpack.c.h.b16 %v439
  %v2370 = vunpack.c.l.b16 %v440
  %v2371 = vunpack.c.h.b16 %v440
  %v2372 = vunpack.c.l.b16 %v441
  %v2373 = vunpack.c.h.b16 %v441
  %v2374 = vunpack.c.l.b16 %v442
  %v2375 = vunpack.c.h.b16 %v442
  %v2376 = vunpack.c.l.b16 %v443
  %v2377 = vunpack.c.h.b16 %v443
  %v2378 = vunpack.c.l.b16 %v444
  %v2379 = vunpack.c.h.b16 %v444
  %v2380 = vunpack.c.l.b16 %v445
  %v2381 = vunpack.c.h.b16 %v445
  %v2382 = vunpack.c.l.b16 %v446
  %v2383 = vunpack.c.h.b16 %v446
  %v2384 = vunpack.c.l.b16 %v447
  %v2385 = vunpack.c.h.b16 %v447
  %v2386 = vunpack.c.l.b16 %v448
  %v2387 = vunpack.c.h.b16 %v448
  %v2388 = vunpack.c.l.b16 %v449
  %v2389 = vunpack.c.h.b16 %v449
  %v2390 = vunpack.c.l.b16 %v450
  %v2391 = vunpack.c.h.b16 %v450
  %v2392 = vunpack.c.l.b16 %v451
  %v2393 = vunpack.c.h.b16 %v451
  %v2394 = vunpack.c.l.b16 %v452
  %v2395 = vunpack.c.h.b16 %v452
  %v2396 = vunpack.c.l.b16 %v453
  %v2397 = vunpack.c.h.b16 %v453
  %v2398 = vunpack.c.l.b16 %v454
  %v2399 = vunpack.c.h.b16 %v454
  %v2400 = vunpack.c.l.b16 %v455
  %v2401 = vunpack.c.h.b16 %v455
  %v2402 = vunpack.c.l.b16 %v456
  %v2403 = vunpack.c.h.b16 %v456
  %v2404 = vunpack.c.l.b16 %v457
  %v2405 = vunpack.c.h.b16 %v457
  %v2406 = vunpack.c.l.b16 %v458
  %v2407 = vunpack.c.h.b16 %v458
  %v2408 = vunpack.c.l.b16 %v459
  %v2409 = vunpack.c.h.b16 %v459
  %v2410 = vunpack.c.l.b16 %v460
  %v2411 = vunpack.c.h.b16 %v460
  %v2412 = vunpack.c.l.b16 %v461
  %v2413 = vunpack.c.h.b16 %v461
  %v2414 = vunpack.c.l.b16 %v462
  %v2415 = vunpack.c.h.b16 %v462
  %v2416 = vunpack.c.l.b16 %v463
  %v2417 = vunpack.c.h.b16 %v463
  %v2418 = vunpack.c.l.b16 %v464
  %v2419 = vunpack.c.h.b16 %v464
  %v2420 = vpack.c.b16 %v2326, %v2324
  %v2421 = vpack.c.b16 %v2327, %v2325
  %v2422 = vpack.c.b16 %v2330, %v2328
  %v2423 = vpack.c.b16 %v2331, %v2329
  %v2424 = vpack.c.b16 %v2334, %v2332
  %v2425 = vpack.c.b16 %v2335, %v2333
  %v2426 = vpack.c.b16 %v2338, %v2336
  %v2427 = vpack.c.b16 %v2339, %v2337
  %v2428 = vpack.c.b16 %v2342, %v2340
  %v2429 = vpack.c.b16 %v2343, %v2341
  %v2430 = vpack.c.b16 %v2346, %v2344
  %v2431 = vpack.c.b16 %v2347, %v2345
  %v2432 = vpack.c.b16 %v2350, %v2348
  %v2433 = vpack.c.b16 %v2351, %v2349
  %v2434 = vpack.c.b16 %v2354, %v2352
  %v2435 = vpack.c.b16 %v2355, %v2353
  %v2436 = vpack.c.b16 %v2358, %v2356
  %v2437 = vpack.c.b16 %v2359, %v2357
  %v2438 = vpack.c.b16 %v2362, %v2360
  %v2439 = vpack.c.b16 %v2363, %v2361
  %v2440 = vpack.c.b16 %v2366, %v2364
  %v2441 = vpack.c.b16 %v2367, %v2365
  %v2442 = vpack.c.b16 %v2370, %v2368
  %v2443 = vpack.c.b16 %v2371, %v2369
  %v2444 = vpack.c.b16 %v2374, %v2372
  %v2445 = vpack.c.b16 %v2375, %v2373
  %v2446 = vpack.c.b16 %v2378, %v2376
  %v2447 = vpack.c.b16 %v2379, %v2377
  %v2448 = vpack.c.b16 %v2382, %v2380
  %v2449 = vpack.c.b16 %v2383, %v2381
  %v2450 = vpack.c.b16 %v2386, %v2384
  %v2451 = vpack.c.b16 %v2387, %v2385
  %v2452 = vpack.c.b16 %v2390, %v2388
  %v2453 = vpack.c.b16 %v2391, %v2389
  %v2454 = vpack.c.b16 %v2394, %v2392
  %v2455 = vpack.c.b16 %v2395, %v2393
  %v2456 = vpack.c.b16 %v2398, %v2396
  %v2457 = vpack.c.b16 %v2399, %v2397
  %v2458 = vpack.c.b16 %v2402, %v2400
  %v2459 = vpack.c.b16 %v2403, %v2401
  %v2460 = vpack.c.b16 %v2406, %v2404
  %v2461 = vpack.c.b16 %v2407, %v2405
  %v2462 = vpack.c.b16 %v2410, %v2408
  %v2463 = vpack.c.b16 %v2411, %v2409
  %v2464 = vpack.c.b16 %v2414, %v2412
  %v2465 = vpack.c.b16 %v2415, %v2413
  %v2466 = vpack.c.b16 %v2418, %v2416
  %v2467 = vpack.c.b16 %v2419, %v2417
  %2516 = vmatpush.bf16.msra.mxu0 %v2434
  %2517 = vmatpush.bf16.msra.mxu0 %v2432
  %2518 = vmatpush.bf16.msra.mxu0 %v2430
  %2519 = vmatpush.bf16.msra.mxu0 %v2428
  %2520 = vmatpush.bf16.msra.mxu0 %v2426
  %2521 = vmatpush.bf16.msra.mxu0 %v2424
  %2522 = vmatpush.bf16.msra.mxu0 %v2422
  %2523 = vmatpush.bf16.msra.mxu0 %v2420
  %2524 = vmatmul.bf16.gmra.mxu0 %v998
  %v2525 = vpop.f32.mrf.mxu0
  %v2526 = vadd.f32 0.0, %v2525
  %v2527 = vpop.f32.mrf.mxu0
  %2528 = vdwg.mxu0
  %2529 = vmatpush.bf16.msra.mxu0 %v2450
  %2530 = vmatpush.bf16.msra.mxu0 %v2448
  %2531 = vmatpush.bf16.msra.mxu0 %v2446
  %2532 = vmatpush.bf16.msra.mxu0 %v2444
  %2533 = vmatpush.bf16.msra.mxu0 %v2442
  %2534 = vmatpush.bf16.msra.mxu0 %v2440
  %2535 = vmatpush.bf16.msra.mxu0 %v2438
  %2536 = vmatpush.bf16.msra.mxu0 %v2436
  %2537 = vmatmul.bf16.gmra.mxu0 %v999
  %v2538 = vpop.f32.mrf.mxu0
  %v2539 = vadd.f32 %v2526, %v2538
  %v2540 = vpop.f32.mrf.mxu0
  %2541 = vdwg.mxu0
  %2542 = vmatpush.bf16.msra.mxu0 %v2466
  %2543 = vmatpush.bf16.msra.mxu0 %v2464
  %2544 = vmatpush.bf16.msra.mxu0 %v2462
  %2545 = vmatpush.bf16.msra.mxu0 %v2460
  %2546 = vmatpush.bf16.msra.mxu0 %v2458
  %2547 = vmatpush.bf16.msra.mxu0 %v2456
  %2548 = vmatpush.bf16.msra.mxu0 %v2454
  %2549 = vmatpush.bf16.msra.mxu0 %v2452
  %2550 = vmatmul.bf16.gmra.mxu0 %v1000
  %v2551 = vpop.f32.mrf.mxu0
  %v2552 = vadd.f32 %v2539, %v2551
  %v2553 = vpop.f32.mrf.mxu0
  %2554 = vdwg.mxu0
  %2555 = vmatpush.bf16.msra.mxu0 %v2435
  %2556 = vmatpush.bf16.msra.mxu0 %v2433
  %2557 = vmatpush.bf16.msra.mxu0 %v2431
  %2558 = vmatpush.bf16.msra.mxu0 %v2429
  %2559 = vmatpush.bf16.msra.mxu0 %v2427
  %2560 = vmatpush.bf16.msra.mxu0 %v2425
  %2561 = vmatpush.bf16.msra.mxu0 %v2423
  %2562 = vmatpush.bf16.msra.mxu0 %v2421
  %2563 = vmatmul.bf16.gmra.mxu0 %v998
  %v2564 = vpop.f32.mrf.mxu0
  %v2565 = vadd.f32 0.0, %v2564
  %v2566 = vpop.f32.mrf.mxu0
  %2567 = vdwg.mxu0
  %2568 = vmatpush.bf16.msra.mxu0 %v2451
  %2569 = vmatpush.bf16.msra.mxu0 %v2449
  %2570 = vmatpush.bf16.msra.mxu0 %v2447
  %2571 = vmatpush.bf16.msra.mxu0 %v2445
  %2572 = vmatpush.bf16.msra.mxu0 %v2443
  %2573 = vmatpush.bf16.msra.mxu0 %v2441
  %2574 = vmatpush.bf16.msra.mxu0 %v2439
  %2575 = vmatpush.bf16.msra.mxu0 %v2437
  %2576 = vmatmul.bf16.gmra.mxu0 %v999
  %v2577 = vpop.f32.mrf.mxu0
  %v2578 = vadd.f32 %v2565, %v2577
  %v2579 = vpop.f32.mrf.mxu0
  %2580 = vdwg.mxu0
  %2581 = vmatpush.bf16.msra.mxu0 %v2467
  %2582 = vmatpush.bf16.msra.mxu0 %v2465
  %2583 = vmatpush.bf16.msra.mxu0 %v2463
  %2584 = vmatpush.bf16.msra.mxu0 %v2461
  %2585 = vmatpush.bf16.msra.mxu0 %v2459
  %2586 = vmatpush.bf16.msra.mxu0 %v2457
  %2587 = vmatpush.bf16.msra.mxu0 %v2455
  %2588 = vmatpush.bf16.msra.mxu0 %v2453
  %2589 = vmatmul.bf16.gmra.mxu0 %v1000
  %v2590 = vpop.f32.mrf.mxu0
  %v2591 = vadd.f32 %v2578, %v2590
  %v2592 = vpop.f32.mrf.mxu0
  %2593 = vdwg.mxu0
  %v2642 = vunpack.c.l.b16 %v465
  %v2643 = vunpack.c.h.b16 %v465
  %v2644 = vunpack.c.l.b16 %v466
  %v2645 = vunpack.c.h.b16 %v466
  %v2646 = vunpack.c.l.b16 %v467
  %v2647 = vunpack.c.h.b16 %v467
  %v2648 = vunpack.c.l.b16 %v468
  %v2649 = vunpack.c.h.b16 %v468
  %v2650 = vunpack.c.l.b16 %v469
  %v2651 = vunpack.c.h.b16 %v469
  %v2652 = vunpack.c.l.b16 %v470
  %v2653 = vunpack.c.h.b16 %v470
  %v2654 = vunpack.c.l.b16 %v471
  %v2655 = vunpack.c.h.b16 %v471
  %v2656 = vunpack.c.l.b16 %v472
  %v2657 = vunpack.c.h.b16 %v472
  %v2658 = vunpack.c.l.b16 %v473
  %v2659 = vunpack.c.h.b16 %v473
  %v2660 = vunpack.c.l.b16 %v474
  %v2661 = vunpack.c.h.b16 %v474
  %v2662 = vunpack.c.l.b16 %v475
  %v2663 = vunpack.c.h.b16 %v475
  %v2664 = vunpack.c.l.b16 %v476
  %v2665 = vunpack.c.h.b16 %v476
  %v2666 = vunpack.c.l.b16 %v477
  %v2667 = vunpack.c.h.b16 %v477
  %v2668 = vunpack.c.l.b16 %v478
  %v2669 = vunpack.c.h.b16 %v478
  %v2670 = vunpack.c.l.b16 %v479
  %v2671 = vunpack.c.h.b16 %v479
  %v2672 = vunpack.c.l.b16 %v480
  %v2673 = vunpack.c.h.b16 %v480
  %v2674 = vunpack.c.l.b16 %v481
  %v2675 = vunpack.c.h.b16 %v481
  %v2676 = vunpack.c.l.b16 %v482
  %v2677 = vunpack.c.h.b16 %v482
  %v2678 = vunpack.c.l.b16 %v483
  %v2679 = vunpack.c.h.b16 %v483
  %v2680 = vunpack.c.l.b16 %v484
  %v2681 = vunpack.c.h.b16 %v484
  %v2682 = vunpack.c.l.b16 %v485
  %v2683 = vunpack.c.h.b16 %v485
  %v2684 = vunpack.c.l.b16 %v486
  %v2685 = vunpack.c.h.b16 %v486
  %v2686 = vunpack.c.l.b16 %v487
  %v2687 = vunpack.c.h.b16 %v487
  %v2688 = vunpack.c.l.b16 %v488
  %v2689 = vunpack.c.h.b16 %v488
  %v2690 = vunpack.c.l.b16 %v489
  %v2691 = vunpack.c.h.b16 %v489
  %v2692 = vunpack.c.l.b16 %v490
  %v2693 = vunpack.c.h.b16 %v490
  %v2694 = vunpack.c.l.b16 %v491
  %v2695 = vunpack.c.h.b16 %v491
  %v2696 = vunpack.c.l.b16 %v492
  %v2697 = vunpack.c.h.b16 %v492
  %v2698 = vunpack.c.l.b16 %v493
  %v2699 = vunpack.c.h.b16 %v493
  %v2700 = vunpack.c.l.b16 %v494
  %v2701 = vunpack.c.h.b16 %v494
  %v2702 = vunpack.c.l.b16 %v495
  %v2703 = vunpack.c.h.b16 %v495
  %v2704 = vunpack.c.l.b16 %v496
  %v2705 = vunpack.c.h.b16 %v496
  %v2706 = vunpack.c.l.b16 %v497
  %v2707 = vunpack.c.h.b16 %v497
  %v2708 = vunpack.c.l.b16 %v498
  %v2709 = vunpack.c.h.b16 %v498
  %v2710 = vunpack.c.l.b16 %v499
  %v2711 = vunpack.c.h.b16 %v499
  %v2712 = vunpack.c.l.b16 %v500
  %v2713 = vunpack.c.h.b16 %v500
  %v2714 = vunpack.c.l.b16 %v501
  %v2715 = vunpack.c.h.b16 %v501
  %v2716 = vunpack.c.l.b16 %v502
  %v2717 = vunpack.c.h.b16 %v502
  %v2718 = vunpack.c.l.b16 %v503
  %v2719 = vunpack.c.h.b16 %v503
  %v2720 = vunpack.c.l.b16 %v504
  %v2721 = vunpack.c.h.b16 %v504
  %v2722 = vunpack.c.l.b16 %v505
  %v2723 = vunpack.c.h.b16 %v505
  %v2724 = vunpack.c.l.b16 %v506
  %v2725 = vunpack.c.h.b16 %v506
  %v2726 = vunpack.c.l.b16 %v507
  %v2727 = vunpack.c.h.b16 %v507
  %v2728 = vunpack.c.l.b16 %v508
  %v2729 = vunpack.c.h.b16 %v508
  %v2730 = vunpack.c.l.b16 %v509
  %v2731 = vunpack.c.h.b16 %v509
  %v2732 = vunpack.c.l.b16 %v510
  %v2733 = vunpack.c.h.b16 %v510
  %v2734 = vunpack.c.l.b16 %v511
  %v2735 = vunpack.c.h.b16 %v511
  %v2736 = vunpack.c.l.b16 %v512
  %v2737 = vunpack.c.h.b16 %v512
  %v2738 = vpack.c.b16 %v2644, %v2642
  %v2739 = vpack.c.b16 %v2645, %v2643
  %v2740 = vpack.c.b16 %v2648, %v2646
  %v2741 = vpack.c.b16 %v2649, %v2647
  %v2742 = vpack.c.b16 %v2652, %v2650
  %v2743 = vpack.c.b16 %v2653, %v2651
  %v2744 = vpack.c.b16 %v2656, %v2654
  %v2745 = vpack.c.b16 %v2657, %v2655
  %v2746 = vpack.c.b16 %v2660, %v2658
  %v2747 = vpack.c.b16 %v2661, %v2659
  %v2748 = vpack.c.b16 %v2664, %v2662
  %v2749 = vpack.c.b16 %v2665, %v2663
  %v2750 = vpack.c.b16 %v2668, %v2666
  %v2751 = vpack.c.b16 %v2669, %v2667
  %v2752 = vpack.c.b16 %v2672, %v2670
  %v2753 = vpack.c.b16 %v2673, %v2671
  %v2754 = vpack.c.b16 %v2676, %v2674
  %v2755 = vpack.c.b16 %v2677, %v2675
  %v2756 = vpack.c.b16 %v2680, %v2678
  %v2757 = vpack.c.b16 %v2681, %v2679
  %v2758 = vpack.c.b16 %v2684, %v2682
  %v2759 = vpack.c.b16 %v2685, %v2683
  %v2760 = vpack.c.b16 %v2688, %v2686
  %v2761 = vpack.c.b16 %v2689, %v2687
  %v2762 = vpack.c.b16 %v2692, %v2690
  %v2763 = vpack.c.b16 %v2693, %v2691
  %v2764 = vpack.c.b16 %v2696, %v2694
  %v2765 = vpack.c.b16 %v2697, %v2695
  %v2766 = vpack.c.b16 %v2700, %v2698
  %v2767 = vpack.c.b16 %v2701, %v2699
  %v2768 = vpack.c.b16 %v2704, %v2702
  %v2769 = vpack.c.b16 %v2705, %v2703
  %v2770 = vpack.c.b16 %v2708, %v2706
  %v2771 = vpack.c.b16 %v2709, %v2707
  %v2772 = vpack.c.b16 %v2712, %v2710
  %v2773 = vpack.c.b16 %v2713, %v2711
  %v2774 = vpack.c.b16 %v2716, %v2714
  %v2775 = vpack.c.b16 %v2717, %v2715
  %v2776 = vpack.c.b16 %v2720, %v2718
  %v2777 = vpack.c.b16 %v2721, %v2719
  %v2778 = vpack.c.b16 %v2724, %v2722
  %v2779 = vpack.c.b16 %v2725, %v2723
  %v2780 = vpack.c.b16 %v2728, %v2726
  %v2781 = vpack.c.b16 %v2729, %v2727
  %v2782 = vpack.c.b16 %v2732, %v2730
  %v2783 = vpack.c.b16 %v2733, %v2731
  %v2784 = vpack.c.b16 %v2736, %v2734
  %v2785 = vpack.c.b16 %v2737, %v2735
  %2834 = vmatpush.bf16.msra.mxu0 %v2752
  %2835 = vmatpush.bf16.msra.mxu0 %v2750
  %2836 = vmatpush.bf16.msra.mxu0 %v2748
  %2837 = vmatpush.bf16.msra.mxu0 %v2746
  %2838 = vmatpush.bf16.msra.mxu0 %v2744
  %2839 = vmatpush.bf16.msra.mxu0 %v2742
  %2840 = vmatpush.bf16.msra.mxu0 %v2740
  %2841 = vmatpush.bf16.msra.mxu0 %v2738
  %2842 = vmatmul.bf16.gmra.mxu0 %v998
  %v2843 = vpop.f32.mrf.mxu0
  %v2844 = vadd.f32 0.0, %v2843
  %v2845 = vpop.f32.mrf.mxu0
  %2846 = vdwg.mxu0
  %2847 = vmatpush.bf16.msra.mxu0 %v2768
  %2848 = vmatpush.bf16.msra.mxu0 %v2766
  %2849 = vmatpush.bf16.msra.mxu0 %v2764
  %2850 = vmatpush.bf16.msra.mxu0 %v2762
  %2851 = vmatpush.bf16.msra.mxu0 %v2760
  %2852 = vmatpush.bf16.msra.mxu0 %v2758
  %2853 = vmatpush.bf16.msra.mxu0 %v2756
  %2854 = vmatpush.bf16.msra.mxu0 %v2754
  %2855 = vmatmul.bf16.gmra.mxu0 %v999
  %v2856 = vpop.f32.mrf.mxu0
  %v2857 = vadd.f32 %v2844, %v2856
  %v2858 = vpop.f32.mrf.mxu0
  %2859 = vdwg.mxu0
  %2860 = vmatpush.bf16.msra.mxu0 %v2784
  %2861 = vmatpush.bf16.msra.mxu0 %v2782
  %2862 = vmatpush.bf16.msra.mxu0 %v2780
  %2863 = vmatpush.bf16.msra.mxu0 %v2778
  %2864 = vmatpush.bf16.msra.mxu0 %v2776
  %2865 = vmatpush.bf16.msra.mxu0 %v2774
  %2866 = vmatpush.bf16.msra.mxu0 %v2772
  %2867 = vmatpush.bf16.msra.mxu0 %v2770
  %2868 = vmatmul.bf16.gmra.mxu0 %v1000
  %v2869 = vpop.f32.mrf.mxu0
  %v2870 = vadd.f32 %v2857, %v2869
  %v2871 = vpop.f32.mrf.mxu0
  %2872 = vdwg.mxu0
  %2873 = vmatpush.bf16.msra.mxu0 %v2753
  %2874 = vmatpush.bf16.msra.mxu0 %v2751
  %2875 = vmatpush.bf16.msra.mxu0 %v2749
  %2876 = vmatpush.bf16.msra.mxu0 %v2747
  %2877 = vmatpush.bf16.msra.mxu0 %v2745
  %2878 = vmatpush.bf16.msra.mxu0 %v2743
  %2879 = vmatpush.bf16.msra.mxu0 %v2741
  %2880 = vmatpush.bf16.msra.mxu0 %v2739
  %2881 = vmatmul.bf16.gmra.mxu0 %v998
  %v2882 = vpop.f32.mrf.mxu0
  %v2883 = vadd.f32 0.0, %v2882
  %v2884 = vpop.f32.mrf.mxu0
  %2885 = vdwg.mxu0
  %2886 = vmatpush.bf16.msra.mxu0 %v2769
  %2887 = vmatpush.bf16.msra.mxu0 %v2767
  %2888 = vmatpush.bf16.msra.mxu0 %v2765
  %2889 = vmatpush.bf16.msra.mxu0 %v2763
  %2890 = vmatpush.bf16.msra.mxu0 %v2761
  %2891 = vmatpush.bf16.msra.mxu0 %v2759
  %2892 = vmatpush.bf16.msra.mxu0 %v2757
  %2893 = vmatpush.bf16.msra.mxu0 %v2755
  %2894 = vmatmul.bf16.gmra.mxu0 %v999
  %v2895 = vpop.f32.mrf.mxu0
  %v2896 = vadd.f32 %v2883, %v2895
  %v2897 = vpop.f32.mrf.mxu0
  %2898 = vdwg.mxu0
  %2899 = vmatpush.bf16.msra.mxu0 %v2785
  %2900 = vmatpush.bf16.msra.mxu0 %v2783
  %2901 = vmatpush.bf16.msra.mxu0 %v2781
  %2902 = vmatpush.bf16.msra.mxu0 %v2779
  %2903 = vmatpush.bf16.msra.mxu0 %v2777
  %2904 = vmatpush.bf16.msra.mxu0 %v2775
  %2905 = vmatpush.bf16.msra.mxu0 %v2773
  %2906 = vmatpush.bf16.msra.mxu0 %v2771
  %2907 = vmatmul.bf16.gmra.mxu0 %v1000
  %v2908 = vpop.f32.mrf.mxu0
  %v2909 = vadd.f32 %v2896, %v2908
  %v2910 = vpop.f32.mrf.mxu0
  %2911 = vdwg.mxu0
  %v2960 = vunpack.c.l.b16 %v513
  %v2961 = vunpack.c.h.b16 %v513
  %v2962 = vunpack.c.l.b16 %v514
  %v2963 = vunpack.c.h.b16 %v514
  %v2964 = vunpack.c.l.b16 %v515
  %v2965 = vunpack.c.h.b16 %v515
  %v2966 = vunpack.c.l.b16 %v516
  %v2967 = vunpack.c.h.b16 %v516
  %v2968 = vunpack.c.l.b16 %v517
  %v2969 = vunpack.c.h.b16 %v517
  %v2970 = vunpack.c.l.b16 %v518
  %v2971 = vunpack.c.h.b16 %v518
  %v2972 = vunpack.c.l.b16 %v519
  %v2973 = vunpack.c.h.b16 %v519
  %v2974 = vunpack.c.l.b16 %v520
  %v2975 = vunpack.c.h.b16 %v520
  %v2976 = vunpack.c.l.b16 %v521
  %v2977 = vunpack.c.h.b16 %v521
  %v2978 = vunpack.c.l.b16 %v522
  %v2979 = vunpack.c.h.b16 %v522
  %v2980 = vunpack.c.l.b16 %v523
  %v2981 = vunpack.c.h.b16 %v523
  %v2982 = vunpack.c.l.b16 %v524
  %v2983 = vunpack.c.h.b16 %v524
  %v2984 = vunpack.c.l.b16 %v525
  %v2985 = vunpack.c.h.b16 %v525
  %v2986 = vunpack.c.l.b16 %v526
  %v2987 = vunpack.c.h.b16 %v526
  %v2988 = vunpack.c.l.b16 %v527
  %v2989 = vunpack.c.h.b16 %v527
  %v2990 = vunpack.c.l.b16 %v528
  %v2991 = vunpack.c.h.b16 %v528
  %v2992 = vunpack.c.l.b16 %v529
  %v2993 = vunpack.c.h.b16 %v529
  %v2994 = vunpack.c.l.b16 %v530
  %v2995 = vunpack.c.h.b16 %v530
  %v2996 = vunpack.c.l.b16 %v531
  %v2997 = vunpack.c.h.b16 %v531
  %v2998 = vunpack.c.l.b16 %v532
  %v2999 = vunpack.c.h.b16 %v532
  %v3000 = vunpack.c.l.b16 %v533
  %v3001 = vunpack.c.h.b16 %v533
  %v3002 = vunpack.c.l.b16 %v534
  %v3003 = vunpack.c.h.b16 %v534
  %v3004 = vunpack.c.l.b16 %v535
  %v3005 = vunpack.c.h.b16 %v535
  %v3006 = vunpack.c.l.b16 %v536
  %v3007 = vunpack.c.h.b16 %v536
  %v3008 = vunpack.c.l.b16 %v537
  %v3009 = vunpack.c.h.b16 %v537
  %v3010 = vunpack.c.l.b16 %v538
  %v3011 = vunpack.c.h.b16 %v538
  %v3012 = vunpack.c.l.b16 %v539
  %v3013 = vunpack.c.h.b16 %v539
  %v3014 = vunpack.c.l.b16 %v540
  %v3015 = vunpack.c.h.b16 %v540
  %v3016 = vunpack.c.l.b16 %v541
  %v3017 = vunpack.c.h.b16 %v541
  %v3018 = vunpack.c.l.b16 %v542
  %v3019 = vunpack.c.h.b16 %v542
  %v3020 = vunpack.c.l.b16 %v543
  %v3021 = vunpack.c.h.b16 %v543
  %v3022 = vunpack.c.l.b16 %v544
  %v3023 = vunpack.c.h.b16 %v544
  %v3024 = vunpack.c.l.b16 %v545
  %v3025 = vunpack.c.h.b16 %v545
  %v3026 = vunpack.c.l.b16 %v546
  %v3027 = vunpack.c.h.b16 %v546
  %v3028 = vunpack.c.l.b16 %v547
  %v3029 = vunpack.c.h.b16 %v547
  %v3030 = vunpack.c.l.b16 %v548
  %v3031 = vunpack.c.h.b16 %v548
  %v3032 = vunpack.c.l.b16 %v549
  %v3033 = vunpack.c.h.b16 %v549
  %v3034 = vunpack.c.l.b16 %v550
  %v3035 = vunpack.c.h.b16 %v550
  %v3036 = vunpack.c.l.b16 %v551
  %v3037 = vunpack.c.h.b16 %v551
  %v3038 = vunpack.c.l.b16 %v552
  %v3039 = vunpack.c.h.b16 %v552
  %v3040 = vunpack.c.l.b16 %v553
  %v3041 = vunpack.c.h.b16 %v553
  %v3042 = vunpack.c.l.b16 %v554
  %v3043 = vunpack.c.h.b16 %v554
  %v3044 = vunpack.c.l.b16 %v555
  %v3045 = vunpack.c.h.b16 %v555
  %v3046 = vunpack.c.l.b16 %v556
  %v3047 = vunpack.c.h.b16 %v556
  %v3048 = vunpack.c.l.b16 %v557
  %v3049 = vunpack.c.h.b16 %v557
  %v3050 = vunpack.c.l.b16 %v558
  %v3051 = vunpack.c.h.b16 %v558
  %v3052 = vunpack.c.l.b16 %v559
  %v3053 = vunpack.c.h.b16 %v559
  %v3054 = vunpack.c.l.b16 %v560
  %v3055 = vunpack.c.h.b16 %v560
  %v3056 = vpack.c.b16 %v2962, %v2960
  %v3057 = vpack.c.b16 %v2963, %v2961
  %v3058 = vpack.c.b16 %v2966, %v2964
  %v3059 = vpack.c.b16 %v2967, %v2965
  %v3060 = vpack.c.b16 %v2970, %v2968
  %v3061 = vpack.c.b16 %v2971, %v2969
  %v3062 = vpack.c.b16 %v2974, %v2972
  %v3063 = vpack.c.b16 %v2975, %v2973
  %v3064 = vpack.c.b16 %v2978, %v2976
  %v3065 = vpack.c.b16 %v2979, %v2977
  %v3066 = vpack.c.b16 %v2982, %v2980
  %v3067 = vpack.c.b16 %v2983, %v2981
  %v3068 = vpack.c.b16 %v2986, %v2984
  %v3069 = vpack.c.b16 %v2987, %v2985
  %v3070 = vpack.c.b16 %v2990, %v2988
  %v3071 = vpack.c.b16 %v2991, %v2989
  %v3072 = vpack.c.b16 %v2994, %v2992
  %v3073 = vpack.c.b16 %v2995, %v2993
  %v3074 = vpack.c.b16 %v2998, %v2996
  %v3075 = vpack.c.b16 %v2999, %v2997
  %v3076 = vpack.c.b16 %v3002, %v3000
  %v3077 = vpack.c.b16 %v3003, %v3001
  %v3078 = vpack.c.b16 %v3006, %v3004
  %v3079 = vpack.c.b16 %v3007, %v3005
  %v3080 = vpack.c.b16 %v3010, %v3008
  %v3081 = vpack.c.b16 %v3011, %v3009
  %v3082 = vpack.c.b16 %v3014, %v3012
  %v3083 = vpack.c.b16 %v3015, %v3013
  %v3084 = vpack.c.b16 %v3018, %v3016
  %v3085 = vpack.c.b16 %v3019, %v3017
  %v3086 = vpack.c.b16 %v3022, %v3020
  %v3087 = vpack.c.b16 %v3023, %v3021
  %v3088 = vpack.c.b16 %v3026, %v3024
  %v3089 = vpack.c.b16 %v3027, %v3025
  %v3090 = vpack.c.b16 %v3030, %v3028
  %v3091 = vpack.c.b16 %v3031, %v3029
  %v3092 = vpack.c.b16 %v3034, %v3032
  %v3093 = vpack.c.b16 %v3035, %v3033
  %v3094 = vpack.c.b16 %v3038, %v3036
  %v3095 = vpack.c.b16 %v3039, %v3037
  %v3096 = vpack.c.b16 %v3042, %v3040
  %v3097 = vpack.c.b16 %v3043, %v3041
  %v3098 = vpack.c.b16 %v3046, %v3044
  %v3099 = vpack.c.b16 %v3047, %v3045
  %v3100 = vpack.c.b16 %v3050, %v3048
  %v3101 = vpack.c.b16 %v3051, %v3049
  %v3102 = vpack.c.b16 %v3054, %v3052
  %v3103 = vpack.c.b16 %v3055, %v3053
  %3152 = vmatpush.bf16.msra.mxu0 %v3070
  %3153 = vmatpush.bf16.msra.mxu0 %v3068
  %3154 = vmatpush.bf16.msra.mxu0 %v3066
  %3155 = vmatpush.bf16.msra.mxu0 %v3064
  %3156 = vmatpush.bf16.msra.mxu0 %v3062
  %3157 = vmatpush.bf16.msra.mxu0 %v3060
  %3158 = vmatpush.bf16.msra.mxu0 %v3058
  %3159 = vmatpush.bf16.msra.mxu0 %v3056
  %3160 = vmatmul.bf16.gmra.mxu0 %v998
  %v3161 = vpop.f32.mrf.mxu0
  %v3162 = vadd.f32 0.0, %v3161
  %v3163 = vpop.f32.mrf.mxu0
  %3164 = vdwg.mxu0
  %3165 = vmatpush.bf16.msra.mxu0 %v3086
  %3166 = vmatpush.bf16.msra.mxu0 %v3084
  %3167 = vmatpush.bf16.msra.mxu0 %v3082
  %3168 = vmatpush.bf16.msra.mxu0 %v3080
  %3169 = vmatpush.bf16.msra.mxu0 %v3078
  %3170 = vmatpush.bf16.msra.mxu0 %v3076
  %3171 = vmatpush.bf16.msra.mxu0 %v3074
  %3172 = vmatpush.bf16.msra.mxu0 %v3072
  %3173 = vmatmul.bf16.gmra.mxu0 %v999
  %v3174 = vpop.f32.mrf.mxu0
  %v3175 = vadd.f32 %v3162, %v3174
  %v3176 = vpop.f32.mrf.mxu0
  %3177 = vdwg.mxu0
  %3178 = vmatpush.bf16.msra.mxu0 %v3102
  %3179 = vmatpush.bf16.msra.mxu0 %v3100
  %3180 = vmatpush.bf16.msra.mxu0 %v3098
  %3181 = vmatpush.bf16.msra.mxu0 %v3096
  %3182 = vmatpush.bf16.msra.mxu0 %v3094
  %3183 = vmatpush.bf16.msra.mxu0 %v3092
  %3184 = vmatpush.bf16.msra.mxu0 %v3090
  %3185 = vmatpush.bf16.msra.mxu0 %v3088
  %3186 = vmatmul.bf16.gmra.mxu0 %v1000
  %v3187 = vpop.f32.mrf.mxu0
  %v3188 = vadd.f32 %v3175, %v3187
  %v3189 = vpop.f32.mrf.mxu0
  %3190 = vdwg.mxu0
  %3191 = vmatpush.bf16.msra.mxu0 %v3071
  %3192 = vmatpush.bf16.msra.mxu0 %v3069
  %3193 = vmatpush.bf16.msra.mxu0 %v3067
  %3194 = vmatpush.bf16.msra.mxu0 %v3065
  %3195 = vmatpush.bf16.msra.mxu0 %v3063
  %3196 = vmatpush.bf16.msra.mxu0 %v3061
  %3197 = vmatpush.bf16.msra.mxu0 %v3059
  %3198 = vmatpush.bf16.msra.mxu0 %v3057
  %3199 = vmatmul.bf16.gmra.mxu0 %v998
  %v3200 = vpop.f32.mrf.mxu0
  %v3201 = vadd.f32 0.0, %v3200
  %v3202 = vpop.f32.mrf.mxu0
  %3203 = vdwg.mxu0
  %3204 = vmatpush.bf16.msra.mxu0 %v3087
  %3205 = vmatpush.bf16.msra.mxu0 %v3085
  %3206 = vmatpush.bf16.msra.mxu0 %v3083
  %3207 = vmatpush.bf16.msra.mxu0 %v3081
  %3208 = vmatpush.bf16.msra.mxu0 %v3079
  %3209 = vmatpush.bf16.msra.mxu0 %v3077
  %3210 = vmatpush.bf16.msra.mxu0 %v3075
  %3211 = vmatpush.bf16.msra.mxu0 %v3073
  %3212 = vmatmul.bf16.gmra.mxu0 %v999
  %v3213 = vpop.f32.mrf.mxu0
  %v3214 = vadd.f32 %v3201, %v3213
  %v3215 = vpop.f32.mrf.mxu0
  %3216 = vdwg.mxu0
  %3217 = vmatpush.bf16.msra.mxu0 %v3103
  %3218 = vmatpush.bf16.msra.mxu0 %v3101
  %3219 = vmatpush.bf16.msra.mxu0 %v3099
  %3220 = vmatpush.bf16.msra.mxu0 %v3097
  %3221 = vmatpush.bf16.msra.mxu0 %v3095
  %3222 = vmatpush.bf16.msra.mxu0 %v3093
  %3223 = vmatpush.bf16.msra.mxu0 %v3091
  %3224 = vmatpush.bf16.msra.mxu0 %v3089
  %3225 = vmatmul.bf16.gmra.mxu0 %v1000
  %v3226 = vpop.f32.mrf.mxu0
  %v3227 = vadd.f32 %v3214, %v3226
  %v3228 = vpop.f32.mrf.mxu0
  %3229 = vdwg.mxu0
  %v3278 = vunpack.c.l.b16 %v561
  %v3279 = vunpack.c.h.b16 %v561
  %v3280 = vunpack.c.l.b16 %v562
  %v3281 = vunpack.c.h.b16 %v562
  %v3282 = vunpack.c.l.b16 %v563
  %v3283 = vunpack.c.h.b16 %v563
  %v3284 = vunpack.c.l.b16 %v564
  %v3285 = vunpack.c.h.b16 %v564
  %v3286 = vunpack.c.l.b16 %v565
  %v3287 = vunpack.c.h.b16 %v565
  %v3288 = vunpack.c.l.b16 %v566
  %v3289 = vunpack.c.h.b16 %v566
  %v3290 = vunpack.c.l.b16 %v567
  %v3291 = vunpack.c.h.b16 %v567
  %v3292 = vunpack.c.l.b16 %v568
  %v3293 = vunpack.c.h.b16 %v568
  %v3294 = vunpack.c.l.b16 %v569
  %v3295 = vunpack.c.h.b16 %v569
  %v3296 = vunpack.c.l.b16 %v570
  %v3297 = vunpack.c.h.b16 %v570
  %v3298 = vunpack.c.l.b16 %v571
  %v3299 = vunpack.c.h.b16 %v571
  %v3300 = vunpack.c.l.b16 %v572
  %v3301 = vunpack.c.h.b16 %v572
  %v3302 = vunpack.c.l.b16 %v573
  %v3303 = vunpack.c.h.b16 %v573
  %v3304 = vunpack.c.l.b16 %v574
  %v3305 = vunpack.c.h.b16 %v574
  %v3306 = vunpack.c.l.b16 %v575
  %v3307 = vunpack.c.h.b16 %v575
  %v3308 = vunpack.c.l.b16 %v576
  %v3309 = vunpack.c.h.b16 %v576
  %v3310 = vunpack.c.l.b16 %v577
  %v3311 = vunpack.c.h.b16 %v577
  %v3312 = vunpack.c.l.b16 %v578
  %v3313 = vunpack.c.h.b16 %v578
  %v3314 = vunpack.c.l.b16 %v579
  %v3315 = vunpack.c.h.b16 %v579
  %v3316 = vunpack.c.l.b16 %v580
  %v3317 = vunpack.c.h.b16 %v580
  %v3318 = vunpack.c.l.b16 %v581
  %v3319 = vunpack.c.h.b16 %v581
  %v3320 = vunpack.c.l.b16 %v582
  %v3321 = vunpack.c.h.b16 %v582
  %v3322 = vunpack.c.l.b16 %v583
  %v3323 = vunpack.c.h.b16 %v583
  %v3324 = vunpack.c.l.b16 %v584
  %v3325 = vunpack.c.h.b16 %v584
  %v3326 = vunpack.c.l.b16 %v585
  %v3327 = vunpack.c.h.b16 %v585
  %v3328 = vunpack.c.l.b16 %v586
  %v3329 = vunpack.c.h.b16 %v586
  %v3330 = vunpack.c.l.b16 %v587
  %v3331 = vunpack.c.h.b16 %v587
  %v3332 = vunpack.c.l.b16 %v588
  %v3333 = vunpack.c.h.b16 %v588
  %v3334 = vunpack.c.l.b16 %v589
  %v3335 = vunpack.c.h.b16 %v589
  %v3336 = vunpack.c.l.b16 %v590
  %v3337 = vunpack.c.h.b16 %v590
  %v3338 = vunpack.c.l.b16 %v591
  %v3339 = vunpack.c.h.b16 %v591
  %v3340 = vunpack.c.l.b16 %v592
  %v3341 = vunpack.c.h.b16 %v592
  %v3342 = vunpack.c.l.b16 %v593
  %v3343 = vunpack.c.h.b16 %v593
  %v3344 = vunpack.c.l.b16 %v594
  %v3345 = vunpack.c.h.b16 %v594
  %v3346 = vunpack.c.l.b16 %v595
  %v3347 = vunpack.c.h.b16 %v595
  %v3348 = vunpack.c.l.b16 %v596
  %v3349 = vunpack.c.h.b16 %v596
  %v3350 = vunpack.c.l.b16 %v597
  %v3351 = vunpack.c.h.b16 %v597
  %v3352 = vunpack.c.l.b16 %v598
  %v3353 = vunpack.c.h.b16 %v598
  %v3354 = vunpack.c.l.b16 %v599
  %v3355 = vunpack.c.h.b16 %v599
  %v3356 = vunpack.c.l.b16 %v600
  %v3357 = vunpack.c.h.b16 %v600
  %v3358 = vunpack.c.l.b16 %v601
  %v3359 = vunpack.c.h.b16 %v601
  %v3360 = vunpack.c.l.b16 %v602
  %v3361 = vunpack.c.h.b16 %v602
  %v3362 = vunpack.c.l.b16 %v603
  %v3363 = vunpack.c.h.b16 %v603
  %v3364 = vunpack.c.l.b16 %v604
  %v3365 = vunpack.c.h.b16 %v604
  %v3366 = vunpack.c.l.b16 %v605
  %v3367 = vunpack.c.h.b16 %v605
  %v3368 = vunpack.c.l.b16 %v606
  %v3369 = vunpack.c.h.b16 %v606
  %v3370 = vunpack.c.l.b16 %v607
  %v3371 = vunpack.c.h.b16 %v607
  %v3372 = vunpack.c.l.b16 %v608
  %v3373 = vunpack.c.h.b16 %v608
  %v3374 = vpack.c.b16 %v3280, %v3278
  %v3375 = vpack.c.b16 %v3281, %v3279
  %v3376 = vpack.c.b16 %v3284, %v3282
  %v3377 = vpack.c.b16 %v3285, %v3283
  %v3378 = vpack.c.b16 %v3288, %v3286
  %v3379 = vpack.c.b16 %v3289, %v3287
  %v3380 = vpack.c.b16 %v3292, %v3290
  %v3381 = vpack.c.b16 %v3293, %v3291
  %v3382 = vpack.c.b16 %v3296, %v3294
  %v3383 = vpack.c.b16 %v3297, %v3295
  %v3384 = vpack.c.b16 %v3300, %v3298
  %v3385 = vpack.c.b16 %v3301, %v3299
  %v3386 = vpack.c.b16 %v3304, %v3302
  %v3387 = vpack.c.b16 %v3305, %v3303
  %v3388 = vpack.c.b16 %v3308, %v3306
  %v3389 = vpack.c.b16 %v3309, %v3307
  %v3390 = vpack.c.b16 %v3312, %v3310
  %v3391 = vpack.c.b16 %v3313, %v3311
  %v3392 = vpack.c.b16 %v3316, %v3314
  %v3393 = vpack.c.b16 %v3317, %v3315
  %v3394 = vpack.c.b16 %v3320, %v3318
  %v3395 = vpack.c.b16 %v3321, %v3319
  %v3396 = vpack.c.b16 %v3324, %v3322
  %v3397 = vpack.c.b16 %v3325, %v3323
  %v3398 = vpack.c.b16 %v3328, %v3326
  %v3399 = vpack.c.b16 %v3329, %v3327
  %v3400 = vpack.c.b16 %v3332, %v3330
  %v3401 = vpack.c.b16 %v3333, %v3331
  %v3402 = vpack.c.b16 %v3336, %v3334
  %v3403 = vpack.c.b16 %v3337, %v3335
  %v3404 = vpack.c.b16 %v3340, %v3338
  %v3405 = vpack.c.b16 %v3341, %v3339
  %v3406 = vpack.c.b16 %v3344, %v3342
  %v3407 = vpack.c.b16 %v3345, %v3343
  %v3408 = vpack.c.b16 %v3348, %v3346
  %v3409 = vpack.c.b16 %v3349, %v3347
  %v3410 = vpack.c.b16 %v3352, %v3350
  %v3411 = vpack.c.b16 %v3353, %v3351
  %v3412 = vpack.c.b16 %v3356, %v3354
  %v3413 = vpack.c.b16 %v3357, %v3355
  %v3414 = vpack.c.b16 %v3360, %v3358
  %v3415 = vpack.c.b16 %v3361, %v3359
  %v3416 = vpack.c.b16 %v3364, %v3362
  %v3417 = vpack.c.b16 %v3365, %v3363
  %v3418 = vpack.c.b16 %v3368, %v3366
  %v3419 = vpack.c.b16 %v3369, %v3367
  %v3420 = vpack.c.b16 %v3372, %v3370
  %v3421 = vpack.c.b16 %v3373, %v3371
  %3470 = vmatpush.bf16.msra.mxu0 %v3388
  %3471 = vmatpush.bf16.msra.mxu0 %v3386
  %3472 = vmatpush.bf16.msra.mxu0 %v3384
  %3473 = vmatpush.bf16.msra.mxu0 %v3382
  %3474 = vmatpush.bf16.msra.mxu0 %v3380
  %3475 = vmatpush.bf16.msra.mxu0 %v3378
  %3476 = vmatpush.bf16.msra.mxu0 %v3376
  %3477 = vmatpush.bf16.msra.mxu0 %v3374
  %3478 = vmatmul.bf16.gmra.mxu0 %v998
  %v3479 = vpop.f32.mrf.mxu0
  %v3480 = vadd.f32 0.0, %v3479
  %v3481 = vpop.f32.mrf.mxu0
  %3482 = vdwg.mxu0
  %3483 = vmatpush.bf16.msra.mxu0 %v3404
  %3484 = vmatpush.bf16.msra.mxu0 %v3402
  %3485 = vmatpush.bf16.msra.mxu0 %v3400
  %3486 = vmatpush.bf16.msra.mxu0 %v3398
  %3487 = vmatpush.bf16.msra.mxu0 %v3396
  %3488 = vmatpush.bf16.msra.mxu0 %v3394
  %3489 = vmatpush.bf16.msra.mxu0 %v3392
  %3490 = vmatpush.bf16.msra.mxu0 %v3390
  %3491 = vmatmul.bf16.gmra.mxu0 %v999
  %v3492 = vpop.f32.mrf.mxu0
  %v3493 = vadd.f32 %v3480, %v3492
  %v3494 = vpop.f32.mrf.mxu0
  %3495 = vdwg.mxu0
  %3496 = vmatpush.bf16.msra.mxu0 %v3420
  %3497 = vmatpush.bf16.msra.mxu0 %v3418
  %3498 = vmatpush.bf16.msra.mxu0 %v3416
  %3499 = vmatpush.bf16.msra.mxu0 %v3414
  %3500 = vmatpush.bf16.msra.mxu0 %v3412
  %3501 = vmatpush.bf16.msra.mxu0 %v3410
  %3502 = vmatpush.bf16.msra.mxu0 %v3408
  %3503 = vmatpush.bf16.msra.mxu0 %v3406
  %3504 = vmatmul.bf16.gmra.mxu0 %v1000
  %v3505 = vpop.f32.mrf.mxu0
  %v3506 = vadd.f32 %v3493, %v3505
  %v3507 = vpop.f32.mrf.mxu0
  %3508 = vdwg.mxu0
  %3509 = vmatpush.bf16.msra.mxu0 %v3389
  %3510 = vmatpush.bf16.msra.mxu0 %v3387
  %3511 = vmatpush.bf16.msra.mxu0 %v3385
  %3512 = vmatpush.bf16.msra.mxu0 %v3383
  %3513 = vmatpush.bf16.msra.mxu0 %v3381
  %3514 = vmatpush.bf16.msra.mxu0 %v3379
  %3515 = vmatpush.bf16.msra.mxu0 %v3377
  %3516 = vmatpush.bf16.msra.mxu0 %v3375
  %3517 = vmatmul.bf16.gmra.mxu0 %v998
  %v3518 = vpop.f32.mrf.mxu0
  %v3519 = vadd.f32 0.0, %v3518
  %v3520 = vpop.f32.mrf.mxu0
  %3521 = vdwg.mxu0
  %3522 = vmatpush.bf16.msra.mxu0 %v3405
  %3523 = vmatpush.bf16.msra.mxu0 %v3403
  %3524 = vmatpush.bf16.msra.mxu0 %v3401
  %3525 = vmatpush.bf16.msra.mxu0 %v3399
  %3526 = vmatpush.bf16.msra.mxu0 %v3397
  %3527 = vmatpush.bf16.msra.mxu0 %v3395
  %3528 = vmatpush.bf16.msra.mxu0 %v3393
  %3529 = vmatpush.bf16.msra.mxu0 %v3391
  %3530 = vmatmul.bf16.gmra.mxu0 %v999
  %v3531 = vpop.f32.mrf.mxu0
  %v3532 = vadd.f32 %v3519, %v3531
  %v3533 = vpop.f32.mrf.mxu0
  %3534 = vdwg.mxu0
  %3535 = vmatpush.bf16.msra.mxu0 %v3421
  %3536 = vmatpush.bf16.msra.mxu0 %v3419
  %3537 = vmatpush.bf16.msra.mxu0 %v3417
  %3538 = vmatpush.bf16.msra.mxu0 %v3415
  %3539 = vmatpush.bf16.msra.mxu0 %v3413
  %3540 = vmatpush.bf16.msra.mxu0 %v3411
  %3541 = vmatpush.bf16.msra.mxu0 %v3409
  %3542 = vmatpush.bf16.msra.mxu0 %v3407
  %3543 = vmatmul.bf16.gmra.mxu0 %v1000
  %v3544 = vpop.f32.mrf.mxu0
  %v3545 = vadd.f32 %v3532, %v3544
  %v3546 = vpop.f32.mrf.mxu0
  %3547 = vdwg.mxu0
  %v3596 = vunpack.c.l.b16 %v609
  %v3597 = vunpack.c.h.b16 %v609
  %v3598 = vunpack.c.l.b16 %v610
  %v3599 = vunpack.c.h.b16 %v610
  %v3600 = vunpack.c.l.b16 %v611
  %v3601 = vunpack.c.h.b16 %v611
  %v3602 = vunpack.c.l.b16 %v612
  %v3603 = vunpack.c.h.b16 %v612
  %v3604 = vunpack.c.l.b16 %v613
  %v3605 = vunpack.c.h.b16 %v613
  %v3606 = vunpack.c.l.b16 %v614
  %v3607 = vunpack.c.h.b16 %v614
  %v3608 = vunpack.c.l.b16 %v615
  %v3609 = vunpack.c.h.b16 %v615
  %v3610 = vunpack.c.l.b16 %v616
  %v3611 = vunpack.c.h.b16 %v616
  %v3612 = vunpack.c.l.b16 %v617
  %v3613 = vunpack.c.h.b16 %v617
  %v3614 = vunpack.c.l.b16 %v618
  %v3615 = vunpack.c.h.b16 %v618
  %v3616 = vunpack.c.l.b16 %v619
  %v3617 = vunpack.c.h.b16 %v619
  %v3618 = vunpack.c.l.b16 %v620
  %v3619 = vunpack.c.h.b16 %v620
  %v3620 = vunpack.c.l.b16 %v621
  %v3621 = vunpack.c.h.b16 %v621
  %v3622 = vunpack.c.l.b16 %v622
  %v3623 = vunpack.c.h.b16 %v622
  %v3624 = vunpack.c.l.b16 %v623
  %v3625 = vunpack.c.h.b16 %v623
  %v3626 = vunpack.c.l.b16 %v624
  %v3627 = vunpack.c.h.b16 %v624
  %v3628 = vunpack.c.l.b16 %v625
  %v3629 = vunpack.c.h.b16 %v625
  %v3630 = vunpack.c.l.b16 %v626
  %v3631 = vunpack.c.h.b16 %v626
  %v3632 = vunpack.c.l.b16 %v627
  %v3633 = vunpack.c.h.b16 %v627
  %v3634 = vunpack.c.l.b16 %v628
  %v3635 = vunpack.c.h.b16 %v628
  %v3636 = vunpack.c.l.b16 %v629
  %v3637 = vunpack.c.h.b16 %v629
  %v3638 = vunpack.c.l.b16 %v630
  %v3639 = vunpack.c.h.b16 %v630
  %v3640 = vunpack.c.l.b16 %v631
  %v3641 = vunpack.c.h.b16 %v631
  %v3642 = vunpack.c.l.b16 %v632
  %v3643 = vunpack.c.h.b16 %v632
  %v3644 = vunpack.c.l.b16 %v633
  %v3645 = vunpack.c.h.b16 %v633
  %v3646 = vunpack.c.l.b16 %v634
  %v3647 = vunpack.c.h.b16 %v634
  %v3648 = vunpack.c.l.b16 %v635
  %v3649 = vunpack.c.h.b16 %v635
  %v3650 = vunpack.c.l.b16 %v636
  %v3651 = vunpack.c.h.b16 %v636
  %v3652 = vunpack.c.l.b16 %v637
  %v3653 = vunpack.c.h.b16 %v637
  %v3654 = vunpack.c.l.b16 %v638
  %v3655 = vunpack.c.h.b16 %v638
  %v3656 = vunpack.c.l.b16 %v639
  %v3657 = vunpack.c.h.b16 %v639
  %v3658 = vunpack.c.l.b16 %v640
  %v3659 = vunpack.c.h.b16 %v640
  %v3660 = vunpack.c.l.b16 %v641
  %v3661 = vunpack.c.h.b16 %v641
  %v3662 = vunpack.c.l.b16 %v642
  %v3663 = vunpack.c.h.b16 %v642
  %v3664 = vunpack.c.l.b16 %v643
  %v3665 = vunpack.c.h.b16 %v643
  %v3666 = vunpack.c.l.b16 %v644
  %v3667 = vunpack.c.h.b16 %v644
  %v3668 = vunpack.c.l.b16 %v645
  %v3669 = vunpack.c.h.b16 %v645
  %v3670 = vunpack.c.l.b16 %v646
  %v3671 = vunpack.c.h.b16 %v646
  %v3672 = vunpack.c.l.b16 %v647
  %v3673 = vunpack.c.h.b16 %v647
  %v3674 = vunpack.c.l.b16 %v648
  %v3675 = vunpack.c.h.b16 %v648
  %v3676 = vunpack.c.l.b16 %v649
  %v3677 = vunpack.c.h.b16 %v649
  %v3678 = vunpack.c.l.b16 %v650
  %v3679 = vunpack.c.h.b16 %v650
  %v3680 = vunpack.c.l.b16 %v651
  %v3681 = vunpack.c.h.b16 %v651
  %v3682 = vunpack.c.l.b16 %v652
  %v3683 = vunpack.c.h.b16 %v652
  %v3684 = vunpack.c.l.b16 %v653
  %v3685 = vunpack.c.h.b16 %v653
  %v3686 = vunpack.c.l.b16 %v654
  %v3687 = vunpack.c.h.b16 %v654
  %v3688 = vunpack.c.l.b16 %v655
  %v3689 = vunpack.c.h.b16 %v655
  %v3690 = vunpack.c.l.b16 %v656
  %v3691 = vunpack.c.h.b16 %v656
  %v3692 = vpack.c.b16 %v3598, %v3596
  %v3693 = vpack.c.b16 %v3599, %v3597
  %v3694 = vpack.c.b16 %v3602, %v3600
  %v3695 = vpack.c.b16 %v3603, %v3601
  %v3696 = vpack.c.b16 %v3606, %v3604
  %v3697 = vpack.c.b16 %v3607, %v3605
  %v3698 = vpack.c.b16 %v3610, %v3608
  %v3699 = vpack.c.b16 %v3611, %v3609
  %v3700 = vpack.c.b16 %v3614, %v3612
  %v3701 = vpack.c.b16 %v3615, %v3613
  %v3702 = vpack.c.b16 %v3618, %v3616
  %v3703 = vpack.c.b16 %v3619, %v3617
  %v3704 = vpack.c.b16 %v3622, %v3620
  %v3705 = vpack.c.b16 %v3623, %v3621
  %v3706 = vpack.c.b16 %v3626, %v3624
  %v3707 = vpack.c.b16 %v3627, %v3625
  %v3708 = vpack.c.b16 %v3630, %v3628
  %v3709 = vpack.c.b16 %v3631, %v3629
  %v3710 = vpack.c.b16 %v3634, %v3632
  %v3711 = vpack.c.b16 %v3635, %v3633
  %v3712 = vpack.c.b16 %v3638, %v3636
  %v3713 = vpack.c.b16 %v3639, %v3637
  %v3714 = vpack.c.b16 %v3642, %v3640
  %v3715 = vpack.c.b16 %v3643, %v3641
  %v3716 = vpack.c.b16 %v3646, %v3644
  %v3717 = vpack.c.b16 %v3647, %v3645
  %v3718 = vpack.c.b16 %v3650, %v3648
  %v3719 = vpack.c.b16 %v3651, %v3649
  %v3720 = vpack.c.b16 %v3654, %v3652
  %v3721 = vpack.c.b16 %v3655, %v3653
  %v3722 = vpack.c.b16 %v3658, %v3656
  %v3723 = vpack.c.b16 %v3659, %v3657
  %v3724 = vpack.c.b16 %v3662, %v3660
  %v3725 = vpack.c.b16 %v3663, %v3661
  %v3726 = vpack.c.b16 %v3666, %v3664
  %v3727 = vpack.c.b16 %v3667, %v3665
  %v3728 = vpack.c.b16 %v3670, %v3668
  %v3729 = vpack.c.b16 %v3671, %v3669
  %v3730 = vpack.c.b16 %v3674, %v3672
  %v3731 = vpack.c.b16 %v3675, %v3673
  %v3732 = vpack.c.b16 %v3678, %v3676
  %v3733 = vpack.c.b16 %v3679, %v3677
  %v3734 = vpack.c.b16 %v3682, %v3680
  %v3735 = vpack.c.b16 %v3683, %v3681
  %v3736 = vpack.c.b16 %v3686, %v3684
  %v3737 = vpack.c.b16 %v3687, %v3685
  %v3738 = vpack.c.b16 %v3690, %v3688
  %v3739 = vpack.c.b16 %v3691, %v3689
  %3788 = vmatpush.bf16.msra.mxu0 %v3706
  %3789 = vmatpush.bf16.msra.mxu0 %v3704
  %3790 = vmatpush.bf16.msra.mxu0 %v3702
  %3791 = vmatpush.bf16.msra.mxu0 %v3700
  %3792 = vmatpush.bf16.msra.mxu0 %v3698
  %3793 = vmatpush.bf16.msra.mxu0 %v3696
  %3794 = vmatpush.bf16.msra.mxu0 %v3694
  %3795 = vmatpush.bf16.msra.mxu0 %v3692
  %3796 = vmatmul.bf16.gmra.mxu0 %v998
  %v3797 = vpop.f32.mrf.mxu0
  %v3798 = vadd.f32 0.0, %v3797
  %v3799 = vpop.f32.mrf.mxu0
  %3800 = vdwg.mxu0
  %3801 = vmatpush.bf16.msra.mxu0 %v3722
  %3802 = vmatpush.bf16.msra.mxu0 %v3720
  %3803 = vmatpush.bf16.msra.mxu0 %v3718
  %3804 = vmatpush.bf16.msra.mxu0 %v3716
  %3805 = vmatpush.bf16.msra.mxu0 %v3714
  %3806 = vmatpush.bf16.msra.mxu0 %v3712
  %3807 = vmatpush.bf16.msra.mxu0 %v3710
  %3808 = vmatpush.bf16.msra.mxu0 %v3708
  %3809 = vmatmul.bf16.gmra.mxu0 %v999
  %v3810 = vpop.f32.mrf.mxu0
  %v3811 = vadd.f32 %v3798, %v3810
  %v3812 = vpop.f32.mrf.mxu0
  %3813 = vdwg.mxu0
  %3814 = vmatpush.bf16.msra.mxu0 %v3738
  %3815 = vmatpush.bf16.msra.mxu0 %v3736
  %3816 = vmatpush.bf16.msra.mxu0 %v3734
  %3817 = vmatpush.bf16.msra.mxu0 %v3732
  %3818 = vmatpush.bf16.msra.mxu0 %v3730
  %3819 = vmatpush.bf16.msra.mxu0 %v3728
  %3820 = vmatpush.bf16.msra.mxu0 %v3726
  %3821 = vmatpush.bf16.msra.mxu0 %v3724
  %3822 = vmatmul.bf16.gmra.mxu0 %v1000
  %v3823 = vpop.f32.mrf.mxu0
  %v3824 = vadd.f32 %v3811, %v3823
  %v3825 = vpop.f32.mrf.mxu0
  %3826 = vdwg.mxu0
  %3827 = vmatpush.bf16.msra.mxu0 %v3707
  %3828 = vmatpush.bf16.msra.mxu0 %v3705
  %3829 = vmatpush.bf16.msra.mxu0 %v3703
  %3830 = vmatpush.bf16.msra.mxu0 %v3701
  %3831 = vmatpush.bf16.msra.mxu0 %v3699
  %3832 = vmatpush.bf16.msra.mxu0 %v3697
  %3833 = vmatpush.bf16.msra.mxu0 %v3695
  %3834 = vmatpush.bf16.msra.mxu0 %v3693
  %3835 = vmatmul.bf16.gmra.mxu0 %v998
  %v3836 = vpop.f32.mrf.mxu0
  %v3837 = vadd.f32 0.0, %v3836
  %v3838 = vpop.f32.mrf.mxu0
  %3839 = vdwg.mxu0
  %3840 = vmatpush.bf16.msra.mxu0 %v3723
  %3841 = vmatpush.bf16.msra.mxu0 %v3721
  %3842 = vmatpush.bf16.msra.mxu0 %v3719
  %3843 = vmatpush.bf16.msra.mxu0 %v3717
  %3844 = vmatpush.bf16.msra.mxu0 %v3715
  %3845 = vmatpush.bf16.msra.mxu0 %v3713
  %3846 = vmatpush.bf16.msra.mxu0 %v3711
  %3847 = vmatpush.bf16.msra.mxu0 %v3709
  %3848 = vmatmul.bf16.gmra.mxu0 %v999
  %v3849 = vpop.f32.mrf.mxu0
  %v3850 = vadd.f32 %v3837, %v3849
  %v3851 = vpop.f32.mrf.mxu0
  %3852 = vdwg.mxu0
  %3853 = vmatpush.bf16.msra.mxu0 %v3739
  %3854 = vmatpush.bf16.msra.mxu0 %v3737
  %3855 = vmatpush.bf16.msra.mxu0 %v3735
  %3856 = vmatpush.bf16.msra.mxu0 %v3733
  %3857 = vmatpush.bf16.msra.mxu0 %v3731
  %3858 = vmatpush.bf16.msra.mxu0 %v3729
  %3859 = vmatpush.bf16.msra.mxu0 %v3727
  %3860 = vmatpush.bf16.msra.mxu0 %v3725
  %3861 = vmatmul.bf16.gmra.mxu0 %v1000
  %v3862 = vpop.f32.mrf.mxu0
  %v3863 = vadd.f32 %v3850, %v3862
  %v3864 = vpop.f32.mrf.mxu0
  %3865 = vdwg.mxu0
  %v3914 = vunpack.c.l.b16 %v657
  %v3915 = vunpack.c.h.b16 %v657
  %v3916 = vunpack.c.l.b16 %v658
  %v3917 = vunpack.c.h.b16 %v658
  %v3918 = vunpack.c.l.b16 %v659
  %v3919 = vunpack.c.h.b16 %v659
  %v3920 = vunpack.c.l.b16 %v660
  %v3921 = vunpack.c.h.b16 %v660
  %v3922 = vunpack.c.l.b16 %v661
  %v3923 = vunpack.c.h.b16 %v661
  %v3924 = vunpack.c.l.b16 %v662
  %v3925 = vunpack.c.h.b16 %v662
  %v3926 = vunpack.c.l.b16 %v663
  %v3927 = vunpack.c.h.b16 %v663
  %v3928 = vunpack.c.l.b16 %v664
  %v3929 = vunpack.c.h.b16 %v664
  %v3930 = vunpack.c.l.b16 %v665
  %v3931 = vunpack.c.h.b16 %v665
  %v3932 = vunpack.c.l.b16 %v666
  %v3933 = vunpack.c.h.b16 %v666
  %v3934 = vunpack.c.l.b16 %v667
  %v3935 = vunpack.c.h.b16 %v667
  %v3936 = vunpack.c.l.b16 %v668
  %v3937 = vunpack.c.h.b16 %v668
  %v3938 = vunpack.c.l.b16 %v669
  %v3939 = vunpack.c.h.b16 %v669
  %v3940 = vunpack.c.l.b16 %v670
  %v3941 = vunpack.c.h.b16 %v670
  %v3942 = vunpack.c.l.b16 %v671
  %v3943 = vunpack.c.h.b16 %v671
  %v3944 = vunpack.c.l.b16 %v672
  %v3945 = vunpack.c.h.b16 %v672
  %v3946 = vunpack.c.l.b16 %v673
  %v3947 = vunpack.c.h.b16 %v673
  %v3948 = vunpack.c.l.b16 %v674
  %v3949 = vunpack.c.h.b16 %v674
  %v3950 = vunpack.c.l.b16 %v675
  %v3951 = vunpack.c.h.b16 %v675
  %v3952 = vunpack.c.l.b16 %v676
  %v3953 = vunpack.c.h.b16 %v676
  %v3954 = vunpack.c.l.b16 %v677
  %v3955 = vunpack.c.h.b16 %v677
  %v3956 = vunpack.c.l.b16 %v678
  %v3957 = vunpack.c.h.b16 %v678
  %v3958 = vunpack.c.l.b16 %v679
  %v3959 = vunpack.c.h.b16 %v679
  %v3960 = vunpack.c.l.b16 %v680
  %v3961 = vunpack.c.h.b16 %v680
  %v3962 = vunpack.c.l.b16 %v681
  %v3963 = vunpack.c.h.b16 %v681
  %v3964 = vunpack.c.l.b16 %v682
  %v3965 = vunpack.c.h.b16 %v682
  %v3966 = vunpack.c.l.b16 %v683
  %v3967 = vunpack.c.h.b16 %v683
  %v3968 = vunpack.c.l.b16 %v684
  %v3969 = vunpack.c.h.b16 %v684
  %v3970 = vunpack.c.l.b16 %v685
  %v3971 = vunpack.c.h.b16 %v685
  %v3972 = vunpack.c.l.b16 %v686
  %v3973 = vunpack.c.h.b16 %v686
  %v3974 = vunpack.c.l.b16 %v687
  %v3975 = vunpack.c.h.b16 %v687
  %v3976 = vunpack.c.l.b16 %v688
  %v3977 = vunpack.c.h.b16 %v688
  %v3978 = vunpack.c.l.b16 %v689
  %v3979 = vunpack.c.h.b16 %v689
  %v3980 = vunpack.c.l.b16 %v690
  %v3981 = vunpack.c.h.b16 %v690
  %v3982 = vunpack.c.l.b16 %v691
  %v3983 = vunpack.c.h.b16 %v691
  %v3984 = vunpack.c.l.b16 %v692
  %v3985 = vunpack.c.h.b16 %v692
  %v3986 = vunpack.c.l.b16 %v693
  %v3987 = vunpack.c.h.b16 %v693
  %v3988 = vunpack.c.l.b16 %v694
  %v3989 = vunpack.c.h.b16 %v694
  %v3990 = vunpack.c.l.b16 %v695
  %v3991 = vunpack.c.h.b16 %v695
  %v3992 = vunpack.c.l.b16 %v696
  %v3993 = vunpack.c.h.b16 %v696
  %v3994 = vunpack.c.l.b16 %v697
  %v3995 = vunpack.c.h.b16 %v697
  %v3996 = vunpack.c.l.b16 %v698
  %v3997 = vunpack.c.h.b16 %v698
  %v3998 = vunpack.c.l.b16 %v699
  %v3999 = vunpack.c.h.b16 %v699
  %v4000 = vunpack.c.l.b16 %v700
  %v4001 = vunpack.c.h.b16 %v700
  %v4002 = vunpack.c.l.b16 %v701
  %v4003 = vunpack.c.h.b16 %v701
  %v4004 = vunpack.c.l.b16 %v702
  %v4005 = vunpack.c.h.b16 %v702
  %v4006 = vunpack.c.l.b16 %v703
  %v4007 = vunpack.c.h.b16 %v703
  %v4008 = vunpack.c.l.b16 %v704
  %v4009 = vunpack.c.h.b16 %v704
  %v4010 = vpack.c.b16 %v3916, %v3914
  %v4011 = vpack.c.b16 %v3917, %v3915
  %v4012 = vpack.c.b16 %v3920, %v3918
  %v4013 = vpack.c.b16 %v3921, %v3919
  %v4014 = vpack.c.b16 %v3924, %v3922
  %v4015 = vpack.c.b16 %v3925, %v3923
  %v4016 = vpack.c.b16 %v3928, %v3926
  %v4017 = vpack.c.b16 %v3929, %v3927
  %v4018 = vpack.c.b16 %v3932, %v3930
  %v4019 = vpack.c.b16 %v3933, %v3931
  %v4020 = vpack.c.b16 %v3936, %v3934
  %v4021 = vpack.c.b16 %v3937, %v3935
  %v4022 = vpack.c.b16 %v3940, %v3938
  %v4023 = vpack.c.b16 %v3941, %v3939
  %v4024 = vpack.c.b16 %v3944, %v3942
  %v4025 = vpack.c.b16 %v3945, %v3943
  %v4026 = vpack.c.b16 %v3948, %v3946
  %v4027 = vpack.c.b16 %v3949, %v3947
  %v4028 = vpack.c.b16 %v3952, %v3950
  %v4029 = vpack.c.b16 %v3953, %v3951
  %v4030 = vpack.c.b16 %v3956, %v3954
  %v4031 = vpack.c.b16 %v3957, %v3955
  %v4032 = vpack.c.b16 %v3960, %v3958
  %v4033 = vpack.c.b16 %v3961, %v3959
  %v4034 = vpack.c.b16 %v3964, %v3962
  %v4035 = vpack.c.b16 %v3965, %v3963
  %v4036 = vpack.c.b16 %v3968, %v3966
  %v4037 = vpack.c.b16 %v3969, %v3967
  %v4038 = vpack.c.b16 %v3972, %v3970
  %v4039 = vpack.c.b16 %v3973, %v3971
  %v4040 = vpack.c.b16 %v3976, %v3974
  %v4041 = vpack.c.b16 %v3977, %v3975
  %v4042 = vpack.c.b16 %v3980, %v3978
  %v4043 = vpack.c.b16 %v3981, %v3979
  %v4044 = vpack.c.b16 %v3984, %v3982
  %v4045 = vpack.c.b16 %v3985, %v3983
  %v4046 = vpack.c.b16 %v3988, %v3986
  %v4047 = vpack.c.b16 %v3989, %v3987
  %v4048 = vpack.c.b16 %v3992, %v3990
  %v4049 = vpack.c.b16 %v3993, %v3991
  %v4050 = vpack.c.b16 %v3996, %v3994
  %v4051 = vpack.c.b16 %v3997, %v3995
  %v4052 = vpack.c.b16 %v4000, %v3998
  %v4053 = vpack.c.b16 %v4001, %v3999
  %v4054 = vpack.c.b16 %v4004, %v4002
  %v4055 = vpack.c.b16 %v4005, %v4003
  %v4056 = vpack.c.b16 %v4008, %v4006
  %v4057 = vpack.c.b16 %v4009, %v4007
  %4106 = vmatpush.bf16.msra.mxu0 %v4024
  %4107 = vmatpush.bf16.msra.mxu0 %v4022
  %4108 = vmatpush.bf16.msra.mxu0 %v4020
  %4109 = vmatpush.bf16.msra.mxu0 %v4018
  %4110 = vmatpush.bf16.msra.mxu0 %v4016
  %4111 = vmatpush.bf16.msra.mxu0 %v4014
  %4112 = vmatpush.bf16.msra.mxu0 %v4012
  %4113 = vmatpush.bf16.msra.mxu0 %v4010
  %4114 = vmatmul.bf16.gmra.mxu0 %v998
  %v4115 = vpop.f32.mrf.mxu0
  %v4116 = vadd.f32 0.0, %v4115
  %v4117 = vpop.f32.mrf.mxu0
  %4118 = vdwg.mxu0
  %4119 = vmatpush.bf16.msra.mxu0 %v4040
  %4120 = vmatpush.bf16.msra.mxu0 %v4038
  %4121 = vmatpush.bf16.msra.mxu0 %v4036
  %4122 = vmatpush.bf16.msra.mxu0 %v4034
  %4123 = vmatpush.bf16.msra.mxu0 %v4032
  %4124 = vmatpush.bf16.msra.mxu0 %v4030
  %4125 = vmatpush.bf16.msra.mxu0 %v4028
  %4126 = vmatpush.bf16.msra.mxu0 %v4026
  %4127 = vmatmul.bf16.gmra.mxu0 %v999
  %v4128 = vpop.f32.mrf.mxu0
  %v4129 = vadd.f32 %v4116, %v4128
  %v4130 = vpop.f32.mrf.mxu0
  %4131 = vdwg.mxu0
  %4132 = vmatpush.bf16.msra.mxu0 %v4056
  %4133 = vmatpush.bf16.msra.mxu0 %v4054
  %4134 = vmatpush.bf16.msra.mxu0 %v4052
  %4135 = vmatpush.bf16.msra.mxu0 %v4050
  %4136 = vmatpush.bf16.msra.mxu0 %v4048
  %4137 = vmatpush.bf16.msra.mxu0 %v4046
  %4138 = vmatpush.bf16.msra.mxu0 %v4044
  %4139 = vmatpush.bf16.msra.mxu0 %v4042
  %4140 = vmatmul.bf16.gmra.mxu0 %v1000
  %v4141 = vpop.f32.mrf.mxu0
  %v4142 = vadd.f32 %v4129, %v4141
  %v4143 = vpop.f32.mrf.mxu0
  %4144 = vdwg.mxu0
  %4145 = vmatpush.bf16.msra.mxu0 %v4025
  %4146 = vmatpush.bf16.msra.mxu0 %v4023
  %4147 = vmatpush.bf16.msra.mxu0 %v4021
  %4148 = vmatpush.bf16.msra.mxu0 %v4019
  %4149 = vmatpush.bf16.msra.mxu0 %v4017
  %4150 = vmatpush.bf16.msra.mxu0 %v4015
  %4151 = vmatpush.bf16.msra.mxu0 %v4013
  %4152 = vmatpush.bf16.msra.mxu0 %v4011
  %4153 = vmatmul.bf16.gmra.mxu0 %v998
  %v4154 = vpop.f32.mrf.mxu0
  %v4155 = vadd.f32 0.0, %v4154
  %v4156 = vpop.f32.mrf.mxu0
  %4157 = vdwg.mxu0
  %4158 = vmatpush.bf16.msra.mxu0 %v4041
  %4159 = vmatpush.bf16.msra.mxu0 %v4039
  %4160 = vmatpush.bf16.msra.mxu0 %v4037
  %4161 = vmatpush.bf16.msra.mxu0 %v4035
  %4162 = vmatpush.bf16.msra.mxu0 %v4033
  %4163 = vmatpush.bf16.msra.mxu0 %v4031
  %4164 = vmatpush.bf16.msra.mxu0 %v4029
  %4165 = vmatpush.bf16.msra.mxu0 %v4027
  %4166 = vmatmul.bf16.gmra.mxu0 %v999
  %v4167 = vpop.f32.mrf.mxu0
  %v4168 = vadd.f32 %v4155, %v4167
  %v4169 = vpop.f32.mrf.mxu0
  %4170 = vdwg.mxu0
  %4171 = vmatpush.bf16.msra.mxu0 %v4057
  %4172 = vmatpush.bf16.msra.mxu0 %v4055
  %4173 = vmatpush.bf16.msra.mxu0 %v4053
  %4174 = vmatpush.bf16.msra.mxu0 %v4051
  %4175 = vmatpush.bf16.msra.mxu0 %v4049
  %4176 = vmatpush.bf16.msra.mxu0 %v4047
  %4177 = vmatpush.bf16.msra.mxu0 %v4045
  %4178 = vmatpush.bf16.msra.mxu0 %v4043
  %4179 = vmatmul.bf16.gmra.mxu0 %v1000
  %v4180 = vpop.f32.mrf.mxu0
  %v4181 = vadd.f32 %v4168, %v4180
  %v4182 = vpop.f32.mrf.mxu0
  %4183 = vdwg.mxu0
  %v4232 = vunpack.c.l.b16 %v705
  %v4233 = vunpack.c.h.b16 %v705
  %v4234 = vunpack.c.l.b16 %v706
  %v4235 = vunpack.c.h.b16 %v706
  %v4236 = vunpack.c.l.b16 %v707
  %v4237 = vunpack.c.h.b16 %v707
  %v4238 = vunpack.c.l.b16 %v708
  %v4239 = vunpack.c.h.b16 %v708
  %v4240 = vunpack.c.l.b16 %v709
  %v4241 = vunpack.c.h.b16 %v709
  %v4242 = vunpack.c.l.b16 %v710
  %v4243 = vunpack.c.h.b16 %v710
  %v4244 = vunpack.c.l.b16 %v711
  %v4245 = vunpack.c.h.b16 %v711
  %v4246 = vunpack.c.l.b16 %v712
  %v4247 = vunpack.c.h.b16 %v712
  %v4248 = vunpack.c.l.b16 %v713
  %v4249 = vunpack.c.h.b16 %v713
  %v4250 = vunpack.c.l.b16 %v714
  %v4251 = vunpack.c.h.b16 %v714
  %v4252 = vunpack.c.l.b16 %v715
  %v4253 = vunpack.c.h.b16 %v715
  %v4254 = vunpack.c.l.b16 %v716
  %v4255 = vunpack.c.h.b16 %v716
  %v4256 = vunpack.c.l.b16 %v717
  %v4257 = vunpack.c.h.b16 %v717
  %v4258 = vunpack.c.l.b16 %v718
  %v4259 = vunpack.c.h.b16 %v718
  %v4260 = vunpack.c.l.b16 %v719
  %v4261 = vunpack.c.h.b16 %v719
  %v4262 = vunpack.c.l.b16 %v720
  %v4263 = vunpack.c.h.b16 %v720
  %v4264 = vunpack.c.l.b16 %v721
  %v4265 = vunpack.c.h.b16 %v721
  %v4266 = vunpack.c.l.b16 %v722
  %v4267 = vunpack.c.h.b16 %v722
  %v4268 = vunpack.c.l.b16 %v723
  %v4269 = vunpack.c.h.b16 %v723
  %v4270 = vunpack.c.l.b16 %v724
  %v4271 = vunpack.c.h.b16 %v724
  %v4272 = vunpack.c.l.b16 %v725
  %v4273 = vunpack.c.h.b16 %v725
  %v4274 = vunpack.c.l.b16 %v726
  %v4275 = vunpack.c.h.b16 %v726
  %v4276 = vunpack.c.l.b16 %v727
  %v4277 = vunpack.c.h.b16 %v727
  %v4278 = vunpack.c.l.b16 %v728
  %v4279 = vunpack.c.h.b16 %v728
  %v4280 = vunpack.c.l.b16 %v729
  %v4281 = vunpack.c.h.b16 %v729
  %v4282 = vunpack.c.l.b16 %v730
  %v4283 = vunpack.c.h.b16 %v730
  %v4284 = vunpack.c.l.b16 %v731
  %v4285 = vunpack.c.h.b16 %v731
  %v4286 = vunpack.c.l.b16 %v732
  %v4287 = vunpack.c.h.b16 %v732
  %v4288 = vunpack.c.l.b16 %v733
  %v4289 = vunpack.c.h.b16 %v733
  %v4290 = vunpack.c.l.b16 %v734
  %v4291 = vunpack.c.h.b16 %v734
  %v4292 = vunpack.c.l.b16 %v735
  %v4293 = vunpack.c.h.b16 %v735
  %v4294 = vunpack.c.l.b16 %v736
  %v4295 = vunpack.c.h.b16 %v736
  %v4296 = vunpack.c.l.b16 %v737
  %v4297 = vunpack.c.h.b16 %v737
  %v4298 = vunpack.c.l.b16 %v738
  %v4299 = vunpack.c.h.b16 %v738
  %v4300 = vunpack.c.l.b16 %v739
  %v4301 = vunpack.c.h.b16 %v739
  %v4302 = vunpack.c.l.b16 %v740
  %v4303 = vunpack.c.h.b16 %v740
  %v4304 = vunpack.c.l.b16 %v741
  %v4305 = vunpack.c.h.b16 %v741
  %v4306 = vunpack.c.l.b16 %v742
  %v4307 = vunpack.c.h.b16 %v742
  %v4308 = vunpack.c.l.b16 %v743
  %v4309 = vunpack.c.h.b16 %v743
  %v4310 = vunpack.c.l.b16 %v744
  %v4311 = vunpack.c.h.b16 %v744
  %v4312 = vunpack.c.l.b16 %v745
  %v4313 = vunpack.c.h.b16 %v745
  %v4314 = vunpack.c.l.b16 %v746
  %v4315 = vunpack.c.h.b16 %v746
  %v4316 = vunpack.c.l.b16 %v747
  %v4317 = vunpack.c.h.b16 %v747
  %v4318 = vunpack.c.l.b16 %v748
  %v4319 = vunpack.c.h.b16 %v748
  %v4320 = vunpack.c.l.b16 %v749
  %v4321 = vunpack.c.h.b16 %v749
  %v4322 = vunpack.c.l.b16 %v750
  %v4323 = vunpack.c.h.b16 %v750
  %v4324 = vunpack.c.l.b16 %v751
  %v4325 = vunpack.c.h.b16 %v751
  %v4326 = vunpack.c.l.b16 %v752
  %v4327 = vunpack.c.h.b16 %v752
  %v4328 = vpack.c.b16 %v4234, %v4232
  %v4329 = vpack.c.b16 %v4235, %v4233
  %v4330 = vpack.c.b16 %v4238, %v4236
  %v4331 = vpack.c.b16 %v4239, %v4237
  %v4332 = vpack.c.b16 %v4242, %v4240
  %v4333 = vpack.c.b16 %v4243, %v4241
  %v4334 = vpack.c.b16 %v4246, %v4244
  %v4335 = vpack.c.b16 %v4247, %v4245
  %v4336 = vpack.c.b16 %v4250, %v4248
  %v4337 = vpack.c.b16 %v4251, %v4249
  %v4338 = vpack.c.b16 %v4254, %v4252
  %v4339 = vpack.c.b16 %v4255, %v4253
  %v4340 = vpack.c.b16 %v4258, %v4256
  %v4341 = vpack.c.b16 %v4259, %v4257
  %v4342 = vpack.c.b16 %v4262, %v4260
  %v4343 = vpack.c.b16 %v4263, %v4261
  %v4344 = vpack.c.b16 %v4266, %v4264
  %v4345 = vpack.c.b16 %v4267, %v4265
  %v4346 = vpack.c.b16 %v4270, %v4268
  %v4347 = vpack.c.b16 %v4271, %v4269
  %v4348 = vpack.c.b16 %v4274, %v4272
  %v4349 = vpack.c.b16 %v4275, %v4273
  %v4350 = vpack.c.b16 %v4278, %v4276
  %v4351 = vpack.c.b16 %v4279, %v4277
  %v4352 = vpack.c.b16 %v4282, %v4280
  %v4353 = vpack.c.b16 %v4283, %v4281
  %v4354 = vpack.c.b16 %v4286, %v4284
  %v4355 = vpack.c.b16 %v4287, %v4285
  %v4356 = vpack.c.b16 %v4290, %v4288
  %v4357 = vpack.c.b16 %v4291, %v4289
  %v4358 = vpack.c.b16 %v4294, %v4292
  %v4359 = vpack.c.b16 %v4295, %v4293
  %v4360 = vpack.c.b16 %v4298, %v4296
  %v4361 = vpack.c.b16 %v4299, %v4297
  %v4362 = vpack.c.b16 %v4302, %v4300
  %v4363 = vpack.c.b16 %v4303, %v4301
  %v4364 = vpack.c.b16 %v4306, %v4304
  %v4365 = vpack.c.b16 %v4307, %v4305
  %v4366 = vpack.c.b16 %v4310, %v4308
  %v4367 = vpack.c.b16 %v4311, %v4309
  %v4368 = vpack.c.b16 %v4314, %v4312
  %v4369 = vpack.c.b16 %v4315, %v4313
  %v4370 = vpack.c.b16 %v4318, %v4316
  %v4371 = vpack.c.b16 %v4319, %v4317
  %v4372 = vpack.c.b16 %v4322, %v4320
  %v4373 = vpack.c.b16 %v4323, %v4321
  %v4374 = vpack.c.b16 %v4326, %v4324
  %v4375 = vpack.c.b16 %v4327, %v4325
  %4424 = vmatpush.bf16.msra.mxu0 %v4342
  %4425 = vmatpush.bf16.msra.mxu0 %v4340
  %4426 = vmatpush.bf16.msra.mxu0 %v4338
  %4427 = vmatpush.bf16.msra.mxu0 %v4336
  %4428 = vmatpush.bf16.msra.mxu0 %v4334
  %4429 = vmatpush.bf16.msra.mxu0 %v4332
  %4430 = vmatpush.bf16.msra.mxu0 %v4330
  %4431 = vmatpush.bf16.msra.mxu0 %v4328
  %4432 = vmatmul.bf16.gmra.mxu0 %v998
  %v4433 = vpop.f32.mrf.mxu0
  %v4434 = vadd.f32 0.0, %v4433
  %v4435 = vpop.f32.mrf.mxu0
  %4436 = vdwg.mxu0
  %4437 = vmatpush.bf16.msra.mxu0 %v4358
  %4438 = vmatpush.bf16.msra.mxu0 %v4356
  %4439 = vmatpush.bf16.msra.mxu0 %v4354
  %4440 = vmatpush.bf16.msra.mxu0 %v4352
  %4441 = vmatpush.bf16.msra.mxu0 %v4350
  %4442 = vmatpush.bf16.msra.mxu0 %v4348
  %4443 = vmatpush.bf16.msra.mxu0 %v4346
  %4444 = vmatpush.bf16.msra.mxu0 %v4344
  %4445 = vmatmul.bf16.gmra.mxu0 %v999
  %v4446 = vpop.f32.mrf.mxu0
  %v4447 = vadd.f32 %v4434, %v4446
  %v4448 = vpop.f32.mrf.mxu0
  %4449 = vdwg.mxu0
  %4450 = vmatpush.bf16.msra.mxu0 %v4374
  %4451 = vmatpush.bf16.msra.mxu0 %v4372
  %4452 = vmatpush.bf16.msra.mxu0 %v4370
  %4453 = vmatpush.bf16.msra.mxu0 %v4368
  %4454 = vmatpush.bf16.msra.mxu0 %v4366
  %4455 = vmatpush.bf16.msra.mxu0 %v4364
  %4456 = vmatpush.bf16.msra.mxu0 %v4362
  %4457 = vmatpush.bf16.msra.mxu0 %v4360
  %4458 = vmatmul.bf16.gmra.mxu0 %v1000
  %v4459 = vpop.f32.mrf.mxu0
  %v4460 = vadd.f32 %v4447, %v4459
  %v4461 = vpop.f32.mrf.mxu0
  %4462 = vdwg.mxu0
  %4463 = vmatpush.bf16.msra.mxu0 %v4343
  %4464 = vmatpush.bf16.msra.mxu0 %v4341
  %4465 = vmatpush.bf16.msra.mxu0 %v4339
  %4466 = vmatpush.bf16.msra.mxu0 %v4337
  %4467 = vmatpush.bf16.msra.mxu0 %v4335
  %4468 = vmatpush.bf16.msra.mxu0 %v4333
  %4469 = vmatpush.bf16.msra.mxu0 %v4331
  %4470 = vmatpush.bf16.msra.mxu0 %v4329
  %4471 = vmatmul.bf16.gmra.mxu0 %v998
  %v4472 = vpop.f32.mrf.mxu0
  %v4473 = vadd.f32 0.0, %v4472
  %v4474 = vpop.f32.mrf.mxu0
  %4475 = vdwg.mxu0
  %4476 = vmatpush.bf16.msra.mxu0 %v4359
  %4477 = vmatpush.bf16.msra.mxu0 %v4357
  %4478 = vmatpush.bf16.msra.mxu0 %v4355
  %4479 = vmatpush.bf16.msra.mxu0 %v4353
  %4480 = vmatpush.bf16.msra.mxu0 %v4351
  %4481 = vmatpush.bf16.msra.mxu0 %v4349
  %4482 = vmatpush.bf16.msra.mxu0 %v4347
  %4483 = vmatpush.bf16.msra.mxu0 %v4345
  %4484 = vmatmul.bf16.gmra.mxu0 %v999
  %v4485 = vpop.f32.mrf.mxu0
  %v4486 = vadd.f32 %v4473, %v4485
  %v4487 = vpop.f32.mrf.mxu0
  %4488 = vdwg.mxu0
  %4489 = vmatpush.bf16.msra.mxu0 %v4375
  %4490 = vmatpush.bf16.msra.mxu0 %v4373
  %4491 = vmatpush.bf16.msra.mxu0 %v4371
  %4492 = vmatpush.bf16.msra.mxu0 %v4369
  %4493 = vmatpush.bf16.msra.mxu0 %v4367
  %4494 = vmatpush.bf16.msra.mxu0 %v4365
  %4495 = vmatpush.bf16.msra.mxu0 %v4363
  %4496 = vmatpush.bf16.msra.mxu0 %v4361
  %4497 = vmatmul.bf16.gmra.mxu0 %v1000
  %v4498 = vpop.f32.mrf.mxu0
  %v4499 = vadd.f32 %v4486, %v4498
  %v4500 = vpop.f32.mrf.mxu0
  %4501 = vdwg.mxu0
  %v4550 = vunpack.c.l.b16 %v753
  %v4551 = vunpack.c.h.b16 %v753
  %v4552 = vunpack.c.l.b16 %v754
  %v4553 = vunpack.c.h.b16 %v754
  %v4554 = vunpack.c.l.b16 %v755
  %v4555 = vunpack.c.h.b16 %v755
  %v4556 = vunpack.c.l.b16 %v756
  %v4557 = vunpack.c.h.b16 %v756
  %v4558 = vunpack.c.l.b16 %v757
  %v4559 = vunpack.c.h.b16 %v757
  %v4560 = vunpack.c.l.b16 %v758
  %v4561 = vunpack.c.h.b16 %v758
  %v4562 = vunpack.c.l.b16 %v759
  %v4563 = vunpack.c.h.b16 %v759
  %v4564 = vunpack.c.l.b16 %v760
  %v4565 = vunpack.c.h.b16 %v760
  %v4566 = vunpack.c.l.b16 %v761
  %v4567 = vunpack.c.h.b16 %v761
  %v4568 = vunpack.c.l.b16 %v762
  %v4569 = vunpack.c.h.b16 %v762
  %v4570 = vunpack.c.l.b16 %v763
  %v4571 = vunpack.c.h.b16 %v763
  %v4572 = vunpack.c.l.b16 %v764
  %v4573 = vunpack.c.h.b16 %v764
  %v4574 = vunpack.c.l.b16 %v765
  %v4575 = vunpack.c.h.b16 %v765
  %v4576 = vunpack.c.l.b16 %v766
  %v4577 = vunpack.c.h.b16 %v766
  %v4578 = vunpack.c.l.b16 %v767
  %v4579 = vunpack.c.h.b16 %v767
  %v4580 = vunpack.c.l.b16 %v768
  %v4581 = vunpack.c.h.b16 %v768
  %v4582 = vunpack.c.l.b16 %v769
  %v4583 = vunpack.c.h.b16 %v769
  %v4584 = vunpack.c.l.b16 %v770
  %v4585 = vunpack.c.h.b16 %v770
  %v4586 = vunpack.c.l.b16 %v771
  %v4587 = vunpack.c.h.b16 %v771
  %v4588 = vunpack.c.l.b16 %v772
  %v4589 = vunpack.c.h.b16 %v772
  %v4590 = vunpack.c.l.b16 %v773
  %v4591 = vunpack.c.h.b16 %v773
  %v4592 = vunpack.c.l.b16 %v774
  %v4593 = vunpack.c.h.b16 %v774
  %v4594 = vunpack.c.l.b16 %v775
  %v4595 = vunpack.c.h.b16 %v775
  %v4596 = vunpack.c.l.b16 %v776
  %v4597 = vunpack.c.h.b16 %v776
  %v4598 = vunpack.c.l.b16 %v777
  %v4599 = vunpack.c.h.b16 %v777
  %v4600 = vunpack.c.l.b16 %v778
  %v4601 = vunpack.c.h.b16 %v778
  %v4602 = vunpack.c.l.b16 %v779
  %v4603 = vunpack.c.h.b16 %v779
  %v4604 = vunpack.c.l.b16 %v780
  %v4605 = vunpack.c.h.b16 %v780
  %v4606 = vunpack.c.l.b16 %v781
  %v4607 = vunpack.c.h.b16 %v781
  %v4608 = vunpack.c.l.b16 %v782
  %v4609 = vunpack.c.h.b16 %v782
  %v4610 = vunpack.c.l.b16 %v783
  %v4611 = vunpack.c.h.b16 %v783
  %v4612 = vunpack.c.l.b16 %v784
  %v4613 = vunpack.c.h.b16 %v784
  %v4614 = vunpack.c.l.b16 %v785
  %v4615 = vunpack.c.h.b16 %v785
  %v4616 = vunpack.c.l.b16 %v786
  %v4617 = vunpack.c.h.b16 %v786
  %v4618 = vunpack.c.l.b16 %v787
  %v4619 = vunpack.c.h.b16 %v787
  %v4620 = vunpack.c.l.b16 %v788
  %v4621 = vunpack.c.h.b16 %v788
  %v4622 = vunpack.c.l.b16 %v789
  %v4623 = vunpack.c.h.b16 %v789
  %v4624 = vunpack.c.l.b16 %v790
  %v4625 = vunpack.c.h.b16 %v790
  %v4626 = vunpack.c.l.b16 %v791
  %v4627 = vunpack.c.h.b16 %v791
  %v4628 = vunpack.c.l.b16 %v792
  %v4629 = vunpack.c.h.b16 %v792
  %v4630 = vunpack.c.l.b16 %v793
  %v4631 = vunpack.c.h.b16 %v793
  %v4632 = vunpack.c.l.b16 %v794
  %v4633 = vunpack.c.h.b16 %v794
  %v4634 = vunpack.c.l.b16 %v795
  %v4635 = vunpack.c.h.b16 %v795
  %v4636 = vunpack.c.l.b16 %v796
  %v4637 = vunpack.c.h.b16 %v796
  %v4638 = vunpack.c.l.b16 %v797
  %v4639 = vunpack.c.h.b16 %v797
  %v4640 = vunpack.c.l.b16 %v798
  %v4641 = vunpack.c.h.b16 %v798
  %v4642 = vunpack.c.l.b16 %v799
  %v4643 = vunpack.c.h.b16 %v799
  %v4644 = vunpack.c.l.b16 %v800
  %v4645 = vunpack.c.h.b16 %v800
  %v4646 = vpack.c.b16 %v4552, %v4550
  %v4647 = vpack.c.b16 %v4553, %v4551
  %v4648 = vpack.c.b16 %v4556, %v4554
  %v4649 = vpack.c.b16 %v4557, %v4555
  %v4650 = vpack.c.b16 %v4560, %v4558
  %v4651 = vpack.c.b16 %v4561, %v4559
  %v4652 = vpack.c.b16 %v4564, %v4562
  %v4653 = vpack.c.b16 %v4565, %v4563
  %v4654 = vpack.c.b16 %v4568, %v4566
  %v4655 = vpack.c.b16 %v4569, %v4567
  %v4656 = vpack.c.b16 %v4572, %v4570
  %v4657 = vpack.c.b16 %v4573, %v4571
  %v4658 = vpack.c.b16 %v4576, %v4574
  %v4659 = vpack.c.b16 %v4577, %v4575
  %v4660 = vpack.c.b16 %v4580, %v4578
  %v4661 = vpack.c.b16 %v4581, %v4579
  %v4662 = vpack.c.b16 %v4584, %v4582
  %v4663 = vpack.c.b16 %v4585, %v4583
  %v4664 = vpack.c.b16 %v4588, %v4586
  %v4665 = vpack.c.b16 %v4589, %v4587
  %v4666 = vpack.c.b16 %v4592, %v4590
  %v4667 = vpack.c.b16 %v4593, %v4591
  %v4668 = vpack.c.b16 %v4596, %v4594
  %v4669 = vpack.c.b16 %v4597, %v4595
  %v4670 = vpack.c.b16 %v4600, %v4598
  %v4671 = vpack.c.b16 %v4601, %v4599
  %v4672 = vpack.c.b16 %v4604, %v4602
  %v4673 = vpack.c.b16 %v4605, %v4603
  %v4674 = vpack.c.b16 %v4608, %v4606
  %v4675 = vpack.c.b16 %v4609, %v4607
  %v4676 = vpack.c.b16 %v4612, %v4610
  %v4677 = vpack.c.b16 %v4613, %v4611
  %v4678 = vpack.c.b16 %v4616, %v4614
  %v4679 = vpack.c.b16 %v4617, %v4615
  %v4680 = vpack.c.b16 %v4620, %v4618
  %v4681 = vpack.c.b16 %v4621, %v4619
  %v4682 = vpack.c.b16 %v4624, %v4622
  %v4683 = vpack.c.b16 %v4625, %v4623
  %v4684 = vpack.c.b16 %v4628, %v4626
  %v4685 = vpack.c.b16 %v4629, %v4627
  %v4686 = vpack.c.b16 %v4632, %v4630
  %v4687 = vpack.c.b16 %v4633, %v4631
  %v4688 = vpack.c.b16 %v4636, %v4634
  %v4689 = vpack.c.b16 %v4637, %v4635
  %v4690 = vpack.c.b16 %v4640, %v4638
  %v4691 = vpack.c.b16 %v4641, %v4639
  %v4692 = vpack.c.b16 %v4644, %v4642
  %v4693 = vpack.c.b16 %v4645, %v4643
  %4742 = vmatpush.bf16.msra.mxu0 %v4660
  %4743 = vmatpush.bf16.msra.mxu0 %v4658
  %4744 = vmatpush.bf16.msra.mxu0 %v4656
  %4745 = vmatpush.bf16.msra.mxu0 %v4654
  %4746 = vmatpush.bf16.msra.mxu0 %v4652
  %4747 = vmatpush.bf16.msra.mxu0 %v4650
  %4748 = vmatpush.bf16.msra.mxu0 %v4648
  %4749 = vmatpush.bf16.msra.mxu0 %v4646
  %4750 = vmatmul.bf16.gmra.mxu0 %v998
  %v4751 = vpop.f32.mrf.mxu0
  %v4752 = vadd.f32 0.0, %v4751
  %v4753 = vpop.f32.mrf.mxu0
  %4754 = vdwg.mxu0
  %4755 = vmatpush.bf16.msra.mxu0 %v4676
  %4756 = vmatpush.bf16.msra.mxu0 %v4674
  %4757 = vmatpush.bf16.msra.mxu0 %v4672
  %4758 = vmatpush.bf16.msra.mxu0 %v4670
  %4759 = vmatpush.bf16.msra.mxu0 %v4668
  %4760 = vmatpush.bf16.msra.mxu0 %v4666
  %4761 = vmatpush.bf16.msra.mxu0 %v4664
  %4762 = vmatpush.bf16.msra.mxu0 %v4662
  %4763 = vmatmul.bf16.gmra.mxu0 %v999
  %v4764 = vpop.f32.mrf.mxu0
  %v4765 = vadd.f32 %v4752, %v4764
  %v4766 = vpop.f32.mrf.mxu0
  %4767 = vdwg.mxu0
  %4768 = vmatpush.bf16.msra.mxu0 %v4692
  %4769 = vmatpush.bf16.msra.mxu0 %v4690
  %4770 = vmatpush.bf16.msra.mxu0 %v4688
  %4771 = vmatpush.bf16.msra.mxu0 %v4686
  %4772 = vmatpush.bf16.msra.mxu0 %v4684
  %4773 = vmatpush.bf16.msra.mxu0 %v4682
  %4774 = vmatpush.bf16.msra.mxu0 %v4680
  %4775 = vmatpush.bf16.msra.mxu0 %v4678
  %4776 = vmatmul.bf16.gmra.mxu0 %v1000
  %v4777 = vpop.f32.mrf.mxu0
  %v4778 = vadd.f32 %v4765, %v4777
  %v4779 = vpop.f32.mrf.mxu0
  %4780 = vdwg.mxu0
  %4781 = vmatpush.bf16.msra.mxu0 %v4661
  %4782 = vmatpush.bf16.msra.mxu0 %v4659
  %4783 = vmatpush.bf16.msra.mxu0 %v4657
  %4784 = vmatpush.bf16.msra.mxu0 %v4655
  %4785 = vmatpush.bf16.msra.mxu0 %v4653
  %4786 = vmatpush.bf16.msra.mxu0 %v4651
  %4787 = vmatpush.bf16.msra.mxu0 %v4649
  %4788 = vmatpush.bf16.msra.mxu0 %v4647
  %4789 = vmatmul.bf16.gmra.mxu0 %v998
  %v4790 = vpop.f32.mrf.mxu0
  %v4791 = vadd.f32 0.0, %v4790
  %v4792 = vpop.f32.mrf.mxu0
  %4793 = vdwg.mxu0
  %4794 = vmatpush.bf16.msra.mxu0 %v4677
  %4795 = vmatpush.bf16.msra.mxu0 %v4675
  %4796 = vmatpush.bf16.msra.mxu0 %v4673
  %4797 = vmatpush.bf16.msra.mxu0 %v4671
  %4798 = vmatpush.bf16.msra.mxu0 %v4669
  %4799 = vmatpush.bf16.msra.mxu0 %v4667
  %4800 = vmatpush.bf16.msra.mxu0 %v4665
  %4801 = vmatpush.bf16.msra.mxu0 %v4663
  %4802 = vmatmul.bf16.gmra.mxu0 %v999
  %v4803 = vpop.f32.mrf.mxu0
  %v4804 = vadd.f32 %v4791, %v4803
  %v4805 = vpop.f32.mrf.mxu0
  %4806 = vdwg.mxu0
  %4807 = vmatpush.bf16.msra.mxu0 %v4693
  %4808 = vmatpush.bf16.msra.mxu0 %v4691
  %4809 = vmatpush.bf16.msra.mxu0 %v4689
  %4810 = vmatpush.bf16.msra.mxu0 %v4687
  %4811 = vmatpush.bf16.msra.mxu0 %v4685
  %4812 = vmatpush.bf16.msra.mxu0 %v4683
  %4813 = vmatpush.bf16.msra.mxu0 %v4681
  %4814 = vmatpush.bf16.msra.mxu0 %v4679
  %4815 = vmatmul.bf16.gmra.mxu0 %v1000
  %v4816 = vpop.f32.mrf.mxu0
  %v4817 = vadd.f32 %v4804, %v4816
  %v4818 = vpop.f32.mrf.mxu0
  %4819 = vdwg.mxu0
  %v4868 = vunpack.c.l.b16 %v801
  %v4869 = vunpack.c.h.b16 %v801
  %v4870 = vunpack.c.l.b16 %v802
  %v4871 = vunpack.c.h.b16 %v802
  %v4872 = vunpack.c.l.b16 %v803
  %v4873 = vunpack.c.h.b16 %v803
  %v4874 = vunpack.c.l.b16 %v804
  %v4875 = vunpack.c.h.b16 %v804
  %v4876 = vunpack.c.l.b16 %v805
  %v4877 = vunpack.c.h.b16 %v805
  %v4878 = vunpack.c.l.b16 %v806
  %v4879 = vunpack.c.h.b16 %v806
  %v4880 = vunpack.c.l.b16 %v807
  %v4881 = vunpack.c.h.b16 %v807
  %v4882 = vunpack.c.l.b16 %v808
  %v4883 = vunpack.c.h.b16 %v808
  %v4884 = vunpack.c.l.b16 %v809
  %v4885 = vunpack.c.h.b16 %v809
  %v4886 = vunpack.c.l.b16 %v810
  %v4887 = vunpack.c.h.b16 %v810
  %v4888 = vunpack.c.l.b16 %v811
  %v4889 = vunpack.c.h.b16 %v811
  %v4890 = vunpack.c.l.b16 %v812
  %v4891 = vunpack.c.h.b16 %v812
  %v4892 = vunpack.c.l.b16 %v813
  %v4893 = vunpack.c.h.b16 %v813
  %v4894 = vunpack.c.l.b16 %v814
  %v4895 = vunpack.c.h.b16 %v814
  %v4896 = vunpack.c.l.b16 %v815
  %v4897 = vunpack.c.h.b16 %v815
  %v4898 = vunpack.c.l.b16 %v816
  %v4899 = vunpack.c.h.b16 %v816
  %v4900 = vunpack.c.l.b16 %v817
  %v4901 = vunpack.c.h.b16 %v817
  %v4902 = vunpack.c.l.b16 %v818
  %v4903 = vunpack.c.h.b16 %v818
  %v4904 = vunpack.c.l.b16 %v819
  %v4905 = vunpack.c.h.b16 %v819
  %v4906 = vunpack.c.l.b16 %v820
  %v4907 = vunpack.c.h.b16 %v820
  %v4908 = vunpack.c.l.b16 %v821
  %v4909 = vunpack.c.h.b16 %v821
  %v4910 = vunpack.c.l.b16 %v822
  %v4911 = vunpack.c.h.b16 %v822
  %v4912 = vunpack.c.l.b16 %v823
  %v4913 = vunpack.c.h.b16 %v823
  %v4914 = vunpack.c.l.b16 %v824
  %v4915 = vunpack.c.h.b16 %v824
  %v4916 = vunpack.c.l.b16 %v825
  %v4917 = vunpack.c.h.b16 %v825
  %v4918 = vunpack.c.l.b16 %v826
  %v4919 = vunpack.c.h.b16 %v826
  %v4920 = vunpack.c.l.b16 %v827
  %v4921 = vunpack.c.h.b16 %v827
  %v4922 = vunpack.c.l.b16 %v828
  %v4923 = vunpack.c.h.b16 %v828
  %v4924 = vunpack.c.l.b16 %v829
  %v4925 = vunpack.c.h.b16 %v829
  %v4926 = vunpack.c.l.b16 %v830
  %v4927 = vunpack.c.h.b16 %v830
  %v4928 = vunpack.c.l.b16 %v831
  %v4929 = vunpack.c.h.b16 %v831
  %v4930 = vunpack.c.l.b16 %v832
  %v4931 = vunpack.c.h.b16 %v832
  %v4932 = vunpack.c.l.b16 %v833
  %v4933 = vunpack.c.h.b16 %v833
  %v4934 = vunpack.c.l.b16 %v834
  %v4935 = vunpack.c.h.b16 %v834
  %v4936 = vunpack.c.l.b16 %v835
  %v4937 = vunpack.c.h.b16 %v835
  %v4938 = vunpack.c.l.b16 %v836
  %v4939 = vunpack.c.h.b16 %v836
  %v4940 = vunpack.c.l.b16 %v837
  %v4941 = vunpack.c.h.b16 %v837
  %v4942 = vunpack.c.l.b16 %v838
  %v4943 = vunpack.c.h.b16 %v838
  %v4944 = vunpack.c.l.b16 %v839
  %v4945 = vunpack.c.h.b16 %v839
  %v4946 = vunpack.c.l.b16 %v840
  %v4947 = vunpack.c.h.b16 %v840
  %v4948 = vunpack.c.l.b16 %v841
  %v4949 = vunpack.c.h.b16 %v841
  %v4950 = vunpack.c.l.b16 %v842
  %v4951 = vunpack.c.h.b16 %v842
  %v4952 = vunpack.c.l.b16 %v843
  %v4953 = vunpack.c.h.b16 %v843
  %v4954 = vunpack.c.l.b16 %v844
  %v4955 = vunpack.c.h.b16 %v844
  %v4956 = vunpack.c.l.b16 %v845
  %v4957 = vunpack.c.h.b16 %v845
  %v4958 = vunpack.c.l.b16 %v846
  %v4959 = vunpack.c.h.b16 %v846
  %v4960 = vunpack.c.l.b16 %v847
  %v4961 = vunpack.c.h.b16 %v847
  %v4962 = vunpack.c.l.b16 %v848
  %v4963 = vunpack.c.h.b16 %v848
  %v4964 = vpack.c.b16 %v4870, %v4868
  %v4965 = vpack.c.b16 %v4871, %v4869
  %v4966 = vpack.c.b16 %v4874, %v4872
  %v4967 = vpack.c.b16 %v4875, %v4873
  %v4968 = vpack.c.b16 %v4878, %v4876
  %v4969 = vpack.c.b16 %v4879, %v4877
  %v4970 = vpack.c.b16 %v4882, %v4880
  %v4971 = vpack.c.b16 %v4883, %v4881
  %v4972 = vpack.c.b16 %v4886, %v4884
  %v4973 = vpack.c.b16 %v4887, %v4885
  %v4974 = vpack.c.b16 %v4890, %v4888
  %v4975 = vpack.c.b16 %v4891, %v4889
  %v4976 = vpack.c.b16 %v4894, %v4892
  %v4977 = vpack.c.b16 %v4895, %v4893
  %v4978 = vpack.c.b16 %v4898, %v4896
  %v4979 = vpack.c.b16 %v4899, %v4897
  %v4980 = vpack.c.b16 %v4902, %v4900
  %v4981 = vpack.c.b16 %v4903, %v4901
  %v4982 = vpack.c.b16 %v4906, %v4904
  %v4983 = vpack.c.b16 %v4907, %v4905
  %v4984 = vpack.c.b16 %v4910, %v4908
  %v4985 = vpack.c.b16 %v4911, %v4909
  %v4986 = vpack.c.b16 %v4914, %v4912
  %v4987 = vpack.c.b16 %v4915, %v4913
  %v4988 = vpack.c.b16 %v4918, %v4916
  %v4989 = vpack.c.b16 %v4919, %v4917
  %v4990 = vpack.c.b16 %v4922, %v4920
  %v4991 = vpack.c.b16 %v4923, %v4921
  %v4992 = vpack.c.b16 %v4926, %v4924
  %v4993 = vpack.c.b16 %v4927, %v4925
  %v4994 = vpack.c.b16 %v4930, %v4928
  %v4995 = vpack.c.b16 %v4931, %v4929
  %v4996 = vpack.c.b16 %v4934, %v4932
  %v4997 = vpack.c.b16 %v4935, %v4933
  %v4998 = vpack.c.b16 %v4938, %v4936
  %v4999 = vpack.c.b16 %v4939, %v4937
  %v5000 = vpack.c.b16 %v4942, %v4940
  %v5001 = vpack.c.b16 %v4943, %v4941
  %v5002 = vpack.c.b16 %v4946, %v4944
  %v5003 = vpack.c.b16 %v4947, %v4945
  %v5004 = vpack.c.b16 %v4950, %v4948
  %v5005 = vpack.c.b16 %v4951, %v4949
  %v5006 = vpack.c.b16 %v4954, %v4952
  %v5007 = vpack.c.b16 %v4955, %v4953
  %v5008 = vpack.c.b16 %v4958, %v4956
  %v5009 = vpack.c.b16 %v4959, %v4957
  %v5010 = vpack.c.b16 %v4962, %v4960
  %v5011 = vpack.c.b16 %v4963, %v4961
  %5060 = vmatpush.bf16.msra.mxu0 %v4978
  %5061 = vmatpush.bf16.msra.mxu0 %v4976
  %5062 = vmatpush.bf16.msra.mxu0 %v4974
  %5063 = vmatpush.bf16.msra.mxu0 %v4972
  %5064 = vmatpush.bf16.msra.mxu0 %v4970
  %5065 = vmatpush.bf16.msra.mxu0 %v4968
  %5066 = vmatpush.bf16.msra.mxu0 %v4966
  %5067 = vmatpush.bf16.msra.mxu0 %v4964
  %5068 = vmatmul.bf16.gmra.mxu0 %v998
  %v5069 = vpop.f32.mrf.mxu0
  %v5070 = vadd.f32 0.0, %v5069
  %v5071 = vpop.f32.mrf.mxu0
  %5072 = vdwg.mxu0
  %5073 = vmatpush.bf16.msra.mxu0 %v4994
  %5074 = vmatpush.bf16.msra.mxu0 %v4992
  %5075 = vmatpush.bf16.msra.mxu0 %v4990
  %5076 = vmatpush.bf16.msra.mxu0 %v4988
  %5077 = vmatpush.bf16.msra.mxu0 %v4986
  %5078 = vmatpush.bf16.msra.mxu0 %v4984
  %5079 = vmatpush.bf16.msra.mxu0 %v4982
  %5080 = vmatpush.bf16.msra.mxu0 %v4980
  %5081 = vmatmul.bf16.gmra.mxu0 %v999
  %v5082 = vpop.f32.mrf.mxu0
  %v5083 = vadd.f32 %v5070, %v5082
  %v5084 = vpop.f32.mrf.mxu0
  %5085 = vdwg.mxu0
  %5086 = vmatpush.bf16.msra.mxu0 %v5010
  %5087 = vmatpush.bf16.msra.mxu0 %v5008
  %5088 = vmatpush.bf16.msra.mxu0 %v5006
  %5089 = vmatpush.bf16.msra.mxu0 %v5004
  %5090 = vmatpush.bf16.msra.mxu0 %v5002
  %5091 = vmatpush.bf16.msra.mxu0 %v5000
  %5092 = vmatpush.bf16.msra.mxu0 %v4998
  %5093 = vmatpush.bf16.msra.mxu0 %v4996
  %5094 = vmatmul.bf16.gmra.mxu0 %v1000
  %v5095 = vpop.f32.mrf.mxu0
  %v5096 = vadd.f32 %v5083, %v5095
  %v5097 = vpop.f32.mrf.mxu0
  %5098 = vdwg.mxu0
  %5099 = vmatpush.bf16.msra.mxu0 %v4979
  %5100 = vmatpush.bf16.msra.mxu0 %v4977
  %5101 = vmatpush.bf16.msra.mxu0 %v4975
  %5102 = vmatpush.bf16.msra.mxu0 %v4973
  %5103 = vmatpush.bf16.msra.mxu0 %v4971
  %5104 = vmatpush.bf16.msra.mxu0 %v4969
  %5105 = vmatpush.bf16.msra.mxu0 %v4967
  %5106 = vmatpush.bf16.msra.mxu0 %v4965
  %5107 = vmatmul.bf16.gmra.mxu0 %v998
  %v5108 = vpop.f32.mrf.mxu0
  %v5109 = vadd.f32 0.0, %v5108
  %v5110 = vpop.f32.mrf.mxu0
  %5111 = vdwg.mxu0
  %5112 = vmatpush.bf16.msra.mxu0 %v4995
  %5113 = vmatpush.bf16.msra.mxu0 %v4993
  %5114 = vmatpush.bf16.msra.mxu0 %v4991
  %5115 = vmatpush.bf16.msra.mxu0 %v4989
  %5116 = vmatpush.bf16.msra.mxu0 %v4987
  %5117 = vmatpush.bf16.msra.mxu0 %v4985
  %5118 = vmatpush.bf16.msra.mxu0 %v4983
  %5119 = vmatpush.bf16.msra.mxu0 %v4981
  %5120 = vmatmul.bf16.gmra.mxu0 %v999
  %v5121 = vpop.f32.mrf.mxu0
  %v5122 = vadd.f32 %v5109, %v5121
  %v5123 = vpop.f32.mrf.mxu0
  %5124 = vdwg.mxu0
  %5125 = vmatpush.bf16.msra.mxu0 %v5011
  %5126 = vmatpush.bf16.msra.mxu0 %v5009
  %5127 = vmatpush.bf16.msra.mxu0 %v5007
  %5128 = vmatpush.bf16.msra.mxu0 %v5005
  %5129 = vmatpush.bf16.msra.mxu0 %v5003
  %5130 = vmatpush.bf16.msra.mxu0 %v5001
  %5131 = vmatpush.bf16.msra.mxu0 %v4999
  %5132 = vmatpush.bf16.msra.mxu0 %v4997
  %5133 = vmatmul.bf16.gmra.mxu0 %v1000
  %v5134 = vpop.f32.mrf.mxu0
  %v5135 = vadd.f32 %v5122, %v5134
  %v5136 = vpop.f32.mrf.mxu0
  %5137 = vdwg.mxu0
  %v5186 = vunpack.c.l.b16 %v849
  %v5187 = vunpack.c.h.b16 %v849
  %v5188 = vunpack.c.l.b16 %v850
  %v5189 = vunpack.c.h.b16 %v850
  %v5190 = vunpack.c.l.b16 %v851
  %v5191 = vunpack.c.h.b16 %v851
  %v5192 = vunpack.c.l.b16 %v852
  %v5193 = vunpack.c.h.b16 %v852
  %v5194 = vunpack.c.l.b16 %v853
  %v5195 = vunpack.c.h.b16 %v853
  %v5196 = vunpack.c.l.b16 %v854
  %v5197 = vunpack.c.h.b16 %v854
  %v5198 = vunpack.c.l.b16 %v855
  %v5199 = vunpack.c.h.b16 %v855
  %v5200 = vunpack.c.l.b16 %v856
  %v5201 = vunpack.c.h.b16 %v856
  %v5202 = vunpack.c.l.b16 %v857
  %v5203 = vunpack.c.h.b16 %v857
  %v5204 = vunpack.c.l.b16 %v858
  %v5205 = vunpack.c.h.b16 %v858
  %v5206 = vunpack.c.l.b16 %v859
  %v5207 = vunpack.c.h.b16 %v859
  %v5208 = vunpack.c.l.b16 %v860
  %v5209 = vunpack.c.h.b16 %v860
  %v5210 = vunpack.c.l.b16 %v861
  %v5211 = vunpack.c.h.b16 %v861
  %v5212 = vunpack.c.l.b16 %v862
  %v5213 = vunpack.c.h.b16 %v862
  %v5214 = vunpack.c.l.b16 %v863
  %v5215 = vunpack.c.h.b16 %v863
  %v5216 = vunpack.c.l.b16 %v864
  %v5217 = vunpack.c.h.b16 %v864
  %v5218 = vunpack.c.l.b16 %v865
  %v5219 = vunpack.c.h.b16 %v865
  %v5220 = vunpack.c.l.b16 %v866
  %v5221 = vunpack.c.h.b16 %v866
  %v5222 = vunpack.c.l.b16 %v867
  %v5223 = vunpack.c.h.b16 %v867
  %v5224 = vunpack.c.l.b16 %v868
  %v5225 = vunpack.c.h.b16 %v868
  %v5226 = vunpack.c.l.b16 %v869
  %v5227 = vunpack.c.h.b16 %v869
  %v5228 = vunpack.c.l.b16 %v870
  %v5229 = vunpack.c.h.b16 %v870
  %v5230 = vunpack.c.l.b16 %v871
  %v5231 = vunpack.c.h.b16 %v871
  %v5232 = vunpack.c.l.b16 %v872
  %v5233 = vunpack.c.h.b16 %v872
  %v5234 = vunpack.c.l.b16 %v873
  %v5235 = vunpack.c.h.b16 %v873
  %v5236 = vunpack.c.l.b16 %v874
  %v5237 = vunpack.c.h.b16 %v874
  %v5238 = vunpack.c.l.b16 %v875
  %v5239 = vunpack.c.h.b16 %v875
  %v5240 = vunpack.c.l.b16 %v876
  %v5241 = vunpack.c.h.b16 %v876
  %v5242 = vunpack.c.l.b16 %v877
  %v5243 = vunpack.c.h.b16 %v877
  %v5244 = vunpack.c.l.b16 %v878
  %v5245 = vunpack.c.h.b16 %v878
  %v5246 = vunpack.c.l.b16 %v879
  %v5247 = vunpack.c.h.b16 %v879
  %v5248 = vunpack.c.l.b16 %v880
  %v5249 = vunpack.c.h.b16 %v880
  %v5250 = vunpack.c.l.b16 %v881
  %v5251 = vunpack.c.h.b16 %v881
  %v5252 = vunpack.c.l.b16 %v882
  %v5253 = vunpack.c.h.b16 %v882
  %v5254 = vunpack.c.l.b16 %v883
  %v5255 = vunpack.c.h.b16 %v883
  %v5256 = vunpack.c.l.b16 %v884
  %v5257 = vunpack.c.h.b16 %v884
  %v5258 = vunpack.c.l.b16 %v885
  %v5259 = vunpack.c.h.b16 %v885
  %v5260 = vunpack.c.l.b16 %v886
  %v5261 = vunpack.c.h.b16 %v886
  %v5262 = vunpack.c.l.b16 %v887
  %v5263 = vunpack.c.h.b16 %v887
  %v5264 = vunpack.c.l.b16 %v888
  %v5265 = vunpack.c.h.b16 %v888
  %v5266 = vunpack.c.l.b16 %v889
  %v5267 = vunpack.c.h.b16 %v889
  %v5268 = vunpack.c.l.b16 %v890
  %v5269 = vunpack.c.h.b16 %v890
  %v5270 = vunpack.c.l.b16 %v891
  %v5271 = vunpack.c.h.b16 %v891
  %v5272 = vunpack.c.l.b16 %v892
  %v5273 = vunpack.c.h.b16 %v892
  %v5274 = vunpack.c.l.b16 %v893
  %v5275 = vunpack.c.h.b16 %v893
  %v5276 = vunpack.c.l.b16 %v894
  %v5277 = vunpack.c.h.b16 %v894
  %v5278 = vunpack.c.l.b16 %v895
  %v5279 = vunpack.c.h.b16 %v895
  %v5280 = vunpack.c.l.b16 %v896
  %v5281 = vunpack.c.h.b16 %v896
  %v5282 = vpack.c.b16 %v5188, %v5186
  %v5283 = vpack.c.b16 %v5189, %v5187
  %v5284 = vpack.c.b16 %v5192, %v5190
  %v5285 = vpack.c.b16 %v5193, %v5191
  %v5286 = vpack.c.b16 %v5196, %v5194
  %v5287 = vpack.c.b16 %v5197, %v5195
  %v5288 = vpack.c.b16 %v5200, %v5198
  %v5289 = vpack.c.b16 %v5201, %v5199
  %v5290 = vpack.c.b16 %v5204, %v5202
  %v5291 = vpack.c.b16 %v5205, %v5203
  %v5292 = vpack.c.b16 %v5208, %v5206
  %v5293 = vpack.c.b16 %v5209, %v5207
  %v5294 = vpack.c.b16 %v5212, %v5210
  %v5295 = vpack.c.b16 %v5213, %v5211
  %v5296 = vpack.c.b16 %v5216, %v5214
  %v5297 = vpack.c.b16 %v5217, %v5215
  %v5298 = vpack.c.b16 %v5220, %v5218
  %v5299 = vpack.c.b16 %v5221, %v5219
  %v5300 = vpack.c.b16 %v5224, %v5222
  %v5301 = vpack.c.b16 %v5225, %v5223
  %v5302 = vpack.c.b16 %v5228, %v5226
  %v5303 = vpack.c.b16 %v5229, %v5227
  %v5304 = vpack.c.b16 %v5232, %v5230
  %v5305 = vpack.c.b16 %v5233, %v5231
  %v5306 = vpack.c.b16 %v5236, %v5234
  %v5307 = vpack.c.b16 %v5237, %v5235
  %v5308 = vpack.c.b16 %v5240, %v5238
  %v5309 = vpack.c.b16 %v5241, %v5239
  %v5310 = vpack.c.b16 %v5244, %v5242
  %v5311 = vpack.c.b16 %v5245, %v5243
  %v5312 = vpack.c.b16 %v5248, %v5246
  %v5313 = vpack.c.b16 %v5249, %v5247
  %v5314 = vpack.c.b16 %v5252, %v5250
  %v5315 = vpack.c.b16 %v5253, %v5251
  %v5316 = vpack.c.b16 %v5256, %v5254
  %v5317 = vpack.c.b16 %v5257, %v5255
  %v5318 = vpack.c.b16 %v5260, %v5258
  %v5319 = vpack.c.b16 %v5261, %v5259
  %v5320 = vpack.c.b16 %v5264, %v5262
  %v5321 = vpack.c.b16 %v5265, %v5263
  %v5322 = vpack.c.b16 %v5268, %v5266
  %v5323 = vpack.c.b16 %v5269, %v5267
  %v5324 = vpack.c.b16 %v5272, %v5270
  %v5325 = vpack.c.b16 %v5273, %v5271
  %v5326 = vpack.c.b16 %v5276, %v5274
  %v5327 = vpack.c.b16 %v5277, %v5275
  %v5328 = vpack.c.b16 %v5280, %v5278
  %v5329 = vpack.c.b16 %v5281, %v5279
  %5378 = vmatpush.bf16.msra.mxu0 %v5296
  %5379 = vmatpush.bf16.msra.mxu0 %v5294
  %5380 = vmatpush.bf16.msra.mxu0 %v5292
  %5381 = vmatpush.bf16.msra.mxu0 %v5290
  %5382 = vmatpush.bf16.msra.mxu0 %v5288
  %5383 = vmatpush.bf16.msra.mxu0 %v5286
  %5384 = vmatpush.bf16.msra.mxu0 %v5284
  %5385 = vmatpush.bf16.msra.mxu0 %v5282
  %5386 = vmatmul.bf16.gmra.mxu0 %v998
  %v5387 = vpop.f32.mrf.mxu0
  %v5388 = vadd.f32 0.0, %v5387
  %v5389 = vpop.f32.mrf.mxu0
  %5390 = vdwg.mxu0
  %5391 = vmatpush.bf16.msra.mxu0 %v5312
  %5392 = vmatpush.bf16.msra.mxu0 %v5310
  %5393 = vmatpush.bf16.msra.mxu0 %v5308
  %5394 = vmatpush.bf16.msra.mxu0 %v5306
  %5395 = vmatpush.bf16.msra.mxu0 %v5304
  %5396 = vmatpush.bf16.msra.mxu0 %v5302
  %5397 = vmatpush.bf16.msra.mxu0 %v5300
  %5398 = vmatpush.bf16.msra.mxu0 %v5298
  %5399 = vmatmul.bf16.gmra.mxu0 %v999
  %v5400 = vpop.f32.mrf.mxu0
  %v5401 = vadd.f32 %v5388, %v5400
  %v5402 = vpop.f32.mrf.mxu0
  %5403 = vdwg.mxu0
  %5404 = vmatpush.bf16.msra.mxu0 %v5328
  %5405 = vmatpush.bf16.msra.mxu0 %v5326
  %5406 = vmatpush.bf16.msra.mxu0 %v5324
  %5407 = vmatpush.bf16.msra.mxu0 %v5322
  %5408 = vmatpush.bf16.msra.mxu0 %v5320
  %5409 = vmatpush.bf16.msra.mxu0 %v5318
  %5410 = vmatpush.bf16.msra.mxu0 %v5316
  %5411 = vmatpush.bf16.msra.mxu0 %v5314
  %5412 = vmatmul.bf16.gmra.mxu0 %v1000
  %v5413 = vpop.f32.mrf.mxu0
  %v5414 = vadd.f32 %v5401, %v5413
  %v5415 = vpop.f32.mrf.mxu0
  %5416 = vdwg.mxu0
  %5417 = vmatpush.bf16.msra.mxu0 %v5297
  %5418 = vmatpush.bf16.msra.mxu0 %v5295
  %5419 = vmatpush.bf16.msra.mxu0 %v5293
  %5420 = vmatpush.bf16.msra.mxu0 %v5291
  %5421 = vmatpush.bf16.msra.mxu0 %v5289
  %5422 = vmatpush.bf16.msra.mxu0 %v5287
  %5423 = vmatpush.bf16.msra.mxu0 %v5285
  %5424 = vmatpush.bf16.msra.mxu0 %v5283
  %5425 = vmatmul.bf16.gmra.mxu0 %v998
  %v5426 = vpop.f32.mrf.mxu0
  %v5427 = vadd.f32 0.0, %v5426
  %v5428 = vpop.f32.mrf.mxu0
  %5429 = vdwg.mxu0
  %5430 = vmatpush.bf16.msra.mxu0 %v5313
  %5431 = vmatpush.bf16.msra.mxu0 %v5311
  %5432 = vmatpush.bf16.msra.mxu0 %v5309
  %5433 = vmatpush.bf16.msra.mxu0 %v5307
  %5434 = vmatpush.bf16.msra.mxu0 %v5305
  %5435 = vmatpush.bf16.msra.mxu0 %v5303
  %5436 = vmatpush.bf16.msra.mxu0 %v5301
  %5437 = vmatpush.bf16.msra.mxu0 %v5299
  %5438 = vmatmul.bf16.gmra.mxu0 %v999
  %v5439 = vpop.f32.mrf.mxu0
  %v5440 = vadd.f32 %v5427, %v5439
  %v5441 = vpop.f32.mrf.mxu0
  %5442 = vdwg.mxu0
  %5443 = vmatpush.bf16.msra.mxu0 %v5329
  %5444 = vmatpush.bf16.msra.mxu0 %v5327
  %5445 = vmatpush.bf16.msra.mxu0 %v5325
  %5446 = vmatpush.bf16.msra.mxu0 %v5323
  %5447 = vmatpush.bf16.msra.mxu0 %v5321
  %5448 = vmatpush.bf16.msra.mxu0 %v5319
  %5449 = vmatpush.bf16.msra.mxu0 %v5317
  %5450 = vmatpush.bf16.msra.mxu0 %v5315
  %5451 = vmatmul.bf16.gmra.mxu0 %v1000
  %v5452 = vpop.f32.mrf.mxu0
  %v5453 = vadd.f32 %v5440, %v5452
  %v5454 = vpop.f32.mrf.mxu0
  %5455 = vdwg.mxu0
  %v5504 = vunpack.c.l.b16 %v897
  %v5505 = vunpack.c.h.b16 %v897
  %v5506 = vunpack.c.l.b16 %v898
  %v5507 = vunpack.c.h.b16 %v898
  %v5508 = vunpack.c.l.b16 %v899
  %v5509 = vunpack.c.h.b16 %v899
  %v5510 = vunpack.c.l.b16 %v900
  %v5511 = vunpack.c.h.b16 %v900
  %v5512 = vunpack.c.l.b16 %v901
  %v5513 = vunpack.c.h.b16 %v901
  %v5514 = vunpack.c.l.b16 %v902
  %v5515 = vunpack.c.h.b16 %v902
  %v5516 = vunpack.c.l.b16 %v903
  %v5517 = vunpack.c.h.b16 %v903
  %v5518 = vunpack.c.l.b16 %v904
  %v5519 = vunpack.c.h.b16 %v904
  %v5520 = vunpack.c.l.b16 %v905
  %v5521 = vunpack.c.h.b16 %v905
  %v5522 = vunpack.c.l.b16 %v906
  %v5523 = vunpack.c.h.b16 %v906
  %v5524 = vunpack.c.l.b16 %v907
  %v5525 = vunpack.c.h.b16 %v907
  %v5526 = vunpack.c.l.b16 %v908
  %v5527 = vunpack.c.h.b16 %v908
  %v5528 = vunpack.c.l.b16 %v909
  %v5529 = vunpack.c.h.b16 %v909
  %v5530 = vunpack.c.l.b16 %v910
  %v5531 = vunpack.c.h.b16 %v910
  %v5532 = vunpack.c.l.b16 %v911
  %v5533 = vunpack.c.h.b16 %v911
  %v5534 = vunpack.c.l.b16 %v912
  %v5535 = vunpack.c.h.b16 %v912
  %v5536 = vunpack.c.l.b16 %v913
  %v5537 = vunpack.c.h.b16 %v913
  %v5538 = vunpack.c.l.b16 %v914
  %v5539 = vunpack.c.h.b16 %v914
  %v5540 = vunpack.c.l.b16 %v915
  %v5541 = vunpack.c.h.b16 %v915
  %v5542 = vunpack.c.l.b16 %v916
  %v5543 = vunpack.c.h.b16 %v916
  %v5544 = vunpack.c.l.b16 %v917
  %v5545 = vunpack.c.h.b16 %v917
  %v5546 = vunpack.c.l.b16 %v918
  %v5547 = vunpack.c.h.b16 %v918
  %v5548 = vunpack.c.l.b16 %v919
  %v5549 = vunpack.c.h.b16 %v919
  %v5550 = vunpack.c.l.b16 %v920
  %v5551 = vunpack.c.h.b16 %v920
  %v5552 = vunpack.c.l.b16 %v921
  %v5553 = vunpack.c.h.b16 %v921
  %v5554 = vunpack.c.l.b16 %v922
  %v5555 = vunpack.c.h.b16 %v922
  %v5556 = vunpack.c.l.b16 %v923
  %v5557 = vunpack.c.h.b16 %v923
  %v5558 = vunpack.c.l.b16 %v924
  %v5559 = vunpack.c.h.b16 %v924
  %v5560 = vunpack.c.l.b16 %v925
  %v5561 = vunpack.c.h.b16 %v925
  %v5562 = vunpack.c.l.b16 %v926
  %v5563 = vunpack.c.h.b16 %v926
  %v5564 = vunpack.c.l.b16 %v927
  %v5565 = vunpack.c.h.b16 %v927
  %v5566 = vunpack.c.l.b16 %v928
  %v5567 = vunpack.c.h.b16 %v928
  %v5568 = vunpack.c.l.b16 %v929
  %v5569 = vunpack.c.h.b16 %v929
  %v5570 = vunpack.c.l.b16 %v930
  %v5571 = vunpack.c.h.b16 %v930
  %v5572 = vunpack.c.l.b16 %v931
  %v5573 = vunpack.c.h.b16 %v931
  %v5574 = vunpack.c.l.b16 %v932
  %v5575 = vunpack.c.h.b16 %v932
  %v5576 = vunpack.c.l.b16 %v933
  %v5577 = vunpack.c.h.b16 %v933
  %v5578 = vunpack.c.l.b16 %v934
  %v5579 = vunpack.c.h.b16 %v934
  %v5580 = vunpack.c.l.b16 %v935
  %v5581 = vunpack.c.h.b16 %v935
  %v5582 = vunpack.c.l.b16 %v936
  %v5583 = vunpack.c.h.b16 %v936
  %v5584 = vunpack.c.l.b16 %v937
  %v5585 = vunpack.c.h.b16 %v937
  %v5586 = vunpack.c.l.b16 %v938
  %v5587 = vunpack.c.h.b16 %v938
  %v5588 = vunpack.c.l.b16 %v939
  %v5589 = vunpack.c.h.b16 %v939
  %v5590 = vunpack.c.l.b16 %v940
  %v5591 = vunpack.c.h.b16 %v940
  %v5592 = vunpack.c.l.b16 %v941
  %v5593 = vunpack.c.h.b16 %v941
  %v5594 = vunpack.c.l.b16 %v942
  %v5595 = vunpack.c.h.b16 %v942
  %v5596 = vunpack.c.l.b16 %v943
  %v5597 = vunpack.c.h.b16 %v943
  %v5598 = vunpack.c.l.b16 %v944
  %v5599 = vunpack.c.h.b16 %v944
  %v5600 = vpack.c.b16 %v5506, %v5504
  %v5601 = vpack.c.b16 %v5507, %v5505
  %v5602 = vpack.c.b16 %v5510, %v5508
  %v5603 = vpack.c.b16 %v5511, %v5509
  %v5604 = vpack.c.b16 %v5514, %v5512
  %v5605 = vpack.c.b16 %v5515, %v5513
  %v5606 = vpack.c.b16 %v5518, %v5516
  %v5607 = vpack.c.b16 %v5519, %v5517
  %v5608 = vpack.c.b16 %v5522, %v5520
  %v5609 = vpack.c.b16 %v5523, %v5521
  %v5610 = vpack.c.b16 %v5526, %v5524
  %v5611 = vpack.c.b16 %v5527, %v5525
  %v5612 = vpack.c.b16 %v5530, %v5528
  %v5613 = vpack.c.b16 %v5531, %v5529
  %v5614 = vpack.c.b16 %v5534, %v5532
  %v5615 = vpack.c.b16 %v5535, %v5533
  %v5616 = vpack.c.b16 %v5538, %v5536
  %v5617 = vpack.c.b16 %v5539, %v5537
  %v5618 = vpack.c.b16 %v5542, %v5540
  %v5619 = vpack.c.b16 %v5543, %v5541
  %v5620 = vpack.c.b16 %v5546, %v5544
  %v5621 = vpack.c.b16 %v5547, %v5545
  %v5622 = vpack.c.b16 %v5550, %v5548
  %v5623 = vpack.c.b16 %v5551, %v5549
  %v5624 = vpack.c.b16 %v5554, %v5552
  %v5625 = vpack.c.b16 %v5555, %v5553
  %v5626 = vpack.c.b16 %v5558, %v5556
  %v5627 = vpack.c.b16 %v5559, %v5557
  %v5628 = vpack.c.b16 %v5562, %v5560
  %v5629 = vpack.c.b16 %v5563, %v5561
  %v5630 = vpack.c.b16 %v5566, %v5564
  %v5631 = vpack.c.b16 %v5567, %v5565
  %v5632 = vpack.c.b16 %v5570, %v5568
  %v5633 = vpack.c.b16 %v5571, %v5569
  %v5634 = vpack.c.b16 %v5574, %v5572
  %v5635 = vpack.c.b16 %v5575, %v5573
  %v5636 = vpack.c.b16 %v5578, %v5576
  %v5637 = vpack.c.b16 %v5579, %v5577
  %v5638 = vpack.c.b16 %v5582, %v5580
  %v5639 = vpack.c.b16 %v5583, %v5581
  %v5640 = vpack.c.b16 %v5586, %v5584
  %v5641 = vpack.c.b16 %v5587, %v5585
  %v5642 = vpack.c.b16 %v5590, %v5588
  %v5643 = vpack.c.b16 %v5591, %v5589
  %v5644 = vpack.c.b16 %v5594, %v5592
  %v5645 = vpack.c.b16 %v5595, %v5593
  %v5646 = vpack.c.b16 %v5598, %v5596
  %v5647 = vpack.c.b16 %v5599, %v5597
  %5696 = vmatpush.bf16.msra.mxu0 %v5614
  %5697 = vmatpush.bf16.msra.mxu0 %v5612
  %5698 = vmatpush.bf16.msra.mxu0 %v5610
  %5699 = vmatpush.bf16.msra.mxu0 %v5608
  %5700 = vmatpush.bf16.msra.mxu0 %v5606
  %5701 = vmatpush.bf16.msra.mxu0 %v5604
  %5702 = vmatpush.bf16.msra.mxu0 %v5602
  %5703 = vmatpush.bf16.msra.mxu0 %v5600
  %5704 = vmatmul.bf16.gmra.mxu0 %v998
  %v5705 = vpop.f32.mrf.mxu0
  %v5706 = vadd.f32 0.0, %v5705
  %v5707 = vpop.f32.mrf.mxu0
  %5708 = vdwg.mxu0
  %5709 = vmatpush.bf16.msra.mxu0 %v5630
  %5710 = vmatpush.bf16.msra.mxu0 %v5628
  %5711 = vmatpush.bf16.msra.mxu0 %v5626
  %5712 = vmatpush.bf16.msra.mxu0 %v5624
  %5713 = vmatpush.bf16.msra.mxu0 %v5622
  %5714 = vmatpush.bf16.msra.mxu0 %v5620
  %5715 = vmatpush.bf16.msra.mxu0 %v5618
  %5716 = vmatpush.bf16.msra.mxu0 %v5616
  %5717 = vmatmul.bf16.gmra.mxu0 %v999
  %v5718 = vpop.f32.mrf.mxu0
  %v5719 = vadd.f32 %v5706, %v5718
  %v5720 = vpop.f32.mrf.mxu0
  %5721 = vdwg.mxu0
  %5722 = vmatpush.bf16.msra.mxu0 %v5646
  %5723 = vmatpush.bf16.msra.mxu0 %v5644
  %5724 = vmatpush.bf16.msra.mxu0 %v5642
  %5725 = vmatpush.bf16.msra.mxu0 %v5640
  %5726 = vmatpush.bf16.msra.mxu0 %v5638
  %5727 = vmatpush.bf16.msra.mxu0 %v5636
  %5728 = vmatpush.bf16.msra.mxu0 %v5634
  %5729 = vmatpush.bf16.msra.mxu0 %v5632
  %5730 = vmatmul.bf16.gmra.mxu0 %v1000
  %v5731 = vpop.f32.mrf.mxu0
  %v5732 = vadd.f32 %v5719, %v5731
  %v5733 = vpop.f32.mrf.mxu0
  %5734 = vdwg.mxu0
  %5735 = vmatpush.bf16.msra.mxu0 %v5615
  %5736 = vmatpush.bf16.msra.mxu0 %v5613
  %5737 = vmatpush.bf16.msra.mxu0 %v5611
  %5738 = vmatpush.bf16.msra.mxu0 %v5609
  %5739 = vmatpush.bf16.msra.mxu0 %v5607
  %5740 = vmatpush.bf16.msra.mxu0 %v5605
  %5741 = vmatpush.bf16.msra.mxu0 %v5603
  %5742 = vmatpush.bf16.msra.mxu0 %v5601
  %5743 = vmatmul.bf16.gmra.mxu0 %v998
  %v5744 = vpop.f32.mrf.mxu0
  %v5745 = vadd.f32 0.0, %v5744
  %v5746 = vpop.f32.mrf.mxu0
  %5747 = vdwg.mxu0
  %5748 = vmatpush.bf16.msra.mxu0 %v5631
  %5749 = vmatpush.bf16.msra.mxu0 %v5629
  %5750 = vmatpush.bf16.msra.mxu0 %v5627
  %5751 = vmatpush.bf16.msra.mxu0 %v5625
  %5752 = vmatpush.bf16.msra.mxu0 %v5623
  %5753 = vmatpush.bf16.msra.mxu0 %v5621
  %5754 = vmatpush.bf16.msra.mxu0 %v5619
  %5755 = vmatpush.bf16.msra.mxu0 %v5617
  %5756 = vmatmul.bf16.gmra.mxu0 %v999
  %v5757 = vpop.f32.mrf.mxu0
  %v5758 = vadd.f32 %v5745, %v5757
  %v5759 = vpop.f32.mrf.mxu0
  %5760 = vdwg.mxu0
  %5761 = vmatpush.bf16.msra.mxu0 %v5647
  %5762 = vmatpush.bf16.msra.mxu0 %v5645
  %5763 = vmatpush.bf16.msra.mxu0 %v5643
  %5764 = vmatpush.bf16.msra.mxu0 %v5641
  %5765 = vmatpush.bf16.msra.mxu0 %v5639
  %5766 = vmatpush.bf16.msra.mxu0 %v5637
  %5767 = vmatpush.bf16.msra.mxu0 %v5635
  %5768 = vmatpush.bf16.msra.mxu0 %v5633
  %5769 = vmatmul.bf16.gmra.mxu0 %v1000
  %v5770 = vpop.f32.mrf.mxu0
  %v5771 = vadd.f32 %v5758, %v5770
  %v5772 = vpop.f32.mrf.mxu0
  %5773 = vdwg.mxu0
  %v5822 = vunpack.c.l.b16 %v945
  %v5823 = vunpack.c.h.b16 %v945
  %v5824 = vunpack.c.l.b16 %v946
  %v5825 = vunpack.c.h.b16 %v946
  %v5826 = vunpack.c.l.b16 %v947
  %v5827 = vunpack.c.h.b16 %v947
  %v5828 = vunpack.c.l.b16 %v948
  %v5829 = vunpack.c.h.b16 %v948
  %v5830 = vunpack.c.l.b16 %v949
  %v5831 = vunpack.c.h.b16 %v949
  %v5832 = vunpack.c.l.b16 %v950
  %v5833 = vunpack.c.h.b16 %v950
  %v5834 = vunpack.c.l.b16 %v951
  %v5835 = vunpack.c.h.b16 %v951
  %v5836 = vunpack.c.l.b16 %v952
  %v5837 = vunpack.c.h.b16 %v952
  %v5838 = vunpack.c.l.b16 %v953
  %v5839 = vunpack.c.h.b16 %v953
  %v5840 = vunpack.c.l.b16 %v954
  %v5841 = vunpack.c.h.b16 %v954
  %v5842 = vunpack.c.l.b16 %v955
  %v5843 = vunpack.c.h.b16 %v955
  %v5844 = vunpack.c.l.b16 %v956
  %v5845 = vunpack.c.h.b16 %v956
  %v5846 = vunpack.c.l.b16 %v957
  %v5847 = vunpack.c.h.b16 %v957
  %v5848 = vunpack.c.l.b16 %v958
  %v5849 = vunpack.c.h.b16 %v958
  %v5850 = vunpack.c.l.b16 %v959
  %v5851 = vunpack.c.h.b16 %v959
  %v5852 = vunpack.c.l.b16 %v960
  %v5853 = vunpack.c.h.b16 %v960
  %v5854 = vunpack.c.l.b16 %v961
  %v5855 = vunpack.c.h.b16 %v961
  %v5856 = vunpack.c.l.b16 %v962
  %v5857 = vunpack.c.h.b16 %v962
  %v5858 = vunpack.c.l.b16 %v963
  %v5859 = vunpack.c.h.b16 %v963
  %v5860 = vunpack.c.l.b16 %v964
  %v5861 = vunpack.c.h.b16 %v964
  %v5862 = vunpack.c.l.b16 %v965
  %v5863 = vunpack.c.h.b16 %v965
  %v5864 = vunpack.c.l.b16 %v966
  %v5865 = vunpack.c.h.b16 %v966
  %v5866 = vunpack.c.l.b16 %v967
  %v5867 = vunpack.c.h.b16 %v967
  %v5868 = vunpack.c.l.b16 %v968
  %v5869 = vunpack.c.h.b16 %v968
  %v5870 = vunpack.c.l.b16 %v969
  %v5871 = vunpack.c.h.b16 %v969
  %v5872 = vunpack.c.l.b16 %v970
  %v5873 = vunpack.c.h.b16 %v970
  %v5874 = vunpack.c.l.b16 %v971
  %v5875 = vunpack.c.h.b16 %v971
  %v5876 = vunpack.c.l.b16 %v972
  %v5877 = vunpack.c.h.b16 %v972
  %v5878 = vunpack.c.l.b16 %v973
  %v5879 = vunpack.c.h.b16 %v973
  %v5880 = vunpack.c.l.b16 %v974
  %v5881 = vunpack.c.h.b16 %v974
  %v5882 = vunpack.c.l.b16 %v975
  %v5883 = vunpack.c.h.b16 %v975
  %v5884 = vunpack.c.l.b16 %v976
  %v5885 = vunpack.c.h.b16 %v976
  %v5886 = vunpack.c.l.b16 %v977
  %v5887 = vunpack.c.h.b16 %v977
  %v5888 = vunpack.c.l.b16 %v978
  %v5889 = vunpack.c.h.b16 %v978
  %v5890 = vunpack.c.l.b16 %v979
  %v5891 = vunpack.c.h.b16 %v979
  %v5892 = vunpack.c.l.b16 %v980
  %v5893 = vunpack.c.h.b16 %v980
  %v5894 = vunpack.c.l.b16 %v981
  %v5895 = vunpack.c.h.b16 %v981
  %v5896 = vunpack.c.l.b16 %v982
  %v5897 = vunpack.c.h.b16 %v982
  %v5898 = vunpack.c.l.b16 %v983
  %v5899 = vunpack.c.h.b16 %v983
  %v5900 = vunpack.c.l.b16 %v984
  %v5901 = vunpack.c.h.b16 %v984
  %v5902 = vunpack.c.l.b16 %v985
  %v5903 = vunpack.c.h.b16 %v985
  %v5904 = vunpack.c.l.b16 %v986
  %v5905 = vunpack.c.h.b16 %v986
  %v5906 = vunpack.c.l.b16 %v987
  %v5907 = vunpack.c.h.b16 %v987
  %v5908 = vunpack.c.l.b16 %v988
  %v5909 = vunpack.c.h.b16 %v988
  %v5910 = vunpack.c.l.b16 %v989
  %v5911 = vunpack.c.h.b16 %v989
  %v5912 = vunpack.c.l.b16 %v990
  %v5913 = vunpack.c.h.b16 %v990
  %v5914 = vunpack.c.l.b16 %v991
  %v5915 = vunpack.c.h.b16 %v991
  %v5916 = vunpack.c.l.b16 %v992
  %v5917 = vunpack.c.h.b16 %v992
  %v5918 = vpack.c.b16 %v5824, %v5822
  %v5919 = vpack.c.b16 %v5825, %v5823
  %v5920 = vpack.c.b16 %v5828, %v5826
  %v5921 = vpack.c.b16 %v5829, %v5827
  %v5922 = vpack.c.b16 %v5832, %v5830
  %v5923 = vpack.c.b16 %v5833, %v5831
  %v5924 = vpack.c.b16 %v5836, %v5834
  %v5925 = vpack.c.b16 %v5837, %v5835
  %v5926 = vpack.c.b16 %v5840, %v5838
  %v5927 = vpack.c.b16 %v5841, %v5839
  %v5928 = vpack.c.b16 %v5844, %v5842
  %v5929 = vpack.c.b16 %v5845, %v5843
  %v5930 = vpack.c.b16 %v5848, %v5846
  %v5931 = vpack.c.b16 %v5849, %v5847
  %v5932 = vpack.c.b16 %v5852, %v5850
  %v5933 = vpack.c.b16 %v5853, %v5851
  %v5934 = vpack.c.b16 %v5856, %v5854
  %v5935 = vpack.c.b16 %v5857, %v5855
  %v5936 = vpack.c.b16 %v5860, %v5858
  %v5937 = vpack.c.b16 %v5861, %v5859
  %v5938 = vpack.c.b16 %v5864, %v5862
  %v5939 = vpack.c.b16 %v5865, %v5863
  %v5940 = vpack.c.b16 %v5868, %v5866
  %v5941 = vpack.c.b16 %v5869, %v5867
  %v5942 = vpack.c.b16 %v5872, %v5870
  %v5943 = vpack.c.b16 %v5873, %v5871
  %v5944 = vpack.c.b16 %v5876, %v5874
  %v5945 = vpack.c.b16 %v5877, %v5875
  %v5946 = vpack.c.b16 %v5880, %v5878
  %v5947 = vpack.c.b16 %v5881, %v5879
  %v5948 = vpack.c.b16 %v5884, %v5882
  %v5949 = vpack.c.b16 %v5885, %v5883
  %v5950 = vpack.c.b16 %v5888, %v5886
  %v5951 = vpack.c.b16 %v5889, %v5887
  %v5952 = vpack.c.b16 %v5892, %v5890
  %v5953 = vpack.c.b16 %v5893, %v5891
  %v5954 = vpack.c.b16 %v5896, %v5894
  %v5955 = vpack.c.b16 %v5897, %v5895
  %v5956 = vpack.c.b16 %v5900, %v5898
  %v5957 = vpack.c.b16 %v5901, %v5899
  %v5958 = vpack.c.b16 %v5904, %v5902
  %v5959 = vpack.c.b16 %v5905, %v5903
  %v5960 = vpack.c.b16 %v5908, %v5906
  %v5961 = vpack.c.b16 %v5909, %v5907
  %v5962 = vpack.c.b16 %v5912, %v5910
  %v5963 = vpack.c.b16 %v5913, %v5911
  %v5964 = vpack.c.b16 %v5916, %v5914
  %v5965 = vpack.c.b16 %v5917, %v5915
  %6014 = vmatpush.bf16.msra.mxu0 %v5932
  %6015 = vmatpush.bf16.msra.mxu0 %v5930
  %6016 = vmatpush.bf16.msra.mxu0 %v5928
  %6017 = vmatpush.bf16.msra.mxu0 %v5926
  %6018 = vmatpush.bf16.msra.mxu0 %v5924
  %6019 = vmatpush.bf16.msra.mxu0 %v5922
  %6020 = vmatpush.bf16.msra.mxu0 %v5920
  %6021 = vmatpush.bf16.msra.mxu0 %v5918
  %6022 = vmatmul.bf16.gmra.mxu0 %v998
  %v6023 = vpop.f32.mrf.mxu0
  %v6024 = vadd.f32 0.0, %v6023
  %v6025 = vpop.f32.mrf.mxu0
  %6026 = vdwg.mxu0
  %6027 = vmatpush.bf16.msra.mxu0 %v5948
  %6028 = vmatpush.bf16.msra.mxu0 %v5946
  %6029 = vmatpush.bf16.msra.mxu0 %v5944
  %6030 = vmatpush.bf16.msra.mxu0 %v5942
  %6031 = vmatpush.bf16.msra.mxu0 %v5940
  %6032 = vmatpush.bf16.msra.mxu0 %v5938
  %6033 = vmatpush.bf16.msra.mxu0 %v5936
  %6034 = vmatpush.bf16.msra.mxu0 %v5934
  %6035 = vmatmul.bf16.gmra.mxu0 %v999
  %v6036 = vpop.f32.mrf.mxu0
  %v6037 = vadd.f32 %v6024, %v6036
  %v6038 = vpop.f32.mrf.mxu0
  %6039 = vdwg.mxu0
  %6040 = vmatpush.bf16.msra.mxu0 %v5964
  %6041 = vmatpush.bf16.msra.mxu0 %v5962
  %6042 = vmatpush.bf16.msra.mxu0 %v5960
  %6043 = vmatpush.bf16.msra.mxu0 %v5958
  %6044 = vmatpush.bf16.msra.mxu0 %v5956
  %6045 = vmatpush.bf16.msra.mxu0 %v5954
  %6046 = vmatpush.bf16.msra.mxu0 %v5952
  %6047 = vmatpush.bf16.msra.mxu0 %v5950
  %6048 = vmatmul.bf16.gmra.mxu0 %v1000
  %v6049 = vpop.f32.mrf.mxu0
  %v6050 = vadd.f32 %v6037, %v6049
  %v6051 = vpop.f32.mrf.mxu0
  %6052 = vdwg.mxu0
  %6053 = vmatpush.bf16.msra.mxu0 %v5933
  %6054 = vmatpush.bf16.msra.mxu0 %v5931
  %6055 = vmatpush.bf16.msra.mxu0 %v5929
  %6056 = vmatpush.bf16.msra.mxu0 %v5927
  %6057 = vmatpush.bf16.msra.mxu0 %v5925
  %6058 = vmatpush.bf16.msra.mxu0 %v5923
  %6059 = vmatpush.bf16.msra.mxu0 %v5921
  %6060 = vmatpush.bf16.msra.mxu0 %v5919
  %6061 = vmatmul.bf16.gmra.mxu0 %v998
  %v6062 = vpop.f32.mrf.mxu0
  %v6063 = vadd.f32 0.0, %v6062
  %v6064 = vpop.f32.mrf.mxu0
  %6065 = vdwg.mxu0
  %6066 = vmatpush.bf16.msra.mxu0 %v5949
  %6067 = vmatpush.bf16.msra.mxu0 %v5947
  %6068 = vmatpush.bf16.msra.mxu0 %v5945
  %6069 = vmatpush.bf16.msra.mxu0 %v5943
  %6070 = vmatpush.bf16.msra.mxu0 %v5941
  %6071 = vmatpush.bf16.msra.mxu0 %v5939
  %6072 = vmatpush.bf16.msra.mxu0 %v5937
  %6073 = vmatpush.bf16.msra.mxu0 %v5935
  %6074 = vmatmul.bf16.gmra.mxu0 %v999
  %v6075 = vpop.f32.mrf.mxu0
  %v6076 = vadd.f32 %v6063, %v6075
  %v6077 = vpop.f32.mrf.mxu0
  %6078 = vdwg.mxu0
  %6079 = vmatpush.bf16.msra.mxu0 %v5965
  %6080 = vmatpush.bf16.msra.mxu0 %v5963
  %6081 = vmatpush.bf16.msra.mxu0 %v5961
  %6082 = vmatpush.bf16.msra.mxu0 %v5959
  %6083 = vmatpush.bf16.msra.mxu0 %v5957
  %6084 = vmatpush.bf16.msra.mxu0 %v5955
  %6085 = vmatpush.bf16.msra.mxu0 %v5953
  %6086 = vmatpush.bf16.msra.mxu0 %v5951
  %6087 = vmatmul.bf16.gmra.mxu0 %v1000
  %v6088 = vpop.f32.mrf.mxu0
  %v6089 = vadd.f32 %v6076, %v6088
  %v6090 = vpop.f32.mrf.mxu0
  %6091 = vdwg.mxu0
  %v6092 = vld [vmem:[%s4] sm:$0x3]
  %v6093 = vld [vmem:[%s5] sm:$0x3]
  %vm6094 = vcmask 1041408
  %v6095 = vsel %vm6094, %v1280, 0.0
  %v6096 = vsel %vm6094, %v1598, 0.0
  %v6097 = vadd.f32 %v6095, %v6096
  %v6098 = vsel %vm6094, %v1916, 0.0
  %v6099 = vadd.f32 %v6097, %v6098
  %v6100 = vsel %vm6094, %v2234, 0.0
  %v6101 = vadd.f32 %v6099, %v6100
  %v6102 = vsel %vm6094, %v2552, 0.0
  %v6103 = vadd.f32 %v6101, %v6102
  %v6104 = vsel %vm6094, %v2870, 0.0
  %v6105 = vadd.f32 %v6103, %v6104
  %v6106 = vsel %vm6094, %v3188, 0.0
  %v6107 = vadd.f32 %v6105, %v6106
  %v6108 = vsel %vm6094, %v3506, 0.0
  %v6109 = vadd.f32 %v6107, %v6108
  %v6110 = vsel %vm6094, %v3824, 0.0
  %v6111 = vadd.f32 %v6109, %v6110
  %v6112 = vsel %vm6094, %v4142, 0.0
  %v6113 = vadd.f32 %v6111, %v6112
  %v6114 = vsel %vm6094, %v4460, 0.0
  %v6115 = vadd.f32 %v6113, %v6114
  %v6116 = vsel %vm6094, %v4778, 0.0
  %v6117 = vadd.f32 %v6115, %v6116
  %v6118 = vsel %vm6094, %v5096, 0.0
  %v6119 = vadd.f32 %v6117, %v6118
  %v6120 = vsel %vm6094, %v5414, 0.0
  %v6121 = vadd.f32 %v6119, %v6120
  %v6122 = vsel %vm6094, %v5732, 0.0
  %v6123 = vadd.f32 %v6121, %v6122
  %v6124 = vsel %vm6094, %v6050, 0.0
  %v6125 = vadd.f32 %v6123, %v6124
  %vm6126 = vcmask 517120
  %v6127 = vsel %vm6126, %v1319, 0.0
  %v6128 = vsel %vm6126, %v1637, 0.0
  %v6129 = vadd.f32 %v6127, %v6128
  %v6130 = vsel %vm6126, %v1955, 0.0
  %v6131 = vadd.f32 %v6129, %v6130
  %v6132 = vsel %vm6126, %v2273, 0.0
  %v6133 = vadd.f32 %v6131, %v6132
  %v6134 = vsel %vm6126, %v2591, 0.0
  %v6135 = vadd.f32 %v6133, %v6134
  %v6136 = vsel %vm6126, %v2909, 0.0
  %v6137 = vadd.f32 %v6135, %v6136
  %v6138 = vsel %vm6126, %v3227, 0.0
  %v6139 = vadd.f32 %v6137, %v6138
  %v6140 = vsel %vm6126, %v3545, 0.0
  %v6141 = vadd.f32 %v6139, %v6140
  %v6142 = vsel %vm6126, %v3863, 0.0
  %v6143 = vadd.f32 %v6141, %v6142
  %v6144 = vsel %vm6126, %v4181, 0.0
  %v6145 = vadd.f32 %v6143, %v6144
  %v6146 = vsel %vm6126, %v4499, 0.0
  %v6147 = vadd.f32 %v6145, %v6146
  %v6148 = vsel %vm6126, %v4817, 0.0
  %v6149 = vadd.f32 %v6147, %v6148
  %v6150 = vsel %vm6126, %v5135, 0.0
  %v6151 = vadd.f32 %v6149, %v6150
  %v6152 = vsel %vm6126, %v5453, 0.0
  %v6153 = vadd.f32 %v6151, %v6152
  %v6154 = vsel %vm6126, %v5771, 0.0
  %v6155 = vadd.f32 %v6153, %v6154
  %v6156 = vsel %vm6126, %v6089, 0.0
  %v6157 = vadd.f32 %v6155, %v6156
  %v6158 = vrcp.pop 16.0
  %v6159 = vmul.f32 16.0, %v6158
  %v6160 = vsub.f32 1.0, %v6159
  %v6161 = vmul.f32 %v6158, %v6160
  %v6162 = vadd.f32 %v6158, %v6161
  %vm6163 = vweird.f32 %v6158
  %v6164 = vsel %vm6163, %v6158, %v6162
  %v6165 = vmul.f32 %v6125, %v6164
  %v6166 = vmul.f32 %v6157, %v6164
  %v6167 = vsel %vm6094, %v6165, 0.0
  %v6168 = vrot.slane %v6167, 4
  %v6169 = vadd.f32 %v6167, %v6168
  %v6170 = vrot.slane %v6169, 2
  %v6171 = vadd.f32 %v6169, %v6170
  %v6172 = vrot.slane %v6171, 1
  %v6173 = vadd.f32 %v6171, %v6172
  %v6174 = vsel %vm6126, %v6166, 0.0
  %v6175 = vrot.slane %v6174, 4
  %v6176 = vadd.f32 %v6174, %v6175
  %v6177 = vrot.slane %v6176, 2
  %v6178 = vadd.f32 %v6176, %v6177
  %v6179 = vrot.slane %v6178, 1
  %v6180 = vadd.f32 %v6178, %v6179
  %v6181 = vrcp.pop 2.0
  %v6182 = vmul.f32 2.0, %v6181
  %v6183 = vsub.f32 1.0, %v6182
  %v6184 = vmul.f32 %v6181, %v6183
  %v6185 = vadd.f32 %v6181, %v6184
  %vm6186 = vweird.f32 %v6181
  %v6187 = vsel %vm6186, %v6181, %v6185
  %v6188 = vmul.f32 %v6173, %v6187
  %v6189 = vmul.f32 %v6180, %v6187
  %v6190 = vsub.f32 %v1280, %v6188
  %v6191 = vsub.f32 %v1319, %v6189
  %v6192 = vsub.f32 %v1598, %v6188
  %v6193 = vsub.f32 %v1637, %v6189
  %v6194 = vsub.f32 %v1916, %v6188
  %v6195 = vsub.f32 %v1955, %v6189
  %v6196 = vsub.f32 %v2234, %v6188
  %v6197 = vsub.f32 %v2273, %v6189
  %v6198 = vsub.f32 %v2552, %v6188
  %v6199 = vsub.f32 %v2591, %v6189
  %v6200 = vsub.f32 %v2870, %v6188
  %v6201 = vsub.f32 %v2909, %v6189
  %v6202 = vsub.f32 %v3188, %v6188
  %v6203 = vsub.f32 %v3227, %v6189
  %v6204 = vsub.f32 %v3506, %v6188
  %v6205 = vsub.f32 %v3545, %v6189
  %v6206 = vsub.f32 %v3824, %v6188
  %v6207 = vsub.f32 %v3863, %v6189
  %v6208 = vsub.f32 %v4142, %v6188
  %v6209 = vsub.f32 %v4181, %v6189
  %v6210 = vsub.f32 %v4460, %v6188
  %v6211 = vsub.f32 %v4499, %v6189
  %v6212 = vsub.f32 %v4778, %v6188
  %v6213 = vsub.f32 %v4817, %v6189
  %v6214 = vsub.f32 %v5096, %v6188
  %v6215 = vsub.f32 %v5135, %v6189
  %v6216 = vsub.f32 %v5414, %v6188
  %v6217 = vsub.f32 %v5453, %v6189
  %v6218 = vsub.f32 %v5732, %v6188
  %v6219 = vsub.f32 %v5771, %v6189
  %v6220 = vsub.f32 %v6050, %v6188
  %v6221 = vsub.f32 %v6089, %v6189
  %v6222 = vmul.f32 %v6190, %v6190
  %v6223 = vmul.f32 %v6191, %v6191
  %v6224 = vmul.f32 %v6192, %v6192
  %v6225 = vmul.f32 %v6193, %v6193
  %v6226 = vmul.f32 %v6194, %v6194
  %v6227 = vmul.f32 %v6195, %v6195
  %v6228 = vmul.f32 %v6196, %v6196
  %v6229 = vmul.f32 %v6197, %v6197
  %v6230 = vmul.f32 %v6198, %v6198
  %v6231 = vmul.f32 %v6199, %v6199
  %v6232 = vmul.f32 %v6200, %v6200
  %v6233 = vmul.f32 %v6201, %v6201
  %v6234 = vmul.f32 %v6202, %v6202
  %v6235 = vmul.f32 %v6203, %v6203
  %v6236 = vmul.f32 %v6204, %v6204
  %v6237 = vmul.f32 %v6205, %v6205
  %v6238 = vmul.f32 %v6206, %v6206
  %v6239 = vmul.f32 %v6207, %v6207
  %v6240 = vmul.f32 %v6208, %v6208
  %v6241 = vmul.f32 %v6209, %v6209
  %v6242 = vmul.f32 %v6210, %v6210
  %v6243 = vmul.f32 %v6211, %v6211
  %v6244 = vmul.f32 %v6212, %v6212
  %v6245 = vmul.f32 %v6213, %v6213
  %v6246 = vmul.f32 %v6214, %v6214
  %v6247 = vmul.f32 %v6215, %v6215
  %v6248 = vmul.f32 %v6216, %v6216
  %v6249 = vmul.f32 %v6217, %v6217
  %v6250 = vmul.f32 %v6218, %v6218
  %v6251 = vmul.f32 %v6219, %v6219
  %v6252 = vmul.f32 %v6220, %v6220
  %v6253 = vmul.f32 %v6221, %v6221
  %v6254 = vsel %vm6094, %v6222, 0.0
  %v6255 = vsel %vm6094, %v6224, 0.0
  %v6256 = vadd.f32 %v6254, %v6255
  %v6257 = vsel %vm6094, %v6226, 0.0
  %v6258 = vadd.f32 %v6256, %v6257
  %v6259 = vsel %vm6094, %v6228, 0.0
  %v6260 = vadd.f32 %v6258, %v6259
  %v6261 = vsel %vm6094, %v6230, 0.0
  %v6262 = vadd.f32 %v6260, %v6261
  %v6263 = vsel %vm6094, %v6232, 0.0
  %v6264 = vadd.f32 %v6262, %v6263
  %v6265 = vsel %vm6094, %v6234, 0.0
  %v6266 = vadd.f32 %v6264, %v6265
  %v6267 = vsel %vm6094, %v6236, 0.0
  %v6268 = vadd.f32 %v6266, %v6267
  %v6269 = vsel %vm6094, %v6238, 0.0
  %v6270 = vadd.f32 %v6268, %v6269
  %v6271 = vsel %vm6094, %v6240, 0.0
  %v6272 = vadd.f32 %v6270, %v6271
  %v6273 = vsel %vm6094, %v6242, 0.0
  %v6274 = vadd.f32 %v6272, %v6273
  %v6275 = vsel %vm6094, %v6244, 0.0
  %v6276 = vadd.f32 %v6274, %v6275
  %v6277 = vsel %vm6094, %v6246, 0.0
  %v6278 = vadd.f32 %v6276, %v6277
  %v6279 = vsel %vm6094, %v6248, 0.0
  %v6280 = vadd.f32 %v6278, %v6279
  %v6281 = vsel %vm6094, %v6250, 0.0
  %v6282 = vadd.f32 %v6280, %v6281
  %v6283 = vsel %vm6094, %v6252, 0.0
  %v6284 = vadd.f32 %v6282, %v6283
  %v6285 = vsel %vm6126, %v6223, 0.0
  %v6286 = vsel %vm6126, %v6225, 0.0
  %v6287 = vadd.f32 %v6285, %v6286
  %v6288 = vsel %vm6126, %v6227, 0.0
  %v6289 = vadd.f32 %v6287, %v6288
  %v6290 = vsel %vm6126, %v6229, 0.0
  %v6291 = vadd.f32 %v6289, %v6290
  %v6292 = vsel %vm6126, %v6231, 0.0
  %v6293 = vadd.f32 %v6291, %v6292
  %v6294 = vsel %vm6126, %v6233, 0.0
  %v6295 = vadd.f32 %v6293, %v6294
  %v6296 = vsel %vm6126, %v6235, 0.0
  %v6297 = vadd.f32 %v6295, %v6296
  %v6298 = vsel %vm6126, %v6237, 0.0
  %v6299 = vadd.f32 %v6297, %v6298
  %v6300 = vsel %vm6126, %v6239, 0.0
  %v6301 = vadd.f32 %v6299, %v6300
  %v6302 = vsel %vm6126, %v6241, 0.0
  %v6303 = vadd.f32 %v6301, %v6302
  %v6304 = vsel %vm6126, %v6243, 0.0
  %v6305 = vadd.f32 %v6303, %v6304
  %v6306 = vsel %vm6126, %v6245, 0.0
  %v6307 = vadd.f32 %v6305, %v6306
  %v6308 = vsel %vm6126, %v6247, 0.0
  %v6309 = vadd.f32 %v6307, %v6308
  %v6310 = vsel %vm6126, %v6249, 0.0
  %v6311 = vadd.f32 %v6309, %v6310
  %v6312 = vsel %vm6126, %v6251, 0.0
  %v6313 = vadd.f32 %v6311, %v6312
  %v6314 = vsel %vm6126, %v6253, 0.0
  %v6315 = vadd.f32 %v6313, %v6314
  %v6316 = vmul.f32 %v6284, %v6164
  %v6317 = vmul.f32 %v6315, %v6164
  %v6318 = vsel %vm6094, %v6316, 0.0
  %v6319 = vrot.slane %v6318, 4
  %v6320 = vadd.f32 %v6318, %v6319
  %v6321 = vrot.slane %v6320, 2
  %v6322 = vadd.f32 %v6320, %v6321
  %v6323 = vrot.slane %v6322, 1
  %v6324 = vadd.f32 %v6322, %v6323
  %v6325 = vsel %vm6126, %v6317, 0.0
  %v6326 = vrot.slane %v6325, 4
  %v6327 = vadd.f32 %v6325, %v6326
  %v6328 = vrot.slane %v6327, 2
  %v6329 = vadd.f32 %v6327, %v6328
  %v6330 = vrot.slane %v6329, 1
  %v6331 = vadd.f32 %v6329, %v6330
  %v6332 = vmul.f32 %v6324, %v6187
  %v6333 = vmul.f32 %v6331, %v6187
  %v6334 = vadd.f32 %v6332, 1e-05
  %v6335 = vadd.f32 %v6333, 1e-05
  %v6336 = vrsqrt.pop %v6334
  %v6337 = vmul.f32 %v6336, %v6334
  %v6338 = vmul.f32 %v6337, %v6336
  %v6339 = vmul.f32 0.5, %v6338
  %v6340 = vsub.f32 1.5, %v6339
  %v6341 = vmul.f32 %v6336, %v6340
  %vm6342 = vweird.f32 %v6334
  %vm6343 = vweird.f32 %v6336
  %vm6344 = vmor %vm6342, %vm6343
  %v6345 = vsel %vm6344, %v6336, %v6341
  %v6346 = vrsqrt.pop %v6335
  %v6347 = vmul.f32 %v6346, %v6335
  %v6348 = vmul.f32 %v6347, %v6346
  %v6349 = vmul.f32 0.5, %v6348
  %v6350 = vsub.f32 1.5, %v6349
  %v6351 = vmul.f32 %v6346, %v6350
  %vm6352 = vweird.f32 %v6335
  %vm6353 = vweird.f32 %v6346
  %vm6354 = vmor %vm6352, %vm6353
  %v6355 = vsel %vm6354, %v6346, %v6351
  %v6356 = vmul.f32 %v6190, %v6345
  %v6357 = vmul.f32 %v6191, %v6355
  %v6358 = vmul.f32 %v6192, %v6345
  %v6359 = vmul.f32 %v6193, %v6355
  %v6360 = vmul.f32 %v6194, %v6345
  %v6361 = vmul.f32 %v6195, %v6355
  %v6362 = vmul.f32 %v6196, %v6345
  %v6363 = vmul.f32 %v6197, %v6355
  %v6364 = vmul.f32 %v6198, %v6345
  %v6365 = vmul.f32 %v6199, %v6355
  %v6366 = vmul.f32 %v6200, %v6345
  %v6367 = vmul.f32 %v6201, %v6355
  %v6368 = vmul.f32 %v6202, %v6345
  %v6369 = vmul.f32 %v6203, %v6355
  %v6370 = vmul.f32 %v6204, %v6345
  %v6371 = vmul.f32 %v6205, %v6355
  %v6372 = vmul.f32 %v6206, %v6345
  %v6373 = vmul.f32 %v6207, %v6355
  %v6374 = vmul.f32 %v6208, %v6345
  %v6375 = vmul.f32 %v6209, %v6355
  %v6376 = vmul.f32 %v6210, %v6345
  %v6377 = vmul.f32 %v6211, %v6355
  %v6378 = vmul.f32 %v6212, %v6345
  %v6379 = vmul.f32 %v6213, %v6355
  %v6380 = vmul.f32 %v6214, %v6345
  %v6381 = vmul.f32 %v6215, %v6355
  %v6382 = vmul.f32 %v6216, %v6345
  %v6383 = vmul.f32 %v6217, %v6355
  %v6384 = vmul.f32 %v6218, %v6345
  %v6385 = vmul.f32 %v6219, %v6355
  %v6386 = vmul.f32 %v6220, %v6345
  %v6387 = vmul.f32 %v6221, %v6355
  %v6389 = vperm.slane %v6092, 0
  %v6390 = vperm.slane %v6092, 1
  %v6393 = vmul.f32 %v6356, %v6389
  %v6394 = vmul.f32 %v6357, %v6390
  %v6395 = vmul.f32 %v6358, %v6389
  %v6396 = vmul.f32 %v6359, %v6390
  %v6397 = vmul.f32 %v6360, %v6389
  %v6398 = vmul.f32 %v6361, %v6390
  %v6399 = vmul.f32 %v6362, %v6389
  %v6400 = vmul.f32 %v6363, %v6390
  %v6401 = vmul.f32 %v6364, %v6389
  %v6402 = vmul.f32 %v6365, %v6390
  %v6403 = vmul.f32 %v6366, %v6389
  %v6404 = vmul.f32 %v6367, %v6390
  %v6405 = vmul.f32 %v6368, %v6389
  %v6406 = vmul.f32 %v6369, %v6390
  %v6407 = vmul.f32 %v6370, %v6389
  %v6408 = vmul.f32 %v6371, %v6390
  %v6409 = vmul.f32 %v6372, %v6389
  %v6410 = vmul.f32 %v6373, %v6390
  %v6411 = vmul.f32 %v6374, %v6389
  %v6412 = vmul.f32 %v6375, %v6390
  %v6413 = vmul.f32 %v6376, %v6389
  %v6414 = vmul.f32 %v6377, %v6390
  %v6415 = vmul.f32 %v6378, %v6389
  %v6416 = vmul.f32 %v6379, %v6390
  %v6417 = vmul.f32 %v6380, %v6389
  %v6418 = vmul.f32 %v6381, %v6390
  %v6419 = vmul.f32 %v6382, %v6389
  %v6420 = vmul.f32 %v6383, %v6390
  %v6421 = vmul.f32 %v6384, %v6389
  %v6422 = vmul.f32 %v6385, %v6390
  %v6423 = vmul.f32 %v6386, %v6389
  %v6424 = vmul.f32 %v6387, %v6390
  %v6426 = vperm.slane %v6093, 0
  %v6427 = vperm.slane %v6093, 1
  %v6430 = vadd.f32 %v6393, %v6426
  %v6431 = vadd.f32 %v6394, %v6427
  %v6432 = vadd.f32 %v6395, %v6426
  %v6433 = vadd.f32 %v6396, %v6427
  %v6434 = vadd.f32 %v6397, %v6426
  %v6435 = vadd.f32 %v6398, %v6427
  %v6436 = vadd.f32 %v6399, %v6426
  %v6437 = vadd.f32 %v6400, %v6427
  %v6438 = vadd.f32 %v6401, %v6426
  %v6439 = vadd.f32 %v6402, %v6427
  %v6440 = vadd.f32 %v6403, %v6426
  %v6441 = vadd.f32 %v6404, %v6427
  %v6442 = vadd.f32 %v6405, %v6426
  %v6443 = vadd.f32 %v6406, %v6427
  %v6444 = vadd.f32 %v6407, %v6426
  %v6445 = vadd.f32 %v6408, %v6427
  %v6446 = vadd.f32 %v6409, %v6426
  %v6447 = vadd.f32 %v6410, %v6427
  %v6448 = vadd.f32 %v6411, %v6426
  %v6449 = vadd.f32 %v6412, %v6427
  %v6450 = vadd.f32 %v6413, %v6426
  %v6451 = vadd.f32 %v6414, %v6427
  %v6452 = vadd.f32 %v6415, %v6426
  %v6453 = vadd.f32 %v6416, %v6427
  %v6454 = vadd.f32 %v6417, %v6426
  %v6455 = vadd.f32 %v6418, %v6427
  %v6456 = vadd.f32 %v6419, %v6426
  %v6457 = vadd.f32 %v6420, %v6427
  %v6458 = vadd.f32 %v6421, %v6426
  %v6459 = vadd.f32 %v6422, %v6427
  %v6460 = vadd.f32 %v6423, %v6426
  %v6461 = vadd.f32 %v6424, %v6427
  %v6462 = vmax.f32 %v6430, 0.0
  %v6463 = vmax.f32 %v6431, 0.0
  %v6464 = vmax.f32 %v6432, 0.0
  %v6465 = vmax.f32 %v6433, 0.0
  %v6466 = vmax.f32 %v6434, 0.0
  %v6467 = vmax.f32 %v6435, 0.0
  %v6468 = vmax.f32 %v6436, 0.0
  %v6469 = vmax.f32 %v6437, 0.0
  %v6470 = vmax.f32 %v6438, 0.0
  %v6471 = vmax.f32 %v6439, 0.0
  %v6472 = vmax.f32 %v6440, 0.0
  %v6473 = vmax.f32 %v6441, 0.0
  %v6474 = vmax.f32 %v6442, 0.0
  %v6475 = vmax.f32 %v6443, 0.0
  %v6476 = vmax.f32 %v6444, 0.0
  %v6477 = vmax.f32 %v6445, 0.0
  %v6478 = vmax.f32 %v6446, 0.0
  %v6479 = vmax.f32 %v6447, 0.0
  %v6480 = vmax.f32 %v6448, 0.0
  %v6481 = vmax.f32 %v6449, 0.0
  %v6482 = vmax.f32 %v6450, 0.0
  %v6483 = vmax.f32 %v6451, 0.0
  %v6484 = vmax.f32 %v6452, 0.0
  %v6485 = vmax.f32 %v6453, 0.0
  %v6486 = vmax.f32 %v6454, 0.0
  %v6487 = vmax.f32 %v6455, 0.0
  %v6488 = vmax.f32 %v6456, 0.0
  %v6489 = vmax.f32 %v6457, 0.0
  %v6490 = vmax.f32 %v6458, 0.0
  %v6491 = vmax.f32 %v6459, 0.0
  %v6492 = vmax.f32 %v6460, 0.0
  %v6493 = vmax.f32 %v6461, 0.0
  %v6494 = vpack.c.bf16 %v6463, %v6462
  %v6495 = vpack.c.bf16 %v6465, %v6464
  %v6496 = vpack.c.bf16 %v6467, %v6466
  %v6497 = vpack.c.bf16 %v6469, %v6468
  %v6498 = vpack.c.bf16 %v6471, %v6470
  %v6499 = vpack.c.bf16 %v6473, %v6472
  %v6500 = vpack.c.bf16 %v6475, %v6474
  %v6501 = vpack.c.bf16 %v6477, %v6476
  %v6502 = vpack.c.bf16 %v6479, %v6478
  %v6503 = vpack.c.bf16 %v6481, %v6480
  %v6504 = vpack.c.bf16 %v6483, %v6482
  %v6505 = vpack.c.bf16 %v6485, %v6484
  %v6506 = vpack.c.bf16 %v6487, %v6486
  %v6507 = vpack.c.bf16 %v6489, %v6488
  %v6508 = vpack.c.bf16 %v6491, %v6490
  %v6509 = vpack.c.bf16 %v6493, %v6492
  %v6526 = vrot.slane %v6494, 3
  %v6527 = vrot.slane %v6495, 3
  %v6528 = vrot.slane %v6496, 3
  %v6529 = vrot.slane %v6497, 3
  %v6530 = vrot.slane %v6498, 3
  %v6531 = vrot.slane %v6499, 3
  %v6532 = vrot.slane %v6500, 3
  %v6533 = vrot.slane %v6501, 3
  %v6534 = vrot.slane %v6502, 3
  %v6535 = vrot.slane %v6503, 3
  %v6536 = vrot.slane %v6504, 3
  %v6537 = vrot.slane %v6505, 3
  %v6538 = vrot.slane %v6506, 3
  %v6539 = vrot.slane %v6507, 3
  %v6540 = vrot.slane %v6508, 3
  %v6541 = vrot.slane %v6509, 3
  %vm6542 = vcmask 1040384
  %v6545 = vsel %vm6542, %v6494, %v6526
  %v6548 = vsel %vm6542, %v6495, %v6527
  %v6551 = vsel %vm6542, %v6496, %v6528
  %v6554 = vsel %vm6542, %v6497, %v6529
  %v6557 = vsel %vm6542, %v6498, %v6530
  %v6560 = vsel %vm6542, %v6499, %v6531
  %v6563 = vsel %vm6542, %v6500, %v6532
  %v6566 = vsel %vm6542, %v6501, %v6533
  %v6569 = vsel %vm6542, %v6502, %v6534
  %v6572 = vsel %vm6542, %v6503, %v6535
  %v6575 = vsel %vm6542, %v6504, %v6536
  %v6578 = vsel %vm6542, %v6505, %v6537
  %v6581 = vsel %vm6542, %v6506, %v6538
  %v6584 = vsel %vm6542, %v6507, %v6539
  %v6587 = vsel %vm6542, %v6508, %v6540
  %v6590 = vsel %vm6542, %v6509, %v6541
  %vm6607 = vcmask 517121
  %vm6608 = vmor %vm6607, %vm6542
  %6609 = vst.msk [vmem:[%s6] sm:$0x3] %vm6608, %v6545
  %6610 = vst.msk [vmem:[%s6 + $0x2] sm:$0x3] %vm6608, %v6548
  %6611 = vst.msk [vmem:[%s6 + $0x4] sm:$0x3] %vm6608, %v6551
  %6612 = vst.msk [vmem:[%s6 + $0x6] sm:$0x3] %vm6608, %v6554
  %6613 = vst.msk [vmem:[%s6 + $0x8] sm:$0x3] %vm6608, %v6557
  %6614 = vst.msk [vmem:[%s6 + $0xa] sm:$0x3] %vm6608, %v6560
  %6615 = vst.msk [vmem:[%s6 + $0xc] sm:$0x3] %vm6608, %v6563
  %6616 = vst.msk [vmem:[%s6 + $0xe] sm:$0x3] %vm6608, %v6566
  %6617 = vst.msk [vmem:[%s6 + $0x10] sm:$0x3] %vm6608, %v6569
  %6618 = vst.msk [vmem:[%s6 + $0x12] sm:$0x3] %vm6608, %v6572
  %6619 = vst.msk [vmem:[%s6 + $0x14] sm:$0x3] %vm6608, %v6575
  %6620 = vst.msk [vmem:[%s6 + $0x16] sm:$0x3] %vm6608, %v6578
  %6621 = vst.msk [vmem:[%s6 + $0x18] sm:$0x3] %vm6608, %v6581
  %6622 = vst.msk [vmem:[%s6 + $0x1a] sm:$0x3] %vm6608, %v6584
  %6623 = vst.msk [vmem:[%s6 + $0x1c] sm:$0x3] %vm6608, %v6587
  %6624 = vst.msk [vmem:[%s6 + $0x1e] sm:$0x3] %vm6608, %v6590
  // Predicated region
  $region26: #{generator_32_forward.4} parent=0 // pred_check
    _
  $region27: #{generator_32_forward.4} parent=0 // pred_check_branch
    %6626 = sbr.rel (0) target = $region29
  $region28: #{generator_32_forward.4} parent=0 // pred_region
    _
  $region29: #{generator_32_forward.4} parent=0 // pred_fallthru
    _
  // Predicated region
  $region30: #{generator_32_forward.4} parent=0 // pred_check
    _
  $region31: #{generator_32_forward.4} parent=0 // pred_check_branch
    %6628 = sbr.rel (0) target = $region33
  $region32: #{generator_32_forward.4} parent=0 // pred_region
    _
  $region33: #{generator_32_forward.4} parent=0 // pred_fallthru
    _

// kernel: generator_32_forward.6
$region0: #{generator_32_forward.6}
  #allocation0 [shape = 'u32[]', space=smem, size = 0x4, offset = 0x4, fixed_abs, tag = 'smem constant byte address 0x4 - core index']
  #allocation1 [shape = 'u32[72,128]{1,0:T(1,128)}', space=vmem, size = 0x9000, scoped, tag = 'internal scratch']
  %s0 = inlined_call_operand.vmem [shape: bf16[4,128,384], index: 0, kind: input, shape index: {}]
  %s1 = inlined_call_operand.vmem [shape: bf16[4,384,48], index: 1, kind: input, shape index: {}]
  %s2 = inlined_call_operand.vmem [shape: f32[1,48], index: 2, kind: input, shape index: {}]
  %s3 = inlined_call_operand.vmem [shape: f32[1,48], index: 3, kind: input, shape index: {}]
  %s4 = inlined_call_operand.vmem [shape: bf16[4,128,48], index: 4, kind: output, shape index: {}]
  %s5 = sld [smem:[#allocation0]]
  $region26: #{generator_32_forward.6} parent=0
    _
  %s7 = ssub.s32 1, %s5
  %s8 = scalar_select 0, %s7, %s5
  // Predicated region
  $region2: #{generator_32_forward.6} parent=0 // pred_check
    _
  $region3: #{generator_32_forward.6} parent=0 // pred_check_branch
    %10 = sbr.rel (0) target = $region5
  $region4: #{generator_32_forward.6} parent=0 // pred_region
    _
  $region5: #{generator_32_forward.6} parent=0 // pred_fallthru
    _
  // Predicated region
  $region6: #{generator_32_forward.6} parent=0 // pred_check
    _
  $region7: #{generator_32_forward.6} parent=0 // pred_check_branch
    %12 = sbr.rel (0) target = $region9
  $region8: #{generator_32_forward.6} parent=0 // pred_region
    _
  $region9: #{generator_32_forward.6} parent=0 // pred_fallthru
    _
  // Predicated region
  $region10: #{generator_32_forward.6} parent=0 // pred_check
    _
  $region11: #{generator_32_forward.6} parent=0 // pred_check_branch
    %14 = sbr.rel (0) target = $region13
  $region12: #{generator_32_forward.6} parent=0 // pred_region
    _
  $region13: #{generator_32_forward.6} parent=0 // pred_fallthru
    _
  // Predicated region
  $region14: #{generator_32_forward.6} parent=0 // pred_check
    _
  $region15: #{generator_32_forward.6} parent=0 // pred_check_branch
    %16 = sbr.rel (0) target = $region17
  $region16: #{generator_32_forward.6} parent=0 // pred_region
    _
  $region17: #{generator_32_forward.6} parent=0 // pred_fallthru
    _
  %v17 = vld [vmem:[%s0] sm:$0xff]
  %v18 = vld [vmem:[%s0 + $0x8] sm:$0xf]
  %v19 = vld [vmem:[%s0 + $0xc] sm:$0xff]
  %v20 = vld [vmem:[%s0 + $0x14] sm:$0xf]
  %v21 = vld [vmem:[%s0 + $0x18] sm:$0xff]
  %v22 = vld [vmem:[%s0 + $0x20] sm:$0xf]
  %v23 = vld [vmem:[%s0 + $0x24] sm:$0xff]
  %v24 = vld [vmem:[%s0 + $0x2c] sm:$0xf]
  %v25 = vld [vmem:[%s0 + $0x30] sm:$0xff]
  %v26 = vld [vmem:[%s0 + $0x38] sm:$0xf]
  %v27 = vld [vmem:[%s0 + $0x3c] sm:$0xff]
  %v28 = vld [vmem:[%s0 + $0x44] sm:$0xf]
  %v29 = vld [vmem:[%s0 + $0x48] sm:$0xff]
  %v30 = vld [vmem:[%s0 + $0x50] sm:$0xf]
  %v31 = vld [vmem:[%s0 + $0x54] sm:$0xff]
  %v32 = vld [vmem:[%s0 + $0x5c] sm:$0xf]
  %v33 = vld [vmem:[%s0 + $0x60] sm:$0xff]
  %v34 = vld [vmem:[%s0 + $0x68] sm:$0xf]
  %v35 = vld [vmem:[%s0 + $0x6c] sm:$0xff]
  %v36 = vld [vmem:[%s0 + $0x74] sm:$0xf]
  %v37 = vld [vmem:[%s0 + $0x78] sm:$0xff]
  %v38 = vld [vmem:[%s0 + $0x80] sm:$0xf]
  %v39 = vld [vmem:[%s0 + $0x84] sm:$0xff]
  %v40 = vld [vmem:[%s0 + $0x8c] sm:$0xf]
  %v41 = vld [vmem:[%s0 + $0x90] sm:$0xff]
  %v42 = vld [vmem:[%s0 + $0x98] sm:$0xf]
  %v43 = vld [vmem:[%s0 + $0x9c] sm:$0xff]
  %v44 = vld [vmem:[%s0 + $0xa4] sm:$0xf]
  %v45 = vld [vmem:[%s0 + $0xa8] sm:$0xff]
  %v46 = vld [vmem:[%s0 + $0xb0] sm:$0xf]
  %v47 = vld [vmem:[%s0 + $0xb4] sm:$0xff]
  %v48 = vld [vmem:[%s0 + $0xbc] sm:$0xf]
  %v49 = vld [vmem:[%s0 + $0xc0] sm:$0xff]
  %v50 = vld [vmem:[%s0 + $0xc8] sm:$0xf]
  %v51 = vld [vmem:[%s0 + $0xcc] sm:$0xff]
  %v52 = vld [vmem:[%s0 + $0xd4] sm:$0xf]
  %v53 = vld [vmem:[%s0 + $0xd8] sm:$0xff]
  %v54 = vld [vmem:[%s0 + $0xe0] sm:$0xf]
  %v55 = vld [vmem:[%s0 + $0xe4] sm:$0xff]
  %v56 = vld [vmem:[%s0 + $0xec] sm:$0xf]
  %v57 = vld [vmem:[%s0 + $0xf0] sm:$0xff]
  %v58 = vld [vmem:[%s0 + $0xf8] sm:$0xf]
  %v59 = vld [vmem:[%s0 + $0xfc] sm:$0xff]
  %v60 = vld [vmem:[%s0 + $0x104] sm:$0xf]
  %v61 = vld [vmem:[%s0 + $0x108] sm:$0xff]
  %v62 = vld [vmem:[%s0 + $0x110] sm:$0xf]
  %v63 = vld [vmem:[%s0 + $0x114] sm:$0xff]
  %v64 = vld [vmem:[%s0 + $0x11c] sm:$0xf]
  %v65 = vld [vmem:[%s0 + $0x120] sm:$0xff]
  %v66 = vld [vmem:[%s0 + $0x128] sm:$0xf]
  %v67 = vld [vmem:[%s0 + $0x12c] sm:$0xff]
  %v68 = vld [vmem:[%s0 + $0x134] sm:$0xf]
  %v69 = vld [vmem:[%s0 + $0x138] sm:$0xff]
  %v70 = vld [vmem:[%s0 + $0x140] sm:$0xf]
  %v71 = vld [vmem:[%s0 + $0x144] sm:$0xff]
  %v72 = vld [vmem:[%s0 + $0x14c] sm:$0xf]
  %v73 = vld [vmem:[%s0 + $0x150] sm:$0xff]
  %v74 = vld [vmem:[%s0 + $0x158] sm:$0xf]
  %v75 = vld [vmem:[%s0 + $0x15c] sm:$0xff]
  %v76 = vld [vmem:[%s0 + $0x164] sm:$0xf]
  %v77 = vld [vmem:[%s0 + $0x168] sm:$0xff]
  %v78 = vld [vmem:[%s0 + $0x170] sm:$0xf]
  %v79 = vld [vmem:[%s0 + $0x174] sm:$0xff]
  %v80 = vld [vmem:[%s0 + $0x17c] sm:$0xf]
  %v81 = vld [vmem:[%s0 + $0x180] sm:$0xff]
  %v82 = vld [vmem:[%s0 + $0x188] sm:$0xf]
  %v83 = vld [vmem:[%s0 + $0x18c] sm:$0xff]
  %v84 = vld [vmem:[%s0 + $0x194] sm:$0xf]
  %v85 = vld [vmem:[%s0 + $0x198] sm:$0xff]
  %v86 = vld [vmem:[%s0 + $0x1a0] sm:$0xf]
  %v87 = vld [vmem:[%s0 + $0x1a4] sm:$0xff]
  %v88 = vld [vmem:[%s0 + $0x1ac] sm:$0xf]
  %v89 = vld [vmem:[%s0 + $0x1b0] sm:$0xff]
  %v90 = vld [vmem:[%s0 + $0x1b8] sm:$0xf]
  %v91 = vld [vmem:[%s0 + $0x1bc] sm:$0xff]
  %v92 = vld [vmem:[%s0 + $0x1c4] sm:$0xf]
  %v93 = vld [vmem:[%s0 + $0x1c8] sm:$0xff]
  %v94 = vld [vmem:[%s0 + $0x1d0] sm:$0xf]
  %v95 = vld [vmem:[%s0 + $0x1d4] sm:$0xff]
  %v96 = vld [vmem:[%s0 + $0x1dc] sm:$0xf]
  %v97 = vld [vmem:[%s0 + $0x1e0] sm:$0xff]
  %v98 = vld [vmem:[%s0 + $0x1e8] sm:$0xf]
  %v99 = vld [vmem:[%s0 + $0x1ec] sm:$0xff]
  %v100 = vld [vmem:[%s0 + $0x1f4] sm:$0xf]
  %v101 = vld [vmem:[%s0 + $0x1f8] sm:$0xff]
  %v102 = vld [vmem:[%s0 + $0x200] sm:$0xf]
  %v103 = vld [vmem:[%s0 + $0x204] sm:$0xff]
  %v104 = vld [vmem:[%s0 + $0x20c] sm:$0xf]
  %v105 = vld [vmem:[%s0 + $0x210] sm:$0xff]
  %v106 = vld [vmem:[%s0 + $0x218] sm:$0xf]
  %v107 = vld [vmem:[%s0 + $0x21c] sm:$0xff]
  %v108 = vld [vmem:[%s0 + $0x224] sm:$0xf]
  %v109 = vld [vmem:[%s0 + $0x228] sm:$0xff]
  %v110 = vld [vmem:[%s0 + $0x230] sm:$0xf]
  %v111 = vld [vmem:[%s0 + $0x234] sm:$0xff]
  %v112 = vld [vmem:[%s0 + $0x23c] sm:$0xf]
  %v113 = vld [vmem:[%s0 + $0x240] sm:$0xff]
  %v114 = vld [vmem:[%s0 + $0x248] sm:$0xf]
  %v115 = vld [vmem:[%s0 + $0x24c] sm:$0xff]
  %v116 = vld [vmem:[%s0 + $0x254] sm:$0xf]
  %v117 = vld [vmem:[%s0 + $0x258] sm:$0xff]
  %v118 = vld [vmem:[%s0 + $0x260] sm:$0xf]
  %v119 = vld [vmem:[%s0 + $0x264] sm:$0xff]
  %v120 = vld [vmem:[%s0 + $0x26c] sm:$0xf]
  %v121 = vld [vmem:[%s0 + $0x270] sm:$0xff]
  %v122 = vld [vmem:[%s0 + $0x278] sm:$0xf]
  %v123 = vld [vmem:[%s0 + $0x27c] sm:$0xff]
  %v124 = vld [vmem:[%s0 + $0x284] sm:$0xf]
  %v125 = vld [vmem:[%s0 + $0x288] sm:$0xff]
  %v126 = vld [vmem:[%s0 + $0x290] sm:$0xf]
  %v127 = vld [vmem:[%s0 + $0x294] sm:$0xff]
  %v128 = vld [vmem:[%s0 + $0x29c] sm:$0xf]
  %v129 = vld [vmem:[%s0 + $0x2a0] sm:$0xff]
  %v130 = vld [vmem:[%s0 + $0x2a8] sm:$0xf]
  %v131 = vld [vmem:[%s0 + $0x2ac] sm:$0xff]
  %v132 = vld [vmem:[%s0 + $0x2b4] sm:$0xf]
  %v133 = vld [vmem:[%s0 + $0x2b8] sm:$0xff]
  %v134 = vld [vmem:[%s0 + $0x2c0] sm:$0xf]
  %v135 = vld [vmem:[%s0 + $0x2c4] sm:$0xff]
  %v136 = vld [vmem:[%s0 + $0x2cc] sm:$0xf]
  %v137 = vld [vmem:[%s0 + $0x2d0] sm:$0xff]
  %v138 = vld [vmem:[%s0 + $0x2d8] sm:$0xf]
  %v139 = vld [vmem:[%s0 + $0x2dc] sm:$0xff]
  %v140 = vld [vmem:[%s0 + $0x2e4] sm:$0xf]
  %v141 = vld [vmem:[%s0 + $0x2e8] sm:$0xff]
  %v142 = vld [vmem:[%s0 + $0x2f0] sm:$0xf]
  %v143 = vld [vmem:[%s0 + $0x2f4] sm:$0xff]
  %v144 = vld [vmem:[%s0 + $0x2fc] sm:$0xf]
  %v145 = vld [vmem:[%s1] sm:$0xf]
  %v146 = vld [vmem:[%s1 + $0x4] sm:$0xf]
  %v147 = vld [vmem:[%s1 + $0x8] sm:$0xf]
  %v148 = vld [vmem:[%s1 + $0xc] sm:$0xf]
  %v149 = vld [vmem:[%s1 + $0x10] sm:$0xf]
  %v150 = vld [vmem:[%s1 + $0x14] sm:$0xf]
  %v151 = vld [vmem:[%s1 + $0x18] sm:$0xf]
  %v152 = vld [vmem:[%s1 + $0x1c] sm:$0xf]
  %v153 = vld [vmem:[%s1 + $0x20] sm:$0xf]
  %v154 = vld [vmem:[%s1 + $0x24] sm:$0xf]
  %v155 = vld [vmem:[%s1 + $0x28] sm:$0xf]
  %v156 = vld [vmem:[%s1 + $0x2c] sm:$0xf]
  %v157 = vld [vmem:[%s1 + $0x30] sm:$0xf]
  %v158 = vld [vmem:[%s1 + $0x34] sm:$0xf]
  %v159 = vld [vmem:[%s1 + $0x38] sm:$0xf]
  %v160 = vld [vmem:[%s1 + $0x3c] sm:$0xf]
  %v161 = vld [vmem:[%s1 + $0x40] sm:$0xf]
  %v162 = vld [vmem:[%s1 + $0x44] sm:$0xf]
  %v163 = vld [vmem:[%s1 + $0x48] sm:$0xf]
  %v164 = vld [vmem:[%s1 + $0x4c] sm:$0xf]
  %v165 = vld [vmem:[%s1 + $0x50] sm:$0xf]
  %v166 = vld [vmem:[%s1 + $0x54] sm:$0xf]
  %v167 = vld [vmem:[%s1 + $0x58] sm:$0xf]
  %v168 = vld [vmem:[%s1 + $0x5c] sm:$0xf]
  %v169 = vld [vmem:[%s1 + $0x60] sm:$0xf]
  %v170 = vld [vmem:[%s1 + $0x64] sm:$0xf]
  %v171 = vld [vmem:[%s1 + $0x68] sm:$0xf]
  %v172 = vld [vmem:[%s1 + $0x6c] sm:$0xf]
  %v173 = vld [vmem:[%s1 + $0x70] sm:$0xf]
  %v174 = vld [vmem:[%s1 + $0x74] sm:$0xf]
  %v175 = vld [vmem:[%s1 + $0x78] sm:$0xf]
  %v176 = vld [vmem:[%s1 + $0x7c] sm:$0xf]
  %v177 = vld [vmem:[%s1 + $0x80] sm:$0xf]
  %v178 = vld [vmem:[%s1 + $0x84] sm:$0xf]
  %v179 = vld [vmem:[%s1 + $0x88] sm:$0xf]
  %v180 = vld [vmem:[%s1 + $0x8c] sm:$0xf]
  %v181 = vld [vmem:[%s1 + $0x90] sm:$0xf]
  %v182 = vld [vmem:[%s1 + $0x94] sm:$0xf]
  %v183 = vld [vmem:[%s1 + $0x98] sm:$0xf]
  %v184 = vld [vmem:[%s1 + $0x9c] sm:$0xf]
  %v185 = vld [vmem:[%s1 + $0xa0] sm:$0xf]
  %v186 = vld [vmem:[%s1 + $0xa4] sm:$0xf]
  %v187 = vld [vmem:[%s1 + $0xa8] sm:$0xf]
  %v188 = vld [vmem:[%s1 + $0xac] sm:$0xf]
  %v189 = vld [vmem:[%s1 + $0xb0] sm:$0xf]
  %v190 = vld [vmem:[%s1 + $0xb4] sm:$0xf]
  %v191 = vld [vmem:[%s1 + $0xb8] sm:$0xf]
  %v192 = vld [vmem:[%s1 + $0xbc] sm:$0xf]
  %v193 = vld [vmem:[%s1 + $0xc0] sm:$0xf]
  %v194 = vld [vmem:[%s1 + $0xc4] sm:$0xf]
  %v195 = vld [vmem:[%s1 + $0xc8] sm:$0xf]
  %v196 = vld [vmem:[%s1 + $0xcc] sm:$0xf]
  %v197 = vld [vmem:[%s1 + $0xd0] sm:$0xf]
  %v198 = vld [vmem:[%s1 + $0xd4] sm:$0xf]
  %v199 = vld [vmem:[%s1 + $0xd8] sm:$0xf]
  %v200 = vld [vmem:[%s1 + $0xdc] sm:$0xf]
  %v201 = vld [vmem:[%s1 + $0xe0] sm:$0xf]
  %v202 = vld [vmem:[%s1 + $0xe4] sm:$0xf]
  %v203 = vld [vmem:[%s1 + $0xe8] sm:$0xf]
  %v204 = vld [vmem:[%s1 + $0xec] sm:$0xf]
  %v205 = vld [vmem:[%s1 + $0xf0] sm:$0xf]
  %v206 = vld [vmem:[%s1 + $0xf4] sm:$0xf]
  %v207 = vld [vmem:[%s1 + $0xf8] sm:$0xf]
  %v208 = vld [vmem:[%s1 + $0xfc] sm:$0xf]
  %v209 = vld [vmem:[%s1 + $0x100] sm:$0xf]
  %v210 = vld [vmem:[%s1 + $0x104] sm:$0xf]
  %v211 = vld [vmem:[%s1 + $0x108] sm:$0xf]
  %v212 = vld [vmem:[%s1 + $0x10c] sm:$0xf]
  %v213 = vld [vmem:[%s1 + $0x110] sm:$0xf]
  %v214 = vld [vmem:[%s1 + $0x114] sm:$0xf]
  %v215 = vld [vmem:[%s1 + $0x118] sm:$0xf]
  %v216 = vld [vmem:[%s1 + $0x11c] sm:$0xf]
  %v217 = vld [vmem:[%s1 + $0x120] sm:$0xf]
  %v218 = vld [vmem:[%s1 + $0x124] sm:$0xf]
  %v219 = vld [vmem:[%s1 + $0x128] sm:$0xf]
  %v220 = vld [vmem:[%s1 + $0x12c] sm:$0xf]
  %v221 = vld [vmem:[%s1 + $0x130] sm:$0xf]
  %v222 = vld [vmem:[%s1 + $0x134] sm:$0xf]
  %v223 = vld [vmem:[%s1 + $0x138] sm:$0xf]
  %v224 = vld [vmem:[%s1 + $0x13c] sm:$0xf]
  %v225 = vld [vmem:[%s1 + $0x140] sm:$0xf]
  %v226 = vld [vmem:[%s1 + $0x144] sm:$0xf]
  %v227 = vld [vmem:[%s1 + $0x148] sm:$0xf]
  %v228 = vld [vmem:[%s1 + $0x14c] sm:$0xf]
  %v229 = vld [vmem:[%s1 + $0x150] sm:$0xf]
  %v230 = vld [vmem:[%s1 + $0x154] sm:$0xf]
  %v231 = vld [vmem:[%s1 + $0x158] sm:$0xf]
  %v232 = vld [vmem:[%s1 + $0x15c] sm:$0xf]
  %v233 = vld [vmem:[%s1 + $0x160] sm:$0xf]
  %v234 = vld [vmem:[%s1 + $0x164] sm:$0xf]
  %v235 = vld [vmem:[%s1 + $0x168] sm:$0xf]
  %v236 = vld [vmem:[%s1 + $0x16c] sm:$0xf]
  %v237 = vld [vmem:[%s1 + $0x170] sm:$0xf]
  %v238 = vld [vmem:[%s1 + $0x174] sm:$0xf]
  %v239 = vld [vmem:[%s1 + $0x178] sm:$0xf]
  %v240 = vld [vmem:[%s1 + $0x17c] sm:$0xf]
  %v241 = vld [vmem:[%s1 + $0x180] sm:$0xf]
  %v242 = vld [vmem:[%s1 + $0x184] sm:$0xf]
  %v243 = vld [vmem:[%s1 + $0x188] sm:$0xf]
  %v244 = vld [vmem:[%s1 + $0x18c] sm:$0xf]
  %v245 = vld [vmem:[%s1 + $0x190] sm:$0xf]
  %v246 = vld [vmem:[%s1 + $0x194] sm:$0xf]
  %v247 = vld [vmem:[%s1 + $0x198] sm:$0xf]
  %v248 = vld [vmem:[%s1 + $0x19c] sm:$0xf]
  %v249 = vld [vmem:[%s1 + $0x1a0] sm:$0xf]
  %v250 = vld [vmem:[%s1 + $0x1a4] sm:$0xf]
  %v251 = vld [vmem:[%s1 + $0x1a8] sm:$0xf]
  %v252 = vld [vmem:[%s1 + $0x1ac] sm:$0xf]
  %v253 = vld [vmem:[%s1 + $0x1b0] sm:$0xf]
  %v254 = vld [vmem:[%s1 + $0x1b4] sm:$0xf]
  %v255 = vld [vmem:[%s1 + $0x1b8] sm:$0xf]
  %v256 = vld [vmem:[%s1 + $0x1bc] sm:$0xf]
  %v257 = vld [vmem:[%s1 + $0x1c0] sm:$0xf]
  %v258 = vld [vmem:[%s1 + $0x1c4] sm:$0xf]
  %v259 = vld [vmem:[%s1 + $0x1c8] sm:$0xf]
  %v260 = vld [vmem:[%s1 + $0x1cc] sm:$0xf]
  %v261 = vld [vmem:[%s1 + $0x1d0] sm:$0xf]
  %v262 = vld [vmem:[%s1 + $0x1d4] sm:$0xf]
  %v263 = vld [vmem:[%s1 + $0x1d8] sm:$0xf]
  %v264 = vld [vmem:[%s1 + $0x1dc] sm:$0xf]
  %v265 = vld [vmem:[%s1 + $0x1e0] sm:$0xf]
  %v266 = vld [vmem:[%s1 + $0x1e4] sm:$0xf]
  %v267 = vld [vmem:[%s1 + $0x1e8] sm:$0xf]
  %v268 = vld [vmem:[%s1 + $0x1ec] sm:$0xf]
  %v269 = vld [vmem:[%s1 + $0x1f0] sm:$0xf]
  %v270 = vld [vmem:[%s1 + $0x1f4] sm:$0xf]
  %v271 = vld [vmem:[%s1 + $0x1f8] sm:$0xf]
  %v272 = vld [vmem:[%s1 + $0x1fc] sm:$0xf]
  %v273 = vld [vmem:[%s1 + $0x200] sm:$0xf]
  %v274 = vld [vmem:[%s1 + $0x204] sm:$0xf]
  %v275 = vld [vmem:[%s1 + $0x208] sm:$0xf]
  %v276 = vld [vmem:[%s1 + $0x20c] sm:$0xf]
  %v277 = vld [vmem:[%s1 + $0x210] sm:$0xf]
  %v278 = vld [vmem:[%s1 + $0x214] sm:$0xf]
  %v279 = vld [vmem:[%s1 + $0x218] sm:$0xf]
  %v280 = vld [vmem:[%s1 + $0x21c] sm:$0xf]
  %v281 = vld [vmem:[%s1 + $0x220] sm:$0xf]
  %v282 = vld [vmem:[%s1 + $0x224] sm:$0xf]
  %v283 = vld [vmem:[%s1 + $0x228] sm:$0xf]
  %v284 = vld [vmem:[%s1 + $0x22c] sm:$0xf]
  %v285 = vld [vmem:[%s1 + $0x230] sm:$0xf]
  %v286 = vld [vmem:[%s1 + $0x234] sm:$0xf]
  %v287 = vld [vmem:[%s1 + $0x238] sm:$0xf]
  %v288 = vld [vmem:[%s1 + $0x23c] sm:$0xf]
  %v289 = vld [vmem:[%s1 + $0x240] sm:$0xf]
  %v290 = vld [vmem:[%s1 + $0x244] sm:$0xf]
  %v291 = vld [vmem:[%s1 + $0x248] sm:$0xf]
  %v292 = vld [vmem:[%s1 + $0x24c] sm:$0xf]
  %v293 = vld [vmem:[%s1 + $0x250] sm:$0xf]
  %v294 = vld [vmem:[%s1 + $0x254] sm:$0xf]
  %v295 = vld [vmem:[%s1 + $0x258] sm:$0xf]
  %v296 = vld [vmem:[%s1 + $0x25c] sm:$0xf]
  %v297 = vld [vmem:[%s1 + $0x260] sm:$0xf]
  %v298 = vld [vmem:[%s1 + $0x264] sm:$0xf]
  %v299 = vld [vmem:[%s1 + $0x268] sm:$0xf]
  %v300 = vld [vmem:[%s1 + $0x26c] sm:$0xf]
  %v301 = vld [vmem:[%s1 + $0x270] sm:$0xf]
  %v302 = vld [vmem:[%s1 + $0x274] sm:$0xf]
  %v303 = vld [vmem:[%s1 + $0x278] sm:$0xf]
  %v304 = vld [vmem:[%s1 + $0x27c] sm:$0xf]
  %v305 = vld [vmem:[%s1 + $0x280] sm:$0xf]
  %v306 = vld [vmem:[%s1 + $0x284] sm:$0xf]
  %v307 = vld [vmem:[%s1 + $0x288] sm:$0xf]
  %v308 = vld [vmem:[%s1 + $0x28c] sm:$0xf]
  %v309 = vld [vmem:[%s1 + $0x290] sm:$0xf]
  %v310 = vld [vmem:[%s1 + $0x294] sm:$0xf]
  %v311 = vld [vmem:[%s1 + $0x298] sm:$0xf]
  %v312 = vld [vmem:[%s1 + $0x29c] sm:$0xf]
  %v313 = vld [vmem:[%s1 + $0x2a0] sm:$0xf]
  %v314 = vld [vmem:[%s1 + $0x2a4] sm:$0xf]
  %v315 = vld [vmem:[%s1 + $0x2a8] sm:$0xf]
  %v316 = vld [vmem:[%s1 + $0x2ac] sm:$0xf]
  %v317 = vld [vmem:[%s1 + $0x2b0] sm:$0xf]
  %v318 = vld [vmem:[%s1 + $0x2b4] sm:$0xf]
  %v319 = vld [vmem:[%s1 + $0x2b8] sm:$0xf]
  %v320 = vld [vmem:[%s1 + $0x2bc] sm:$0xf]
  %v321 = vld [vmem:[%s1 + $0x2c0] sm:$0xf]
  %v322 = vld [vmem:[%s1 + $0x2c4] sm:$0xf]
  %v323 = vld [vmem:[%s1 + $0x2c8] sm:$0xf]
  %v324 = vld [vmem:[%s1 + $0x2cc] sm:$0xf]
  %v325 = vld [vmem:[%s1 + $0x2d0] sm:$0xf]
  %v326 = vld [vmem:[%s1 + $0x2d4] sm:$0xf]
  %v327 = vld [vmem:[%s1 + $0x2d8] sm:$0xf]
  %v328 = vld [vmem:[%s1 + $0x2dc] sm:$0xf]
  %v329 = vld [vmem:[%s1 + $0x2e0] sm:$0xf]
  %v330 = vld [vmem:[%s1 + $0x2e4] sm:$0xf]
  %v331 = vld [vmem:[%s1 + $0x2e8] sm:$0xf]
  %v332 = vld [vmem:[%s1 + $0x2ec] sm:$0xf]
  %v333 = vld [vmem:[%s1 + $0x2f0] sm:$0xf]
  %v334 = vld [vmem:[%s1 + $0x2f4] sm:$0xf]
  %v335 = vld [vmem:[%s1 + $0x2f8] sm:$0xf]
  %v336 = vld [vmem:[%s1 + $0x2fc] sm:$0xf]
  %v369 = vunpack.c.l.b16 %v17
  %v370 = vunpack.c.h.b16 %v17
  %v371 = vunpack.c.l.b16 %v18
  %v372 = vunpack.c.l.b16 %v19
  %v373 = vunpack.c.h.b16 %v19
  %v374 = vunpack.c.l.b16 %v20
  %v375 = vunpack.c.l.b16 %v21
  %v376 = vunpack.c.h.b16 %v21
  %v377 = vunpack.c.l.b16 %v22
  %v378 = vunpack.c.l.b16 %v23
  %v379 = vunpack.c.h.b16 %v23
  %v380 = vunpack.c.l.b16 %v24
  %v381 = vunpack.c.l.b16 %v25
  %v382 = vunpack.c.h.b16 %v25
  %v383 = vunpack.c.l.b16 %v26
  %v384 = vunpack.c.l.b16 %v27
  %v385 = vunpack.c.h.b16 %v27
  %v386 = vunpack.c.l.b16 %v28
  %v387 = vunpack.c.l.b16 %v29
  %v388 = vunpack.c.h.b16 %v29
  %v389 = vunpack.c.l.b16 %v30
  %v390 = vunpack.c.l.b16 %v31
  %v391 = vunpack.c.h.b16 %v31
  %v392 = vunpack.c.l.b16 %v32
  %v393 = vunpack.c.l.b16 %v33
  %v394 = vunpack.c.h.b16 %v33
  %v395 = vunpack.c.l.b16 %v34
  %v396 = vunpack.c.l.b16 %v35
  %v397 = vunpack.c.h.b16 %v35
  %v398 = vunpack.c.l.b16 %v36
  %v399 = vunpack.c.l.b16 %v37
  %v400 = vunpack.c.h.b16 %v37
  %v401 = vunpack.c.l.b16 %v38
  %v402 = vunpack.c.l.b16 %v39
  %v403 = vunpack.c.h.b16 %v39
  %v404 = vunpack.c.l.b16 %v40
  %v405 = vunpack.c.l.b16 %v41
  %v406 = vunpack.c.h.b16 %v41
  %v407 = vunpack.c.l.b16 %v42
  %v408 = vunpack.c.l.b16 %v43
  %v409 = vunpack.c.h.b16 %v43
  %v410 = vunpack.c.l.b16 %v44
  %v411 = vunpack.c.l.b16 %v45
  %v412 = vunpack.c.h.b16 %v45
  %v413 = vunpack.c.l.b16 %v46
  %v414 = vunpack.c.l.b16 %v47
  %v415 = vunpack.c.h.b16 %v47
  %v416 = vunpack.c.l.b16 %v48
  %v417 = vpack.c.b16 %v372, %v369
  %v418 = vpack.c.b16 %v373, %v370
  %v419 = vpack.c.b16 %v374, %v371
  %v420 = vpack.c.b16 %v378, %v375
  %v421 = vpack.c.b16 %v379, %v376
  %v422 = vpack.c.b16 %v380, %v377
  %v423 = vpack.c.b16 %v384, %v381
  %v424 = vpack.c.b16 %v385, %v382
  %v425 = vpack.c.b16 %v386, %v383
  %v426 = vpack.c.b16 %v390, %v387
  %v427 = vpack.c.b16 %v391, %v388
  %v428 = vpack.c.b16 %v392, %v389
  %v429 = vpack.c.b16 %v396, %v393
  %v430 = vpack.c.b16 %v397, %v394
  %v431 = vpack.c.b16 %v398, %v395
  %v432 = vpack.c.b16 %v402, %v399
  %v433 = vpack.c.b16 %v403, %v400
  %v434 = vpack.c.b16 %v404, %v401
  %v435 = vpack.c.b16 %v408, %v405
  %v436 = vpack.c.b16 %v409, %v406
  %v437 = vpack.c.b16 %v410, %v407
  %v438 = vpack.c.b16 %v414, %v411
  %v439 = vpack.c.b16 %v415, %v412
  %v440 = vpack.c.b16 %v416, %v413
  %v513 = vunpack.c.l.b16 %v145
  %v514 = vunpack.c.l.b16 %v146
  %v515 = vunpack.c.l.b16 %v147
  %v516 = vunpack.c.l.b16 %v148
  %v517 = vunpack.c.l.b16 %v149
  %v518 = vunpack.c.l.b16 %v150
  %v519 = vunpack.c.l.b16 %v151
  %v520 = vunpack.c.l.b16 %v152
  %v521 = vunpack.c.l.b16 %v153
  %v522 = vunpack.c.l.b16 %v154
  %v523 = vunpack.c.l.b16 %v155
  %v524 = vunpack.c.l.b16 %v156
  %v525 = vunpack.c.l.b16 %v157
  %v526 = vunpack.c.l.b16 %v158
  %v527 = vunpack.c.l.b16 %v159
  %v528 = vunpack.c.l.b16 %v160
  %v529 = vunpack.c.l.b16 %v161
  %v530 = vunpack.c.l.b16 %v162
  %v531 = vunpack.c.l.b16 %v163
  %v532 = vunpack.c.l.b16 %v164
  %v533 = vunpack.c.l.b16 %v165
  %v534 = vunpack.c.l.b16 %v166
  %v535 = vunpack.c.l.b16 %v167
  %v536 = vunpack.c.l.b16 %v168
  %v537 = vunpack.c.l.b16 %v169
  %v538 = vunpack.c.l.b16 %v170
  %v539 = vunpack.c.l.b16 %v171
  %v540 = vunpack.c.l.b16 %v172
  %v541 = vunpack.c.l.b16 %v173
  %v542 = vunpack.c.l.b16 %v174
  %v543 = vunpack.c.l.b16 %v175
  %v544 = vunpack.c.l.b16 %v176
  %v545 = vunpack.c.l.b16 %v177
  %v546 = vunpack.c.l.b16 %v178
  %v547 = vunpack.c.l.b16 %v179
  %v548 = vunpack.c.l.b16 %v180
  %v549 = vunpack.c.l.b16 %v181
  %v550 = vunpack.c.l.b16 %v182
  %v551 = vunpack.c.l.b16 %v183
  %v552 = vunpack.c.l.b16 %v184
  %v553 = vunpack.c.l.b16 %v185
  %v554 = vunpack.c.l.b16 %v186
  %v555 = vunpack.c.l.b16 %v187
  %v556 = vunpack.c.l.b16 %v188
  %v557 = vunpack.c.l.b16 %v189
  %v558 = vunpack.c.l.b16 %v190
  %v559 = vunpack.c.l.b16 %v191
  %v560 = vunpack.c.l.b16 %v192
  %v561 = vpack.c.b16 %v514, %v513
  %v562 = vpack.c.b16 %v516, %v515
  %v563 = vpack.c.b16 %v518, %v517
  %v564 = vpack.c.b16 %v520, %v519
  %v565 = vpack.c.b16 %v522, %v521
  %v566 = vpack.c.b16 %v524, %v523
  %v567 = vpack.c.b16 %v526, %v525
  %v568 = vpack.c.b16 %v528, %v527
  %v569 = vpack.c.b16 %v530, %v529
  %v570 = vpack.c.b16 %v532, %v531
  %v571 = vpack.c.b16 %v534, %v533
  %v572 = vpack.c.b16 %v536, %v535
  %v573 = vpack.c.b16 %v538, %v537
  %v574 = vpack.c.b16 %v540, %v539
  %v575 = vpack.c.b16 %v542, %v541
  %v576 = vpack.c.b16 %v544, %v543
  %v577 = vpack.c.b16 %v546, %v545
  %v578 = vpack.c.b16 %v548, %v547
  %v579 = vpack.c.b16 %v550, %v549
  %v580 = vpack.c.b16 %v552, %v551
  %v581 = vpack.c.b16 %v554, %v553
  %v582 = vpack.c.b16 %v556, %v555
  %v583 = vpack.c.b16 %v558, %v557
  %v584 = vpack.c.b16 %v560, %v559
  %609 = vmatpush.bf16.msra.mxu0 %v568
  %610 = vmatpush.bf16.msra.mxu0 %v567
  %611 = vmatpush.bf16.msra.mxu0 %v566
  %612 = vmatpush.bf16.msra.mxu0 %v565
  %613 = vmatpush.bf16.msra.mxu0 %v564
  %614 = vmatpush.bf16.msra.mxu0 %v563
  %615 = vmatpush.bf16.msra.mxu0 %v562
  %616 = vmatpush.bf16.msra.mxu0 %v561
  %617 = vmatmul.bf16.gmra.mxu0 %v417
  %v618 = vpop.f32.mrf.mxu0
  %v619 = vadd.f32 0.0, %v618
  %v620 = vpop.f32.mrf.mxu0
  %v621 = vadd.f32 0.0, %v620
  %622 = vmatmul.bf16.gmra.mxu0 %v420
  %v623 = vpop.f32.mrf.mxu0
  %v624 = vadd.f32 0.0, %v623
  %v625 = vpop.f32.mrf.mxu0
  %v626 = vadd.f32 0.0, %v625
  %627 = vmatmul.bf16.gmra.mxu0 %v423
  %v628 = vpop.f32.mrf.mxu0
  %v629 = vadd.f32 0.0, %v628
  %v630 = vpop.f32.mrf.mxu0
  %v631 = vadd.f32 0.0, %v630
  %632 = vmatmul.bf16.gmra.mxu0 %v426
  %v633 = vpop.f32.mrf.mxu0
  %v634 = vadd.f32 0.0, %v633
  %v635 = vpop.f32.mrf.mxu0
  %v636 = vadd.f32 0.0, %v635
  %637 = vmatmul.bf16.gmra.mxu0 %v429
  %v638 = vpop.f32.mrf.mxu0
  %v639 = vadd.f32 0.0, %v638
  %v640 = vpop.f32.mrf.mxu0
  %v641 = vadd.f32 0.0, %v640
  %642 = vmatmul.bf16.gmra.mxu0 %v432
  %v643 = vpop.f32.mrf.mxu0
  %v644 = vadd.f32 0.0, %v643
  %v645 = vpop.f32.mrf.mxu0
  %v646 = vadd.f32 0.0, %v645
  %647 = vmatmul.bf16.gmra.mxu0 %v435
  %v648 = vpop.f32.mrf.mxu0
  %v649 = vadd.f32 0.0, %v648
  %v650 = vpop.f32.mrf.mxu0
  %v651 = vadd.f32 0.0, %v650
  %652 = vmatmul.bf16.gmra.mxu0 %v438
  %v653 = vpop.f32.mrf.mxu0
  %v654 = vadd.f32 0.0, %v653
  %v655 = vpop.f32.mrf.mxu0
  %v656 = vadd.f32 0.0, %v655
  %657 = vdwg.mxu0
  %658 = vmatpush.bf16.msra.mxu0 %v576
  %659 = vmatpush.bf16.msra.mxu0 %v575
  %660 = vmatpush.bf16.msra.mxu0 %v574
  %661 = vmatpush.bf16.msra.mxu0 %v573
  %662 = vmatpush.bf16.msra.mxu0 %v572
  %663 = vmatpush.bf16.msra.mxu0 %v571
  %664 = vmatpush.bf16.msra.mxu0 %v570
  %665 = vmatpush.bf16.msra.mxu0 %v569
  %666 = vmatmul.bf16.gmra.mxu0 %v418
  %v667 = vpop.f32.mrf.mxu0
  %v668 = vadd.f32 %v619, %v667
  %v669 = vpop.f32.mrf.mxu0
  %v670 = vadd.f32 %v621, %v669
  %671 = vmatmul.bf16.gmra.mxu0 %v421
  %v672 = vpop.f32.mrf.mxu0
  %v673 = vadd.f32 %v624, %v672
  %v674 = vpop.f32.mrf.mxu0
  %v675 = vadd.f32 %v626, %v674
  %676 = vmatmul.bf16.gmra.mxu0 %v424
  %v677 = vpop.f32.mrf.mxu0
  %v678 = vadd.f32 %v629, %v677
  %v679 = vpop.f32.mrf.mxu0
  %v680 = vadd.f32 %v631, %v679
  %681 = vmatmul.bf16.gmra.mxu0 %v427
  %v682 = vpop.f32.mrf.mxu0
  %v683 = vadd.f32 %v634, %v682
  %v684 = vpop.f32.mrf.mxu0
  %v685 = vadd.f32 %v636, %v684
  %686 = vmatmul.bf16.gmra.mxu0 %v430
  %v687 = vpop.f32.mrf.mxu0
  %v688 = vadd.f32 %v639, %v687
  %v689 = vpop.f32.mrf.mxu0
  %v690 = vadd.f32 %v641, %v689
  %691 = vmatmul.bf16.gmra.mxu0 %v433
  %v692 = vpop.f32.mrf.mxu0
  %v693 = vadd.f32 %v644, %v692
  %v694 = vpop.f32.mrf.mxu0
  %v695 = vadd.f32 %v646, %v694
  %696 = vmatmul.bf16.gmra.mxu0 %v436
  %v697 = vpop.f32.mrf.mxu0
  %v698 = vadd.f32 %v649, %v697
  %v699 = vpop.f32.mrf.mxu0
  %v700 = vadd.f32 %v651, %v699
  %701 = vmatmul.bf16.gmra.mxu0 %v439
  %v702 = vpop.f32.mrf.mxu0
  %v703 = vadd.f32 %v654, %v702
  %v704 = vpop.f32.mrf.mxu0
  %v705 = vadd.f32 %v656, %v704
  %706 = vdwg.mxu0
  %707 = vmatpush.bf16.msra.mxu0 %v584
  %708 = vmatpush.bf16.msra.mxu0 %v583
  %709 = vmatpush.bf16.msra.mxu0 %v582
  %710 = vmatpush.bf16.msra.mxu0 %v581
  %711 = vmatpush.bf16.msra.mxu0 %v580
  %712 = vmatpush.bf16.msra.mxu0 %v579
  %713 = vmatpush.bf16.msra.mxu0 %v578
  %714 = vmatpush.bf16.msra.mxu0 %v577
  %715 = vmatmul.bf16.gmra.mxu0 %v419
  %v716 = vpop.f32.mrf.mxu0
  %v717 = vadd.f32 %v668, %v716
  %v718 = vpop.f32.mrf.mxu0
  %v719 = vadd.f32 %v670, %v718
  %720 = vmatmul.bf16.gmra.mxu0 %v422
  %v721 = vpop.f32.mrf.mxu0
  %v722 = vadd.f32 %v673, %v721
  %v723 = vpop.f32.mrf.mxu0
  %v724 = vadd.f32 %v675, %v723
  %725 = vmatmul.bf16.gmra.mxu0 %v425
  %v726 = vpop.f32.mrf.mxu0
  %v727 = vadd.f32 %v678, %v726
  %v728 = vpop.f32.mrf.mxu0
  %v729 = vadd.f32 %v680, %v728
  %730 = vmatmul.bf16.gmra.mxu0 %v428
  %v731 = vpop.f32.mrf.mxu0
  %v732 = vadd.f32 %v683, %v731
  %v733 = vpop.f32.mrf.mxu0
  %v734 = vadd.f32 %v685, %v733
  %735 = vmatmul.bf16.gmra.mxu0 %v431
  %v736 = vpop.f32.mrf.mxu0
  %v737 = vadd.f32 %v688, %v736
  %v738 = vpop.f32.mrf.mxu0
  %v739 = vadd.f32 %v690, %v738
  %740 = vmatmul.bf16.gmra.mxu0 %v434
  %v741 = vpop.f32.mrf.mxu0
  %v742 = vadd.f32 %v693, %v741
  %v743 = vpop.f32.mrf.mxu0
  %v744 = vadd.f32 %v695, %v743
  %745 = vmatmul.bf16.gmra.mxu0 %v437
  %v746 = vpop.f32.mrf.mxu0
  %v747 = vadd.f32 %v698, %v746
  %v748 = vpop.f32.mrf.mxu0
  %v749 = vadd.f32 %v700, %v748
  %750 = vmatmul.bf16.gmra.mxu0 %v440
  %v751 = vpop.f32.mrf.mxu0
  %v752 = vadd.f32 %v703, %v751
  %v753 = vpop.f32.mrf.mxu0
  %v754 = vadd.f32 %v705, %v753
  %755 = vdwg.mxu0
  %v788 = vunpack.c.l.b16 %v49
  %v789 = vunpack.c.h.b16 %v49
  %v790 = vunpack.c.l.b16 %v50
  %v791 = vunpack.c.l.b16 %v51
  %v792 = vunpack.c.h.b16 %v51
  %v793 = vunpack.c.l.b16 %v52
  %v794 = vunpack.c.l.b16 %v53
  %v795 = vunpack.c.h.b16 %v53
  %v796 = vunpack.c.l.b16 %v54
  %v797 = vunpack.c.l.b16 %v55
  %v798 = vunpack.c.h.b16 %v55
  %v799 = vunpack.c.l.b16 %v56
  %v800 = vunpack.c.l.b16 %v57
  %v801 = vunpack.c.h.b16 %v57
  %v802 = vunpack.c.l.b16 %v58
  %v803 = vunpack.c.l.b16 %v59
  %v804 = vunpack.c.h.b16 %v59
  %v805 = vunpack.c.l.b16 %v60
  %v806 = vunpack.c.l.b16 %v61
  %v807 = vunpack.c.h.b16 %v61
  %v808 = vunpack.c.l.b16 %v62
  %v809 = vunpack.c.l.b16 %v63
  %v810 = vunpack.c.h.b16 %v63
  %v811 = vunpack.c.l.b16 %v64
  %v812 = vunpack.c.l.b16 %v65
  %v813 = vunpack.c.h.b16 %v65
  %v814 = vunpack.c.l.b16 %v66
  %v815 = vunpack.c.l.b16 %v67
  %v816 = vunpack.c.h.b16 %v67
  %v817 = vunpack.c.l.b16 %v68
  %v818 = vunpack.c.l.b16 %v69
  %v819 = vunpack.c.h.b16 %v69
  %v820 = vunpack.c.l.b16 %v70
  %v821 = vunpack.c.l.b16 %v71
  %v822 = vunpack.c.h.b16 %v71
  %v823 = vunpack.c.l.b16 %v72
  %v824 = vunpack.c.l.b16 %v73
  %v825 = vunpack.c.h.b16 %v73
  %v826 = vunpack.c.l.b16 %v74
  %v827 = vunpack.c.l.b16 %v75
  %v828 = vunpack.c.h.b16 %v75
  %v829 = vunpack.c.l.b16 %v76
  %v830 = vunpack.c.l.b16 %v77
  %v831 = vunpack.c.h.b16 %v77
  %v832 = vunpack.c.l.b16 %v78
  %v833 = vunpack.c.l.b16 %v79
  %v834 = vunpack.c.h.b16 %v79
  %v835 = vunpack.c.l.b16 %v80
  %v836 = vpack.c.b16 %v791, %v788
  %v837 = vpack.c.b16 %v792, %v789
  %v838 = vpack.c.b16 %v793, %v790
  %v839 = vpack.c.b16 %v797, %v794
  %v840 = vpack.c.b16 %v798, %v795
  %v841 = vpack.c.b16 %v799, %v796
  %v842 = vpack.c.b16 %v803, %v800
  %v843 = vpack.c.b16 %v804, %v801
  %v844 = vpack.c.b16 %v805, %v802
  %v845 = vpack.c.b16 %v809, %v806
  %v846 = vpack.c.b16 %v810, %v807
  %v847 = vpack.c.b16 %v811, %v808
  %v848 = vpack.c.b16 %v815, %v812
  %v849 = vpack.c.b16 %v816, %v813
  %v850 = vpack.c.b16 %v817, %v814
  %v851 = vpack.c.b16 %v821, %v818
  %v852 = vpack.c.b16 %v822, %v819
  %v853 = vpack.c.b16 %v823, %v820
  %v854 = vpack.c.b16 %v827, %v824
  %v855 = vpack.c.b16 %v828, %v825
  %v856 = vpack.c.b16 %v829, %v826
  %v857 = vpack.c.b16 %v833, %v830
  %v858 = vpack.c.b16 %v834, %v831
  %v859 = vpack.c.b16 %v835, %v832
  %v932 = vunpack.c.l.b16 %v193
  %v933 = vunpack.c.l.b16 %v194
  %v934 = vunpack.c.l.b16 %v195
  %v935 = vunpack.c.l.b16 %v196
  %v936 = vunpack.c.l.b16 %v197
  %v937 = vunpack.c.l.b16 %v198
  %v938 = vunpack.c.l.b16 %v199
  %v939 = vunpack.c.l.b16 %v200
  %v940 = vunpack.c.l.b16 %v201
  %v941 = vunpack.c.l.b16 %v202
  %v942 = vunpack.c.l.b16 %v203
  %v943 = vunpack.c.l.b16 %v204
  %v944 = vunpack.c.l.b16 %v205
  %v945 = vunpack.c.l.b16 %v206
  %v946 = vunpack.c.l.b16 %v207
  %v947 = vunpack.c.l.b16 %v208
  %v948 = vunpack.c.l.b16 %v209
  %v949 = vunpack.c.l.b16 %v210
  %v950 = vunpack.c.l.b16 %v211
  %v951 = vunpack.c.l.b16 %v212
  %v952 = vunpack.c.l.b16 %v213
  %v953 = vunpack.c.l.b16 %v214
  %v954 = vunpack.c.l.b16 %v215
  %v955 = vunpack.c.l.b16 %v216
  %v956 = vunpack.c.l.b16 %v217
  %v957 = vunpack.c.l.b16 %v218
  %v958 = vunpack.c.l.b16 %v219
  %v959 = vunpack.c.l.b16 %v220
  %v960 = vunpack.c.l.b16 %v221
  %v961 = vunpack.c.l.b16 %v222
  %v962 = vunpack.c.l.b16 %v223
  %v963 = vunpack.c.l.b16 %v224
  %v964 = vunpack.c.l.b16 %v225
  %v965 = vunpack.c.l.b16 %v226
  %v966 = vunpack.c.l.b16 %v227
  %v967 = vunpack.c.l.b16 %v228
  %v968 = vunpack.c.l.b16 %v229
  %v969 = vunpack.c.l.b16 %v230
  %v970 = vunpack.c.l.b16 %v231
  %v971 = vunpack.c.l.b16 %v232
  %v972 = vunpack.c.l.b16 %v233
  %v973 = vunpack.c.l.b16 %v234
  %v974 = vunpack.c.l.b16 %v235
  %v975 = vunpack.c.l.b16 %v236
  %v976 = vunpack.c.l.b16 %v237
  %v977 = vunpack.c.l.b16 %v238
  %v978 = vunpack.c.l.b16 %v239
  %v979 = vunpack.c.l.b16 %v240
  %v980 = vpack.c.b16 %v933, %v932
  %v981 = vpack.c.b16 %v935, %v934
  %v982 = vpack.c.b16 %v937, %v936
  %v983 = vpack.c.b16 %v939, %v938
  %v984 = vpack.c.b16 %v941, %v940
  %v985 = vpack.c.b16 %v943, %v942
  %v986 = vpack.c.b16 %v945, %v944
  %v987 = vpack.c.b16 %v947, %v946
  %v988 = vpack.c.b16 %v949, %v948
  %v989 = vpack.c.b16 %v951, %v950
  %v990 = vpack.c.b16 %v953, %v952
  %v991 = vpack.c.b16 %v955, %v954
  %v992 = vpack.c.b16 %v957, %v956
  %v993 = vpack.c.b16 %v959, %v958
  %v994 = vpack.c.b16 %v961, %v960
  %v995 = vpack.c.b16 %v963, %v962
  %v996 = vpack.c.b16 %v965, %v964
  %v997 = vpack.c.b16 %v967, %v966
  %v998 = vpack.c.b16 %v969, %v968
  %v999 = vpack.c.b16 %v971, %v970
  %v1000 = vpack.c.b16 %v973, %v972
  %v1001 = vpack.c.b16 %v975, %v974
  %v1002 = vpack.c.b16 %v977, %v976
  %v1003 = vpack.c.b16 %v979, %v978
  %1028 = vmatpush.bf16.msra.mxu0 %v987
  %1029 = vmatpush.bf16.msra.mxu0 %v986
  %1030 = vmatpush.bf16.msra.mxu0 %v985
  %1031 = vmatpush.bf16.msra.mxu0 %v984
  %1032 = vmatpush.bf16.msra.mxu0 %v983
  %1033 = vmatpush.bf16.msra.mxu0 %v982
  %1034 = vmatpush.bf16.msra.mxu0 %v981
  %1035 = vmatpush.bf16.msra.mxu0 %v980
  %1036 = vmatmul.bf16.gmra.mxu0 %v836
  %v1037 = vpop.f32.mrf.mxu0
  %v1038 = vadd.f32 0.0, %v1037
  %v1039 = vpop.f32.mrf.mxu0
  %v1040 = vadd.f32 0.0, %v1039
  %1041 = vmatmul.bf16.gmra.mxu0 %v839
  %v1042 = vpop.f32.mrf.mxu0
  %v1043 = vadd.f32 0.0, %v1042
  %v1044 = vpop.f32.mrf.mxu0
  %v1045 = vadd.f32 0.0, %v1044
  %1046 = vmatmul.bf16.gmra.mxu0 %v842
  %v1047 = vpop.f32.mrf.mxu0
  %v1048 = vadd.f32 0.0, %v1047
  %v1049 = vpop.f32.mrf.mxu0
  %v1050 = vadd.f32 0.0, %v1049
  %1051 = vmatmul.bf16.gmra.mxu0 %v845
  %v1052 = vpop.f32.mrf.mxu0
  %v1053 = vadd.f32 0.0, %v1052
  %v1054 = vpop.f32.mrf.mxu0
  %v1055 = vadd.f32 0.0, %v1054
  %1056 = vmatmul.bf16.gmra.mxu0 %v848
  %v1057 = vpop.f32.mrf.mxu0
  %v1058 = vadd.f32 0.0, %v1057
  %v1059 = vpop.f32.mrf.mxu0
  %v1060 = vadd.f32 0.0, %v1059
  %1061 = vmatmul.bf16.gmra.mxu0 %v851
  %v1062 = vpop.f32.mrf.mxu0
  %v1063 = vadd.f32 0.0, %v1062
  %v1064 = vpop.f32.mrf.mxu0
  %v1065 = vadd.f32 0.0, %v1064
  %1066 = vmatmul.bf16.gmra.mxu0 %v854
  %v1067 = vpop.f32.mrf.mxu0
  %v1068 = vadd.f32 0.0, %v1067
  %v1069 = vpop.f32.mrf.mxu0
  %v1070 = vadd.f32 0.0, %v1069
  %1071 = vmatmul.bf16.gmra.mxu0 %v857
  %v1072 = vpop.f32.mrf.mxu0
  %v1073 = vadd.f32 0.0, %v1072
  %v1074 = vpop.f32.mrf.mxu0
  %v1075 = vadd.f32 0.0, %v1074
  %1076 = vdwg.mxu0
  %1077 = vmatpush.bf16.msra.mxu0 %v995
  %1078 = vmatpush.bf16.msra.mxu0 %v994
  %1079 = vmatpush.bf16.msra.mxu0 %v993
  %1080 = vmatpush.bf16.msra.mxu0 %v992
  %1081 = vmatpush.bf16.msra.mxu0 %v991
  %1082 = vmatpush.bf16.msra.mxu0 %v990
  %1083 = vmatpush.bf16.msra.mxu0 %v989
  %1084 = vmatpush.bf16.msra.mxu0 %v988
  %1085 = vmatmul.bf16.gmra.mxu0 %v837
  %v1086 = vpop.f32.mrf.mxu0
  %v1087 = vadd.f32 %v1038, %v1086
  %v1088 = vpop.f32.mrf.mxu0
  %v1089 = vadd.f32 %v1040, %v1088
  %1090 = vmatmul.bf16.gmra.mxu0 %v840
  %v1091 = vpop.f32.mrf.mxu0
  %v1092 = vadd.f32 %v1043, %v1091
  %v1093 = vpop.f32.mrf.mxu0
  %v1094 = vadd.f32 %v1045, %v1093
  %1095 = vmatmul.bf16.gmra.mxu0 %v843
  %v1096 = vpop.f32.mrf.mxu0
  %v1097 = vadd.f32 %v1048, %v1096
  %v1098 = vpop.f32.mrf.mxu0
  %v1099 = vadd.f32 %v1050, %v1098
  %1100 = vmatmul.bf16.gmra.mxu0 %v846
  %v1101 = vpop.f32.mrf.mxu0
  %v1102 = vadd.f32 %v1053, %v1101
  %v1103 = vpop.f32.mrf.mxu0
  %v1104 = vadd.f32 %v1055, %v1103
  %1105 = vmatmul.bf16.gmra.mxu0 %v849
  %v1106 = vpop.f32.mrf.mxu0
  %v1107 = vadd.f32 %v1058, %v1106
  %v1108 = vpop.f32.mrf.mxu0
  %v1109 = vadd.f32 %v1060, %v1108
  %1110 = vmatmul.bf16.gmra.mxu0 %v852
  %v1111 = vpop.f32.mrf.mxu0
  %v1112 = vadd.f32 %v1063, %v1111
  %v1113 = vpop.f32.mrf.mxu0
  %v1114 = vadd.f32 %v1065, %v1113
  %1115 = vmatmul.bf16.gmra.mxu0 %v855
  %v1116 = vpop.f32.mrf.mxu0
  %v1117 = vadd.f32 %v1068, %v1116
  %v1118 = vpop.f32.mrf.mxu0
  %v1119 = vadd.f32 %v1070, %v1118
  %1120 = vmatmul.bf16.gmra.mxu0 %v858
  %v1121 = vpop.f32.mrf.mxu0
  %v1122 = vadd.f32 %v1073, %v1121
  %v1123 = vpop.f32.mrf.mxu0
  %v1124 = vadd.f32 %v1075, %v1123
  %1125 = vdwg.mxu0
  %1126 = vmatpush.bf16.msra.mxu0 %v1003
  %1127 = vmatpush.bf16.msra.mxu0 %v1002
  %1128 = vmatpush.bf16.msra.mxu0 %v1001
  %1129 = vmatpush.bf16.msra.mxu0 %v1000
  %1130 = vmatpush.bf16.msra.mxu0 %v999
  %1131 = vmatpush.bf16.msra.mxu0 %v998
  %1132 = vmatpush.bf16.msra.mxu0 %v997
  %1133 = vmatpush.bf16.msra.mxu0 %v996
  %1134 = vmatmul.bf16.gmra.mxu0 %v838
  %v1135 = vpop.f32.mrf.mxu0
  %v1136 = vadd.f32 %v1087, %v1135
  %v1137 = vpop.f32.mrf.mxu0
  %v1138 = vadd.f32 %v1089, %v1137
  %1139 = vmatmul.bf16.gmra.mxu0 %v841
  %v1140 = vpop.f32.mrf.mxu0
  %v1141 = vadd.f32 %v1092, %v1140
  %v1142 = vpop.f32.mrf.mxu0
  %v1143 = vadd.f32 %v1094, %v1142
  %1144 = vmatmul.bf16.gmra.mxu0 %v844
  %v1145 = vpop.f32.mrf.mxu0
  %v1146 = vadd.f32 %v1097, %v1145
  %v1147 = vpop.f32.mrf.mxu0
  %v1148 = vadd.f32 %v1099, %v1147
  %1149 = vmatmul.bf16.gmra.mxu0 %v847
  %v1150 = vpop.f32.mrf.mxu0
  %v1151 = vadd.f32 %v1102, %v1150
  %v1152 = vpop.f32.mrf.mxu0
  %v1153 = vadd.f32 %v1104, %v1152
  %1154 = vmatmul.bf16.gmra.mxu0 %v850
  %v1155 = vpop.f32.mrf.mxu0
  %v1156 = vadd.f32 %v1107, %v1155
  %v1157 = vpop.f32.mrf.mxu0
  %v1158 = vadd.f32 %v1109, %v1157
  %1159 = vmatmul.bf16.gmra.mxu0 %v853
  %v1160 = vpop.f32.mrf.mxu0
  %v1161 = vadd.f32 %v1112, %v1160
  %v1162 = vpop.f32.mrf.mxu0
  %v1163 = vadd.f32 %v1114, %v1162
  %1164 = vmatmul.bf16.gmra.mxu0 %v856
  %v1165 = vpop.f32.mrf.mxu0
  %v1166 = vadd.f32 %v1117, %v1165
  %v1167 = vpop.f32.mrf.mxu0
  %v1168 = vadd.f32 %v1119, %v1167
  %1169 = vmatmul.bf16.gmra.mxu0 %v859
  %v1170 = vpop.f32.mrf.mxu0
  %v1171 = vadd.f32 %v1122, %v1170
  %v1172 = vpop.f32.mrf.mxu0
  %v1173 = vadd.f32 %v1124, %v1172
  %1174 = vdwg.mxu0
  %v1207 = vunpack.c.l.b16 %v81
  %v1208 = vunpack.c.h.b16 %v81
  %v1209 = vunpack.c.l.b16 %v82
  %v1210 = vunpack.c.l.b16 %v83
  %v1211 = vunpack.c.h.b16 %v83
  %v1212 = vunpack.c.l.b16 %v84
  %v1213 = vunpack.c.l.b16 %v85
  %v1214 = vunpack.c.h.b16 %v85
  %v1215 = vunpack.c.l.b16 %v86
  %v1216 = vunpack.c.l.b16 %v87
  %v1217 = vunpack.c.h.b16 %v87
  %v1218 = vunpack.c.l.b16 %v88
  %v1219 = vunpack.c.l.b16 %v89
  %v1220 = vunpack.c.h.b16 %v89
  %v1221 = vunpack.c.l.b16 %v90
  %v1222 = vunpack.c.l.b16 %v91
  %v1223 = vunpack.c.h.b16 %v91
  %v1224 = vunpack.c.l.b16 %v92
  %v1225 = vunpack.c.l.b16 %v93
  %v1226 = vunpack.c.h.b16 %v93
  %v1227 = vunpack.c.l.b16 %v94
  %v1228 = vunpack.c.l.b16 %v95
  %v1229 = vunpack.c.h.b16 %v95
  %v1230 = vunpack.c.l.b16 %v96
  %v1231 = vunpack.c.l.b16 %v97
  %v1232 = vunpack.c.h.b16 %v97
  %v1233 = vunpack.c.l.b16 %v98
  %v1234 = vunpack.c.l.b16 %v99
  %v1235 = vunpack.c.h.b16 %v99
  %v1236 = vunpack.c.l.b16 %v100
  %v1237 = vunpack.c.l.b16 %v101
  %v1238 = vunpack.c.h.b16 %v101
  %v1239 = vunpack.c.l.b16 %v102
  %v1240 = vunpack.c.l.b16 %v103
  %v1241 = vunpack.c.h.b16 %v103
  %v1242 = vunpack.c.l.b16 %v104
  %v1243 = vunpack.c.l.b16 %v105
  %v1244 = vunpack.c.h.b16 %v105
  %v1245 = vunpack.c.l.b16 %v106
  %v1246 = vunpack.c.l.b16 %v107
  %v1247 = vunpack.c.h.b16 %v107
  %v1248 = vunpack.c.l.b16 %v108
  %v1249 = vunpack.c.l.b16 %v109
  %v1250 = vunpack.c.h.b16 %v109
  %v1251 = vunpack.c.l.b16 %v110
  %v1252 = vunpack.c.l.b16 %v111
  %v1253 = vunpack.c.h.b16 %v111
  %v1254 = vunpack.c.l.b16 %v112
  %v1255 = vpack.c.b16 %v1210, %v1207
  %v1256 = vpack.c.b16 %v1211, %v1208
  %v1257 = vpack.c.b16 %v1212, %v1209
  %v1258 = vpack.c.b16 %v1216, %v1213
  %v1259 = vpack.c.b16 %v1217, %v1214
  %v1260 = vpack.c.b16 %v1218, %v1215
  %v1261 = vpack.c.b16 %v1222, %v1219
  %v1262 = vpack.c.b16 %v1223, %v1220
  %v1263 = vpack.c.b16 %v1224, %v1221
  %v1264 = vpack.c.b16 %v1228, %v1225
  %v1265 = vpack.c.b16 %v1229, %v1226
  %v1266 = vpack.c.b16 %v1230, %v1227
  %v1267 = vpack.c.b16 %v1234, %v1231
  %v1268 = vpack.c.b16 %v1235, %v1232
  %v1269 = vpack.c.b16 %v1236, %v1233
  %v1270 = vpack.c.b16 %v1240, %v1237
  %v1271 = vpack.c.b16 %v1241, %v1238
  %v1272 = vpack.c.b16 %v1242, %v1239
  %v1273 = vpack.c.b16 %v1246, %v1243
  %v1274 = vpack.c.b16 %v1247, %v1244
  %v1275 = vpack.c.b16 %v1248, %v1245
  %v1276 = vpack.c.b16 %v1252, %v1249
  %v1277 = vpack.c.b16 %v1253, %v1250
  %v1278 = vpack.c.b16 %v1254, %v1251
  %v1351 = vunpack.c.l.b16 %v241
  %v1352 = vunpack.c.l.b16 %v242
  %v1353 = vunpack.c.l.b16 %v243
  %v1354 = vunpack.c.l.b16 %v244
  %v1355 = vunpack.c.l.b16 %v245
  %v1356 = vunpack.c.l.b16 %v246
  %v1357 = vunpack.c.l.b16 %v247
  %v1358 = vunpack.c.l.b16 %v248
  %v1359 = vunpack.c.l.b16 %v249
  %v1360 = vunpack.c.l.b16 %v250
  %v1361 = vunpack.c.l.b16 %v251
  %v1362 = vunpack.c.l.b16 %v252
  %v1363 = vunpack.c.l.b16 %v253
  %v1364 = vunpack.c.l.b16 %v254
  %v1365 = vunpack.c.l.b16 %v255
  %v1366 = vunpack.c.l.b16 %v256
  %v1367 = vunpack.c.l.b16 %v257
  %v1368 = vunpack.c.l.b16 %v258
  %v1369 = vunpack.c.l.b16 %v259
  %v1370 = vunpack.c.l.b16 %v260
  %v1371 = vunpack.c.l.b16 %v261
  %v1372 = vunpack.c.l.b16 %v262
  %v1373 = vunpack.c.l.b16 %v263
  %v1374 = vunpack.c.l.b16 %v264
  %v1375 = vunpack.c.l.b16 %v265
  %v1376 = vunpack.c.l.b16 %v266
  %v1377 = vunpack.c.l.b16 %v267
  %v1378 = vunpack.c.l.b16 %v268
  %v1379 = vunpack.c.l.b16 %v269
  %v1380 = vunpack.c.l.b16 %v270
  %v1381 = vunpack.c.l.b16 %v271
  %v1382 = vunpack.c.l.b16 %v272
  %v1383 = vunpack.c.l.b16 %v273
  %v1384 = vunpack.c.l.b16 %v274
  %v1385 = vunpack.c.l.b16 %v275
  %v1386 = vunpack.c.l.b16 %v276
  %v1387 = vunpack.c.l.b16 %v277
  %v1388 = vunpack.c.l.b16 %v278
  %v1389 = vunpack.c.l.b16 %v279
  %v1390 = vunpack.c.l.b16 %v280
  %v1391 = vunpack.c.l.b16 %v281
  %v1392 = vunpack.c.l.b16 %v282
  %v1393 = vunpack.c.l.b16 %v283
  %v1394 = vunpack.c.l.b16 %v284
  %v1395 = vunpack.c.l.b16 %v285
  %v1396 = vunpack.c.l.b16 %v286
  %v1397 = vunpack.c.l.b16 %v287
  %v1398 = vunpack.c.l.b16 %v288
  %v1399 = vpack.c.b16 %v1352, %v1351
  %v1400 = vpack.c.b16 %v1354, %v1353
  %v1401 = vpack.c.b16 %v1356, %v1355
  %v1402 = vpack.c.b16 %v1358, %v1357
  %v1403 = vpack.c.b16 %v1360, %v1359
  %v1404 = vpack.c.b16 %v1362, %v1361
  %v1405 = vpack.c.b16 %v1364, %v1363
  %v1406 = vpack.c.b16 %v1366, %v1365
  %v1407 = vpack.c.b16 %v1368, %v1367
  %v1408 = vpack.c.b16 %v1370, %v1369
  %v1409 = vpack.c.b16 %v1372, %v1371
  %v1410 = vpack.c.b16 %v1374, %v1373
  %v1411 = vpack.c.b16 %v1376, %v1375
  %v1412 = vpack.c.b16 %v1378, %v1377
  %v1413 = vpack.c.b16 %v1380, %v1379
  %v1414 = vpack.c.b16 %v1382, %v1381
  %v1415 = vpack.c.b16 %v1384, %v1383
  %v1416 = vpack.c.b16 %v1386, %v1385
  %v1417 = vpack.c.b16 %v1388, %v1387
  %v1418 = vpack.c.b16 %v1390, %v1389
  %v1419 = vpack.c.b16 %v1392, %v1391
  %v1420 = vpack.c.b16 %v1394, %v1393
  %v1421 = vpack.c.b16 %v1396, %v1395
  %v1422 = vpack.c.b16 %v1398, %v1397
  %1447 = vmatpush.bf16.msra.mxu0 %v1406
  %1448 = vmatpush.bf16.msra.mxu0 %v1405
  %1449 = vmatpush.bf16.msra.mxu0 %v1404
  %1450 = vmatpush.bf16.msra.mxu0 %v1403
  %1451 = vmatpush.bf16.msra.mxu0 %v1402
  %1452 = vmatpush.bf16.msra.mxu0 %v1401
  %1453 = vmatpush.bf16.msra.mxu0 %v1400
  %1454 = vmatpush.bf16.msra.mxu0 %v1399
  %1455 = vmatmul.bf16.gmra.mxu0 %v1255
  %v1456 = vpop.f32.mrf.mxu0
  %v1457 = vadd.f32 0.0, %v1456
  %v1458 = vpop.f32.mrf.mxu0
  %v1459 = vadd.f32 0.0, %v1458
  %1460 = vmatmul.bf16.gmra.mxu0 %v1258
  %v1461 = vpop.f32.mrf.mxu0
  %v1462 = vadd.f32 0.0, %v1461
  %v1463 = vpop.f32.mrf.mxu0
  %v1464 = vadd.f32 0.0, %v1463
  %1465 = vmatmul.bf16.gmra.mxu0 %v1261
  %v1466 = vpop.f32.mrf.mxu0
  %v1467 = vadd.f32 0.0, %v1466
  %v1468 = vpop.f32.mrf.mxu0
  %v1469 = vadd.f32 0.0, %v1468
  %1470 = vmatmul.bf16.gmra.mxu0 %v1264
  %v1471 = vpop.f32.mrf.mxu0
  %v1472 = vadd.f32 0.0, %v1471
  %v1473 = vpop.f32.mrf.mxu0
  %v1474 = vadd.f32 0.0, %v1473
  %1475 = vmatmul.bf16.gmra.mxu0 %v1267
  %v1476 = vpop.f32.mrf.mxu0
  %v1477 = vadd.f32 0.0, %v1476
  %v1478 = vpop.f32.mrf.mxu0
  %v1479 = vadd.f32 0.0, %v1478
  %1480 = vmatmul.bf16.gmra.mxu0 %v1270
  %v1481 = vpop.f32.mrf.mxu0
  %v1482 = vadd.f32 0.0, %v1481
  %v1483 = vpop.f32.mrf.mxu0
  %v1484 = vadd.f32 0.0, %v1483
  %1485 = vmatmul.bf16.gmra.mxu0 %v1273
  %v1486 = vpop.f32.mrf.mxu0
  %v1487 = vadd.f32 0.0, %v1486
  %v1488 = vpop.f32.mrf.mxu0
  %v1489 = vadd.f32 0.0, %v1488
  %1490 = vmatmul.bf16.gmra.mxu0 %v1276
  %v1491 = vpop.f32.mrf.mxu0
  %v1492 = vadd.f32 0.0, %v1491
  %v1493 = vpop.f32.mrf.mxu0
  %v1494 = vadd.f32 0.0, %v1493
  %1495 = vdwg.mxu0
  %1496 = vmatpush.bf16.msra.mxu0 %v1414
  %1497 = vmatpush.bf16.msra.mxu0 %v1413
  %1498 = vmatpush.bf16.msra.mxu0 %v1412
  %1499 = vmatpush.bf16.msra.mxu0 %v1411
  %1500 = vmatpush.bf16.msra.mxu0 %v1410
  %1501 = vmatpush.bf16.msra.mxu0 %v1409
  %1502 = vmatpush.bf16.msra.mxu0 %v1408
  %1503 = vmatpush.bf16.msra.mxu0 %v1407
  %1504 = vmatmul.bf16.gmra.mxu0 %v1256
  %v1505 = vpop.f32.mrf.mxu0
  %v1506 = vadd.f32 %v1457, %v1505
  %v1507 = vpop.f32.mrf.mxu0
  %v1508 = vadd.f32 %v1459, %v1507
  %1509 = vmatmul.bf16.gmra.mxu0 %v1259
  %v1510 = vpop.f32.mrf.mxu0
  %v1511 = vadd.f32 %v1462, %v1510
  %v1512 = vpop.f32.mrf.mxu0
  %v1513 = vadd.f32 %v1464, %v1512
  %1514 = vmatmul.bf16.gmra.mxu0 %v1262
  %v1515 = vpop.f32.mrf.mxu0
  %v1516 = vadd.f32 %v1467, %v1515
  %v1517 = vpop.f32.mrf.mxu0
  %v1518 = vadd.f32 %v1469, %v1517
  %1519 = vmatmul.bf16.gmra.mxu0 %v1265
  %v1520 = vpop.f32.mrf.mxu0
  %v1521 = vadd.f32 %v1472, %v1520
  %v1522 = vpop.f32.mrf.mxu0
  %v1523 = vadd.f32 %v1474, %v1522
  %1524 = vmatmul.bf16.gmra.mxu0 %v1268
  %v1525 = vpop.f32.mrf.mxu0
  %v1526 = vadd.f32 %v1477, %v1525
  %v1527 = vpop.f32.mrf.mxu0
  %v1528 = vadd.f32 %v1479, %v1527
  %1529 = vmatmul.bf16.gmra.mxu0 %v1271
  %v1530 = vpop.f32.mrf.mxu0
  %v1531 = vadd.f32 %v1482, %v1530
  %v1532 = vpop.f32.mrf.mxu0
  %v1533 = vadd.f32 %v1484, %v1532
  %1534 = vmatmul.bf16.gmra.mxu0 %v1274
  %v1535 = vpop.f32.mrf.mxu0
  %v1536 = vadd.f32 %v1487, %v1535
  %v1537 = vpop.f32.mrf.mxu0
  %v1538 = vadd.f32 %v1489, %v1537
  %1539 = vmatmul.bf16.gmra.mxu0 %v1277
  %v1540 = vpop.f32.mrf.mxu0
  %v1541 = vadd.f32 %v1492, %v1540
  %v1542 = vpop.f32.mrf.mxu0
  %v1543 = vadd.f32 %v1494, %v1542
  %1544 = vdwg.mxu0
  %1545 = vmatpush.bf16.msra.mxu0 %v1422
  %1546 = vmatpush.bf16.msra.mxu0 %v1421
  %1547 = vmatpush.bf16.msra.mxu0 %v1420
  %1548 = vmatpush.bf16.msra.mxu0 %v1419
  %1549 = vmatpush.bf16.msra.mxu0 %v1418
  %1550 = vmatpush.bf16.msra.mxu0 %v1417
  %1551 = vmatpush.bf16.msra.mxu0 %v1416
  %1552 = vmatpush.bf16.msra.mxu0 %v1415
  %1553 = vmatmul.bf16.gmra.mxu0 %v1257
  %v1554 = vpop.f32.mrf.mxu0
  %v1555 = vadd.f32 %v1506, %v1554
  %v1556 = vpop.f32.mrf.mxu0
  %v1557 = vadd.f32 %v1508, %v1556
  %1558 = vmatmul.bf16.gmra.mxu0 %v1260
  %v1559 = vpop.f32.mrf.mxu0
  %v1560 = vadd.f32 %v1511, %v1559
  %v1561 = vpop.f32.mrf.mxu0
  %v1562 = vadd.f32 %v1513, %v1561
  %1563 = vmatmul.bf16.gmra.mxu0 %v1263
  %v1564 = vpop.f32.mrf.mxu0
  %v1565 = vadd.f32 %v1516, %v1564
  %v1566 = vpop.f32.mrf.mxu0
  %v1567 = vadd.f32 %v1518, %v1566
  %1568 = vmatmul.bf16.gmra.mxu0 %v1266
  %v1569 = vpop.f32.mrf.mxu0
  %v1570 = vadd.f32 %v1521, %v1569
  %v1571 = vpop.f32.mrf.mxu0
  %v1572 = vadd.f32 %v1523, %v1571
  %1573 = vmatmul.bf16.gmra.mxu0 %v1269
  %v1574 = vpop.f32.mrf.mxu0
  %v1575 = vadd.f32 %v1526, %v1574
  %v1576 = vpop.f32.mrf.mxu0
  %v1577 = vadd.f32 %v1528, %v1576
  %1578 = vmatmul.bf16.gmra.mxu0 %v1272
  %v1579 = vpop.f32.mrf.mxu0
  %v1580 = vadd.f32 %v1531, %v1579
  %v1581 = vpop.f32.mrf.mxu0
  %v1582 = vadd.f32 %v1533, %v1581
  %1583 = vmatmul.bf16.gmra.mxu0 %v1275
  %v1584 = vpop.f32.mrf.mxu0
  %v1585 = vadd.f32 %v1536, %v1584
  %v1586 = vpop.f32.mrf.mxu0
  %v1587 = vadd.f32 %v1538, %v1586
  %1588 = vmatmul.bf16.gmra.mxu0 %v1278
  %v1589 = vpop.f32.mrf.mxu0
  %v1590 = vadd.f32 %v1541, %v1589
  %v1591 = vpop.f32.mrf.mxu0
  %v1592 = vadd.f32 %v1543, %v1591
  %1593 = vdwg.mxu0
  %v1626 = vunpack.c.l.b16 %v113
  %v1627 = vunpack.c.h.b16 %v113
  %v1628 = vunpack.c.l.b16 %v114
  %v1629 = vunpack.c.l.b16 %v115
  %v1630 = vunpack.c.h.b16 %v115
  %v1631 = vunpack.c.l.b16 %v116
  %v1632 = vunpack.c.l.b16 %v117
  %v1633 = vunpack.c.h.b16 %v117
  %v1634 = vunpack.c.l.b16 %v118
  %v1635 = vunpack.c.l.b16 %v119
  %v1636 = vunpack.c.h.b16 %v119
  %v1637 = vunpack.c.l.b16 %v120
  %v1638 = vunpack.c.l.b16 %v121
  %v1639 = vunpack.c.h.b16 %v121
  %v1640 = vunpack.c.l.b16 %v122
  %v1641 = vunpack.c.l.b16 %v123
  %v1642 = vunpack.c.h.b16 %v123
  %v1643 = vunpack.c.l.b16 %v124
  %v1644 = vunpack.c.l.b16 %v125
  %v1645 = vunpack.c.h.b16 %v125
  %v1646 = vunpack.c.l.b16 %v126
  %v1647 = vunpack.c.l.b16 %v127
  %v1648 = vunpack.c.h.b16 %v127
  %v1649 = vunpack.c.l.b16 %v128
  %v1650 = vunpack.c.l.b16 %v129
  %v1651 = vunpack.c.h.b16 %v129
  %v1652 = vunpack.c.l.b16 %v130
  %v1653 = vunpack.c.l.b16 %v131
  %v1654 = vunpack.c.h.b16 %v131
  %v1655 = vunpack.c.l.b16 %v132
  %v1656 = vunpack.c.l.b16 %v133
  %v1657 = vunpack.c.h.b16 %v133
  %v1658 = vunpack.c.l.b16 %v134
  %v1659 = vunpack.c.l.b16 %v135
  %v1660 = vunpack.c.h.b16 %v135
  %v1661 = vunpack.c.l.b16 %v136
  %v1662 = vunpack.c.l.b16 %v137
  %v1663 = vunpack.c.h.b16 %v137
  %v1664 = vunpack.c.l.b16 %v138
  %v1665 = vunpack.c.l.b16 %v139
  %v1666 = vunpack.c.h.b16 %v139
  %v1667 = vunpack.c.l.b16 %v140
  %v1668 = vunpack.c.l.b16 %v141
  %v1669 = vunpack.c.h.b16 %v141
  %v1670 = vunpack.c.l.b16 %v142
  %v1671 = vunpack.c.l.b16 %v143
  %v1672 = vunpack.c.h.b16 %v143
  %v1673 = vunpack.c.l.b16 %v144
  %v1674 = vpack.c.b16 %v1629, %v1626
  %v1675 = vpack.c.b16 %v1630, %v1627
  %v1676 = vpack.c.b16 %v1631, %v1628
  %v1677 = vpack.c.b16 %v1635, %v1632
  %v1678 = vpack.c.b16 %v1636, %v1633
  %v1679 = vpack.c.b16 %v1637, %v1634
  %v1680 = vpack.c.b16 %v1641, %v1638
  %v1681 = vpack.c.b16 %v1642, %v1639
  %v1682 = vpack.c.b16 %v1643, %v1640
  %v1683 = vpack.c.b16 %v1647, %v1644
  %v1684 = vpack.c.b16 %v1648, %v1645
  %v1685 = vpack.c.b16 %v1649, %v1646
  %v1686 = vpack.c.b16 %v1653, %v1650
  %v1687 = vpack.c.b16 %v1654, %v1651
  %v1688 = vpack.c.b16 %v1655, %v1652
  %v1689 = vpack.c.b16 %v1659, %v1656
  %v1690 = vpack.c.b16 %v1660, %v1657
  %v1691 = vpack.c.b16 %v1661, %v1658
  %v1692 = vpack.c.b16 %v1665, %v1662
  %v1693 = vpack.c.b16 %v1666, %v1663
  %v1694 = vpack.c.b16 %v1667, %v1664
  %v1695 = vpack.c.b16 %v1671, %v1668
  %v1696 = vpack.c.b16 %v1672, %v1669
  %v1697 = vpack.c.b16 %v1673, %v1670
  %v1770 = vunpack.c.l.b16 %v289
  %v1771 = vunpack.c.l.b16 %v290
  %v1772 = vunpack.c.l.b16 %v291
  %v1773 = vunpack.c.l.b16 %v292
  %v1774 = vunpack.c.l.b16 %v293
  %v1775 = vunpack.c.l.b16 %v294
  %v1776 = vunpack.c.l.b16 %v295
  %v1777 = vunpack.c.l.b16 %v296
  %v1778 = vunpack.c.l.b16 %v297
  %v1779 = vunpack.c.l.b16 %v298
  %v1780 = vunpack.c.l.b16 %v299
  %v1781 = vunpack.c.l.b16 %v300
  %v1782 = vunpack.c.l.b16 %v301
  %v1783 = vunpack.c.l.b16 %v302
  %v1784 = vunpack.c.l.b16 %v303
  %v1785 = vunpack.c.l.b16 %v304
  %v1786 = vunpack.c.l.b16 %v305
  %v1787 = vunpack.c.l.b16 %v306
  %v1788 = vunpack.c.l.b16 %v307
  %v1789 = vunpack.c.l.b16 %v308
  %v1790 = vunpack.c.l.b16 %v309
  %v1791 = vunpack.c.l.b16 %v310
  %v1792 = vunpack.c.l.b16 %v311
  %v1793 = vunpack.c.l.b16 %v312
  %v1794 = vunpack.c.l.b16 %v313
  %v1795 = vunpack.c.l.b16 %v314
  %v1796 = vunpack.c.l.b16 %v315
  %v1797 = vunpack.c.l.b16 %v316
  %v1798 = vunpack.c.l.b16 %v317
  %v1799 = vunpack.c.l.b16 %v318
  %v1800 = vunpack.c.l.b16 %v319
  %v1801 = vunpack.c.l.b16 %v320
  %v1802 = vunpack.c.l.b16 %v321
  %v1803 = vunpack.c.l.b16 %v322
  %v1804 = vunpack.c.l.b16 %v323
  %v1805 = vunpack.c.l.b16 %v324
  %v1806 = vunpack.c.l.b16 %v325
  %v1807 = vunpack.c.l.b16 %v326
  %v1808 = vunpack.c.l.b16 %v327
  %v1809 = vunpack.c.l.b16 %v328
  %v1810 = vunpack.c.l.b16 %v329
  %v1811 = vunpack.c.l.b16 %v330
  %v1812 = vunpack.c.l.b16 %v331
  %v1813 = vunpack.c.l.b16 %v332
  %v1814 = vunpack.c.l.b16 %v333
  %v1815 = vunpack.c.l.b16 %v334
  %v1816 = vunpack.c.l.b16 %v335
  %v1817 = vunpack.c.l.b16 %v336
  %v1818 = vpack.c.b16 %v1771, %v1770
  %v1819 = vpack.c.b16 %v1773, %v1772
  %v1820 = vpack.c.b16 %v1775, %v1774
  %v1821 = vpack.c.b16 %v1777, %v1776
  %v1822 = vpack.c.b16 %v1779, %v1778
  %v1823 = vpack.c.b16 %v1781, %v1780
  %v1824 = vpack.c.b16 %v1783, %v1782
  %v1825 = vpack.c.b16 %v1785, %v1784
  %v1826 = vpack.c.b16 %v1787, %v1786
  %v1827 = vpack.c.b16 %v1789, %v1788
  %v1828 = vpack.c.b16 %v1791, %v1790
  %v1829 = vpack.c.b16 %v1793, %v1792
  %v1830 = vpack.c.b16 %v1795, %v1794
  %v1831 = vpack.c.b16 %v1797, %v1796
  %v1832 = vpack.c.b16 %v1799, %v1798
  %v1833 = vpack.c.b16 %v1801, %v1800
  %v1834 = vpack.c.b16 %v1803, %v1802
  %v1835 = vpack.c.b16 %v1805, %v1804
  %v1836 = vpack.c.b16 %v1807, %v1806
  %v1837 = vpack.c.b16 %v1809, %v1808
  %v1838 = vpack.c.b16 %v1811, %v1810
  %v1839 = vpack.c.b16 %v1813, %v1812
  %v1840 = vpack.c.b16 %v1815, %v1814
  %v1841 = vpack.c.b16 %v1817, %v1816
  %1866 = vmatpush.bf16.msra.mxu0 %v1825
  %1867 = vmatpush.bf16.msra.mxu0 %v1824
  %1868 = vmatpush.bf16.msra.mxu0 %v1823
  %1869 = vmatpush.bf16.msra.mxu0 %v1822
  %1870 = vmatpush.bf16.msra.mxu0 %v1821
  %1871 = vmatpush.bf16.msra.mxu0 %v1820
  %1872 = vmatpush.bf16.msra.mxu0 %v1819
  %1873 = vmatpush.bf16.msra.mxu0 %v1818
  %1874 = vmatmul.bf16.gmra.mxu0 %v1674
  %v1875 = vpop.f32.mrf.mxu0
  %v1876 = vadd.f32 0.0, %v1875
  %v1877 = vpop.f32.mrf.mxu0
  %v1878 = vadd.f32 0.0, %v1877
  %1879 = vmatmul.bf16.gmra.mxu0 %v1677
  %v1880 = vpop.f32.mrf.mxu0
  %v1881 = vadd.f32 0.0, %v1880
  %v1882 = vpop.f32.mrf.mxu0
  %v1883 = vadd.f32 0.0, %v1882
  %1884 = vmatmul.bf16.gmra.mxu0 %v1680
  %v1885 = vpop.f32.mrf.mxu0
  %v1886 = vadd.f32 0.0, %v1885
  %v1887 = vpop.f32.mrf.mxu0
  %v1888 = vadd.f32 0.0, %v1887
  %1889 = vmatmul.bf16.gmra.mxu0 %v1683
  %v1890 = vpop.f32.mrf.mxu0
  %v1891 = vadd.f32 0.0, %v1890
  %v1892 = vpop.f32.mrf.mxu0
  %v1893 = vadd.f32 0.0, %v1892
  %1894 = vmatmul.bf16.gmra.mxu0 %v1686
  %v1895 = vpop.f32.mrf.mxu0
  %v1896 = vadd.f32 0.0, %v1895
  %v1897 = vpop.f32.mrf.mxu0
  %v1898 = vadd.f32 0.0, %v1897
  %1899 = vmatmul.bf16.gmra.mxu0 %v1689
  %v1900 = vpop.f32.mrf.mxu0
  %v1901 = vadd.f32 0.0, %v1900
  %v1902 = vpop.f32.mrf.mxu0
  %v1903 = vadd.f32 0.0, %v1902
  %1904 = vmatmul.bf16.gmra.mxu0 %v1692
  %v1905 = vpop.f32.mrf.mxu0
  %v1906 = vadd.f32 0.0, %v1905
  %v1907 = vpop.f32.mrf.mxu0
  %v1908 = vadd.f32 0.0, %v1907
  %1909 = vmatmul.bf16.gmra.mxu0 %v1695
  %v1910 = vpop.f32.mrf.mxu0
  %v1911 = vadd.f32 0.0, %v1910
  %v1912 = vpop.f32.mrf.mxu0
  %v1913 = vadd.f32 0.0, %v1912
  %1914 = vdwg.mxu0
  %1915 = vmatpush.bf16.msra.mxu0 %v1833
  %1916 = vmatpush.bf16.msra.mxu0 %v1832
  %1917 = vmatpush.bf16.msra.mxu0 %v1831
  %1918 = vmatpush.bf16.msra.mxu0 %v1830
  %1919 = vmatpush.bf16.msra.mxu0 %v1829
  %1920 = vmatpush.bf16.msra.mxu0 %v1828
  %1921 = vmatpush.bf16.msra.mxu0 %v1827
  %1922 = vmatpush.bf16.msra.mxu0 %v1826
  %1923 = vmatmul.bf16.gmra.mxu0 %v1675
  %v1924 = vpop.f32.mrf.mxu0
  %v1925 = vadd.f32 %v1876, %v1924
  %v1926 = vpop.f32.mrf.mxu0
  %v1927 = vadd.f32 %v1878, %v1926
  %1928 = vmatmul.bf16.gmra.mxu0 %v1678
  %v1929 = vpop.f32.mrf.mxu0
  %v1930 = vadd.f32 %v1881, %v1929
  %v1931 = vpop.f32.mrf.mxu0
  %v1932 = vadd.f32 %v1883, %v1931
  %1933 = vmatmul.bf16.gmra.mxu0 %v1681
  %v1934 = vpop.f32.mrf.mxu0
  %v1935 = vadd.f32 %v1886, %v1934
  %v1936 = vpop.f32.mrf.mxu0
  %v1937 = vadd.f32 %v1888, %v1936
  %1938 = vmatmul.bf16.gmra.mxu0 %v1684
  %v1939 = vpop.f32.mrf.mxu0
  %v1940 = vadd.f32 %v1891, %v1939
  %v1941 = vpop.f32.mrf.mxu0
  %v1942 = vadd.f32 %v1893, %v1941
  %1943 = vmatmul.bf16.gmra.mxu0 %v1687
  %v1944 = vpop.f32.mrf.mxu0
  %v1945 = vadd.f32 %v1896, %v1944
  %v1946 = vpop.f32.mrf.mxu0
  %v1947 = vadd.f32 %v1898, %v1946
  %1948 = vmatmul.bf16.gmra.mxu0 %v1690
  %v1949 = vpop.f32.mrf.mxu0
  %v1950 = vadd.f32 %v1901, %v1949
  %v1951 = vpop.f32.mrf.mxu0
  %v1952 = vadd.f32 %v1903, %v1951
  %1953 = vmatmul.bf16.gmra.mxu0 %v1693
  %v1954 = vpop.f32.mrf.mxu0
  %v1955 = vadd.f32 %v1906, %v1954
  %v1956 = vpop.f32.mrf.mxu0
  %v1957 = vadd.f32 %v1908, %v1956
  %1958 = vmatmul.bf16.gmra.mxu0 %v1696
  %v1959 = vpop.f32.mrf.mxu0
  %v1960 = vadd.f32 %v1911, %v1959
  %v1961 = vpop.f32.mrf.mxu0
  %v1962 = vadd.f32 %v1913, %v1961
  %1963 = vdwg.mxu0
  %1964 = vmatpush.bf16.msra.mxu0 %v1841
  %1965 = vmatpush.bf16.msra.mxu0 %v1840
  %1966 = vmatpush.bf16.msra.mxu0 %v1839
  %1967 = vmatpush.bf16.msra.mxu0 %v1838
  %1968 = vmatpush.bf16.msra.mxu0 %v1837
  %1969 = vmatpush.bf16.msra.mxu0 %v1836
  %1970 = vmatpush.bf16.msra.mxu0 %v1835
  %1971 = vmatpush.bf16.msra.mxu0 %v1834
  %1972 = vmatmul.bf16.gmra.mxu0 %v1676
  %v1973 = vpop.f32.mrf.mxu0
  %v1974 = vadd.f32 %v1925, %v1973
  %v1975 = vpop.f32.mrf.mxu0
  %v1976 = vadd.f32 %v1927, %v1975
  %1977 = vmatmul.bf16.gmra.mxu0 %v1679
  %v1978 = vpop.f32.mrf.mxu0
  %v1979 = vadd.f32 %v1930, %v1978
  %v1980 = vpop.f32.mrf.mxu0
  %v1981 = vadd.f32 %v1932, %v1980
  %1982 = vmatmul.bf16.gmra.mxu0 %v1682
  %v1983 = vpop.f32.mrf.mxu0
  %v1984 = vadd.f32 %v1935, %v1983
  %v1985 = vpop.f32.mrf.mxu0
  %v1986 = vadd.f32 %v1937, %v1985
  %1987 = vmatmul.bf16.gmra.mxu0 %v1685
  %v1988 = vpop.f32.mrf.mxu0
  %v1989 = vadd.f32 %v1940, %v1988
  %v1990 = vpop.f32.mrf.mxu0
  %v1991 = vadd.f32 %v1942, %v1990
  %1992 = vmatmul.bf16.gmra.mxu0 %v1688
  %v1993 = vpop.f32.mrf.mxu0
  %v1994 = vadd.f32 %v1945, %v1993
  %v1995 = vpop.f32.mrf.mxu0
  %v1996 = vadd.f32 %v1947, %v1995
  %1997 = vmatmul.bf16.gmra.mxu0 %v1691
  %v1998 = vpop.f32.mrf.mxu0
  %v1999 = vadd.f32 %v1950, %v1998
  %v2000 = vpop.f32.mrf.mxu0
  %v2001 = vadd.f32 %v1952, %v2000
  %2002 = vmatmul.bf16.gmra.mxu0 %v1694
  %v2003 = vpop.f32.mrf.mxu0
  %v2004 = vadd.f32 %v1955, %v2003
  %v2005 = vpop.f32.mrf.mxu0
  %v2006 = vadd.f32 %v1957, %v2005
  %2007 = vmatmul.bf16.gmra.mxu0 %v1697
  %v2008 = vpop.f32.mrf.mxu0
  %v2009 = vadd.f32 %v1960, %v2008
  %v2010 = vpop.f32.mrf.mxu0
  %v2011 = vadd.f32 %v1962, %v2010
  %2012 = vdwg.mxu0
  %v2013 = vld [vmem:[%s2] sm:$0x1]
  %v2014 = vld [vmem:[%s3] sm:$0x1]
  %vm2015 = vcmask 392192
  %v2016 = vsel %vm2015, %v717, 0.0
  %v2017 = vsel %vm2015, %v1136, 0.0
  %v2018 = vadd.f32 %v2016, %v2017
  %v2019 = vsel %vm2015, %v1555, 0.0
  %v2020 = vadd.f32 %v2018, %v2019
  %v2021 = vsel %vm2015, %v1974, 0.0
  %v2022 = vadd.f32 %v2020, %v2021
  %v2023 = vsel %vm2015, %v719, 0.0
  %v2024 = vsel %vm2015, %v1138, 0.0
  %v2025 = vadd.f32 %v2023, %v2024
  %v2026 = vsel %vm2015, %v1557, 0.0
  %v2027 = vadd.f32 %v2025, %v2026
  %v2028 = vsel %vm2015, %v1976, 0.0
  %v2029 = vadd.f32 %v2027, %v2028
  %v2030 = vsel %vm2015, %v722, 0.0
  %v2031 = vsel %vm2015, %v1141, 0.0
  %v2032 = vadd.f32 %v2030, %v2031
  %v2033 = vsel %vm2015, %v1560, 0.0
  %v2034 = vadd.f32 %v2032, %v2033
  %v2035 = vsel %vm2015, %v1979, 0.0
  %v2036 = vadd.f32 %v2034, %v2035
  %v2037 = vsel %vm2015, %v724, 0.0
  %v2038 = vsel %vm2015, %v1143, 0.0
  %v2039 = vadd.f32 %v2037, %v2038
  %v2040 = vsel %vm2015, %v1562, 0.0
  %v2041 = vadd.f32 %v2039, %v2040
  %v2042 = vsel %vm2015, %v1981, 0.0
  %v2043 = vadd.f32 %v2041, %v2042
  %v2044 = vsel %vm2015, %v727, 0.0
  %v2045 = vsel %vm2015, %v1146, 0.0
  %v2046 = vadd.f32 %v2044, %v2045
  %v2047 = vsel %vm2015, %v1565, 0.0
  %v2048 = vadd.f32 %v2046, %v2047
  %v2049 = vsel %vm2015, %v1984, 0.0
  %v2050 = vadd.f32 %v2048, %v2049
  %v2051 = vsel %vm2015, %v729, 0.0
  %v2052 = vsel %vm2015, %v1148, 0.0
  %v2053 = vadd.f32 %v2051, %v2052
  %v2054 = vsel %vm2015, %v1567, 0.0
  %v2055 = vadd.f32 %v2053, %v2054
  %v2056 = vsel %vm2015, %v1986, 0.0
  %v2057 = vadd.f32 %v2055, %v2056
  %v2058 = vsel %vm2015, %v732, 0.0
  %v2059 = vsel %vm2015, %v1151, 0.0
  %v2060 = vadd.f32 %v2058, %v2059
  %v2061 = vsel %vm2015, %v1570, 0.0
  %v2062 = vadd.f32 %v2060, %v2061
  %v2063 = vsel %vm2015, %v1989, 0.0
  %v2064 = vadd.f32 %v2062, %v2063
  %v2065 = vsel %vm2015, %v734, 0.0
  %v2066 = vsel %vm2015, %v1153, 0.0
  %v2067 = vadd.f32 %v2065, %v2066
  %v2068 = vsel %vm2015, %v1572, 0.0
  %v2069 = vadd.f32 %v2067, %v2068
  %v2070 = vsel %vm2015, %v1991, 0.0
  %v2071 = vadd.f32 %v2069, %v2070
  %v2072 = vsel %vm2015, %v737, 0.0
  %v2073 = vsel %vm2015, %v1156, 0.0
  %v2074 = vadd.f32 %v2072, %v2073
  %v2075 = vsel %vm2015, %v1575, 0.0
  %v2076 = vadd.f32 %v2074, %v2075
  %v2077 = vsel %vm2015, %v1994, 0.0
  %v2078 = vadd.f32 %v2076, %v2077
  %v2079 = vsel %vm2015, %v739, 0.0
  %v2080 = vsel %vm2015, %v1158, 0.0
  %v2081 = vadd.f32 %v2079, %v2080
  %v2082 = vsel %vm2015, %v1577, 0.0
  %v2083 = vadd.f32 %v2081, %v2082
  %v2084 = vsel %vm2015, %v1996, 0.0
  %v2085 = vadd.f32 %v2083, %v2084
  %v2086 = vsel %vm2015, %v742, 0.0
  %v2087 = vsel %vm2015, %v1161, 0.0
  %v2088 = vadd.f32 %v2086, %v2087
  %v2089 = vsel %vm2015, %v1580, 0.0
  %v2090 = vadd.f32 %v2088, %v2089
  %v2091 = vsel %vm2015, %v1999, 0.0
  %v2092 = vadd.f32 %v2090, %v2091
  %v2093 = vsel %vm2015, %v744, 0.0
  %v2094 = vsel %vm2015, %v1163, 0.0
  %v2095 = vadd.f32 %v2093, %v2094
  %v2096 = vsel %vm2015, %v1582, 0.0
  %v2097 = vadd.f32 %v2095, %v2096
  %v2098 = vsel %vm2015, %v2001, 0.0
  %v2099 = vadd.f32 %v2097, %v2098
  %v2100 = vsel %vm2015, %v747, 0.0
  %v2101 = vsel %vm2015, %v1166, 0.0
  %v2102 = vadd.f32 %v2100, %v2101
  %v2103 = vsel %vm2015, %v1585, 0.0
  %v2104 = vadd.f32 %v2102, %v2103
  %v2105 = vsel %vm2015, %v2004, 0.0
  %v2106 = vadd.f32 %v2104, %v2105
  %v2107 = vsel %vm2015, %v749, 0.0
  %v2108 = vsel %vm2015, %v1168, 0.0
  %v2109 = vadd.f32 %v2107, %v2108
  %v2110 = vsel %vm2015, %v1587, 0.0
  %v2111 = vadd.f32 %v2109, %v2110
  %v2112 = vsel %vm2015, %v2006, 0.0
  %v2113 = vadd.f32 %v2111, %v2112
  %v2114 = vsel %vm2015, %v752, 0.0
  %v2115 = vsel %vm2015, %v1171, 0.0
  %v2116 = vadd.f32 %v2114, %v2115
  %v2117 = vsel %vm2015, %v1590, 0.0
  %v2118 = vadd.f32 %v2116, %v2117
  %v2119 = vsel %vm2015, %v2009, 0.0
  %v2120 = vadd.f32 %v2118, %v2119
  %v2121 = vsel %vm2015, %v754, 0.0
  %v2122 = vsel %vm2015, %v1173, 0.0
  %v2123 = vadd.f32 %v2121, %v2122
  %v2124 = vsel %vm2015, %v1592, 0.0
  %v2125 = vadd.f32 %v2123, %v2124
  %v2126 = vsel %vm2015, %v2011, 0.0
  %v2127 = vadd.f32 %v2125, %v2126
  %v2128 = vrcp.pop 4.0
  %v2129 = vmul.f32 4.0, %v2128
  %v2130 = vsub.f32 1.0, %v2129
  %v2131 = vmul.f32 %v2128, %v2130
  %v2132 = vadd.f32 %v2128, %v2131
  %vm2133 = vweird.f32 %v2128
  %v2134 = vsel %vm2133, %v2128, %v2132
  %v2135 = vmul.f32 %v2022, %v2134
  %v2136 = vmul.f32 %v2029, %v2134
  %v2137 = vmul.f32 %v2036, %v2134
  %v2138 = vmul.f32 %v2043, %v2134
  %v2139 = vmul.f32 %v2050, %v2134
  %v2140 = vmul.f32 %v2057, %v2134
  %v2141 = vmul.f32 %v2064, %v2134
  %v2142 = vmul.f32 %v2071, %v2134
  %v2143 = vmul.f32 %v2078, %v2134
  %v2144 = vmul.f32 %v2085, %v2134
  %v2145 = vmul.f32 %v2092, %v2134
  %v2146 = vmul.f32 %v2099, %v2134
  %v2147 = vmul.f32 %v2106, %v2134
  %v2148 = vmul.f32 %v2113, %v2134
  %v2149 = vmul.f32 %v2120, %v2134
  %v2150 = vmul.f32 %v2127, %v2134
  %v2151 = vsel %vm2015, %v2135, 0.0
  %v2152 = vsel %vm2015, %v2136, 0.0
  %v2153 = vadd.f32 %v2151, %v2152
  %v2154 = vsel %vm2015, %v2137, 0.0
  %v2155 = vadd.f32 %v2153, %v2154
  %v2156 = vsel %vm2015, %v2138, 0.0
  %v2157 = vadd.f32 %v2155, %v2156
  %v2158 = vsel %vm2015, %v2139, 0.0
  %v2159 = vadd.f32 %v2157, %v2158
  %v2160 = vsel %vm2015, %v2140, 0.0
  %v2161 = vadd.f32 %v2159, %v2160
  %v2162 = vsel %vm2015, %v2141, 0.0
  %v2163 = vadd.f32 %v2161, %v2162
  %v2164 = vsel %vm2015, %v2142, 0.0
  %v2165 = vadd.f32 %v2163, %v2164
  %v2166 = vsel %vm2015, %v2143, 0.0
  %v2167 = vadd.f32 %v2165, %v2166
  %v2168 = vsel %vm2015, %v2144, 0.0
  %v2169 = vadd.f32 %v2167, %v2168
  %v2170 = vsel %vm2015, %v2145, 0.0
  %v2171 = vadd.f32 %v2169, %v2170
  %v2172 = vsel %vm2015, %v2146, 0.0
  %v2173 = vadd.f32 %v2171, %v2172
  %v2174 = vsel %vm2015, %v2147, 0.0
  %v2175 = vadd.f32 %v2173, %v2174
  %v2176 = vsel %vm2015, %v2148, 0.0
  %v2177 = vadd.f32 %v2175, %v2176
  %v2178 = vsel %vm2015, %v2149, 0.0
  %v2179 = vadd.f32 %v2177, %v2178
  %v2180 = vsel %vm2015, %v2150, 0.0
  %v2181 = vadd.f32 %v2179, %v2180
  %v2182 = vrot.slane %v2181, 4
  %v2183 = vadd.f32 %v2181, %v2182
  %v2184 = vrot.slane %v2183, 2
  %v2185 = vadd.f32 %v2183, %v2184
  %v2186 = vrot.slane %v2185, 1
  %v2187 = vadd.f32 %v2185, %v2186
  %v2188 = vrcp.pop 128.0
  %v2189 = vmul.f32 128.0, %v2188
  %v2190 = vsub.f32 1.0, %v2189
  %v2191 = vmul.f32 %v2188, %v2190
  %v2192 = vadd.f32 %v2188, %v2191
  %vm2193 = vweird.f32 %v2188
  %v2194 = vsel %vm2193, %v2188, %v2192
  %v2195 = vmul.f32 %v2187, %v2194
  %v2196 = vsub.f32 %v717, %v2195
  %v2197 = vsub.f32 %v719, %v2195
  %v2198 = vsub.f32 %v722, %v2195
  %v2199 = vsub.f32 %v724, %v2195
  %v2200 = vsub.f32 %v727, %v2195
  %v2201 = vsub.f32 %v729, %v2195
  %v2202 = vsub.f32 %v732, %v2195
  %v2203 = vsub.f32 %v734, %v2195
  %v2204 = vsub.f32 %v737, %v2195
  %v2205 = vsub.f32 %v739, %v2195
  %v2206 = vsub.f32 %v742, %v2195
  %v2207 = vsub.f32 %v744, %v2195
  %v2208 = vsub.f32 %v747, %v2195
  %v2209 = vsub.f32 %v749, %v2195
  %v2210 = vsub.f32 %v752, %v2195
  %v2211 = vsub.f32 %v754, %v2195
  %v2212 = vsub.f32 %v1136, %v2195
  %v2213 = vsub.f32 %v1138, %v2195
  %v2214 = vsub.f32 %v1141, %v2195
  %v2215 = vsub.f32 %v1143, %v2195
  %v2216 = vsub.f32 %v1146, %v2195
  %v2217 = vsub.f32 %v1148, %v2195
  %v2218 = vsub.f32 %v1151, %v2195
  %v2219 = vsub.f32 %v1153, %v2195
  %v2220 = vsub.f32 %v1156, %v2195
  %v2221 = vsub.f32 %v1158, %v2195
  %v2222 = vsub.f32 %v1161, %v2195
  %v2223 = vsub.f32 %v1163, %v2195
  %v2224 = vsub.f32 %v1166, %v2195
  %v2225 = vsub.f32 %v1168, %v2195
  %v2226 = vsub.f32 %v1171, %v2195
  %v2227 = vsub.f32 %v1173, %v2195
  %v2228 = vsub.f32 %v1555, %v2195
  %v2229 = vsub.f32 %v1557, %v2195
  %v2230 = vsub.f32 %v1560, %v2195
  %v2231 = vsub.f32 %v1562, %v2195
  %v2232 = vsub.f32 %v1565, %v2195
  %v2233 = vsub.f32 %v1567, %v2195
  %v2234 = vsub.f32 %v1570, %v2195
  %v2235 = vsub.f32 %v1572, %v2195
  %v2236 = vsub.f32 %v1575, %v2195
  %v2237 = vsub.f32 %v1577, %v2195
  %v2238 = vsub.f32 %v1580, %v2195
  %v2239 = vsub.f32 %v1582, %v2195
  %v2240 = vsub.f32 %v1585, %v2195
  %v2241 = vsub.f32 %v1587, %v2195
  %v2242 = vsub.f32 %v1590, %v2195
  %v2243 = vsub.f32 %v1592, %v2195
  %v2244 = vsub.f32 %v1974, %v2195
  %v2245 = vsub.f32 %v1976, %v2195
  %v2246 = vsub.f32 %v1979, %v2195
  %v2247 = vsub.f32 %v1981, %v2195
  %v2248 = vsub.f32 %v1984, %v2195
  %v2249 = vsub.f32 %v1986, %v2195
  %v2250 = vsub.f32 %v1989, %v2195
  %v2251 = vsub.f32 %v1991, %v2195
  %v2252 = vsub.f32 %v1994, %v2195
  %v2253 = vsub.f32 %v1996, %v2195
  %v2254 = vsub.f32 %v1999, %v2195
  %v2255 = vsub.f32 %v2001, %v2195
  %v2256 = vsub.f32 %v2004, %v2195
  %v2257 = vsub.f32 %v2006, %v2195
  %v2258 = vsub.f32 %v2009, %v2195
  %v2259 = vsub.f32 %v2011, %v2195
  %v2260 = vmul.f32 %v2196, %v2196
  %v2261 = vmul.f32 %v2197, %v2197
  %v2262 = vmul.f32 %v2198, %v2198
  %v2263 = vmul.f32 %v2199, %v2199
  %v2264 = vmul.f32 %v2200, %v2200
  %v2265 = vmul.f32 %v2201, %v2201
  %v2266 = vmul.f32 %v2202, %v2202
  %v2267 = vmul.f32 %v2203, %v2203
  %v2268 = vmul.f32 %v2204, %v2204
  %v2269 = vmul.f32 %v2205, %v2205
  %v2270 = vmul.f32 %v2206, %v2206
  %v2271 = vmul.f32 %v2207, %v2207
  %v2272 = vmul.f32 %v2208, %v2208
  %v2273 = vmul.f32 %v2209, %v2209
  %v2274 = vmul.f32 %v2210, %v2210
  %v2275 = vmul.f32 %v2211, %v2211
  %v2276 = vmul.f32 %v2212, %v2212
  %v2277 = vmul.f32 %v2213, %v2213
  %v2278 = vmul.f32 %v2214, %v2214
  %v2279 = vmul.f32 %v2215, %v2215
  %v2280 = vmul.f32 %v2216, %v2216
  %v2281 = vmul.f32 %v2217, %v2217
  %v2282 = vmul.f32 %v2218, %v2218
  %v2283 = vmul.f32 %v2219, %v2219
  %v2284 = vmul.f32 %v2220, %v2220
  %v2285 = vmul.f32 %v2221, %v2221
  %v2286 = vmul.f32 %v2222, %v2222
  %v2287 = vmul.f32 %v2223, %v2223
  %v2288 = vmul.f32 %v2224, %v2224
  %v2289 = vmul.f32 %v2225, %v2225
  %v2290 = vmul.f32 %v2226, %v2226
  %v2291 = vmul.f32 %v2227, %v2227
  %v2292 = vmul.f32 %v2228, %v2228
  %v2293 = vmul.f32 %v2229, %v2229
  %v2294 = vmul.f32 %v2230, %v2230
  %v2295 = vmul.f32 %v2231, %v2231
  %v2296 = vmul.f32 %v2232, %v2232
  %v2297 = vmul.f32 %v2233, %v2233
  %v2298 = vmul.f32 %v2234, %v2234
  %v2299 = vmul.f32 %v2235, %v2235
  %v2300 = vmul.f32 %v2236, %v2236
  %v2301 = vmul.f32 %v2237, %v2237
  %v2302 = vmul.f32 %v2238, %v2238
  %v2303 = vmul.f32 %v2239, %v2239
  %v2304 = vmul.f32 %v2240, %v2240
  %v2305 = vmul.f32 %v2241, %v2241
  %v2306 = vmul.f32 %v2242, %v2242
  %v2307 = vmul.f32 %v2243, %v2243
  %v2308 = vmul.f32 %v2244, %v2244
  %v2309 = vmul.f32 %v2245, %v2245
  %v2310 = vmul.f32 %v2246, %v2246
  %v2311 = vmul.f32 %v2247, %v2247
  %v2312 = vmul.f32 %v2248, %v2248
  %v2313 = vmul.f32 %v2249, %v2249
  %v2314 = vmul.f32 %v2250, %v2250
  %v2315 = vmul.f32 %v2251, %v2251
  %v2316 = vmul.f32 %v2252, %v2252
  %v2317 = vmul.f32 %v2253, %v2253
  %v2318 = vmul.f32 %v2254, %v2254
  %v2319 = vmul.f32 %v2255, %v2255
  %v2320 = vmul.f32 %v2256, %v2256
  %v2321 = vmul.f32 %v2257, %v2257
  %v2322 = vmul.f32 %v2258, %v2258
  %v2323 = vmul.f32 %v2259, %v2259
  %v2324 = vsel %vm2015, %v2260, 0.0
  %v2325 = vsel %vm2015, %v2276, 0.0
  %v2326 = vadd.f32 %v2324, %v2325
  %v2327 = vsel %vm2015, %v2292, 0.0
  %v2328 = vadd.f32 %v2326, %v2327
  %v2329 = vsel %vm2015, %v2308, 0.0
  %v2330 = vadd.f32 %v2328, %v2329
  %v2331 = vsel %vm2015, %v2261, 0.0
  %v2332 = vsel %vm2015, %v2277, 0.0
  %v2333 = vadd.f32 %v2331, %v2332
  %v2334 = vsel %vm2015, %v2293, 0.0
  %v2335 = vadd.f32 %v2333, %v2334
  %v2336 = vsel %vm2015, %v2309, 0.0
  %v2337 = vadd.f32 %v2335, %v2336
  %v2338 = vsel %vm2015, %v2262, 0.0
  %v2339 = vsel %vm2015, %v2278, 0.0
  %v2340 = vadd.f32 %v2338, %v2339
  %v2341 = vsel %vm2015, %v2294, 0.0
  %v2342 = vadd.f32 %v2340, %v2341
  %v2343 = vsel %vm2015, %v2310, 0.0
  %v2344 = vadd.f32 %v2342, %v2343
  %v2345 = vsel %vm2015, %v2263, 0.0
  %v2346 = vsel %vm2015, %v2279, 0.0
  %v2347 = vadd.f32 %v2345, %v2346
  %v2348 = vsel %vm2015, %v2295, 0.0
  %v2349 = vadd.f32 %v2347, %v2348
  %v2350 = vsel %vm2015, %v2311, 0.0
  %v2351 = vadd.f32 %v2349, %v2350
  %v2352 = vsel %vm2015, %v2264, 0.0
  %v2353 = vsel %vm2015, %v2280, 0.0
  %v2354 = vadd.f32 %v2352, %v2353
  %v2355 = vsel %vm2015, %v2296, 0.0
  %v2356 = vadd.f32 %v2354, %v2355
  %v2357 = vsel %vm2015, %v2312, 0.0
  %v2358 = vadd.f32 %v2356, %v2357
  %v2359 = vsel %vm2015, %v2265, 0.0
  %v2360 = vsel %vm2015, %v2281, 0.0
  %v2361 = vadd.f32 %v2359, %v2360
  %v2362 = vsel %vm2015, %v2297, 0.0
  %v2363 = vadd.f32 %v2361, %v2362
  %v2364 = vsel %vm2015, %v2313, 0.0
  %v2365 = vadd.f32 %v2363, %v2364
  %v2366 = vsel %vm2015, %v2266, 0.0
  %v2367 = vsel %vm2015, %v2282, 0.0
  %v2368 = vadd.f32 %v2366, %v2367
  %v2369 = vsel %vm2015, %v2298, 0.0
  %v2370 = vadd.f32 %v2368, %v2369
  %v2371 = vsel %vm2015, %v2314, 0.0
  %v2372 = vadd.f32 %v2370, %v2371
  %v2373 = vsel %vm2015, %v2267, 0.0
  %v2374 = vsel %vm2015, %v2283, 0.0
  %v2375 = vadd.f32 %v2373, %v2374
  %v2376 = vsel %vm2015, %v2299, 0.0
  %v2377 = vadd.f32 %v2375, %v2376
  %v2378 = vsel %vm2015, %v2315, 0.0
  %v2379 = vadd.f32 %v2377, %v2378
  %v2380 = vsel %vm2015, %v2268, 0.0
  %v2381 = vsel %vm2015, %v2284, 0.0
  %v2382 = vadd.f32 %v2380, %v2381
  %v2383 = vsel %vm2015, %v2300, 0.0
  %v2384 = vadd.f32 %v2382, %v2383
  %v2385 = vsel %vm2015, %v2316, 0.0
  %v2386 = vadd.f32 %v2384, %v2385
  %v2387 = vsel %vm2015, %v2269, 0.0
  %v2388 = vsel %vm2015, %v2285, 0.0
  %v2389 = vadd.f32 %v2387, %v2388
  %v2390 = vsel %vm2015, %v2301, 0.0
  %v2391 = vadd.f32 %v2389, %v2390
  %v2392 = vsel %vm2015, %v2317, 0.0
  %v2393 = vadd.f32 %v2391, %v2392
  %v2394 = vsel %vm2015, %v2270, 0.0
  %v2395 = vsel %vm2015, %v2286, 0.0
  %v2396 = vadd.f32 %v2394, %v2395
  %v2397 = vsel %vm2015, %v2302, 0.0
  %v2398 = vadd.f32 %v2396, %v2397
  %v2399 = vsel %vm2015, %v2318, 0.0
  %v2400 = vadd.f32 %v2398, %v2399
  %v2401 = vsel %vm2015, %v2271, 0.0
  %v2402 = vsel %vm2015, %v2287, 0.0
  %v2403 = vadd.f32 %v2401, %v2402
  %v2404 = vsel %vm2015, %v2303, 0.0
  %v2405 = vadd.f32 %v2403, %v2404
  %v2406 = vsel %vm2015, %v2319, 0.0
  %v2407 = vadd.f32 %v2405, %v2406
  %v2408 = vsel %vm2015, %v2272, 0.0
  %v2409 = vsel %vm2015, %v2288, 0.0
  %v2410 = vadd.f32 %v2408, %v2409
  %v2411 = vsel %vm2015, %v2304, 0.0
  %v2412 = vadd.f32 %v2410, %v2411
  %v2413 = vsel %vm2015, %v2320, 0.0
  %v2414 = vadd.f32 %v2412, %v2413
  %v2415 = vsel %vm2015, %v2273, 0.0
  %v2416 = vsel %vm2015, %v2289, 0.0
  %v2417 = vadd.f32 %v2415, %v2416
  %v2418 = vsel %vm2015, %v2305, 0.0
  %v2419 = vadd.f32 %v2417, %v2418
  %v2420 = vsel %vm2015, %v2321, 0.0
  %v2421 = vadd.f32 %v2419, %v2420
  %v2422 = vsel %vm2015, %v2274, 0.0
  %v2423 = vsel %vm2015, %v2290, 0.0
  %v2424 = vadd.f32 %v2422, %v2423
  %v2425 = vsel %vm2015, %v2306, 0.0
  %v2426 = vadd.f32 %v2424, %v2425
  %v2427 = vsel %vm2015, %v2322, 0.0
  %v2428 = vadd.f32 %v2426, %v2427
  %v2429 = vsel %vm2015, %v2275, 0.0
  %v2430 = vsel %vm2015, %v2291, 0.0
  %v2431 = vadd.f32 %v2429, %v2430
  %v2432 = vsel %vm2015, %v2307, 0.0
  %v2433 = vadd.f32 %v2431, %v2432
  %v2434 = vsel %vm2015, %v2323, 0.0
  %v2435 = vadd.f32 %v2433, %v2434
  %v2436 = vmul.f32 %v2330, %v2134
  %v2437 = vmul.f32 %v2337, %v2134
  %v2438 = vmul.f32 %v2344, %v2134
  %v2439 = vmul.f32 %v2351, %v2134
  %v2440 = vmul.f32 %v2358, %v2134
  %v2441 = vmul.f32 %v2365, %v2134
  %v2442 = vmul.f32 %v2372, %v2134
  %v2443 = vmul.f32 %v2379, %v2134
  %v2444 = vmul.f32 %v2386, %v2134
  %v2445 = vmul.f32 %v2393, %v2134
  %v2446 = vmul.f32 %v2400, %v2134
  %v2447 = vmul.f32 %v2407, %v2134
  %v2448 = vmul.f32 %v2414, %v2134
  %v2449 = vmul.f32 %v2421, %v2134
  %v2450 = vmul.f32 %v2428, %v2134
  %v2451 = vmul.f32 %v2435, %v2134
  %v2452 = vsel %vm2015, %v2436, 0.0
  %v2453 = vsel %vm2015, %v2437, 0.0
  %v2454 = vadd.f32 %v2452, %v2453
  %v2455 = vsel %vm2015, %v2438, 0.0
  %v2456 = vadd.f32 %v2454, %v2455
  %v2457 = vsel %vm2015, %v2439, 0.0
  %v2458 = vadd.f32 %v2456, %v2457
  %v2459 = vsel %vm2015, %v2440, 0.0
  %v2460 = vadd.f32 %v2458, %v2459
  %v2461 = vsel %vm2015, %v2441, 0.0
  %v2462 = vadd.f32 %v2460, %v2461
  %v2463 = vsel %vm2015, %v2442, 0.0
  %v2464 = vadd.f32 %v2462, %v2463
  %v2465 = vsel %vm2015, %v2443, 0.0
  %v2466 = vadd.f32 %v2464, %v2465
  %v2467 = vsel %vm2015, %v2444, 0.0
  %v2468 = vadd.f32 %v2466, %v2467
  %v2469 = vsel %vm2015, %v2445, 0.0
  %v2470 = vadd.f32 %v2468, %v2469
  %v2471 = vsel %vm2015, %v2446, 0.0
  %v2472 = vadd.f32 %v2470, %v2471
  %v2473 = vsel %vm2015, %v2447, 0.0
  %v2474 = vadd.f32 %v2472, %v2473
  %v2475 = vsel %vm2015, %v2448, 0.0
  %v2476 = vadd.f32 %v2474, %v2475
  %v2477 = vsel %vm2015, %v2449, 0.0
  %v2478 = vadd.f32 %v2476, %v2477
  %v2479 = vsel %vm2015, %v2450, 0.0
  %v2480 = vadd.f32 %v2478, %v2479
  %v2481 = vsel %vm2015, %v2451, 0.0
  %v2482 = vadd.f32 %v2480, %v2481
  %v2483 = vrot.slane %v2482, 4
  %v2484 = vadd.f32 %v2482, %v2483
  %v2485 = vrot.slane %v2484, 2
  %v2486 = vadd.f32 %v2484, %v2485
  %v2487 = vrot.slane %v2486, 1
  %v2488 = vadd.f32 %v2486, %v2487
  %v2489 = vmul.f32 %v2488, %v2194
  %v2490 = vadd.f32 %v2489, 1e-05
  %v2491 = vrsqrt.pop %v2490
  %v2492 = vmul.f32 %v2491, %v2490
  %v2493 = vmul.f32 %v2492, %v2491
  %v2494 = vmul.f32 0.5, %v2493
  %v2495 = vsub.f32 1.5, %v2494
  %v2496 = vmul.f32 %v2491, %v2495
  %vm2497 = vweird.f32 %v2490
  %vm2498 = vweird.f32 %v2491
  %vm2499 = vmor %vm2497, %vm2498
  %v2500 = vsel %vm2499, %v2491, %v2496
  %v2501 = vmul.f32 %v2196, %v2500
  %v2502 = vmul.f32 %v2197, %v2500
  %v2503 = vmul.f32 %v2198, %v2500
  %v2504 = vmul.f32 %v2199, %v2500
  %v2505 = vmul.f32 %v2200, %v2500
  %v2506 = vmul.f32 %v2201, %v2500
  %v2507 = vmul.f32 %v2202, %v2500
  %v2508 = vmul.f32 %v2203, %v2500
  %v2509 = vmul.f32 %v2204, %v2500
  %v2510 = vmul.f32 %v2205, %v2500
  %v2511 = vmul.f32 %v2206, %v2500
  %v2512 = vmul.f32 %v2207, %v2500
  %v2513 = vmul.f32 %v2208, %v2500
  %v2514 = vmul.f32 %v2209, %v2500
  %v2515 = vmul.f32 %v2210, %v2500
  %v2516 = vmul.f32 %v2211, %v2500
  %v2517 = vmul.f32 %v2212, %v2500
  %v2518 = vmul.f32 %v2213, %v2500
  %v2519 = vmul.f32 %v2214, %v2500
  %v2520 = vmul.f32 %v2215, %v2500
  %v2521 = vmul.f32 %v2216, %v2500
  %v2522 = vmul.f32 %v2217, %v2500
  %v2523 = vmul.f32 %v2218, %v2500
  %v2524 = vmul.f32 %v2219, %v2500
  %v2525 = vmul.f32 %v2220, %v2500
  %v2526 = vmul.f32 %v2221, %v2500
  %v2527 = vmul.f32 %v2222, %v2500
  %v2528 = vmul.f32 %v2223, %v2500
  %v2529 = vmul.f32 %v2224, %v2500
  %v2530 = vmul.f32 %v2225, %v2500
  %v2531 = vmul.f32 %v2226, %v2500
  %v2532 = vmul.f32 %v2227, %v2500
  %v2533 = vmul.f32 %v2228, %v2500
  %v2534 = vmul.f32 %v2229, %v2500
  %v2535 = vmul.f32 %v2230, %v2500
  %v2536 = vmul.f32 %v2231, %v2500
  %v2537 = vmul.f32 %v2232, %v2500
  %v2538 = vmul.f32 %v2233, %v2500
  %v2539 = vmul.f32 %v2234, %v2500
  %v2540 = vmul.f32 %v2235, %v2500
  %v2541 = vmul.f32 %v2236, %v2500
  %v2542 = vmul.f32 %v2237, %v2500
  %v2543 = vmul.f32 %v2238, %v2500
  %v2544 = vmul.f32 %v2239, %v2500
  %v2545 = vmul.f32 %v2240, %v2500
  %v2546 = vmul.f32 %v2241, %v2500
  %v2547 = vmul.f32 %v2242, %v2500
  %v2548 = vmul.f32 %v2243, %v2500
  %v2549 = vmul.f32 %v2244, %v2500
  %v2550 = vmul.f32 %v2245, %v2500
  %v2551 = vmul.f32 %v2246, %v2500
  %v2552 = vmul.f32 %v2247, %v2500
  %v2553 = vmul.f32 %v2248, %v2500
  %v2554 = vmul.f32 %v2249, %v2500
  %v2555 = vmul.f32 %v2250, %v2500
  %v2556 = vmul.f32 %v2251, %v2500
  %v2557 = vmul.f32 %v2252, %v2500
  %v2558 = vmul.f32 %v2253, %v2500
  %v2559 = vmul.f32 %v2254, %v2500
  %v2560 = vmul.f32 %v2255, %v2500
  %v2561 = vmul.f32 %v2256, %v2500
  %v2562 = vmul.f32 %v2257, %v2500
  %v2563 = vmul.f32 %v2258, %v2500
  %v2564 = vmul.f32 %v2259, %v2500
  %v2566 = vperm.slane %v2013, 0
  %v2568 = vmul.f32 %v2501, %v2566
  %v2569 = vmul.f32 %v2502, %v2566
  %v2570 = vmul.f32 %v2503, %v2566
  %v2571 = vmul.f32 %v2504, %v2566
  %v2572 = vmul.f32 %v2505, %v2566
  %v2573 = vmul.f32 %v2506, %v2566
  %v2574 = vmul.f32 %v2507, %v2566
  %v2575 = vmul.f32 %v2508, %v2566
  %v2576 = vmul.f32 %v2509, %v2566
  %v2577 = vmul.f32 %v2510, %v2566
  %v2578 = vmul.f32 %v2511, %v2566
  %v2579 = vmul.f32 %v2512, %v2566
  %v2580 = vmul.f32 %v2513, %v2566
  %v2581 = vmul.f32 %v2514, %v2566
  %v2582 = vmul.f32 %v2515, %v2566
  %v2583 = vmul.f32 %v2516, %v2566
  %v2584 = vmul.f32 %v2517, %v2566
  %v2585 = vmul.f32 %v2518, %v2566
  %v2586 = vmul.f32 %v2519, %v2566
  %v2587 = vmul.f32 %v2520, %v2566
  %v2588 = vmul.f32 %v2521, %v2566
  %v2589 = vmul.f32 %v2522, %v2566
  %v2590 = vmul.f32 %v2523, %v2566
  %v2591 = vmul.f32 %v2524, %v2566
  %v2592 = vmul.f32 %v2525, %v2566
  %v2593 = vmul.f32 %v2526, %v2566
  %v2594 = vmul.f32 %v2527, %v2566
  %v2595 = vmul.f32 %v2528, %v2566
  %v2596 = vmul.f32 %v2529, %v2566
  %v2597 = vmul.f32 %v2530, %v2566
  %v2598 = vmul.f32 %v2531, %v2566
  %v2599 = vmul.f32 %v2532, %v2566
  %v2600 = vmul.f32 %v2533, %v2566
  %v2601 = vmul.f32 %v2534, %v2566
  %v2602 = vmul.f32 %v2535, %v2566
  %v2603 = vmul.f32 %v2536, %v2566
  %v2604 = vmul.f32 %v2537, %v2566
  %v2605 = vmul.f32 %v2538, %v2566
  %v2606 = vmul.f32 %v2539, %v2566
  %v2607 = vmul.f32 %v2540, %v2566
  %v2608 = vmul.f32 %v2541, %v2566
  %v2609 = vmul.f32 %v2542, %v2566
  %v2610 = vmul.f32 %v2543, %v2566
  %v2611 = vmul.f32 %v2544, %v2566
  %v2612 = vmul.f32 %v2545, %v2566
  %v2613 = vmul.f32 %v2546, %v2566
  %v2614 = vmul.f32 %v2547, %v2566
  %v2615 = vmul.f32 %v2548, %v2566
  %v2616 = vmul.f32 %v2549, %v2566
  %v2617 = vmul.f32 %v2550, %v2566
  %v2618 = vmul.f32 %v2551, %v2566
  %v2619 = vmul.f32 %v2552, %v2566
  %v2620 = vmul.f32 %v2553, %v2566
  %v2621 = vmul.f32 %v2554, %v2566
  %v2622 = vmul.f32 %v2555, %v2566
  %v2623 = vmul.f32 %v2556, %v2566
  %v2624 = vmul.f32 %v2557, %v2566
  %v2625 = vmul.f32 %v2558, %v2566
  %v2626 = vmul.f32 %v2559, %v2566
  %v2627 = vmul.f32 %v2560, %v2566
  %v2628 = vmul.f32 %v2561, %v2566
  %v2629 = vmul.f32 %v2562, %v2566
  %v2630 = vmul.f32 %v2563, %v2566
  %v2631 = vmul.f32 %v2564, %v2566
  %v2633 = vperm.slane %v2014, 0
  %v2635 = vadd.f32 %v2568, %v2633
  %v2636 = vadd.f32 %v2569, %v2633
  %v2637 = vadd.f32 %v2570, %v2633
  %v2638 = vadd.f32 %v2571, %v2633
  %v2639 = vadd.f32 %v2572, %v2633
  %v2640 = vadd.f32 %v2573, %v2633
  %v2641 = vadd.f32 %v2574, %v2633
  %v2642 = vadd.f32 %v2575, %v2633
  %v2643 = vadd.f32 %v2576, %v2633
  %v2644 = vadd.f32 %v2577, %v2633
  %v2645 = vadd.f32 %v2578, %v2633
  %v2646 = vadd.f32 %v2579, %v2633
  %v2647 = vadd.f32 %v2580, %v2633
  %v2648 = vadd.f32 %v2581, %v2633
  %v2649 = vadd.f32 %v2582, %v2633
  %v2650 = vadd.f32 %v2583, %v2633
  %v2651 = vadd.f32 %v2584, %v2633
  %v2652 = vadd.f32 %v2585, %v2633
  %v2653 = vadd.f32 %v2586, %v2633
  %v2654 = vadd.f32 %v2587, %v2633
  %v2655 = vadd.f32 %v2588, %v2633
  %v2656 = vadd.f32 %v2589, %v2633
  %v2657 = vadd.f32 %v2590, %v2633
  %v2658 = vadd.f32 %v2591, %v2633
  %v2659 = vadd.f32 %v2592, %v2633
  %v2660 = vadd.f32 %v2593, %v2633
  %v2661 = vadd.f32 %v2594, %v2633
  %v2662 = vadd.f32 %v2595, %v2633
  %v2663 = vadd.f32 %v2596, %v2633
  %v2664 = vadd.f32 %v2597, %v2633
  %v2665 = vadd.f32 %v2598, %v2633
  %v2666 = vadd.f32 %v2599, %v2633
  %v2667 = vadd.f32 %v2600, %v2633
  %v2668 = vadd.f32 %v2601, %v2633
  %v2669 = vadd.f32 %v2602, %v2633
  %v2670 = vadd.f32 %v2603, %v2633
  %v2671 = vadd.f32 %v2604, %v2633
  %v2672 = vadd.f32 %v2605, %v2633
  %v2673 = vadd.f32 %v2606, %v2633
  %v2674 = vadd.f32 %v2607, %v2633
  %v2675 = vadd.f32 %v2608, %v2633
  %v2676 = vadd.f32 %v2609, %v2633
  %v2677 = vadd.f32 %v2610, %v2633
  %v2678 = vadd.f32 %v2611, %v2633
  %v2679 = vadd.f32 %v2612, %v2633
  %v2680 = vadd.f32 %v2613, %v2633
  %v2681 = vadd.f32 %v2614, %v2633
  %v2682 = vadd.f32 %v2615, %v2633
  %v2683 = vadd.f32 %v2616, %v2633
  %v2684 = vadd.f32 %v2617, %v2633
  %v2685 = vadd.f32 %v2618, %v2633
  %v2686 = vadd.f32 %v2619, %v2633
  %v2687 = vadd.f32 %v2620, %v2633
  %v2688 = vadd.f32 %v2621, %v2633
  %v2689 = vadd.f32 %v2622, %v2633
  %v2690 = vadd.f32 %v2623, %v2633
  %v2691 = vadd.f32 %v2624, %v2633
  %v2692 = vadd.f32 %v2625, %v2633
  %v2693 = vadd.f32 %v2626, %v2633
  %v2694 = vadd.f32 %v2627, %v2633
  %v2695 = vadd.f32 %v2628, %v2633
  %v2696 = vadd.f32 %v2629, %v2633
  %v2697 = vadd.f32 %v2630, %v2633
  %v2698 = vadd.f32 %v2631, %v2633
  %v2699 = vmax.f32 %v2635, 0.0
  %v2700 = vmax.f32 %v2636, 0.0
  %v2701 = vmax.f32 %v2637, 0.0
  %v2702 = vmax.f32 %v2638, 0.0
  %v2703 = vmax.f32 %v2639, 0.0
  %v2704 = vmax.f32 %v2640, 0.0
  %v2705 = vmax.f32 %v2641, 0.0
  %v2706 = vmax.f32 %v2642, 0.0
  %v2707 = vmax.f32 %v2643, 0.0
  %v2708 = vmax.f32 %v2644, 0.0
  %v2709 = vmax.f32 %v2645, 0.0
  %v2710 = vmax.f32 %v2646, 0.0
  %v2711 = vmax.f32 %v2647, 0.0
  %v2712 = vmax.f32 %v2648, 0.0
  %v2713 = vmax.f32 %v2649, 0.0
  %v2714 = vmax.f32 %v2650, 0.0
  %v2715 = vmax.f32 %v2651, 0.0
  %v2716 = vmax.f32 %v2652, 0.0
  %v2717 = vmax.f32 %v2653, 0.0
  %v2718 = vmax.f32 %v2654, 0.0
  %v2719 = vmax.f32 %v2655, 0.0
  %v2720 = vmax.f32 %v2656, 0.0
  %v2721 = vmax.f32 %v2657, 0.0
  %v2722 = vmax.f32 %v2658, 0.0
  %v2723 = vmax.f32 %v2659, 0.0
  %v2724 = vmax.f32 %v2660, 0.0
  %v2725 = vmax.f32 %v2661, 0.0
  %v2726 = vmax.f32 %v2662, 0.0
  %v2727 = vmax.f32 %v2663, 0.0
  %v2728 = vmax.f32 %v2664, 0.0
  %v2729 = vmax.f32 %v2665, 0.0
  %v2730 = vmax.f32 %v2666, 0.0
  %v2731 = vmax.f32 %v2667, 0.0
  %v2732 = vmax.f32 %v2668, 0.0
  %v2733 = vmax.f32 %v2669, 0.0
  %v2734 = vmax.f32 %v2670, 0.0
  %v2735 = vmax.f32 %v2671, 0.0
  %v2736 = vmax.f32 %v2672, 0.0
  %v2737 = vmax.f32 %v2673, 0.0
  %v2738 = vmax.f32 %v2674, 0.0
  %v2739 = vmax.f32 %v2675, 0.0
  %v2740 = vmax.f32 %v2676, 0.0
  %v2741 = vmax.f32 %v2677, 0.0
  %v2742 = vmax.f32 %v2678, 0.0
  %v2743 = vmax.f32 %v2679, 0.0
  %v2744 = vmax.f32 %v2680, 0.0
  %v2745 = vmax.f32 %v2681, 0.0
  %v2746 = vmax.f32 %v2682, 0.0
  %v2747 = vmax.f32 %v2683, 0.0
  %v2748 = vmax.f32 %v2684, 0.0
  %v2749 = vmax.f32 %v2685, 0.0
  %v2750 = vmax.f32 %v2686, 0.0
  %v2751 = vmax.f32 %v2687, 0.0
  %v2752 = vmax.f32 %v2688, 0.0
  %v2753 = vmax.f32 %v2689, 0.0
  %v2754 = vmax.f32 %v2690, 0.0
  %v2755 = vmax.f32 %v2691, 0.0
  %v2756 = vmax.f32 %v2692, 0.0
  %v2757 = vmax.f32 %v2693, 0.0
  %v2758 = vmax.f32 %v2694, 0.0
  %v2759 = vmax.f32 %v2695, 0.0
  %v2760 = vmax.f32 %v2696, 0.0
  %v2761 = vmax.f32 %v2697, 0.0
  %v2762 = vmax.f32 %v2698, 0.0
  %v2763 = vpack.c.bf16 %v2699, %v2699
  %v2764 = vpack.c.bf16 %v2700, %v2700
  %v2765 = vpack.c.bf16 %v2701, %v2701
  %v2766 = vpack.c.bf16 %v2702, %v2702
  %v2767 = vpack.c.bf16 %v2703, %v2703
  %v2768 = vpack.c.bf16 %v2704, %v2704
  %v2769 = vpack.c.bf16 %v2705, %v2705
  %v2770 = vpack.c.bf16 %v2706, %v2706
  %v2771 = vpack.c.bf16 %v2707, %v2707
  %v2772 = vpack.c.bf16 %v2708, %v2708
  %v2773 = vpack.c.bf16 %v2709, %v2709
  %v2774 = vpack.c.bf16 %v2710, %v2710
  %v2775 = vpack.c.bf16 %v2711, %v2711
  %v2776 = vpack.c.bf16 %v2712, %v2712
  %v2777 = vpack.c.bf16 %v2713, %v2713
  %v2778 = vpack.c.bf16 %v2714, %v2714
  %v2779 = vpack.c.bf16 %v2715, %v2715
  %v2780 = vpack.c.bf16 %v2716, %v2716
  %v2781 = vpack.c.bf16 %v2717, %v2717
  %v2782 = vpack.c.bf16 %v2718, %v2718
  %v2783 = vpack.c.bf16 %v2719, %v2719
  %v2784 = vpack.c.bf16 %v2720, %v2720
  %v2785 = vpack.c.bf16 %v2721, %v2721
  %v2786 = vpack.c.bf16 %v2722, %v2722
  %v2787 = vpack.c.bf16 %v2723, %v2723
  %v2788 = vpack.c.bf16 %v2724, %v2724
  %v2789 = vpack.c.bf16 %v2725, %v2725
  %v2790 = vpack.c.bf16 %v2726, %v2726
  %v2791 = vpack.c.bf16 %v2727, %v2727
  %v2792 = vpack.c.bf16 %v2728, %v2728
  %v2793 = vpack.c.bf16 %v2729, %v2729
  %v2794 = vpack.c.bf16 %v2730, %v2730
  %v2795 = vpack.c.bf16 %v2731, %v2731
  %v2796 = vpack.c.bf16 %v2732, %v2732
  %v2797 = vpack.c.bf16 %v2733, %v2733
  %v2798 = vpack.c.bf16 %v2734, %v2734
  %v2799 = vpack.c.bf16 %v2735, %v2735
  %v2800 = vpack.c.bf16 %v2736, %v2736
  %v2801 = vpack.c.bf16 %v2737, %v2737
  %v2802 = vpack.c.bf16 %v2738, %v2738
  %v2803 = vpack.c.bf16 %v2739, %v2739
  %v2804 = vpack.c.bf16 %v2740, %v2740
  %v2805 = vpack.c.bf16 %v2741, %v2741
  %v2806 = vpack.c.bf16 %v2742, %v2742
  %v2807 = vpack.c.bf16 %v2743, %v2743
  %v2808 = vpack.c.bf16 %v2744, %v2744
  %v2809 = vpack.c.bf16 %v2745, %v2745
  %v2810 = vpack.c.bf16 %v2746, %v2746
  %v2811 = vpack.c.bf16 %v2747, %v2747
  %v2812 = vpack.c.bf16 %v2748, %v2748
  %v2813 = vpack.c.bf16 %v2749, %v2749
  %v2814 = vpack.c.bf16 %v2750, %v2750
  %v2815 = vpack.c.bf16 %v2751, %v2751
  %v2816 = vpack.c.bf16 %v2752, %v2752
  %v2817 = vpack.c.bf16 %v2753, %v2753
  %v2818 = vpack.c.bf16 %v2754, %v2754
  %v2819 = vpack.c.bf16 %v2755, %v2755
  %v2820 = vpack.c.bf16 %v2756, %v2756
  %v2821 = vpack.c.bf16 %v2757, %v2757
  %v2822 = vpack.c.bf16 %v2758, %v2758
  %v2823 = vpack.c.bf16 %v2759, %v2759
  %v2824 = vpack.c.bf16 %v2760, %v2760
  %v2825 = vpack.c.bf16 %v2761, %v2761
  %v2826 = vpack.c.bf16 %v2762, %v2762
  %vm2827 = vcmask 388096
  %2828 = vst.msk [vmem:[%s4] sm:$0xf] %vm2827, %v2763
  %2829 = vst.msk [vmem:[%s4 + $0x4] sm:$0xf] %vm2827, %v2764
  %2830 = vst.msk [vmem:[%s4 + $0x8] sm:$0xf] %vm2827, %v2765
  %2831 = vst.msk [vmem:[%s4 + $0xc] sm:$0xf] %vm2827, %v2766
  %2832 = vst.msk [vmem:[%s4 + $0x10] sm:$0xf] %vm2827, %v2767
  %2833 = vst.msk [vmem:[%s4 + $0x14] sm:$0xf] %vm2827, %v2768
  %2834 = vst.msk [vmem:[%s4 + $0x18] sm:$0xf] %vm2827, %v2769
  %2835 = vst.msk [vmem:[%s4 + $0x1c] sm:$0xf] %vm2827, %v2770
  %2836 = vst.msk [vmem:[%s4 + $0x20] sm:$0xf] %vm2827, %v2771
  %2837 = vst.msk [vmem:[%s4 + $0x24] sm:$0xf] %vm2827, %v2772
  %2838 = vst.msk [vmem:[%s4 + $0x28] sm:$0xf] %vm2827, %v2773
  %2839 = vst.msk [vmem:[%s4 + $0x2c] sm:$0xf] %vm2827, %v2774
  %2840 = vst.msk [vmem:[%s4 + $0x30] sm:$0xf] %vm2827, %v2775
  %2841 = vst.msk [vmem:[%s4 + $0x34] sm:$0xf] %vm2827, %v2776
  %2842 = vst.msk [vmem:[%s4 + $0x38] sm:$0xf] %vm2827, %v2777
  %2843 = vst.msk [vmem:[%s4 + $0x3c] sm:$0xf] %vm2827, %v2778
  %2844 = vst.msk [vmem:[%s4 + $0x40] sm:$0xf] %vm2827, %v2779
  %2845 = vst.msk [vmem:[%s4 + $0x44] sm:$0xf] %vm2827, %v2780
  %2846 = vst.msk [vmem:[%s4 + $0x48] sm:$0xf] %vm2827, %v2781
  %2847 = vst.msk [vmem:[%s4 + $0x4c] sm:$0xf] %vm2827, %v2782
  %2848 = vst.msk [vmem:[%s4 + $0x50] sm:$0xf] %vm2827, %v2783
  %2849 = vst.msk [vmem:[%s4 + $0x54] sm:$0xf] %vm2827, %v2784
  %2850 = vst.msk [vmem:[%s4 + $0x58] sm:$0xf] %vm2827, %v2785
  %2851 = vst.msk [vmem:[%s4 + $0x5c] sm:$0xf] %vm2827, %v2786
  %2852 = vst.msk [vmem:[%s4 + $0x60] sm:$0xf] %vm2827, %v2787
  %2853 = vst.msk [vmem:[%s4 + $0x64] sm:$0xf] %vm2827, %v2788
  %2854 = vst.msk [vmem:[%s4 + $0x68] sm:$0xf] %vm2827, %v2789
  %2855 = vst.msk [vmem:[%s4 + $0x6c] sm:$0xf] %vm2827, %v2790
  %2856 = vst.msk [vmem:[%s4 + $0x70] sm:$0xf] %vm2827, %v2791
  %2857 = vst.msk [vmem:[%s4 + $0x74] sm:$0xf] %vm2827, %v2792
  %2858 = vst.msk [vmem:[%s4 + $0x78] sm:$0xf] %vm2827, %v2793
  %2859 = vst.msk [vmem:[%s4 + $0x7c] sm:$0xf] %vm2827, %v2794
  %2860 = vst.msk [vmem:[%s4 + $0x80] sm:$0xf] %vm2827, %v2795
  %2861 = vst.msk [vmem:[%s4 + $0x84] sm:$0xf] %vm2827, %v2796
  %2862 = vst.msk [vmem:[%s4 + $0x88] sm:$0xf] %vm2827, %v2797
  %2863 = vst.msk [vmem:[%s4 + $0x8c] sm:$0xf] %vm2827, %v2798
  %2864 = vst.msk [vmem:[%s4 + $0x90] sm:$0xf] %vm2827, %v2799
  %2865 = vst.msk [vmem:[%s4 + $0x94] sm:$0xf] %vm2827, %v2800
  %2866 = vst.msk [vmem:[%s4 + $0x98] sm:$0xf] %vm2827, %v2801
  %2867 = vst.msk [vmem:[%s4 + $0x9c] sm:$0xf] %vm2827, %v2802
  %2868 = vst.msk [vmem:[%s4 + $0xa0] sm:$0xf] %vm2827, %v2803
  %2869 = vst.msk [vmem:[%s4 + $0xa4] sm:$0xf] %vm2827, %v2804
  %2870 = vst.msk [vmem:[%s4 + $0xa8] sm:$0xf] %vm2827, %v2805
  %2871 = vst.msk [vmem:[%s4 + $0xac] sm:$0xf] %vm2827, %v2806
  %2872 = vst.msk [vmem:[%s4 + $0xb0] sm:$0xf] %vm2827, %v2807
  %2873 = vst.msk [vmem:[%s4 + $0xb4] sm:$0xf] %vm2827, %v2808
  %2874 = vst.msk [vmem:[%s4 + $0xb8] sm:$0xf] %vm2827, %v2809
  %2875 = vst.msk [vmem:[%s4 + $0xbc] sm:$0xf] %vm2827, %v2810
  %2876 = vst.msk [vmem:[%s4 + $0xc0] sm:$0xf] %vm2827, %v2811
  %2877 = vst.msk [vmem:[%s4 + $0xc4] sm:$0xf] %vm2827, %v2812
  %2878 = vst.msk [vmem:[%s4 + $0xc8] sm:$0xf] %vm2827, %v2813
  %2879 = vst.msk [vmem:[%s4 + $0xcc] sm:$0xf] %vm2827, %v2814
  %2880 = vst.msk [vmem:[%s4 + $0xd0] sm:$0xf] %vm2827, %v2815
  %2881 = vst.msk [vmem:[%s4 + $0xd4] sm:$0xf] %vm2827, %v2816
  %2882 = vst.msk [vmem:[%s4 + $0xd8] sm:$0xf] %vm2827, %v2817
  %2883 = vst.msk [vmem:[%s4 + $0xdc] sm:$0xf] %vm2827, %v2818
  %2884 = vst.msk [vmem:[%s4 + $0xe0] sm:$0xf] %vm2827, %v2819
  %2885 = vst.msk [vmem:[%s4 + $0xe4] sm:$0xf] %vm2827, %v2820
  %2886 = vst.msk [vmem:[%s4 + $0xe8] sm:$0xf] %vm2827, %v2821
  %2887 = vst.msk [vmem:[%s4 + $0xec] sm:$0xf] %vm2827, %v2822
  %2888 = vst.msk [vmem:[%s4 + $0xf0] sm:$0xf] %vm2827, %v2823
  %2889 = vst.msk [vmem:[%s4 + $0xf4] sm:$0xf] %vm2827, %v2824
  %2890 = vst.msk [vmem:[%s4 + $0xf8] sm:$0xf] %vm2827, %v2825
  %2891 = vst.msk [vmem:[%s4 + $0xfc] sm:$0xf] %vm2827, %v2826
  // Predicated region
  $region18: #{generator_32_forward.6} parent=0 // pred_check
    _
  $region19: #{generator_32_forward.6} parent=0 // pred_check_branch
    %2893 = sbr.rel (0) target = $region21
  $region20: #{generator_32_forward.6} parent=0 // pred_region
    _
  $region21: #{generator_32_forward.6} parent=0 // pred_fallthru
    _
  // Predicated region
  $region22: #{generator_32_forward.6} parent=0 // pred_check
    _
  $region23: #{generator_32_forward.6} parent=0 // pred_check_branch
    %2895 = sbr.rel (0) target = $region25
  $region24: #{generator_32_forward.6} parent=0 // pred_region
    _
  $region25: #{generator_32_forward.6} parent=0 // pred_fallthru
    _

// kernel: generator_32_forward.7
$region0: #{generator_32_forward.7}
  #allocation0 [shape = 'u32[]', space=smem, size = 0x4, offset = 0x4, fixed_abs, tag = 'smem constant byte address 0x4 - core index']
  #allocation1 [shape = 'u32[72,128]{1,0:T(1,128)}', space=vmem, size = 0x9000, scoped, tag = 'internal scratch']
  %s0 = inlined_call_operand.vmem [shape: bf16[4,3,192], index: 0, kind: input, shape index: {}]
  %s1 = inlined_call_operand.vmem [shape: bf16[4,192,512], index: 1, kind: input, shape index: {}]
  %s2 = inlined_call_operand.vmem [shape: f32[4,3,512], index: 2, kind: output, shape index: {}]
  %s3 = sld [smem:[#allocation0]]
  $region18: #{generator_32_forward.7} parent=0
    _
  %s5 = ssub.s32 1, %s3
  %s6 = scalar_select 0, %s5, %s3
  // Predicated region
  $region2: #{generator_32_forward.7} parent=0 // pred_check
    _
  $region3: #{generator_32_forward.7} parent=0 // pred_check_branch
    %8 = sbr.rel (0) target = $region5
  $region4: #{generator_32_forward.7} parent=0 // pred_region
    _
  $region5: #{generator_32_forward.7} parent=0 // pred_fallthru
    _
  // Predicated region
  $region6: #{generator_32_forward.7} parent=0 // pred_check
    _
  $region7: #{generator_32_forward.7} parent=0 // pred_check_branch
    %10 = sbr.rel (0) target = $region9
  $region8: #{generator_32_forward.7} parent=0 // pred_region
    _
  $region9: #{generator_32_forward.7} parent=0 // pred_fallthru
    _
  %v12 = vld [vmem:[%s0] sm:$0xf]
  %v13 = vld [vmem:[%s0 + $0x4] sm:$0xf]
  %v14 = vld [vmem:[%s0 + $0x8] sm:$0xf]
  %v15 = vld [vmem:[%s0 + $0xc] sm:$0xf]
  %v16 = vld [vmem:[%s1] sm:$0xff]
  %v17 = vld [vmem:[%s1 + $0x8] sm:$0xff]
  %v18 = vld [vmem:[%s1 + $0x10] sm:$0xff]
  %v19 = vld [vmem:[%s1 + $0x18] sm:$0xff]
  %v20 = vld [vmem:[%s1 + $0x20] sm:$0xff]
  %v21 = vld [vmem:[%s1 + $0x28] sm:$0xff]
  %v22 = vld [vmem:[%s1 + $0x30] sm:$0xff]
  %v23 = vld [vmem:[%s1 + $0x38] sm:$0xff]
  %v24 = vld [vmem:[%s1 + $0x40] sm:$0xff]
  %v25 = vld [vmem:[%s1 + $0x48] sm:$0xff]
  %v26 = vld [vmem:[%s1 + $0x50] sm:$0xff]
  %v27 = vld [vmem:[%s1 + $0x58] sm:$0xff]
  %v28 = vld [vmem:[%s1 + $0x60] sm:$0xff]
  %v29 = vld [vmem:[%s1 + $0x68] sm:$0xff]
  %v30 = vld [vmem:[%s1 + $0x70] sm:$0xff]
  %v31 = vld [vmem:[%s1 + $0x78] sm:$0xff]
  %v32 = vld [vmem:[%s1 + $0x80] sm:$0xff]
  %v33 = vld [vmem:[%s1 + $0x88] sm:$0xff]
  %v34 = vld [vmem:[%s1 + $0x90] sm:$0xff]
  %v35 = vld [vmem:[%s1 + $0x98] sm:$0xff]
  %v36 = vld [vmem:[%s1 + $0xa0] sm:$0xff]
  %v37 = vld [vmem:[%s1 + $0xa8] sm:$0xff]
  %v38 = vld [vmem:[%s1 + $0xb0] sm:$0xff]
  %v39 = vld [vmem:[%s1 + $0xb8] sm:$0xff]
  %v40 = vld [vmem:[%s1 + $0xc0] sm:$0xff]
  %v41 = vld [vmem:[%s1 + $0xc8] sm:$0xff]
  %v42 = vld [vmem:[%s1 + $0xd0] sm:$0xff]
  %v43 = vld [vmem:[%s1 + $0xd8] sm:$0xff]
  %v44 = vld [vmem:[%s1 + $0xe0] sm:$0xff]
  %v45 = vld [vmem:[%s1 + $0xe8] sm:$0xff]
  %v46 = vld [vmem:[%s1 + $0xf0] sm:$0xff]
  %v47 = vld [vmem:[%s1 + $0xf8] sm:$0xff]
  %v48 = vld [vmem:[%s1 + $0x100] sm:$0xff]
  %v49 = vld [vmem:[%s1 + $0x108] sm:$0xff]
  %v50 = vld [vmem:[%s1 + $0x110] sm:$0xff]
  %v51 = vld [vmem:[%s1 + $0x118] sm:$0xff]
  %v52 = vld [vmem:[%s1 + $0x120] sm:$0xff]
  %v53 = vld [vmem:[%s1 + $0x128] sm:$0xff]
  %v54 = vld [vmem:[%s1 + $0x130] sm:$0xff]
  %v55 = vld [vmem:[%s1 + $0x138] sm:$0xff]
  %v56 = vld [vmem:[%s1 + $0x140] sm:$0xff]
  %v57 = vld [vmem:[%s1 + $0x148] sm:$0xff]
  %v58 = vld [vmem:[%s1 + $0x150] sm:$0xff]
  %v59 = vld [vmem:[%s1 + $0x158] sm:$0xff]
  %v60 = vld [vmem:[%s1 + $0x160] sm:$0xff]
  %v61 = vld [vmem:[%s1 + $0x168] sm:$0xff]
  %v62 = vld [vmem:[%s1 + $0x170] sm:$0xff]
  %v63 = vld [vmem:[%s1 + $0x178] sm:$0xff]
  %v64 = vld [vmem:[%s1 + $0x180] sm:$0xff]
  %v65 = vld [vmem:[%s1 + $0x188] sm:$0xff]
  %v66 = vld [vmem:[%s1 + $0x190] sm:$0xff]
  %v67 = vld [vmem:[%s1 + $0x198] sm:$0xff]
  %v68 = vld [vmem:[%s1 + $0x1a0] sm:$0xff]
  %v69 = vld [vmem:[%s1 + $0x1a8] sm:$0xff]
  %v70 = vld [vmem:[%s1 + $0x1b0] sm:$0xff]
  %v71 = vld [vmem:[%s1 + $0x1b8] sm:$0xff]
  %v72 = vld [vmem:[%s1 + $0x1c0] sm:$0xff]
  %v73 = vld [vmem:[%s1 + $0x1c8] sm:$0xff]
  %v74 = vld [vmem:[%s1 + $0x1d0] sm:$0xff]
  %v75 = vld [vmem:[%s1 + $0x1d8] sm:$0xff]
  %v76 = vld [vmem:[%s1 + $0x1e0] sm:$0xff]
  %v77 = vld [vmem:[%s1 + $0x1e8] sm:$0xff]
  %v78 = vld [vmem:[%s1 + $0x1f0] sm:$0xff]
  %v79 = vld [vmem:[%s1 + $0x1f8] sm:$0xff]
  %v80 = vld [vmem:[%s1 + $0x200] sm:$0xff]
  %v81 = vld [vmem:[%s1 + $0x208] sm:$0xff]
  %v82 = vld [vmem:[%s1 + $0x210] sm:$0xff]
  %v83 = vld [vmem:[%s1 + $0x218] sm:$0xff]
  %v84 = vld [vmem:[%s1 + $0x220] sm:$0xff]
  %v85 = vld [vmem:[%s1 + $0x228] sm:$0xff]
  %v86 = vld [vmem:[%s1 + $0x230] sm:$0xff]
  %v87 = vld [vmem:[%s1 + $0x238] sm:$0xff]
  %v88 = vld [vmem:[%s1 + $0x240] sm:$0xff]
  %v89 = vld [vmem:[%s1 + $0x248] sm:$0xff]
  %v90 = vld [vmem:[%s1 + $0x250] sm:$0xff]
  %v91 = vld [vmem:[%s1 + $0x258] sm:$0xff]
  %v92 = vld [vmem:[%s1 + $0x260] sm:$0xff]
  %v93 = vld [vmem:[%s1 + $0x268] sm:$0xff]
  %v94 = vld [vmem:[%s1 + $0x270] sm:$0xff]
  %v95 = vld [vmem:[%s1 + $0x278] sm:$0xff]
  %v96 = vld [vmem:[%s1 + $0x280] sm:$0xff]
  %v97 = vld [vmem:[%s1 + $0x288] sm:$0xff]
  %v98 = vld [vmem:[%s1 + $0x290] sm:$0xff]
  %v99 = vld [vmem:[%s1 + $0x298] sm:$0xff]
  %v100 = vld [vmem:[%s1 + $0x2a0] sm:$0xff]
  %v101 = vld [vmem:[%s1 + $0x2a8] sm:$0xff]
  %v102 = vld [vmem:[%s1 + $0x2b0] sm:$0xff]
  %v103 = vld [vmem:[%s1 + $0x2b8] sm:$0xff]
  %v104 = vld [vmem:[%s1 + $0x2c0] sm:$0xff]
  %v105 = vld [vmem:[%s1 + $0x2c8] sm:$0xff]
  %v106 = vld [vmem:[%s1 + $0x2d0] sm:$0xff]
  %v107 = vld [vmem:[%s1 + $0x2d8] sm:$0xff]
  %v108 = vld [vmem:[%s1 + $0x2e0] sm:$0xff]
  %v109 = vld [vmem:[%s1 + $0x2e8] sm:$0xff]
  %v110 = vld [vmem:[%s1 + $0x2f0] sm:$0xff]
  %v111 = vld [vmem:[%s1 + $0x2f8] sm:$0xff]
  %v112 = vld [vmem:[%s1 + $0x300] sm:$0xff]
  %v113 = vld [vmem:[%s1 + $0x308] sm:$0xff]
  %v114 = vld [vmem:[%s1 + $0x310] sm:$0xff]
  %v115 = vld [vmem:[%s1 + $0x318] sm:$0xff]
  %v116 = vld [vmem:[%s1 + $0x320] sm:$0xff]
  %v117 = vld [vmem:[%s1 + $0x328] sm:$0xff]
  %v118 = vld [vmem:[%s1 + $0x330] sm:$0xff]
  %v119 = vld [vmem:[%s1 + $0x338] sm:$0xff]
  %v120 = vld [vmem:[%s1 + $0x340] sm:$0xff]
  %v121 = vld [vmem:[%s1 + $0x348] sm:$0xff]
  %v122 = vld [vmem:[%s1 + $0x350] sm:$0xff]
  %v123 = vld [vmem:[%s1 + $0x358] sm:$0xff]
  %v124 = vld [vmem:[%s1 + $0x360] sm:$0xff]
  %v125 = vld [vmem:[%s1 + $0x368] sm:$0xff]
  %v126 = vld [vmem:[%s1 + $0x370] sm:$0xff]
  %v127 = vld [vmem:[%s1 + $0x378] sm:$0xff]
  %v128 = vld [vmem:[%s1 + $0x380] sm:$0xff]
  %v129 = vld [vmem:[%s1 + $0x388] sm:$0xff]
  %v130 = vld [vmem:[%s1 + $0x390] sm:$0xff]
  %v131 = vld [vmem:[%s1 + $0x398] sm:$0xff]
  %v132 = vld [vmem:[%s1 + $0x3a0] sm:$0xff]
  %v133 = vld [vmem:[%s1 + $0x3a8] sm:$0xff]
  %v134 = vld [vmem:[%s1 + $0x3b0] sm:$0xff]
  %v135 = vld [vmem:[%s1 + $0x3b8] sm:$0xff]
  %v136 = vld [vmem:[%s1 + $0x3c0] sm:$0xff]
  %v137 = vld [vmem:[%s1 + $0x3c8] sm:$0xff]
  %v138 = vld [vmem:[%s1 + $0x3d0] sm:$0xff]
  %v139 = vld [vmem:[%s1 + $0x3d8] sm:$0xff]
  %v140 = vld [vmem:[%s1 + $0x3e0] sm:$0xff]
  %v141 = vld [vmem:[%s1 + $0x3e8] sm:$0xff]
  %v142 = vld [vmem:[%s1 + $0x3f0] sm:$0xff]
  %v143 = vld [vmem:[%s1 + $0x3f8] sm:$0xff]
  %v144 = vld [vmem:[%s1 + $0x400] sm:$0xff]
  %v145 = vld [vmem:[%s1 + $0x408] sm:$0xff]
  %v146 = vld [vmem:[%s1 + $0x410] sm:$0xff]
  %v147 = vld [vmem:[%s1 + $0x418] sm:$0xff]
  %v148 = vld [vmem:[%s1 + $0x420] sm:$0xff]
  %v149 = vld [vmem:[%s1 + $0x428] sm:$0xff]
  %v150 = vld [vmem:[%s1 + $0x430] sm:$0xff]
  %v151 = vld [vmem:[%s1 + $0x438] sm:$0xff]
  %v152 = vld [vmem:[%s1 + $0x440] sm:$0xff]
  %v153 = vld [vmem:[%s1 + $0x448] sm:$0xff]
  %v154 = vld [vmem:[%s1 + $0x450] sm:$0xff]
  %v155 = vld [vmem:[%s1 + $0x458] sm:$0xff]
  %v156 = vld [vmem:[%s1 + $0x460] sm:$0xff]
  %v157 = vld [vmem:[%s1 + $0x468] sm:$0xff]
  %v158 = vld [vmem:[%s1 + $0x470] sm:$0xff]
  %v159 = vld [vmem:[%s1 + $0x478] sm:$0xff]
  %v160 = vld [vmem:[%s1 + $0x480] sm:$0xff]
  %v161 = vld [vmem:[%s1 + $0x488] sm:$0xff]
  %v162 = vld [vmem:[%s1 + $0x490] sm:$0xff]
  %v163 = vld [vmem:[%s1 + $0x498] sm:$0xff]
  %v164 = vld [vmem:[%s1 + $0x4a0] sm:$0xff]
  %v165 = vld [vmem:[%s1 + $0x4a8] sm:$0xff]
  %v166 = vld [vmem:[%s1 + $0x4b0] sm:$0xff]
  %v167 = vld [vmem:[%s1 + $0x4b8] sm:$0xff]
  %v168 = vld [vmem:[%s1 + $0x4c0] sm:$0xff]
  %v169 = vld [vmem:[%s1 + $0x4c8] sm:$0xff]
  %v170 = vld [vmem:[%s1 + $0x4d0] sm:$0xff]
  %v171 = vld [vmem:[%s1 + $0x4d8] sm:$0xff]
  %v172 = vld [vmem:[%s1 + $0x4e0] sm:$0xff]
  %v173 = vld [vmem:[%s1 + $0x4e8] sm:$0xff]
  %v174 = vld [vmem:[%s1 + $0x4f0] sm:$0xff]
  %v175 = vld [vmem:[%s1 + $0x4f8] sm:$0xff]
  %v176 = vld [vmem:[%s1 + $0x500] sm:$0xff]
  %v177 = vld [vmem:[%s1 + $0x508] sm:$0xff]
  %v178 = vld [vmem:[%s1 + $0x510] sm:$0xff]
  %v179 = vld [vmem:[%s1 + $0x518] sm:$0xff]
  %v180 = vld [vmem:[%s1 + $0x520] sm:$0xff]
  %v181 = vld [vmem:[%s1 + $0x528] sm:$0xff]
  %v182 = vld [vmem:[%s1 + $0x530] sm:$0xff]
  %v183 = vld [vmem:[%s1 + $0x538] sm:$0xff]
  %v184 = vld [vmem:[%s1 + $0x540] sm:$0xff]
  %v185 = vld [vmem:[%s1 + $0x548] sm:$0xff]
  %v186 = vld [vmem:[%s1 + $0x550] sm:$0xff]
  %v187 = vld [vmem:[%s1 + $0x558] sm:$0xff]
  %v188 = vld [vmem:[%s1 + $0x560] sm:$0xff]
  %v189 = vld [vmem:[%s1 + $0x568] sm:$0xff]
  %v190 = vld [vmem:[%s1 + $0x570] sm:$0xff]
  %v191 = vld [vmem:[%s1 + $0x578] sm:$0xff]
  %v192 = vld [vmem:[%s1 + $0x580] sm:$0xff]
  %v193 = vld [vmem:[%s1 + $0x588] sm:$0xff]
  %v194 = vld [vmem:[%s1 + $0x590] sm:$0xff]
  %v195 = vld [vmem:[%s1 + $0x598] sm:$0xff]
  %v196 = vld [vmem:[%s1 + $0x5a0] sm:$0xff]
  %v197 = vld [vmem:[%s1 + $0x5a8] sm:$0xff]
  %v198 = vld [vmem:[%s1 + $0x5b0] sm:$0xff]
  %v199 = vld [vmem:[%s1 + $0x5b8] sm:$0xff]
  %v200 = vld [vmem:[%s1 + $0x5c0] sm:$0xff]
  %v201 = vld [vmem:[%s1 + $0x5c8] sm:$0xff]
  %v202 = vld [vmem:[%s1 + $0x5d0] sm:$0xff]
  %v203 = vld [vmem:[%s1 + $0x5d8] sm:$0xff]
  %v204 = vld [vmem:[%s1 + $0x5e0] sm:$0xff]
  %v205 = vld [vmem:[%s1 + $0x5e8] sm:$0xff]
  %v206 = vld [vmem:[%s1 + $0x5f0] sm:$0xff]
  %v207 = vld [vmem:[%s1 + $0x5f8] sm:$0xff]
  %209 = vst [vmem:[#allocation1] ss:$4 sm:$0xff] %v12
  %v210 = vld.sshfl [vmem:[#allocation1] sm:$0xff pattern:$0x73625140]
  %v211 = vld.sshfl [vmem:[#allocation1 + $0x8] sm:$0xff pattern:$0x73625140]
  %v261 = vunpack.c.l.b16 %v16
  %v262 = vunpack.c.h.b16 %v16
  %v263 = vunpack.c.l.b16 %v17
  %v264 = vunpack.c.h.b16 %v17
  %v265 = vunpack.c.l.b16 %v18
  %v266 = vunpack.c.h.b16 %v18
  %v267 = vunpack.c.l.b16 %v19
  %v268 = vunpack.c.h.b16 %v19
  %v269 = vunpack.c.l.b16 %v20
  %v270 = vunpack.c.h.b16 %v20
  %v271 = vunpack.c.l.b16 %v21
  %v272 = vunpack.c.h.b16 %v21
  %v273 = vunpack.c.l.b16 %v22
  %v274 = vunpack.c.h.b16 %v22
  %v275 = vunpack.c.l.b16 %v23
  %v276 = vunpack.c.h.b16 %v23
  %v277 = vunpack.c.l.b16 %v24
  %v278 = vunpack.c.h.b16 %v24
  %v279 = vunpack.c.l.b16 %v25
  %v280 = vunpack.c.h.b16 %v25
  %v281 = vunpack.c.l.b16 %v26
  %v282 = vunpack.c.h.b16 %v26
  %v283 = vunpack.c.l.b16 %v27
  %v284 = vunpack.c.h.b16 %v27
  %v285 = vunpack.c.l.b16 %v28
  %v286 = vunpack.c.h.b16 %v28
  %v287 = vunpack.c.l.b16 %v29
  %v288 = vunpack.c.h.b16 %v29
  %v289 = vunpack.c.l.b16 %v30
  %v290 = vunpack.c.h.b16 %v30
  %v291 = vunpack.c.l.b16 %v31
  %v292 = vunpack.c.h.b16 %v31
  %v293 = vunpack.c.l.b16 %v32
  %v294 = vunpack.c.h.b16 %v32
  %v295 = vunpack.c.l.b16 %v33
  %v296 = vunpack.c.h.b16 %v33
  %v297 = vunpack.c.l.b16 %v34
  %v298 = vunpack.c.h.b16 %v34
  %v299 = vunpack.c.l.b16 %v35
  %v300 = vunpack.c.h.b16 %v35
  %v301 = vunpack.c.l.b16 %v36
  %v302 = vunpack.c.h.b16 %v36
  %v303 = vunpack.c.l.b16 %v37
  %v304 = vunpack.c.h.b16 %v37
  %v305 = vunpack.c.l.b16 %v38
  %v306 = vunpack.c.h.b16 %v38
  %v307 = vunpack.c.l.b16 %v39
  %v308 = vunpack.c.h.b16 %v39
  %v309 = vunpack.c.l.b16 %v40
  %v310 = vunpack.c.h.b16 %v40
  %v311 = vunpack.c.l.b16 %v41
  %v312 = vunpack.c.h.b16 %v41
  %v313 = vunpack.c.l.b16 %v42
  %v314 = vunpack.c.h.b16 %v42
  %v315 = vunpack.c.l.b16 %v43
  %v316 = vunpack.c.h.b16 %v43
  %v317 = vunpack.c.l.b16 %v44
  %v318 = vunpack.c.h.b16 %v44
  %v319 = vunpack.c.l.b16 %v45
  %v320 = vunpack.c.h.b16 %v45
  %v321 = vunpack.c.l.b16 %v46
  %v322 = vunpack.c.h.b16 %v46
  %v323 = vunpack.c.l.b16 %v47
  %v324 = vunpack.c.h.b16 %v47
  %v325 = vunpack.c.l.b16 %v48
  %v326 = vunpack.c.h.b16 %v48
  %v327 = vunpack.c.l.b16 %v49
  %v328 = vunpack.c.h.b16 %v49
  %v329 = vunpack.c.l.b16 %v50
  %v330 = vunpack.c.h.b16 %v50
  %v331 = vunpack.c.l.b16 %v51
  %v332 = vunpack.c.h.b16 %v51
  %v333 = vunpack.c.l.b16 %v52
  %v334 = vunpack.c.h.b16 %v52
  %v335 = vunpack.c.l.b16 %v53
  %v336 = vunpack.c.h.b16 %v53
  %v337 = vunpack.c.l.b16 %v54
  %v338 = vunpack.c.h.b16 %v54
  %v339 = vunpack.c.l.b16 %v55
  %v340 = vunpack.c.h.b16 %v55
  %v341 = vunpack.c.l.b16 %v56
  %v342 = vunpack.c.h.b16 %v56
  %v343 = vunpack.c.l.b16 %v57
  %v344 = vunpack.c.h.b16 %v57
  %v345 = vunpack.c.l.b16 %v58
  %v346 = vunpack.c.h.b16 %v58
  %v347 = vunpack.c.l.b16 %v59
  %v348 = vunpack.c.h.b16 %v59
  %v349 = vunpack.c.l.b16 %v60
  %v350 = vunpack.c.h.b16 %v60
  %v351 = vunpack.c.l.b16 %v61
  %v352 = vunpack.c.h.b16 %v61
  %v353 = vunpack.c.l.b16 %v62
  %v354 = vunpack.c.h.b16 %v62
  %v355 = vunpack.c.l.b16 %v63
  %v356 = vunpack.c.h.b16 %v63
  %v357 = vpack.c.b16 %v265, %v261
  %v358 = vpack.c.b16 %v266, %v262
  %v359 = vpack.c.b16 %v267, %v263
  %v360 = vpack.c.b16 %v268, %v264
  %v361 = vpack.c.b16 %v273, %v269
  %v362 = vpack.c.b16 %v274, %v270
  %v363 = vpack.c.b16 %v275, %v271
  %v364 = vpack.c.b16 %v276, %v272
  %v365 = vpack.c.b16 %v281, %v277
  %v366 = vpack.c.b16 %v282, %v278
  %v367 = vpack.c.b16 %v283, %v279
  %v368 = vpack.c.b16 %v284, %v280
  %v369 = vpack.c.b16 %v289, %v285
  %v370 = vpack.c.b16 %v290, %v286
  %v371 = vpack.c.b16 %v291, %v287
  %v372 = vpack.c.b16 %v292, %v288
  %v373 = vpack.c.b16 %v297, %v293
  %v374 = vpack.c.b16 %v298, %v294
  %v375 = vpack.c.b16 %v299, %v295
  %v376 = vpack.c.b16 %v300, %v296
  %v377 = vpack.c.b16 %v305, %v301
  %v378 = vpack.c.b16 %v306, %v302
  %v379 = vpack.c.b16 %v307, %v303
  %v380 = vpack.c.b16 %v308, %v304
  %v381 = vpack.c.b16 %v313, %v309
  %v382 = vpack.c.b16 %v314, %v310
  %v383 = vpack.c.b16 %v315, %v311
  %v384 = vpack.c.b16 %v316, %v312
  %v385 = vpack.c.b16 %v321, %v317
  %v386 = vpack.c.b16 %v322, %v318
  %v387 = vpack.c.b16 %v323, %v319
  %v388 = vpack.c.b16 %v324, %v320
  %v389 = vpack.c.b16 %v329, %v325
  %v390 = vpack.c.b16 %v330, %v326
  %v391 = vpack.c.b16 %v331, %v327
  %v392 = vpack.c.b16 %v332, %v328
  %v393 = vpack.c.b16 %v337, %v333
  %v394 = vpack.c.b16 %v338, %v334
  %v395 = vpack.c.b16 %v339, %v335
  %v396 = vpack.c.b16 %v340, %v336
  %v397 = vpack.c.b16 %v345, %v341
  %v398 = vpack.c.b16 %v346, %v342
  %v399 = vpack.c.b16 %v347, %v343
  %v400 = vpack.c.b16 %v348, %v344
  %v401 = vpack.c.b16 %v353, %v349
  %v402 = vpack.c.b16 %v354, %v350
  %v403 = vpack.c.b16 %v355, %v351
  %v404 = vpack.c.b16 %v356, %v352
  %vm453 = vcmask 523264
  %v454 = vsel %vm453, %v211, 0
  %456 = vmatpush.bf16.msra.mxu0 %v385
  %457 = vmatpush.bf16.msra.mxu0 %v381
  %458 = vmatpush.bf16.msra.mxu0 %v377
  %459 = vmatpush.bf16.msra.mxu0 %v373
  %460 = vmatpush.bf16.msra.mxu0 %v369
  %461 = vmatpush.bf16.msra.mxu0 %v365
  %462 = vmatpush.bf16.msra.mxu0 %v361
  %463 = vmatpush.bf16.msra.mxu0 %v357
  %464 = vmatmul.bf16.gmra.mxu0 %v210
  %v465 = vpop.f32.mrf.mxu0
  %v466 = vadd.f32 0.0, %v465
  %v467 = vpop.f32.mrf.mxu0
  %468 = vdwg.mxu0
  %469 = vmatpush.bf16.msra.mxu0 0
  %470 = vmatpush.bf16.msra.mxu0 0
  %471 = vmatpush.bf16.msra.mxu0 0
  %472 = vmatpush.bf16.msra.mxu0 0
  %473 = vmatpush.bf16.msra.mxu0 %v401
  %474 = vmatpush.bf16.msra.mxu0 %v397
  %475 = vmatpush.bf16.msra.mxu0 %v393
  %476 = vmatpush.bf16.msra.mxu0 %v389
  %477 = vmatmul.bf16.gmra.mxu0 %v454
  %v478 = vpop.f32.mrf.mxu0
  %v479 = vadd.f32 %v466, %v478
  %v480 = vpop.f32.mrf.mxu0
  %481 = vdwg.mxu0
  %482 = vmatpush.bf16.msra.mxu0 %v386
  %483 = vmatpush.bf16.msra.mxu0 %v382
  %484 = vmatpush.bf16.msra.mxu0 %v378
  %485 = vmatpush.bf16.msra.mxu0 %v374
  %486 = vmatpush.bf16.msra.mxu0 %v370
  %487 = vmatpush.bf16.msra.mxu0 %v366
  %488 = vmatpush.bf16.msra.mxu0 %v362
  %489 = vmatpush.bf16.msra.mxu0 %v358
  %490 = vmatmul.bf16.gmra.mxu0 %v210
  %v491 = vpop.f32.mrf.mxu0
  %v492 = vadd.f32 0.0, %v491
  %v493 = vpop.f32.mrf.mxu0
  %494 = vdwg.mxu0
  %495 = vmatpush.bf16.msra.mxu0 0
  %496 = vmatpush.bf16.msra.mxu0 0
  %497 = vmatpush.bf16.msra.mxu0 0
  %498 = vmatpush.bf16.msra.mxu0 0
  %499 = vmatpush.bf16.msra.mxu0 %v402
  %500 = vmatpush.bf16.msra.mxu0 %v398
  %501 = vmatpush.bf16.msra.mxu0 %v394
  %502 = vmatpush.bf16.msra.mxu0 %v390
  %503 = vmatmul.bf16.gmra.mxu0 %v454
  %v504 = vpop.f32.mrf.mxu0
  %v505 = vadd.f32 %v492, %v504
  %v506 = vpop.f32.mrf.mxu0
  %507 = vdwg.mxu0
  %508 = vmatpush.bf16.msra.mxu0 %v387
  %509 = vmatpush.bf16.msra.mxu0 %v383
  %510 = vmatpush.bf16.msra.mxu0 %v379
  %511 = vmatpush.bf16.msra.mxu0 %v375
  %512 = vmatpush.bf16.msra.mxu0 %v371
  %513 = vmatpush.bf16.msra.mxu0 %v367
  %514 = vmatpush.bf16.msra.mxu0 %v363
  %515 = vmatpush.bf16.msra.mxu0 %v359
  %516 = vmatmul.bf16.gmra.mxu0 %v210
  %v517 = vpop.f32.mrf.mxu0
  %v518 = vadd.f32 0.0, %v517
  %v519 = vpop.f32.mrf.mxu0
  %520 = vdwg.mxu0
  %521 = vmatpush.bf16.msra.mxu0 0
  %522 = vmatpush.bf16.msra.mxu0 0
  %523 = vmatpush.bf16.msra.mxu0 0
  %524 = vmatpush.bf16.msra.mxu0 0
  %525 = vmatpush.bf16.msra.mxu0 %v403
  %526 = vmatpush.bf16.msra.mxu0 %v399
  %527 = vmatpush.bf16.msra.mxu0 %v395
  %528 = vmatpush.bf16.msra.mxu0 %v391
  %529 = vmatmul.bf16.gmra.mxu0 %v454
  %v530 = vpop.f32.mrf.mxu0
  %v531 = vadd.f32 %v518, %v530
  %v532 = vpop.f32.mrf.mxu0
  %533 = vdwg.mxu0
  %534 = vmatpush.bf16.msra.mxu0 %v388
  %535 = vmatpush.bf16.msra.mxu0 %v384
  %536 = vmatpush.bf16.msra.mxu0 %v380
  %537 = vmatpush.bf16.msra.mxu0 %v376
  %538 = vmatpush.bf16.msra.mxu0 %v372
  %539 = vmatpush.bf16.msra.mxu0 %v368
  %540 = vmatpush.bf16.msra.mxu0 %v364
  %541 = vmatpush.bf16.msra.mxu0 %v360
  %542 = vmatmul.bf16.gmra.mxu0 %v210
  %v543 = vpop.f32.mrf.mxu0
  %v544 = vadd.f32 0.0, %v543
  %v545 = vpop.f32.mrf.mxu0
  %546 = vdwg.mxu0
  %547 = vmatpush.bf16.msra.mxu0 0
  %548 = vmatpush.bf16.msra.mxu0 0
  %549 = vmatpush.bf16.msra.mxu0 0
  %550 = vmatpush.bf16.msra.mxu0 0
  %551 = vmatpush.bf16.msra.mxu0 %v404
  %552 = vmatpush.bf16.msra.mxu0 %v400
  %553 = vmatpush.bf16.msra.mxu0 %v396
  %554 = vmatpush.bf16.msra.mxu0 %v392
  %555 = vmatmul.bf16.gmra.mxu0 %v454
  %v556 = vpop.f32.mrf.mxu0
  %v557 = vadd.f32 %v544, %v556
  %v558 = vpop.f32.mrf.mxu0
  %559 = vdwg.mxu0
  %561 = vst [vmem:[#allocation1] ss:$4 sm:$0xff] %v13
  %v562 = vld.sshfl [vmem:[#allocation1] sm:$0xff pattern:$0x73625140]
  %v563 = vld.sshfl [vmem:[#allocation1 + $0x8] sm:$0xff pattern:$0x73625140]
  %v613 = vunpack.c.l.b16 %v64
  %v614 = vunpack.c.h.b16 %v64
  %v615 = vunpack.c.l.b16 %v65
  %v616 = vunpack.c.h.b16 %v65
  %v617 = vunpack.c.l.b16 %v66
  %v618 = vunpack.c.h.b16 %v66
  %v619 = vunpack.c.l.b16 %v67
  %v620 = vunpack.c.h.b16 %v67
  %v621 = vunpack.c.l.b16 %v68
  %v622 = vunpack.c.h.b16 %v68
  %v623 = vunpack.c.l.b16 %v69
  %v624 = vunpack.c.h.b16 %v69
  %v625 = vunpack.c.l.b16 %v70
  %v626 = vunpack.c.h.b16 %v70
  %v627 = vunpack.c.l.b16 %v71
  %v628 = vunpack.c.h.b16 %v71
  %v629 = vunpack.c.l.b16 %v72
  %v630 = vunpack.c.h.b16 %v72
  %v631 = vunpack.c.l.b16 %v73
  %v632 = vunpack.c.h.b16 %v73
  %v633 = vunpack.c.l.b16 %v74
  %v634 = vunpack.c.h.b16 %v74
  %v635 = vunpack.c.l.b16 %v75
  %v636 = vunpack.c.h.b16 %v75
  %v637 = vunpack.c.l.b16 %v76
  %v638 = vunpack.c.h.b16 %v76
  %v639 = vunpack.c.l.b16 %v77
  %v640 = vunpack.c.h.b16 %v77
  %v641 = vunpack.c.l.b16 %v78
  %v642 = vunpack.c.h.b16 %v78
  %v643 = vunpack.c.l.b16 %v79
  %v644 = vunpack.c.h.b16 %v79
  %v645 = vunpack.c.l.b16 %v80
  %v646 = vunpack.c.h.b16 %v80
  %v647 = vunpack.c.l.b16 %v81
  %v648 = vunpack.c.h.b16 %v81
  %v649 = vunpack.c.l.b16 %v82
  %v650 = vunpack.c.h.b16 %v82
  %v651 = vunpack.c.l.b16 %v83
  %v652 = vunpack.c.h.b16 %v83
  %v653 = vunpack.c.l.b16 %v84
  %v654 = vunpack.c.h.b16 %v84
  %v655 = vunpack.c.l.b16 %v85
  %v656 = vunpack.c.h.b16 %v85
  %v657 = vunpack.c.l.b16 %v86
  %v658 = vunpack.c.h.b16 %v86
  %v659 = vunpack.c.l.b16 %v87
  %v660 = vunpack.c.h.b16 %v87
  %v661 = vunpack.c.l.b16 %v88
  %v662 = vunpack.c.h.b16 %v88
  %v663 = vunpack.c.l.b16 %v89
  %v664 = vunpack.c.h.b16 %v89
  %v665 = vunpack.c.l.b16 %v90
  %v666 = vunpack.c.h.b16 %v90
  %v667 = vunpack.c.l.b16 %v91
  %v668 = vunpack.c.h.b16 %v91
  %v669 = vunpack.c.l.b16 %v92
  %v670 = vunpack.c.h.b16 %v92
  %v671 = vunpack.c.l.b16 %v93
  %v672 = vunpack.c.h.b16 %v93
  %v673 = vunpack.c.l.b16 %v94
  %v674 = vunpack.c.h.b16 %v94
  %v675 = vunpack.c.l.b16 %v95
  %v676 = vunpack.c.h.b16 %v95
  %v677 = vunpack.c.l.b16 %v96
  %v678 = vunpack.c.h.b16 %v96
  %v679 = vunpack.c.l.b16 %v97
  %v680 = vunpack.c.h.b16 %v97
  %v681 = vunpack.c.l.b16 %v98
  %v682 = vunpack.c.h.b16 %v98
  %v683 = vunpack.c.l.b16 %v99
  %v684 = vunpack.c.h.b16 %v99
  %v685 = vunpack.c.l.b16 %v100
  %v686 = vunpack.c.h.b16 %v100
  %v687 = vunpack.c.l.b16 %v101
  %v688 = vunpack.c.h.b16 %v101
  %v689 = vunpack.c.l.b16 %v102
  %v690 = vunpack.c.h.b16 %v102
  %v691 = vunpack.c.l.b16 %v103
  %v692 = vunpack.c.h.b16 %v103
  %v693 = vunpack.c.l.b16 %v104
  %v694 = vunpack.c.h.b16 %v104
  %v695 = vunpack.c.l.b16 %v105
  %v696 = vunpack.c.h.b16 %v105
  %v697 = vunpack.c.l.b16 %v106
  %v698 = vunpack.c.h.b16 %v106
  %v699 = vunpack.c.l.b16 %v107
  %v700 = vunpack.c.h.b16 %v107
  %v701 = vunpack.c.l.b16 %v108
  %v702 = vunpack.c.h.b16 %v108
  %v703 = vunpack.c.l.b16 %v109
  %v704 = vunpack.c.h.b16 %v109
  %v705 = vunpack.c.l.b16 %v110
  %v706 = vunpack.c.h.b16 %v110
  %v707 = vunpack.c.l.b16 %v111
  %v708 = vunpack.c.h.b16 %v111
  %v709 = vpack.c.b16 %v617, %v613
  %v710 = vpack.c.b16 %v618, %v614
  %v711 = vpack.c.b16 %v619, %v615
  %v712 = vpack.c.b16 %v620, %v616
  %v713 = vpack.c.b16 %v625, %v621
  %v714 = vpack.c.b16 %v626, %v622
  %v715 = vpack.c.b16 %v627, %v623
  %v716 = vpack.c.b16 %v628, %v624
  %v717 = vpack.c.b16 %v633, %v629
  %v718 = vpack.c.b16 %v634, %v630
  %v719 = vpack.c.b16 %v635, %v631
  %v720 = vpack.c.b16 %v636, %v632
  %v721 = vpack.c.b16 %v641, %v637
  %v722 = vpack.c.b16 %v642, %v638
  %v723 = vpack.c.b16 %v643, %v639
  %v724 = vpack.c.b16 %v644, %v640
  %v725 = vpack.c.b16 %v649, %v645
  %v726 = vpack.c.b16 %v650, %v646
  %v727 = vpack.c.b16 %v651, %v647
  %v728 = vpack.c.b16 %v652, %v648
  %v729 = vpack.c.b16 %v657, %v653
  %v730 = vpack.c.b16 %v658, %v654
  %v731 = vpack.c.b16 %v659, %v655
  %v732 = vpack.c.b16 %v660, %v656
  %v733 = vpack.c.b16 %v665, %v661
  %v734 = vpack.c.b16 %v666, %v662
  %v735 = vpack.c.b16 %v667, %v663
  %v736 = vpack.c.b16 %v668, %v664
  %v737 = vpack.c.b16 %v673, %v669
  %v738 = vpack.c.b16 %v674, %v670
  %v739 = vpack.c.b16 %v675, %v671
  %v740 = vpack.c.b16 %v676, %v672
  %v741 = vpack.c.b16 %v681, %v677
  %v742 = vpack.c.b16 %v682, %v678
  %v743 = vpack.c.b16 %v683, %v679
  %v744 = vpack.c.b16 %v684, %v680
  %v745 = vpack.c.b16 %v689, %v685
  %v746 = vpack.c.b16 %v690, %v686
  %v747 = vpack.c.b16 %v691, %v687
  %v748 = vpack.c.b16 %v692, %v688
  %v749 = vpack.c.b16 %v697, %v693
  %v750 = vpack.c.b16 %v698, %v694
  %v751 = vpack.c.b16 %v699, %v695
  %v752 = vpack.c.b16 %v700, %v696
  %v753 = vpack.c.b16 %v705, %v701
  %v754 = vpack.c.b16 %v706, %v702
  %v755 = vpack.c.b16 %v707, %v703
  %v756 = vpack.c.b16 %v708, %v704
  %v805 = vsel %vm453, %v563, 0
  %807 = vmatpush.bf16.msra.mxu0 %v737
  %808 = vmatpush.bf16.msra.mxu0 %v733
  %809 = vmatpush.bf16.msra.mxu0 %v729
  %810 = vmatpush.bf16.msra.mxu0 %v725
  %811 = vmatpush.bf16.msra.mxu0 %v721
  %812 = vmatpush.bf16.msra.mxu0 %v717
  %813 = vmatpush.bf16.msra.mxu0 %v713
  %814 = vmatpush.bf16.msra.mxu0 %v709
  %815 = vmatmul.bf16.gmra.mxu0 %v562
  %v816 = vpop.f32.mrf.mxu0
  %v817 = vadd.f32 0.0, %v816
  %v818 = vpop.f32.mrf.mxu0
  %819 = vdwg.mxu0
  %820 = vmatpush.bf16.msra.mxu0 0
  %821 = vmatpush.bf16.msra.mxu0 0
  %822 = vmatpush.bf16.msra.mxu0 0
  %823 = vmatpush.bf16.msra.mxu0 0
  %824 = vmatpush.bf16.msra.mxu0 %v753
  %825 = vmatpush.bf16.msra.mxu0 %v749
  %826 = vmatpush.bf16.msra.mxu0 %v745
  %827 = vmatpush.bf16.msra.mxu0 %v741
  %828 = vmatmul.bf16.gmra.mxu0 %v805
  %v829 = vpop.f32.mrf.mxu0
  %v830 = vadd.f32 %v817, %v829
  %v831 = vpop.f32.mrf.mxu0
  %832 = vdwg.mxu0
  %833 = vmatpush.bf16.msra.mxu0 %v738
  %834 = vmatpush.bf16.msra.mxu0 %v734
  %835 = vmatpush.bf16.msra.mxu0 %v730
  %836 = vmatpush.bf16.msra.mxu0 %v726
  %837 = vmatpush.bf16.msra.mxu0 %v722
  %838 = vmatpush.bf16.msra.mxu0 %v718
  %839 = vmatpush.bf16.msra.mxu0 %v714
  %840 = vmatpush.bf16.msra.mxu0 %v710
  %841 = vmatmul.bf16.gmra.mxu0 %v562
  %v842 = vpop.f32.mrf.mxu0
  %v843 = vadd.f32 0.0, %v842
  %v844 = vpop.f32.mrf.mxu0
  %845 = vdwg.mxu0
  %846 = vmatpush.bf16.msra.mxu0 0
  %847 = vmatpush.bf16.msra.mxu0 0
  %848 = vmatpush.bf16.msra.mxu0 0
  %849 = vmatpush.bf16.msra.mxu0 0
  %850 = vmatpush.bf16.msra.mxu0 %v754
  %851 = vmatpush.bf16.msra.mxu0 %v750
  %852 = vmatpush.bf16.msra.mxu0 %v746
  %853 = vmatpush.bf16.msra.mxu0 %v742
  %854 = vmatmul.bf16.gmra.mxu0 %v805
  %v855 = vpop.f32.mrf.mxu0
  %v856 = vadd.f32 %v843, %v855
  %v857 = vpop.f32.mrf.mxu0
  %858 = vdwg.mxu0
  %859 = vmatpush.bf16.msra.mxu0 %v739
  %860 = vmatpush.bf16.msra.mxu0 %v735
  %861 = vmatpush.bf16.msra.mxu0 %v731
  %862 = vmatpush.bf16.msra.mxu0 %v727
  %863 = vmatpush.bf16.msra.mxu0 %v723
  %864 = vmatpush.bf16.msra.mxu0 %v719
  %865 = vmatpush.bf16.msra.mxu0 %v715
  %866 = vmatpush.bf16.msra.mxu0 %v711
  %867 = vmatmul.bf16.gmra.mxu0 %v562
  %v868 = vpop.f32.mrf.mxu0
  %v869 = vadd.f32 0.0, %v868
  %v870 = vpop.f32.mrf.mxu0
  %871 = vdwg.mxu0
  %872 = vmatpush.bf16.msra.mxu0 0
  %873 = vmatpush.bf16.msra.mxu0 0
  %874 = vmatpush.bf16.msra.mxu0 0
  %875 = vmatpush.bf16.msra.mxu0 0
  %876 = vmatpush.bf16.msra.mxu0 %v755
  %877 = vmatpush.bf16.msra.mxu0 %v751
  %878 = vmatpush.bf16.msra.mxu0 %v747
  %879 = vmatpush.bf16.msra.mxu0 %v743
  %880 = vmatmul.bf16.gmra.mxu0 %v805
  %v881 = vpop.f32.mrf.mxu0
  %v882 = vadd.f32 %v869, %v881
  %v883 = vpop.f32.mrf.mxu0
  %884 = vdwg.mxu0
  %885 = vmatpush.bf16.msra.mxu0 %v740
  %886 = vmatpush.bf16.msra.mxu0 %v736
  %887 = vmatpush.bf16.msra.mxu0 %v732
  %888 = vmatpush.bf16.msra.mxu0 %v728
  %889 = vmatpush.bf16.msra.mxu0 %v724
  %890 = vmatpush.bf16.msra.mxu0 %v720
  %891 = vmatpush.bf16.msra.mxu0 %v716
  %892 = vmatpush.bf16.msra.mxu0 %v712
  %893 = vmatmul.bf16.gmra.mxu0 %v562
  %v894 = vpop.f32.mrf.mxu0
  %v895 = vadd.f32 0.0, %v894
  %v896 = vpop.f32.mrf.mxu0
  %897 = vdwg.mxu0
  %898 = vmatpush.bf16.msra.mxu0 0
  %899 = vmatpush.bf16.msra.mxu0 0
  %900 = vmatpush.bf16.msra.mxu0 0
  %901 = vmatpush.bf16.msra.mxu0 0
  %902 = vmatpush.bf16.msra.mxu0 %v756
  %903 = vmatpush.bf16.msra.mxu0 %v752
  %904 = vmatpush.bf16.msra.mxu0 %v748
  %905 = vmatpush.bf16.msra.mxu0 %v744
  %906 = vmatmul.bf16.gmra.mxu0 %v805
  %v907 = vpop.f32.mrf.mxu0
  %v908 = vadd.f32 %v895, %v907
  %v909 = vpop.f32.mrf.mxu0
  %910 = vdwg.mxu0
  %912 = vst [vmem:[#allocation1] ss:$4 sm:$0xff] %v14
  %v913 = vld.sshfl [vmem:[#allocation1] sm:$0xff pattern:$0x73625140]
  %v914 = vld.sshfl [vmem:[#allocation1 + $0x8] sm:$0xff pattern:$0x73625140]
  %v964 = vunpack.c.l.b16 %v112
  %v965 = vunpack.c.h.b16 %v112
  %v966 = vunpack.c.l.b16 %v113
  %v967 = vunpack.c.h.b16 %v113
  %v968 = vunpack.c.l.b16 %v114
  %v969 = vunpack.c.h.b16 %v114
  %v970 = vunpack.c.l.b16 %v115
  %v971 = vunpack.c.h.b16 %v115
  %v972 = vunpack.c.l.b16 %v116
  %v973 = vunpack.c.h.b16 %v116
  %v974 = vunpack.c.l.b16 %v117
  %v975 = vunpack.c.h.b16 %v117
  %v976 = vunpack.c.l.b16 %v118
  %v977 = vunpack.c.h.b16 %v118
  %v978 = vunpack.c.l.b16 %v119
  %v979 = vunpack.c.h.b16 %v119
  %v980 = vunpack.c.l.b16 %v120
  %v981 = vunpack.c.h.b16 %v120
  %v982 = vunpack.c.l.b16 %v121
  %v983 = vunpack.c.h.b16 %v121
  %v984 = vunpack.c.l.b16 %v122
  %v985 = vunpack.c.h.b16 %v122
  %v986 = vunpack.c.l.b16 %v123
  %v987 = vunpack.c.h.b16 %v123
  %v988 = vunpack.c.l.b16 %v124
  %v989 = vunpack.c.h.b16 %v124
  %v990 = vunpack.c.l.b16 %v125
  %v991 = vunpack.c.h.b16 %v125
  %v992 = vunpack.c.l.b16 %v126
  %v993 = vunpack.c.h.b16 %v126
  %v994 = vunpack.c.l.b16 %v127
  %v995 = vunpack.c.h.b16 %v127
  %v996 = vunpack.c.l.b16 %v128
  %v997 = vunpack.c.h.b16 %v128
  %v998 = vunpack.c.l.b16 %v129
  %v999 = vunpack.c.h.b16 %v129
  %v1000 = vunpack.c.l.b16 %v130
  %v1001 = vunpack.c.h.b16 %v130
  %v1002 = vunpack.c.l.b16 %v131
  %v1003 = vunpack.c.h.b16 %v131
  %v1004 = vunpack.c.l.b16 %v132
  %v1005 = vunpack.c.h.b16 %v132
  %v1006 = vunpack.c.l.b16 %v133
  %v1007 = vunpack.c.h.b16 %v133
  %v1008 = vunpack.c.l.b16 %v134
  %v1009 = vunpack.c.h.b16 %v134
  %v1010 = vunpack.c.l.b16 %v135
  %v1011 = vunpack.c.h.b16 %v135
  %v1012 = vunpack.c.l.b16 %v136
  %v1013 = vunpack.c.h.b16 %v136
  %v1014 = vunpack.c.l.b16 %v137
  %v1015 = vunpack.c.h.b16 %v137
  %v1016 = vunpack.c.l.b16 %v138
  %v1017 = vunpack.c.h.b16 %v138
  %v1018 = vunpack.c.l.b16 %v139
  %v1019 = vunpack.c.h.b16 %v139
  %v1020 = vunpack.c.l.b16 %v140
  %v1021 = vunpack.c.h.b16 %v140
  %v1022 = vunpack.c.l.b16 %v141
  %v1023 = vunpack.c.h.b16 %v141
  %v1024 = vunpack.c.l.b16 %v142
  %v1025 = vunpack.c.h.b16 %v142
  %v1026 = vunpack.c.l.b16 %v143
  %v1027 = vunpack.c.h.b16 %v143
  %v1028 = vunpack.c.l.b16 %v144
  %v1029 = vunpack.c.h.b16 %v144
  %v1030 = vunpack.c.l.b16 %v145
  %v1031 = vunpack.c.h.b16 %v145
  %v1032 = vunpack.c.l.b16 %v146
  %v1033 = vunpack.c.h.b16 %v146
  %v1034 = vunpack.c.l.b16 %v147
  %v1035 = vunpack.c.h.b16 %v147
  %v1036 = vunpack.c.l.b16 %v148
  %v1037 = vunpack.c.h.b16 %v148
  %v1038 = vunpack.c.l.b16 %v149
  %v1039 = vunpack.c.h.b16 %v149
  %v1040 = vunpack.c.l.b16 %v150
  %v1041 = vunpack.c.h.b16 %v150
  %v1042 = vunpack.c.l.b16 %v151
  %v1043 = vunpack.c.h.b16 %v151
  %v1044 = vunpack.c.l.b16 %v152
  %v1045 = vunpack.c.h.b16 %v152
  %v1046 = vunpack.c.l.b16 %v153
  %v1047 = vunpack.c.h.b16 %v153
  %v1048 = vunpack.c.l.b16 %v154
  %v1049 = vunpack.c.h.b16 %v154
  %v1050 = vunpack.c.l.b16 %v155
  %v1051 = vunpack.c.h.b16 %v155
  %v1052 = vunpack.c.l.b16 %v156
  %v1053 = vunpack.c.h.b16 %v156
  %v1054 = vunpack.c.l.b16 %v157
  %v1055 = vunpack.c.h.b16 %v157
  %v1056 = vunpack.c.l.b16 %v158
  %v1057 = vunpack.c.h.b16 %v158
  %v1058 = vunpack.c.l.b16 %v159
  %v1059 = vunpack.c.h.b16 %v159
  %v1060 = vpack.c.b16 %v968, %v964
  %v1061 = vpack.c.b16 %v969, %v965
  %v1062 = vpack.c.b16 %v970, %v966
  %v1063 = vpack.c.b16 %v971, %v967
  %v1064 = vpack.c.b16 %v976, %v972
  %v1065 = vpack.c.b16 %v977, %v973
  %v1066 = vpack.c.b16 %v978, %v974
  %v1067 = vpack.c.b16 %v979, %v975
  %v1068 = vpack.c.b16 %v984, %v980
  %v1069 = vpack.c.b16 %v985, %v981
  %v1070 = vpack.c.b16 %v986, %v982
  %v1071 = vpack.c.b16 %v987, %v983
  %v1072 = vpack.c.b16 %v992, %v988
  %v1073 = vpack.c.b16 %v993, %v989
  %v1074 = vpack.c.b16 %v994, %v990
  %v1075 = vpack.c.b16 %v995, %v991
  %v1076 = vpack.c.b16 %v1000, %v996
  %v1077 = vpack.c.b16 %v1001, %v997
  %v1078 = vpack.c.b16 %v1002, %v998
  %v1079 = vpack.c.b16 %v1003, %v999
  %v1080 = vpack.c.b16 %v1008, %v1004
  %v1081 = vpack.c.b16 %v1009, %v1005
  %v1082 = vpack.c.b16 %v1010, %v1006
  %v1083 = vpack.c.b16 %v1011, %v1007
  %v1084 = vpack.c.b16 %v1016, %v1012
  %v1085 = vpack.c.b16 %v1017, %v1013
  %v1086 = vpack.c.b16 %v1018, %v1014
  %v1087 = vpack.c.b16 %v1019, %v1015
  %v1088 = vpack.c.b16 %v1024, %v1020
  %v1089 = vpack.c.b16 %v1025, %v1021
  %v1090 = vpack.c.b16 %v1026, %v1022
  %v1091 = vpack.c.b16 %v1027, %v1023
  %v1092 = vpack.c.b16 %v1032, %v1028
  %v1093 = vpack.c.b16 %v1033, %v1029
  %v1094 = vpack.c.b16 %v1034, %v1030
  %v1095 = vpack.c.b16 %v1035, %v1031
  %v1096 = vpack.c.b16 %v1040, %v1036
  %v1097 = vpack.c.b16 %v1041, %v1037
  %v1098 = vpack.c.b16 %v1042, %v1038
  %v1099 = vpack.c.b16 %v1043, %v1039
  %v1100 = vpack.c.b16 %v1048, %v1044
  %v1101 = vpack.c.b16 %v1049, %v1045
  %v1102 = vpack.c.b16 %v1050, %v1046
  %v1103 = vpack.c.b16 %v1051, %v1047
  %v1104 = vpack.c.b16 %v1056, %v1052
  %v1105 = vpack.c.b16 %v1057, %v1053
  %v1106 = vpack.c.b16 %v1058, %v1054
  %v1107 = vpack.c.b16 %v1059, %v1055
  %v1156 = vsel %vm453, %v914, 0
  %1158 = vmatpush.bf16.msra.mxu0 %v1088
  %1159 = vmatpush.bf16.msra.mxu0 %v1084
  %1160 = vmatpush.bf16.msra.mxu0 %v1080
  %1161 = vmatpush.bf16.msra.mxu0 %v1076
  %1162 = vmatpush.bf16.msra.mxu0 %v1072
  %1163 = vmatpush.bf16.msra.mxu0 %v1068
  %1164 = vmatpush.bf16.msra.mxu0 %v1064
  %1165 = vmatpush.bf16.msra.mxu0 %v1060
  %1166 = vmatmul.bf16.gmra.mxu0 %v913
  %v1167 = vpop.f32.mrf.mxu0
  %v1168 = vadd.f32 0.0, %v1167
  %v1169 = vpop.f32.mrf.mxu0
  %1170 = vdwg.mxu0
  %1171 = vmatpush.bf16.msra.mxu0 0
  %1172 = vmatpush.bf16.msra.mxu0 0
  %1173 = vmatpush.bf16.msra.mxu0 0
  %1174 = vmatpush.bf16.msra.mxu0 0
  %1175 = vmatpush.bf16.msra.mxu0 %v1104
  %1176 = vmatpush.bf16.msra.mxu0 %v1100
  %1177 = vmatpush.bf16.msra.mxu0 %v1096
  %1178 = vmatpush.bf16.msra.mxu0 %v1092
  %1179 = vmatmul.bf16.gmra.mxu0 %v1156
  %v1180 = vpop.f32.mrf.mxu0
  %v1181 = vadd.f32 %v1168, %v1180
  %v1182 = vpop.f32.mrf.mxu0
  %1183 = vdwg.mxu0
  %1184 = vmatpush.bf16.msra.mxu0 %v1089
  %1185 = vmatpush.bf16.msra.mxu0 %v1085
  %1186 = vmatpush.bf16.msra.mxu0 %v1081
  %1187 = vmatpush.bf16.msra.mxu0 %v1077
  %1188 = vmatpush.bf16.msra.mxu0 %v1073
  %1189 = vmatpush.bf16.msra.mxu0 %v1069
  %1190 = vmatpush.bf16.msra.mxu0 %v1065
  %1191 = vmatpush.bf16.msra.mxu0 %v1061
  %1192 = vmatmul.bf16.gmra.mxu0 %v913
  %v1193 = vpop.f32.mrf.mxu0
  %v1194 = vadd.f32 0.0, %v1193
  %v1195 = vpop.f32.mrf.mxu0
  %1196 = vdwg.mxu0
  %1197 = vmatpush.bf16.msra.mxu0 0
  %1198 = vmatpush.bf16.msra.mxu0 0
  %1199 = vmatpush.bf16.msra.mxu0 0
  %1200 = vmatpush.bf16.msra.mxu0 0
  %1201 = vmatpush.bf16.msra.mxu0 %v1105
  %1202 = vmatpush.bf16.msra.mxu0 %v1101
  %1203 = vmatpush.bf16.msra.mxu0 %v1097
  %1204 = vmatpush.bf16.msra.mxu0 %v1093
  %1205 = vmatmul.bf16.gmra.mxu0 %v1156
  %v1206 = vpop.f32.mrf.mxu0
  %v1207 = vadd.f32 %v1194, %v1206
  %v1208 = vpop.f32.mrf.mxu0
  %1209 = vdwg.mxu0
  %1210 = vmatpush.bf16.msra.mxu0 %v1090
  %1211 = vmatpush.bf16.msra.mxu0 %v1086
  %1212 = vmatpush.bf16.msra.mxu0 %v1082
  %1213 = vmatpush.bf16.msra.mxu0 %v1078
  %1214 = vmatpush.bf16.msra.mxu0 %v1074
  %1215 = vmatpush.bf16.msra.mxu0 %v1070
  %1216 = vmatpush.bf16.msra.mxu0 %v1066
  %1217 = vmatpush.bf16.msra.mxu0 %v1062
  %1218 = vmatmul.bf16.gmra.mxu0 %v913
  %v1219 = vpop.f32.mrf.mxu0
  %v1220 = vadd.f32 0.0, %v1219
  %v1221 = vpop.f32.mrf.mxu0
  %1222 = vdwg.mxu0
  %1223 = vmatpush.bf16.msra.mxu0 0
  %1224 = vmatpush.bf16.msra.mxu0 0
  %1225 = vmatpush.bf16.msra.mxu0 0
  %1226 = vmatpush.bf16.msra.mxu0 0
  %1227 = vmatpush.bf16.msra.mxu0 %v1106
  %1228 = vmatpush.bf16.msra.mxu0 %v1102
  %1229 = vmatpush.bf16.msra.mxu0 %v1098
  %1230 = vmatpush.bf16.msra.mxu0 %v1094
  %1231 = vmatmul.bf16.gmra.mxu0 %v1156
  %v1232 = vpop.f32.mrf.mxu0
  %v1233 = vadd.f32 %v1220, %v1232
  %v1234 = vpop.f32.mrf.mxu0
  %1235 = vdwg.mxu0
  %1236 = vmatpush.bf16.msra.mxu0 %v1091
  %1237 = vmatpush.bf16.msra.mxu0 %v1087
  %1238 = vmatpush.bf16.msra.mxu0 %v1083
  %1239 = vmatpush.bf16.msra.mxu0 %v1079
  %1240 = vmatpush.bf16.msra.mxu0 %v1075
  %1241 = vmatpush.bf16.msra.mxu0 %v1071
  %1242 = vmatpush.bf16.msra.mxu0 %v1067
  %1243 = vmatpush.bf16.msra.mxu0 %v1063
  %1244 = vmatmul.bf16.gmra.mxu0 %v913
  %v1245 = vpop.f32.mrf.mxu0
  %v1246 = vadd.f32 0.0, %v1245
  %v1247 = vpop.f32.mrf.mxu0
  %1248 = vdwg.mxu0
  %1249 = vmatpush.bf16.msra.mxu0 0
  %1250 = vmatpush.bf16.msra.mxu0 0
  %1251 = vmatpush.bf16.msra.mxu0 0
  %1252 = vmatpush.bf16.msra.mxu0 0
  %1253 = vmatpush.bf16.msra.mxu0 %v1107
  %1254 = vmatpush.bf16.msra.mxu0 %v1103
  %1255 = vmatpush.bf16.msra.mxu0 %v1099
  %1256 = vmatpush.bf16.msra.mxu0 %v1095
  %1257 = vmatmul.bf16.gmra.mxu0 %v1156
  %v1258 = vpop.f32.mrf.mxu0
  %v1259 = vadd.f32 %v1246, %v1258
  %v1260 = vpop.f32.mrf.mxu0
  %1261 = vdwg.mxu0
  %1263 = vst [vmem:[#allocation1] ss:$4 sm:$0xff] %v15
  %v1264 = vld.sshfl [vmem:[#allocation1] sm:$0xff pattern:$0x73625140]
  %v1265 = vld.sshfl [vmem:[#allocation1 + $0x8] sm:$0xff pattern:$0x73625140]
  %v1315 = vunpack.c.l.b16 %v160
  %v1316 = vunpack.c.h.b16 %v160
  %v1317 = vunpack.c.l.b16 %v161
  %v1318 = vunpack.c.h.b16 %v161
  %v1319 = vunpack.c.l.b16 %v162
  %v1320 = vunpack.c.h.b16 %v162
  %v1321 = vunpack.c.l.b16 %v163
  %v1322 = vunpack.c.h.b16 %v163
  %v1323 = vunpack.c.l.b16 %v164
  %v1324 = vunpack.c.h.b16 %v164
  %v1325 = vunpack.c.l.b16 %v165
  %v1326 = vunpack.c.h.b16 %v165
  %v1327 = vunpack.c.l.b16 %v166
  %v1328 = vunpack.c.h.b16 %v166
  %v1329 = vunpack.c.l.b16 %v167
  %v1330 = vunpack.c.h.b16 %v167
  %v1331 = vunpack.c.l.b16 %v168
  %v1332 = vunpack.c.h.b16 %v168
  %v1333 = vunpack.c.l.b16 %v169
  %v1334 = vunpack.c.h.b16 %v169
  %v1335 = vunpack.c.l.b16 %v170
  %v1336 = vunpack.c.h.b16 %v170
  %v1337 = vunpack.c.l.b16 %v171
  %v1338 = vunpack.c.h.b16 %v171
  %v1339 = vunpack.c.l.b16 %v172
  %v1340 = vunpack.c.h.b16 %v172
  %v1341 = vunpack.c.l.b16 %v173
  %v1342 = vunpack.c.h.b16 %v173
  %v1343 = vunpack.c.l.b16 %v174
  %v1344 = vunpack.c.h.b16 %v174
  %v1345 = vunpack.c.l.b16 %v175
  %v1346 = vunpack.c.h.b16 %v175
  %v1347 = vunpack.c.l.b16 %v176
  %v1348 = vunpack.c.h.b16 %v176
  %v1349 = vunpack.c.l.b16 %v177
  %v1350 = vunpack.c.h.b16 %v177
  %v1351 = vunpack.c.l.b16 %v178
  %v1352 = vunpack.c.h.b16 %v178
  %v1353 = vunpack.c.l.b16 %v179
  %v1354 = vunpack.c.h.b16 %v179
  %v1355 = vunpack.c.l.b16 %v180
  %v1356 = vunpack.c.h.b16 %v180
  %v1357 = vunpack.c.l.b16 %v181
  %v1358 = vunpack.c.h.b16 %v181
  %v1359 = vunpack.c.l.b16 %v182
  %v1360 = vunpack.c.h.b16 %v182
  %v1361 = vunpack.c.l.b16 %v183
  %v1362 = vunpack.c.h.b16 %v183
  %v1363 = vunpack.c.l.b16 %v184
  %v1364 = vunpack.c.h.b16 %v184
  %v1365 = vunpack.c.l.b16 %v185
  %v1366 = vunpack.c.h.b16 %v185
  %v1367 = vunpack.c.l.b16 %v186
  %v1368 = vunpack.c.h.b16 %v186
  %v1369 = vunpack.c.l.b16 %v187
  %v1370 = vunpack.c.h.b16 %v187
  %v1371 = vunpack.c.l.b16 %v188
  %v1372 = vunpack.c.h.b16 %v188
  %v1373 = vunpack.c.l.b16 %v189
  %v1374 = vunpack.c.h.b16 %v189
  %v1375 = vunpack.c.l.b16 %v190
  %v1376 = vunpack.c.h.b16 %v190
  %v1377 = vunpack.c.l.b16 %v191
  %v1378 = vunpack.c.h.b16 %v191
  %v1379 = vunpack.c.l.b16 %v192
  %v1380 = vunpack.c.h.b16 %v192
  %v1381 = vunpack.c.l.b16 %v193
  %v1382 = vunpack.c.h.b16 %v193
  %v1383 = vunpack.c.l.b16 %v194
  %v1384 = vunpack.c.h.b16 %v194
  %v1385 = vunpack.c.l.b16 %v195
  %v1386 = vunpack.c.h.b16 %v195
  %v1387 = vunpack.c.l.b16 %v196
  %v1388 = vunpack.c.h.b16 %v196
  %v1389 = vunpack.c.l.b16 %v197
  %v1390 = vunpack.c.h.b16 %v197
  %v1391 = vunpack.c.l.b16 %v198
  %v1392 = vunpack.c.h.b16 %v198
  %v1393 = vunpack.c.l.b16 %v199
  %v1394 = vunpack.c.h.b16 %v199
  %v1395 = vunpack.c.l.b16 %v200
  %v1396 = vunpack.c.h.b16 %v200
  %v1397 = vunpack.c.l.b16 %v201
  %v1398 = vunpack.c.h.b16 %v201
  %v1399 = vunpack.c.l.b16 %v202
  %v1400 = vunpack.c.h.b16 %v202
  %v1401 = vunpack.c.l.b16 %v203
  %v1402 = vunpack.c.h.b16 %v203
  %v1403 = vunpack.c.l.b16 %v204
  %v1404 = vunpack.c.h.b16 %v204
  %v1405 = vunpack.c.l.b16 %v205
  %v1406 = vunpack.c.h.b16 %v205
  %v1407 = vunpack.c.l.b16 %v206
  %v1408 = vunpack.c.h.b16 %v206
  %v1409 = vunpack.c.l.b16 %v207
  %v1410 = vunpack.c.h.b16 %v207
  %v1411 = vpack.c.b16 %v1319, %v1315
  %v1412 = vpack.c.b16 %v1320, %v1316
  %v1413 = vpack.c.b16 %v1321, %v1317
  %v1414 = vpack.c.b16 %v1322, %v1318
  %v1415 = vpack.c.b16 %v1327, %v1323
  %v1416 = vpack.c.b16 %v1328, %v1324
  %v1417 = vpack.c.b16 %v1329, %v1325
  %v1418 = vpack.c.b16 %v1330, %v1326
  %v1419 = vpack.c.b16 %v1335, %v1331
  %v1420 = vpack.c.b16 %v1336, %v1332
  %v1421 = vpack.c.b16 %v1337, %v1333
  %v1422 = vpack.c.b16 %v1338, %v1334
  %v1423 = vpack.c.b16 %v1343, %v1339
  %v1424 = vpack.c.b16 %v1344, %v1340
  %v1425 = vpack.c.b16 %v1345, %v1341
  %v1426 = vpack.c.b16 %v1346, %v1342
  %v1427 = vpack.c.b16 %v1351, %v1347
  %v1428 = vpack.c.b16 %v1352, %v1348
  %v1429 = vpack.c.b16 %v1353, %v1349
  %v1430 = vpack.c.b16 %v1354, %v1350
  %v1431 = vpack.c.b16 %v1359, %v1355
  %v1432 = vpack.c.b16 %v1360, %v1356
  %v1433 = vpack.c.b16 %v1361, %v1357
  %v1434 = vpack.c.b16 %v1362, %v1358
  %v1435 = vpack.c.b16 %v1367, %v1363
  %v1436 = vpack.c.b16 %v1368, %v1364
  %v1437 = vpack.c.b16 %v1369, %v1365
  %v1438 = vpack.c.b16 %v1370, %v1366
  %v1439 = vpack.c.b16 %v1375, %v1371
  %v1440 = vpack.c.b16 %v1376, %v1372
  %v1441 = vpack.c.b16 %v1377, %v1373
  %v1442 = vpack.c.b16 %v1378, %v1374
  %v1443 = vpack.c.b16 %v1383, %v1379
  %v1444 = vpack.c.b16 %v1384, %v1380
  %v1445 = vpack.c.b16 %v1385, %v1381
  %v1446 = vpack.c.b16 %v1386, %v1382
  %v1447 = vpack.c.b16 %v1391, %v1387
  %v1448 = vpack.c.b16 %v1392, %v1388
  %v1449 = vpack.c.b16 %v1393, %v1389
  %v1450 = vpack.c.b16 %v1394, %v1390
  %v1451 = vpack.c.b16 %v1399, %v1395
  %v1452 = vpack.c.b16 %v1400, %v1396
  %v1453 = vpack.c.b16 %v1401, %v1397
  %v1454 = vpack.c.b16 %v1402, %v1398
  %v1455 = vpack.c.b16 %v1407, %v1403
  %v1456 = vpack.c.b16 %v1408, %v1404
  %v1457 = vpack.c.b16 %v1409, %v1405
  %v1458 = vpack.c.b16 %v1410, %v1406
  %v1507 = vsel %vm453, %v1265, 0
  %1509 = vmatpush.bf16.msra.mxu0 %v1439
  %1510 = vmatpush.bf16.msra.mxu0 %v1435
  %1511 = vmatpush.bf16.msra.mxu0 %v1431
  %1512 = vmatpush.bf16.msra.mxu0 %v1427
  %1513 = vmatpush.bf16.msra.mxu0 %v1423
  %1514 = vmatpush.bf16.msra.mxu0 %v1419
  %1515 = vmatpush.bf16.msra.mxu0 %v1415
  %1516 = vmatpush.bf16.msra.mxu0 %v1411
  %1517 = vmatmul.bf16.gmra.mxu0 %v1264
  %v1518 = vpop.f32.mrf.mxu0
  %v1519 = vadd.f32 0.0, %v1518
  %v1520 = vpop.f32.mrf.mxu0
  %1521 = vdwg.mxu0
  %1522 = vmatpush.bf16.msra.mxu0 0
  %1523 = vmatpush.bf16.msra.mxu0 0
  %1524 = vmatpush.bf16.msra.mxu0 0
  %1525 = vmatpush.bf16.msra.mxu0 0
  %1526 = vmatpush.bf16.msra.mxu0 %v1455
  %1527 = vmatpush.bf16.msra.mxu0 %v1451
  %1528 = vmatpush.bf16.msra.mxu0 %v1447
  %1529 = vmatpush.bf16.msra.mxu0 %v1443
  %1530 = vmatmul.bf16.gmra.mxu0 %v1507
  %v1531 = vpop.f32.mrf.mxu0
  %v1532 = vadd.f32 %v1519, %v1531
  %v1533 = vpop.f32.mrf.mxu0
  %1534 = vdwg.mxu0
  %1535 = vmatpush.bf16.msra.mxu0 %v1440
  %1536 = vmatpush.bf16.msra.mxu0 %v1436
  %1537 = vmatpush.bf16.msra.mxu0 %v1432
  %1538 = vmatpush.bf16.msra.mxu0 %v1428
  %1539 = vmatpush.bf16.msra.mxu0 %v1424
  %1540 = vmatpush.bf16.msra.mxu0 %v1420
  %1541 = vmatpush.bf16.msra.mxu0 %v1416
  %1542 = vmatpush.bf16.msra.mxu0 %v1412
  %1543 = vmatmul.bf16.gmra.mxu0 %v1264
  %v1544 = vpop.f32.mrf.mxu0
  %v1545 = vadd.f32 0.0, %v1544
  %v1546 = vpop.f32.mrf.mxu0
  %1547 = vdwg.mxu0
  %1548 = vmatpush.bf16.msra.mxu0 0
  %1549 = vmatpush.bf16.msra.mxu0 0
  %1550 = vmatpush.bf16.msra.mxu0 0
  %1551 = vmatpush.bf16.msra.mxu0 0
  %1552 = vmatpush.bf16.msra.mxu0 %v1456
  %1553 = vmatpush.bf16.msra.mxu0 %v1452
  %1554 = vmatpush.bf16.msra.mxu0 %v1448
  %1555 = vmatpush.bf16.msra.mxu0 %v1444
  %1556 = vmatmul.bf16.gmra.mxu0 %v1507
  %v1557 = vpop.f32.mrf.mxu0
  %v1558 = vadd.f32 %v1545, %v1557
  %v1559 = vpop.f32.mrf.mxu0
  %1560 = vdwg.mxu0
  %1561 = vmatpush.bf16.msra.mxu0 %v1441
  %1562 = vmatpush.bf16.msra.mxu0 %v1437
  %1563 = vmatpush.bf16.msra.mxu0 %v1433
  %1564 = vmatpush.bf16.msra.mxu0 %v1429
  %1565 = vmatpush.bf16.msra.mxu0 %v1425
  %1566 = vmatpush.bf16.msra.mxu0 %v1421
  %1567 = vmatpush.bf16.msra.mxu0 %v1417
  %1568 = vmatpush.bf16.msra.mxu0 %v1413
  %1569 = vmatmul.bf16.gmra.mxu0 %v1264
  %v1570 = vpop.f32.mrf.mxu0
  %v1571 = vadd.f32 0.0, %v1570
  %v1572 = vpop.f32.mrf.mxu0
  %1573 = vdwg.mxu0
  %1574 = vmatpush.bf16.msra.mxu0 0
  %1575 = vmatpush.bf16.msra.mxu0 0
  %1576 = vmatpush.bf16.msra.mxu0 0
  %1577 = vmatpush.bf16.msra.mxu0 0
  %1578 = vmatpush.bf16.msra.mxu0 %v1457
  %1579 = vmatpush.bf16.msra.mxu0 %v1453
  %1580 = vmatpush.bf16.msra.mxu0 %v1449
  %1581 = vmatpush.bf16.msra.mxu0 %v1445
  %1582 = vmatmul.bf16.gmra.mxu0 %v1507
  %v1583 = vpop.f32.mrf.mxu0
  %v1584 = vadd.f32 %v1571, %v1583
  %v1585 = vpop.f32.mrf.mxu0
  %1586 = vdwg.mxu0
  %1587 = vmatpush.bf16.msra.mxu0 %v1442
  %1588 = vmatpush.bf16.msra.mxu0 %v1438
  %1589 = vmatpush.bf16.msra.mxu0 %v1434
  %1590 = vmatpush.bf16.msra.mxu0 %v1430
  %1591 = vmatpush.bf16.msra.mxu0 %v1426
  %1592 = vmatpush.bf16.msra.mxu0 %v1422
  %1593 = vmatpush.bf16.msra.mxu0 %v1418
  %1594 = vmatpush.bf16.msra.mxu0 %v1414
  %1595 = vmatmul.bf16.gmra.mxu0 %v1264
  %v1596 = vpop.f32.mrf.mxu0
  %v1597 = vadd.f32 0.0, %v1596
  %v1598 = vpop.f32.mrf.mxu0
  %1599 = vdwg.mxu0
  %1600 = vmatpush.bf16.msra.mxu0 0
  %1601 = vmatpush.bf16.msra.mxu0 0
  %1602 = vmatpush.bf16.msra.mxu0 0
  %1603 = vmatpush.bf16.msra.mxu0 0
  %1604 = vmatpush.bf16.msra.mxu0 %v1458
  %1605 = vmatpush.bf16.msra.mxu0 %v1454
  %1606 = vmatpush.bf16.msra.mxu0 %v1450
  %1607 = vmatpush.bf16.msra.mxu0 %v1446
  %1608 = vmatmul.bf16.gmra.mxu0 %v1507
  %v1609 = vpop.f32.mrf.mxu0
  %v1610 = vadd.f32 %v1597, %v1609
  %v1611 = vpop.f32.mrf.mxu0
  %1612 = vdwg.mxu0
  %v1613 = vtanh.pop %v479
  %v1614 = vtanh.pop %v505
  %v1615 = vtanh.pop %v531
  %v1616 = vtanh.pop %v557
  %v1617 = vtanh.pop %v830
  %v1618 = vtanh.pop %v856
  %v1619 = vtanh.pop %v882
  %v1620 = vtanh.pop %v908
  %v1621 = vtanh.pop %v1181
  %v1622 = vtanh.pop %v1207
  %v1623 = vtanh.pop %v1233
  %v1624 = vtanh.pop %v1259
  %v1625 = vtanh.pop %v1532
  %v1626 = vtanh.pop %v1558
  %v1627 = vtanh.pop %v1584
  %v1628 = vtanh.pop %v1610
  %v1645 = vrot.slane %v1614, 4
  %v1646 = vrot.slane %v1616, 4
  %v1647 = vrot.slane %v1618, 4
  %v1648 = vrot.slane %v1620, 4
  %v1649 = vrot.slane %v1622, 4
  %v1650 = vrot.slane %v1624, 4
  %v1651 = vrot.slane %v1626, 4
  %v1652 = vrot.slane %v1628, 4
  %vm1653 = vcmask 1043456
  %v1654 = vsel %vm1653, %v1613, %v1645
  %v1655 = vsel %vm1653, %v1615, %v1646
  %v1656 = vsel %vm1653, %v1617, %v1647
  %v1657 = vsel %vm1653, %v1619, %v1648
  %v1658 = vsel %vm1653, %v1621, %v1649
  %v1659 = vsel %vm1653, %v1623, %v1650
  %v1660 = vsel %vm1653, %v1625, %v1651
  %v1661 = vsel %vm1653, %v1627, %v1652
  %1670 = vst [vmem:[%s2] sm:$0x77] %v1654
  %1671 = vst [vmem:[%s2 + $0x8] sm:$0x77] %v1655
  %1672 = vst [vmem:[%s2 + $0x10] sm:$0x77] %v1656
  %1673 = vst [vmem:[%s2 + $0x18] sm:$0x77] %v1657
  %1674 = vst [vmem:[%s2 + $0x20] sm:$0x77] %v1658
  %1675 = vst [vmem:[%s2 + $0x28] sm:$0x77] %v1659
  %1676 = vst [vmem:[%s2 + $0x30] sm:$0x77] %v1660
  %1677 = vst [vmem:[%s2 + $0x38] sm:$0x77] %v1661
  // Predicated region
  $region10: #{generator_32_forward.7} parent=0 // pred_check
    _
  $region11: #{generator_32_forward.7} parent=0 // pred_check_branch
    %1679 = sbr.rel (0) target = $region13
  $region12: #{generator_32_forward.7} parent=0 // pred_region
    _
  $region13: #{generator_32_forward.7} parent=0 // pred_fallthru
    _
  // Predicated region
  $region14: #{generator_32_forward.7} parent=0 // pred_check
    _
  $region15: #{generator_32_forward.7} parent=0 // pred_check_branch
    %1681 = sbr.rel (0) target = $region17
  $region16: #{generator_32_forward.7} parent=0 // pred_region
    _
  $region17: #{generator_32_forward.7} parent=0 // pred_fallthru
    _

</llo_original>
